<compile_context>
chip_gen: v6e
topology: v6e:2x2x1
jax: 0.10.0
libtpu: 0.0.40
codegen_flags: <defaults>
</compile_context>

<pallas_src>
import functools

import jax
import jax.numpy as jnp
from jax import lax
from jax.experimental import pallas as pl
from jax.experimental.pallas import tpu as pltpu

BN_EPS = 1e-5


# ----------------------------- Pallas kernels ------------------------------

def _conv_stage_kernel(p_ref, w_ref, fold_ref, expand_ref, g_ref, be_ref,
                       o_ref, y_ref, s1_ref, s2_ref,
                       *, inv_m, pooled, block_rows):
    """Fused conv stage on lane-packed patches.

    Grid axis 0 walks row-blocks of the wide patch matrix (sequential):
      every step : matmul (bf16 in, f32 acc) into the y VMEM scratch and
                   accumulate per-lane sum / sum^2 in tiny VMEM scratches.
      last step  : fold stats to per-channel, compute train-mode BN scale /
                   shift, re-expand to the packed lane layout, apply BN+ReLU
                   to the whole y scratch, (optionally) take the 2x2-pool max
                   over the four contiguous quarter row-blocks, write output.
    """
    i = pl.program_id(0)
    nb = pl.num_programs(0)

    @pl.when(i == 0)
    def _():
        s1_ref[...] = jnp.zeros_like(s1_ref)
        s2_ref[...] = jnp.zeros_like(s2_ref)

    yb = jnp.dot(p_ref[...], w_ref[...], preferred_element_type=jnp.float32)
    if block_rows == y_ref.shape[0]:
        y_ref[...] = yb
    else:
        row0 = pl.multiple_of(i * block_rows, 8)
        y_ref[pl.ds(row0, block_rows), :] = yb
    s1_ref[...] += jnp.sum(yb, axis=0, keepdims=True)
    s2_ref[...] += jnp.sum(yb * yb, axis=0, keepdims=True)

    @pl.when(i == nb - 1)
    def _():
        # Fold (group, channel)-packed lane sums down to per-channel sums.
        sum_c = jnp.dot(s1_ref[...], fold_ref[...],
                        preferred_element_type=jnp.float32)
        ssq_c = jnp.dot(s2_ref[...], fold_ref[...],
                        preferred_element_type=jnp.float32)
        mean = sum_c * inv_m
        var = ssq_c * inv_m - mean * mean
        scale_c = g_ref[...] * lax.rsqrt(var + BN_EPS)
        shift_c = be_ref[...] - mean * scale_c
        # Re-expand per-channel scale/shift to the packed lane layout.
        scale = jnp.dot(scale_c, expand_ref[...],
                        preferred_element_type=jnp.float32)
        shift = jnp.dot(shift_c, expand_ref[...],
                        preferred_element_type=jnp.float32)
        z = jnp.maximum(y_ref[...] * scale + shift, 0.0)
        if pooled:
            q = z.shape[0] // 4
            z = jnp.maximum(jnp.maximum(z[0:q], z[q:2 * q]),
                            jnp.maximum(z[2 * q:3 * q], z[3 * q:4 * q]))
        o_ref[...] = z.astype(o_ref.dtype)


def _linear_kernel(x_ref, w_ref, b_ref, o_ref):
    o_ref[...] = jnp.dot(x_ref[...], w_ref[...],
                         preferred_element_type=jnp.float32) + b_ref[...]


# ------------------------------ static planning -----------------------------

def _pick_block_rows(r):
    """Largest 8-aligned block giving a small (2-8 step) pipelined grid."""
    for nb in (4, 3, 5, 2, 6, 7, 8):
        if r % nb == 0 and (r // nb) % 8 == 0:
            return r // nb
    return r


def _stage_plan(b, h, w, cin, cout, pooled):
    """Pure-Python tiling plan for one conv stage (all static ints)."""
    ho, wo = (h - 1) // 2 + 1, (w - 1) // 2 + 1
    hq, wq = (ho // 2, wo // 2) if pooled else (ho, wo)
    npos = b * hq * wq                       # output positions (per quarter)
    gmax = max(1, 128 // cout)
    g = max(d for d in range(1, min(npos, gmax) + 1) if npos % d == 0)
    lw = g * cout                            # packed lane width (128 here)
    kdim = g * 9 * cin
    rows_q = npos // g                       # packed rows per pool-quarter
    r = 4 * rows_q if pooled else rows_q     # total patch rows
    return dict(ho=ho, wo=wo, hq=hq, wq=wq, g=g, lw=lw, kdim=kdim,
                r=r, out_rows=rows_q, block_rows=_pick_block_rows(r),
                inv_m=1.0 / float(b * ho * wo))


# ------------------------------ JAX-glue helpers ----------------------------

def _build_patches(x, plan, pooled):
    """im2col on a bf16 NHWC activation with lane packing: each row packs `g`
    consecutive output positions (flattened (B, H, W) order).  When pooled,
    the four 2x2-pool corners are the outermost (quarter-major) row blocks so
    MaxPool2d(2) becomes a max over four contiguous row slices in the kernel.

    Row order : (quarter, flat(B,Hq,Wq) // g)   [pooled]
                (flat(B,Ho,Wo) // g,)           [unpooled]
    Lane order: (pos-in-group, tap kh*3+kw, cin)
    """
    b, _, _, c = x.shape
    ho, wo = plan["ho"], plan["wo"]
    xp = jnp.pad(x, ((0, 0), (1, 1), (1, 1), (0, 0)))
    taps = [xp[:, kh:kh + 2 * (ho - 1) + 1:2, kw:kw + 2 * (wo - 1) + 1:2, :]
            for kh in range(3) for kw in range(3)]
    p = jnp.stack(taps, axis=3)                        # (B, Ho, Wo, 9, C)
    if pooled:
        hq, wq = plan["hq"], plan["wq"]
        p = p.reshape(b, hq, 2, wq, 2, 9, c)
        p = p.transpose(2, 4, 0, 1, 3, 5, 6)           # (2, 2, B, Hq, Wq, 9, C)
    return p.reshape(plan["r"], plan["kdim"])          # pure reshape (grouping)


def conv_stage(x, st, plan, pooled):
    """Conv2d(k=3, s=2, p=1) [bias dropped: cancelled by train-mode BN] +
    BatchNorm2d (training stats) + ReLU (+ optional MaxPool2d(2)), all inside
    a single pallas_call.  x is bf16 NHWC; returns a bf16 NHWC activation."""
    b = x.shape[0]
    cout = st["gamma"].shape[1]
    r, kdim, lw = plan["r"], plan["kdim"], plan["lw"]
    block_rows, out_rows = plan["block_rows"], plan["out_rows"]
    nb = r // block_rows

    patches = _build_patches(x, plan, pooled)

    kernel = functools.partial(_conv_stage_kernel, inv_m=plan["inv_m"],
                               pooled=pooled, block_rows=block_rows)

    out2d = pl.pallas_call(
        kernel,
        grid=(nb,),
        in_specs=[
            pl.BlockSpec((block_rows, kdim), lambda i: (i, 0)),
            pl.BlockSpec((kdim, lw), lambda i: (0, 0)),
            pl.BlockSpec((lw, cout), lambda i: (0, 0)),
            pl.BlockSpec((cout, lw), lambda i: (0, 0)),
            pl.BlockSpec((1, cout), lambda i: (0, 0)),
            pl.BlockSpec((1, cout), lambda i: (0, 0)),
        ],
        out_specs=pl.BlockSpec((out_rows, lw), lambda i: (0, 0)),
        out_shape=jax.ShapeDtypeStruct((out_rows, lw), jnp.bfloat16),
        scratch_shapes=[
            pltpu.VMEM((r, lw), jnp.float32),   # full pre-pool conv output
            pltpu.VMEM((1, lw), jnp.float32),   # per-lane sum
            pltpu.VMEM((1, lw), jnp.float32),   # per-lane sum of squares
        ],
        compiler_params=pltpu.CompilerParams(
            dimension_semantics=("arbitrary",),
            vmem_limit_bytes=32 * 1024 * 1024),
    )(patches, st["w_bd"], st["fold"], st["expand"], st["gamma"], st["beta"])

    return out2d.reshape(b, plan["hq"], plan["wq"], cout)   # free reshape


def linear(x_bf16, w_bf16, bias_f32):
    """x: (M, K) bf16, w: (K, N) bf16, bias: (1, N) f32 -> (M, N) f32."""
    m, k = x_bf16.shape
    n = int(w_bf16.shape[1])
    return pl.pallas_call(
        _linear_kernel,
        grid=(1,),
        in_specs=[
            pl.BlockSpec((m, k), lambda i: (0, 0)),
            pl.BlockSpec((k, n), lambda i: (0, 0)),
            pl.BlockSpec((1, n), lambda i: (0, 0)),
        ],
        out_specs=pl.BlockSpec((m, n), lambda i: (0, 0)),
        out_shape=jax.ShapeDtypeStruct((m, n), jnp.float32),
        compiler_params=pltpu.CompilerParams(
            vmem_limit_bytes=32 * 1024 * 1024),
    )(x_bf16, w_bf16, bias_f32)


# ----------------------------- param preparation ----------------------------

_STAGE_DEFS = (("w1", "g1", "be1", True),
               ("w2", "g2", "be2", True),
               ("w3", "g3", "be3", False))


def prepare_encoder(params, input_shape):
    """Precompute (OUTSIDE jit, once) everything derived from the weights:
    block-diagonal packed conv weights (bf16), fold/expand matrices, BN
    params, and the NCHW-flatten-permuted bf16 FC weight.  Conv biases are
    intentionally unused: a conv bias immediately followed by train-mode
    BatchNorm is cancelled exactly by the batch-mean subtraction."""
    b, cin, h, w = input_shape
    stages = []
    hh, ww = h, w
    for wname, gname, bname, pooled in _STAGE_DEFS:
        w_oihw = params[wname]
        cout = int(w_oihw.shape[0])
        plan = _stage_plan(b, hh, ww, cin, cout, pooled)
        g = plan["g"]
        w2d = jnp.transpose(w_oihw, (2, 3, 1, 0)).reshape(9 * cin, cout)
        w_bd = jnp.kron(jnp.eye(g, dtype=jnp.float32),
                        w2d.astype(jnp.float32)).astype(jnp.bfloat16)
        fold = jnp.kron(jnp.ones((g, 1), jnp.float32),
                        jnp.eye(cout, dtype=jnp.float32))       # (lw, cout)
        expand = jnp.kron(jnp.ones((1, g), jnp.float32),
                          jnp.eye(cout, dtype=jnp.float32))     # (cout, lw)
        stages.append(dict(
            w_bd=w_bd, fold=fold, expand=expand,
            gamma=params[gname].astype(jnp.float32).reshape(1, cout),
            beta=params[bname].astype(jnp.float32).reshape(1, cout)))
        cin, hh, ww = cout, plan["hq"], plan["wq"]

    # PyTorch flattens NCHW order; fold that permutation into the FC weight
    # so the NHWC activation flatten is free.  Stream the weight as bf16.
    cc, hq, wq = cin, hh, ww
    w_fc = params["w_fc"].reshape(-1, cc, hq, wq).transpose(0, 2, 3, 1)
    w_fc = w_fc.reshape(-1, hq * wq * cc).T.astype(jnp.bfloat16)  # (HWC, 128)
    return dict(stages=stages, w_fc=w_fc,
                b_fc=params["b_fc"].astype(jnp.float32).reshape(1, -1))


# --------------------------------- forward ----------------------------------

def encoder_forward(prepared, x_nchw):
    # Cast to bf16 BEFORE im2col and do a single NCHW->NHWC transpose; the
    # 9x-expanded tap stacks downstream then move half the bytes.
    x = jnp.transpose(x_nchw.astype(jnp.bfloat16), (0, 2, 3, 1))
    for st, (_, _, _, pooled) in zip(prepared["stages"], _STAGE_DEFS):
        b, h, w, cin = x.shape
        cout = st["gamma"].shape[1]
        plan = _stage_plan(b, h, w, cin, cout, pooled)
        x = conv_stage(x, st, plan, pooled)
    b, hh, ww, cc = x.shape
    feat = x.reshape(b, hh * ww * cc)            # NHWC flatten (free, bf16)
    return linear(feat, prepared["w_fc"], prepared["b_fc"])


# ------------------------- params / reference / main ------------------------

def init_params(key):
    ks = jax.random.split(key, 14)

    def conv_init(kw, kb, cout, cin):
        fan_in = cin * 9
        w = jax.random.normal(kw, (cout, cin, 3, 3), jnp.float32) / jnp.sqrt(fan_in)
        b = jax.random.uniform(kb, (cout,), jnp.float32, -1.0, 1.0) / jnp.sqrt(fan_in)
        return w, b

    def bn_init(kg, kb, c):
        g = 1.0 + 0.1 * jax.random.normal(kg, (c,), jnp.float32)
        be = 0.1 * jax.random.normal(kb, (c,), jnp.float32)
        return g, be

    w1, b1 = conv_init(ks[0], ks[1], 8, 3)
    w2, b2 = conv_init(ks[2], ks[3], 16, 8)
    w3, b3 = conv_init(ks[4], ks[5], 32, 16)
    g1, be1 = bn_init(ks[6], ks[7], 8)
    g2, be2 = bn_init(ks[8], ks[9], 16)
    g3, be3 = bn_init(ks[10], ks[11], 32)
    w_fc = jax.random.normal(ks[12], (128, 32 * 5 * 14), jnp.float32) / jnp.sqrt(2240.0)
    b_fc = jax.random.uniform(ks[13], (128,), jnp.float32, -1.0, 1.0) / jnp.sqrt(2240.0)
    return dict(w1=w1, b1=b1, g1=g1, be1=be1,
                w2=w2, b2=b2, g2=g2, be2=be2,
                w3=w3, b3=b3, g3=g3, be3=be3,
                w_fc=w_fc, b_fc=b_fc)


def reference_forward(params, x):
    """Pure-JAX reference (NCHW, high precision) of the PyTorch forward."""
    prec = lax.Precision.HIGHEST

    def conv(x, w, b):
        y = lax.conv_general_dilated(
            x, w, window_strides=(2, 2), padding=((1, 1), (1, 1)),
            dimension_numbers=("NCHW", "OIHW", "NCHW"), precision=prec)
        return y + b.reshape(1, -1, 1, 1)

    def bn_relu(x, g, be):
        mean = jnp.mean(x, axis=(0, 2, 3), keepdims=True)
        var = jnp.mean(jnp.square(x - mean), axis=(0, 2, 3), keepdims=True)
        xh = (x - mean) * lax.rsqrt(var + BN_EPS)
        return jnp.maximum(xh * g.reshape(1, -1, 1, 1) + be.reshape(1, -1, 1, 1), 0.0)

    def pool(x):
        b, c, h, w = x.shape
        return jnp.max(x.reshape(b, c, h // 2, 2, w // 2, 2), axis=(3, 5))

    x = pool(bn_relu(conv(x, params["w1"], params["b1"]), params["g1"], params["be1"]))
    x = pool(bn_relu(conv(x, params["w2"], params["b2"]), params["g2"], params["be2"]))
    x = bn_relu(conv(x, params["w3"], params["b3"]), params["g3"], params["be3"])
    feat = x.reshape(x.shape[0], -1)
    return jnp.dot(feat, params["w_fc"].T, precision=prec) + params["b_fc"]


if __name__ == "__main__":
    key = jax.random.PRNGKey(0)
    pkey, xkey = jax.random.split(key)
    params = init_params(pkey)

    # Smallest input consistent with fc = Linear(32*5*14, 128):
    # (B, 3, 160, 448) -> conv/pool stack -> (B, 32, 5, 14).
    x = jax.random.normal(xkey, (2, 3, 160, 448), jnp.float32)

    prepared = prepare_encoder(params, x.shape)      # once, outside jit

    out = jax.jit(encoder_forward)(prepared, x)
    out = jax.block_until_ready(out)
    assert out.shape == (2, 128), out.shape

    ref = jax.jit(reference_forward)(params, x)
    ref = jax.block_until_ready(ref)
    assert bool(jnp.allclose(out, ref, rtol=5e-2, atol=5e-2)), \
        float(jnp.max(jnp.abs(out - ref)))

    print("KERNEL_OK")
</pallas_src>

<mosaic_0001>
module attributes {stable_mosaic.version = 11 : i64} {
  func.func @_conv_stage_kernel(%arg0: i32, %arg1: memref<560x432xbf16, #tpu.memory_space<vmem>>, %arg2: memref<432x128xbf16, #tpu.memory_space<vmem>>, %arg3: memref<128x8xf32, #tpu.memory_space<vmem>>, %arg4: memref<8x128xf32, #tpu.memory_space<vmem>>, %arg5: memref<1x8xf32, #tpu.memory_space<vmem>>, %arg6: memref<1x8xf32, #tpu.memory_space<vmem>>, %arg7: memref<560x128xbf16, #tpu.memory_space<vmem>>, %arg8: memref<2240x128xf32, #tpu.memory_space<vmem>>, %arg9: memref<1x128xf32, #tpu.memory_space<vmem>>, %arg10: memref<1x128xf32, #tpu.memory_space<vmem>>) attributes {dimension_semantics = [#tpu.dimension_semantics<arbitrary>], iteration_bounds = array<i64: 4>, scalar_prefetch = 0 : i64, scratch_operands = 3 : i64, tpu.core_type = #tpu.core_type<tc>, window_params = [{transform_indices = @transform_0, window_bounds = array<i64: 560, 432>}, {pipeline_mode = #tpu.pipeline_mode<synchronous>, transform_indices = @transform_1, window_bounds = array<i64: 432, 128>}, {pipeline_mode = #tpu.pipeline_mode<synchronous>, transform_indices = @transform_2, window_bounds = array<i64: 128, 8>}, {pipeline_mode = #tpu.pipeline_mode<synchronous>, transform_indices = @transform_3, window_bounds = array<i64: 8, 128>}, {pipeline_mode = #tpu.pipeline_mode<synchronous>, transform_indices = @transform_4, window_bounds = array<i64: 1, 8>}, {pipeline_mode = #tpu.pipeline_mode<synchronous>, transform_indices = @transform_5, window_bounds = array<i64: 1, 8>}, {pipeline_mode = #tpu.pipeline_mode<synchronous>, transform_indices = @transform_6, window_bounds = array<i64: 560, 128>}]} {
    %c0_i32 = arith.constant 0 : i32
    %0 = arith.cmpi eq, %arg0, %c0_i32 : i32
    %1 = arith.extui %0 : i1 to i32
    %c0_i32_0 = arith.constant 0 : i32
    %2 = arith.cmpi ne, %1, %c0_i32_0 : i32
    scf.if %2 {
      %cst_16 = arith.constant 0.000000e+00 : f32
      %24 = vector.broadcast %cst_16 : f32 to vector<1x128xf32>
      %c0_17 = arith.constant 0 : index
      %c0_18 = arith.constant 0 : index
      %25 = vector.load %arg9[%c0_17, %c0_18] : memref<1x128xf32, #tpu.memory_space<vmem>>, vector<1x128xf32>
      tpu.vector_store %arg9[%c0_17, %c0_18], %24 {strides = array<i32>} : memref<1x128xf32, #tpu.memory_space<vmem>>, vector<1x128xf32>,
      %cst_19 = arith.constant 0.000000e+00 : f32
      %26 = vector.broadcast %cst_19 : f32 to vector<1x128xf32>
      %c0_20 = arith.constant 0 : index
      %c0_21 = arith.constant 0 : index
      %27 = vector.load %arg10[%c0_20, %c0_21] : memref<1x128xf32, #tpu.memory_space<vmem>>, vector<1x128xf32>
      tpu.vector_store %arg10[%c0_20, %c0_21], %26 {strides = array<i32>} : memref<1x128xf32, #tpu.memory_space<vmem>>, vector<1x128xf32>,
    } else {
    }
    %c0 = arith.constant 0 : index
    %c0_1 = arith.constant 0 : index
    %3 = vector.load %arg1[%c0, %c0_1] : memref<560x432xbf16, #tpu.memory_space<vmem>>, vector<560x432xbf16>
    %c0_2 = arith.constant 0 : index
    %c0_3 = arith.constant 0 : index
    %4 = vector.load %arg2[%c0_2, %c0_3] : memref<432x128xbf16, #tpu.memory_space<vmem>>, vector<432x128xbf16>
    %cst = arith.constant dense<0.000000e+00> : vector<560x128xf32>
    %5 = tpu.matmul %3, %4, %cst {dimension_numbers = #tpu.dot_dimension_numbers<[1], [0], [0], [1], [0, 0, 1, 1], [], []>} : vector<560x432xbf16>, vector<432x128xbf16>, vector<560x128xf32> -> vector<560x128xf32>
    %c560_i32 = arith.constant 560 : i32
    %6 = arith.muli %arg0, %c560_i32 : i32
    %7 = tpu.assume_multiple %6, 8 : i32
    %8 = arith.index_cast %7 : i32 to index
    %c0_4 = arith.constant 0 : index
    %9 = vector.load %arg8[%8, %c0_4] : memref<2240x128xf32, #tpu.memory_space<vmem>>, vector<560x128xf32>
    tpu.vector_store %arg8[%8, %c0_4], %5 {strides = array<i32>} : memref<2240x128xf32, #tpu.memory_space<vmem>>, vector<560x128xf32>,
    %c0_5 = arith.constant 0 : index
    %c0_6 = arith.constant 0 : index
    %10 = vector.load %arg9[%c0_5, %c0_6] : memref<1x128xf32, #tpu.memory_space<vmem>>, vector<1x128xf32>
    %cst_7 = arith.constant dense<0.000000e+00> : vector<128xf32>
    %11 = vector.multi_reduction <add>, %5, %cst_7 [0] : vector<560x128xf32> to vector<128xf32>
    %12 = vector.shape_cast %11 : vector<128xf32> to vector<1x128xf32>
    %13 = arith.addf %10, %12 : vector<1x128xf32>
    %c0_8 = arith.constant 0 : index
    %c0_9 = arith.constant 0 : index
    %14 = vector.load %arg9[%c0_8, %c0_9] : memref<1x128xf32, #tpu.memory_space<vmem>>, vector<1x128xf32>
    tpu.vector_store %arg9[%c0_8, %c0_9], %13 {strides = array<i32>} : memref<1x128xf32, #tpu.memory_space<vmem>>, vector<1x128xf32>,
    %c0_10 = arith.constant 0 : index
    %c0_11 = arith.constant 0 : index
    %15 = vector.load %arg10[%c0_10, %c0_11] : memref<1x128xf32, #tpu.memory_space<vmem>>, vector<1x128xf32>
    %16 = arith.mulf %5, %5 : vector<560x128xf32>
    %cst_12 = arith.constant dense<0.000000e+00> : vector<128xf32>
    %17 = vector.multi_reduction <add>, %16, %cst_12 [0] : vector<560x128xf32> to vector<128xf32>
    %18 = vector.shape_cast %17 : vector<128xf32> to vector<1x128xf32>
    %19 = arith.addf %15, %18 : vector<1x128xf32>
    %c0_13 = arith.constant 0 : index
    %c0_14 = arith.constant 0 : index
    %20 = vector.load %arg10[%c0_13, %c0_14] : memref<1x128xf32, #tpu.memory_space<vmem>>, vector<1x128xf32>
    tpu.vector_store %arg10[%c0_13, %c0_14], %19 {strides = array<i32>} : memref<1x128xf32, #tpu.memory_space<vmem>>, vector<1x128xf32>,
    %c3_i32 = arith.constant 3 : i32
    %21 = arith.cmpi eq, %arg0, %c3_i32 : i32
    %22 = arith.extui %21 : i1 to i32
    %c0_i32_15 = arith.constant 0 : i32
    %23 = arith.cmpi ne, %22, %c0_i32_15 : i32
    scf.if %23 {
      %c0_16 = arith.constant 0 : index
      %c0_17 = arith.constant 0 : index
      %24 = vector.load %arg9[%c0_16, %c0_17] : memref<1x128xf32, #tpu.memory_space<vmem>>, vector<1x128xf32>
      %c0_18 = arith.constant 0 : index
      %c0_19 = arith.constant 0 : index
      %25 = vector.load %arg3[%c0_18, %c0_19] : memref<128x8xf32, #tpu.memory_space<vmem>>, vector<128x8xf32>
      %cst_20 = arith.constant dense<0.000000e+00> : vector<1x8xf32>
      %26 = tpu.matmul %24, %25, %cst_20 {dimension_numbers = #tpu.dot_dimension_numbers<[1], [0], [0], [1], [0, 0, 1, 1], [], []>} : vector<1x128xf32>, vector<128x8xf32>, vector<1x8xf32> -> vector<1x8xf32>
      %c0_21 = arith.constant 0 : index
      %c0_22 = arith.constant 0 : index
      %27 = vector.load %arg10[%c0_21, %c0_22] : memref<1x128xf32, #tpu.memory_space<vmem>>, vector<1x128xf32>
      %c0_23 = arith.constant 0 : index
      %c0_24 = arith.constant 0 : index
      %28 = vector.load %arg3[%c0_23, %c0_24] : memref<128x8xf32, #tpu.memory_space<vmem>>, vector<128x8xf32>
      %cst_25 = arith.constant dense<0.000000e+00> : vector<1x8xf32>
      %29 = tpu.matmul %27, %28, %cst_25 {dimension_numbers = #tpu.dot_dimension_numbers<[1], [0], [0], [1], [0, 0, 1, 1], [], []>} : vector<1x128xf32>, vector<128x8xf32>, vector<1x8xf32> -> vector<1x8xf32>
      %cst_26 = arith.constant 2.79017859E-5 : f32
      %30 = vector.broadcast %cst_26 : f32 to vector<1x8xf32>
      %31 = arith.mulf %26, %30 : vector<1x8xf32>
      %cst_27 = arith.constant 2.79017859E-5 : f32
      %32 = vector.broadcast %cst_27 : f32 to vector<1x8xf32>
      %33 = arith.mulf %29, %32 : vector<1x8xf32>
      %34 = arith.mulf %31, %31 : vector<1x8xf32>
      %35 = arith.subf %33, %34 : vector<1x8xf32>
      %c0_28 = arith.constant 0 : index
      %c0_29 = arith.constant 0 : index
      %36 = vector.load %arg5[%c0_28, %c0_29] : memref<1x8xf32, #tpu.memory_space<vmem>>, vector<1x8xf32>
      %cst_30 = arith.constant 9.99999974E-6 : f32
      %37 = vector.broadcast %cst_30 : f32 to vector<1x8xf32>
      %38 = arith.addf %35, %37 : vector<1x8xf32>
      %39 = math.rsqrt %38 : vector<1x8xf32>
      %40 = arith.mulf %36, %39 : vector<1x8xf32>
      %c0_31 = arith.constant 0 : index
      %c0_32 = arith.constant 0 : index
      %41 = vector.load %arg6[%c0_31, %c0_32] : memref<1x8xf32, #tpu.memory_space<vmem>>, vector<1x8xf32>
      %42 = arith.mulf %31, %40 : vector<1x8xf32>
      %43 = arith.subf %41, %42 : vector<1x8xf32>
      %c0_33 = arith.constant 0 : index
      %c0_34 = arith.constant 0 : index
      %44 = vector.load %arg4[%c0_33, %c0_34] : memref<8x128xf32, #tpu.memory_space<vmem>>, vector<8x128xf32>
      %cst_35 = arith.constant dense<0.000000e+00> : vector<1x128xf32>
      %45 = tpu.matmul %40, %44, %cst_35 {dimension_numbers = #tpu.dot_dimension_numbers<[1], [0], [0], [1], [0, 0, 1, 1], [], []>} : vector<1x8xf32>, vector<8x128xf32>, vector<1x128xf32> -> vector<1x128xf32>
      %c0_36 = arith.constant 0 : index
      %c0_37 = arith.constant 0 : index
      %46 = vector.load %arg4[%c0_36, %c0_37] : memref<8x128xf32, #tpu.memory_space<vmem>>, vector<8x128xf32>
      %cst_38 = arith.constant dense<0.000000e+00> : vector<1x128xf32>
      %47 = tpu.matmul %43, %46, %cst_38 {dimension_numbers = #tpu.dot_dimension_numbers<[1], [0], [0], [1], [0, 0, 1, 1], [], []>} : vector<1x8xf32>, vector<8x128xf32>, vector<1x128xf32> -> vector<1x128xf32>
      %c0_39 = arith.constant 0 : index
      %c0_40 = arith.constant 0 : index
      %48 = vector.load %arg8[%c0_39, %c0_40] : memref<2240x128xf32, #tpu.memory_space<vmem>>, vector<2240x128xf32>
      %49 = vector.broadcast %45 : vector<1x128xf32> to vector<2240x128xf32>
      %50 = arith.mulf %48, %49 : vector<2240x128xf32>
      %51 = vector.broadcast %47 : vector<1x128xf32> to vector<2240x128xf32>
      %52 = arith.addf %50, %51 : vector<2240x128xf32>
      %cst_41 = arith.constant 0.000000e+00 : f32
      %53 = vector.broadcast %cst_41 : f32 to vector<2240x128xf32>
      %54 = arith.maximumf %52, %53 : vector<2240x128xf32>
      %55 = vector.extract_strided_slice %54 {offsets = [0, 0], sizes = [560, 128], strides = [1, 1]} : vector<2240x128xf32> to vector<560x128xf32>
      %56 = vector.extract_strided_slice %54 {offsets = [560, 0], sizes = [560, 128], strides = [1, 1]} : vector<2240x128xf32> to vector<560x128xf32>
      %57 = arith.maximumf %55, %56 : vector<560x128xf32>
      %58 = vector.extract_strided_slice %54 {offsets = [1120, 0], sizes = [560, 128], strides = [1, 1]} : vector<2240x128xf32> to vector<560x128xf32>
      %59 = vector.extract_strided_slice %54 {offsets = [1680, 0], sizes = [560, 128], strides = [1, 1]} : vector<2240x128xf32> to vector<560x128xf32>
      %60 = arith.maximumf %58, %59 : vector<560x128xf32>
      %61 = arith.maximumf %57, %60 : vector<560x128xf32>
      %62 = arith.truncf %61 : vector<560x128xf32> to vector<560x128xbf16>
      %c0_42 = arith.constant 0 : index
      %c0_43 = arith.constant 0 : index
      %63 = vector.load %arg7[%c0_42, %c0_43] : memref<560x128xbf16, #tpu.memory_space<vmem>>, vector<560x128xbf16>
      tpu.vector_store %arg7[%c0_42, %c0_43], %62 {strides = array<i32>} : memref<560x128xbf16, #tpu.memory_space<vmem>>, vector<560x128xbf16>,
    } else {
    }
    return
  }
  func.func @transform_0(%arg0: i32) -> (i32, i32) {
    %c0_i32 = arith.constant 0 : i32
    %c0_i32_0 = arith.constant 0 : i32
    return %arg0, %c0_i32 : i32, i32
  }
  func.func @transform_1(%arg0: i32) -> (i32, i32) {
    %c0_i32 = arith.constant 0 : i32
    %c0_i32_0 = arith.constant 0 : i32
    %c0_i32_1 = arith.constant 0 : i32
    return %c0_i32, %c0_i32_0 : i32, i32
  }
  func.func @transform_2(%arg0: i32) -> (i32, i32) {
    %c0_i32 = arith.constant 0 : i32
    %c0_i32_0 = arith.constant 0 : i32
    %c0_i32_1 = arith.constant 0 : i32
    return %c0_i32, %c0_i32_0 : i32, i32
  }
  func.func @transform_3(%arg0: i32) -> (i32, i32) {
    %c0_i32 = arith.constant 0 : i32
    %c0_i32_0 = arith.constant 0 : i32
    %c0_i32_1 = arith.constant 0 : i32
    return %c0_i32, %c0_i32_0 : i32, i32
  }
  func.func @transform_4(%arg0: i32) -> (i32, i32) {
    %c0_i32 = arith.constant 0 : i32
    %c0_i32_0 = arith.constant 0 : i32
    %c0_i32_1 = arith.constant 0 : i32
    return %c0_i32, %c0_i32_0 : i32, i32
  }
  func.func @transform_5(%arg0: i32) -> (i32, i32) {
    %c0_i32 = arith.constant 0 : i32
    %c0_i32_0 = arith.constant 0 : i32
    %c0_i32_1 = arith.constant 0 : i32
    return %c0_i32, %c0_i32_0 : i32, i32
  }
  func.func @transform_6(%arg0: i32) -> (i32, i32) {
    %c0_i32 = arith.constant 0 : i32
    %c0_i32_0 = arith.constant 0 : i32
    %c0_i32_1 = arith.constant 0 : i32
    return %c0_i32, %c0_i32_0 : i32, i32
  }
}

module attributes {stable_mosaic.version = 11 : i64} {
  func.func @_conv_stage_kernel(%arg0: i32, %arg1: memref<56x576xbf16, #tpu.memory_space<vmem>>, %arg2: memref<576x128xbf16, #tpu.memory_space<vmem>>, %arg3: memref<128x16xf32, #tpu.memory_space<vmem>>, %arg4: memref<16x128xf32, #tpu.memory_space<vmem>>, %arg5: memref<1x16xf32, #tpu.memory_space<vmem>>, %arg6: memref<1x16xf32, #tpu.memory_space<vmem>>, %arg7: memref<70x128xbf16, #tpu.memory_space<vmem>>, %arg8: memref<280x128xf32, #tpu.memory_space<vmem>>, %arg9: memref<1x128xf32, #tpu.memory_space<vmem>>, %arg10: memref<1x128xf32, #tpu.memory_space<vmem>>) attributes {dimension_semantics = [#tpu.dimension_semantics<arbitrary>], iteration_bounds = array<i64: 5>, scalar_prefetch = 0 : i64, scratch_operands = 3 : i64, tpu.core_type = #tpu.core_type<tc>, window_params = [{transform_indices = @transform_0, window_bounds = array<i64: 56, 576>}, {pipeline_mode = #tpu.pipeline_mode<synchronous>, transform_indices = @transform_1, window_bounds = array<i64: 576, 128>}, {pipeline_mode = #tpu.pipeline_mode<synchronous>, transform_indices = @transform_2, window_bounds = array<i64: 128, 16>}, {pipeline_mode = #tpu.pipeline_mode<synchronous>, transform_indices = @transform_3, window_bounds = array<i64: 16, 128>}, {pipeline_mode = #tpu.pipeline_mode<synchronous>, transform_indices = @transform_4, window_bounds = array<i64: 1, 16>}, {pipeline_mode = #tpu.pipeline_mode<synchronous>, transform_indices = @transform_5, window_bounds = array<i64: 1, 16>}, {pipeline_mode = #tpu.pipeline_mode<synchronous>, transform_indices = @transform_6, window_bounds = array<i64: 70, 128>}]} {
    %c0_i32 = arith.constant 0 : i32
    %0 = arith.cmpi eq, %arg0, %c0_i32 : i32
    %1 = arith.extui %0 : i1 to i32
    %c0_i32_0 = arith.constant 0 : i32
    %2 = arith.cmpi ne, %1, %c0_i32_0 : i32
    scf.if %2 {
      %cst_16 = arith.constant 0.000000e+00 : f32
      %24 = vector.broadcast %cst_16 : f32 to vector<1x128xf32>
      %c0_17 = arith.constant 0 : index
      %c0_18 = arith.constant 0 : index
      %25 = vector.load %arg9[%c0_17, %c0_18] : memref<1x128xf32, #tpu.memory_space<vmem>>, vector<1x128xf32>
      tpu.vector_store %arg9[%c0_17, %c0_18], %24 {strides = array<i32>} : memref<1x128xf32, #tpu.memory_space<vmem>>, vector<1x128xf32>,
      %cst_19 = arith.constant 0.000000e+00 : f32
      %26 = vector.broadcast %cst_19 : f32 to vector<1x128xf32>
      %c0_20 = arith.constant 0 : index
      %c0_21 = arith.constant 0 : index
      %27 = vector.load %arg10[%c0_20, %c0_21] : memref<1x128xf32, #tpu.memory_space<vmem>>, vector<1x128xf32>
      tpu.vector_store %arg10[%c0_20, %c0_21], %26 {strides = array<i32>} : memref<1x128xf32, #tpu.memory_space<vmem>>, vector<1x128xf32>,
    } else {
    }
    %c0 = arith.constant 0 : index
    %c0_1 = arith.constant 0 : index
    %3 = vector.load %arg1[%c0, %c0_1] : memref<56x576xbf16, #tpu.memory_space<vmem>>, vector<56x576xbf16>
    %c0_2 = arith.constant 0 : index
    %c0_3 = arith.constant 0 : index
    %4 = vector.load %arg2[%c0_2, %c0_3] : memref<576x128xbf16, #tpu.memory_space<vmem>>, vector<576x128xbf16>
    %cst = arith.constant dense<0.000000e+00> : vector<56x128xf32>
    %5 = tpu.matmul %3, %4, %cst {dimension_numbers = #tpu.dot_dimension_numbers<[1], [0], [0], [1], [0, 0, 1, 1], [], []>} : vector<56x576xbf16>, vector<576x128xbf16>, vector<56x128xf32> -> vector<56x128xf32>
    %c56_i32 = arith.constant 56 : i32
    %6 = arith.muli %arg0, %c56_i32 : i32
    %7 = tpu.assume_multiple %6, 8 : i32
    %8 = arith.index_cast %7 : i32 to index
    %c0_4 = arith.constant 0 : index
    %9 = vector.load %arg8[%8, %c0_4] : memref<280x128xf32, #tpu.memory_space<vmem>>, vector<56x128xf32>
    tpu.vector_store %arg8[%8, %c0_4], %5 {strides = array<i32>} : memref<280x128xf32, #tpu.memory_space<vmem>>, vector<56x128xf32>,
    %c0_5 = arith.constant 0 : index
    %c0_6 = arith.constant 0 : index
    %10 = vector.load %arg9[%c0_5, %c0_6] : memref<1x128xf32, #tpu.memory_space<vmem>>, vector<1x128xf32>
    %cst_7 = arith.constant dense<0.000000e+00> : vector<128xf32>
    %11 = vector.multi_reduction <add>, %5, %cst_7 [0] : vector<56x128xf32> to vector<128xf32>
    %12 = vector.shape_cast %11 : vector<128xf32> to vector<1x128xf32>
    %13 = arith.addf %10, %12 : vector<1x128xf32>
    %c0_8 = arith.constant 0 : index
    %c0_9 = arith.constant 0 : index
    %14 = vector.load %arg9[%c0_8, %c0_9] : memref<1x128xf32, #tpu.memory_space<vmem>>, vector<1x128xf32>
    tpu.vector_store %arg9[%c0_8, %c0_9], %13 {strides = array<i32>} : memref<1x128xf32, #tpu.memory_space<vmem>>, vector<1x128xf32>,
    %c0_10 = arith.constant 0 : index
    %c0_11 = arith.constant 0 : index
    %15 = vector.load %arg10[%c0_10, %c0_11] : memref<1x128xf32, #tpu.memory_space<vmem>>, vector<1x128xf32>
    %16 = arith.mulf %5, %5 : vector<56x128xf32>
    %cst_12 = arith.constant dense<0.000000e+00> : vector<128xf32>
    %17 = vector.multi_reduction <add>, %16, %cst_12 [0] : vector<56x128xf32> to vector<128xf32>
    %18 = vector.shape_cast %17 : vector<128xf32> to vector<1x128xf32>
    %19 = arith.addf %15, %18 : vector<1x128xf32>
    %c0_13 = arith.constant 0 : index
    %c0_14 = arith.constant 0 : index
    %20 = vector.load %arg10[%c0_13, %c0_14] : memref<1x128xf32, #tpu.memory_space<vmem>>, vector<1x128xf32>
    tpu.vector_store %arg10[%c0_13, %c0_14], %19 {strides = array<i32>} : memref<1x128xf32, #tpu.memory_space<vmem>>, vector<1x128xf32>,
    %c4_i32 = arith.constant 4 : i32
    %21 = arith.cmpi eq, %arg0, %c4_i32 : i32
    %22 = arith.extui %21 : i1 to i32
    %c0_i32_15 = arith.constant 0 : i32
    %23 = arith.cmpi ne, %22, %c0_i32_15 : i32
    scf.if %23 {
      %c0_16 = arith.constant 0 : index
      %c0_17 = arith.constant 0 : index
      %24 = vector.load %arg9[%c0_16, %c0_17] : memref<1x128xf32, #tpu.memory_space<vmem>>, vector<1x128xf32>
      %c0_18 = arith.constant 0 : index
      %c0_19 = arith.constant 0 : index
      %25 = vector.load %arg3[%c0_18, %c0_19] : memref<128x16xf32, #tpu.memory_space<vmem>>, vector<128x16xf32>
      %cst_20 = arith.constant dense<0.000000e+00> : vector<1x16xf32>
      %26 = tpu.matmul %24, %25, %cst_20 {dimension_numbers = #tpu.dot_dimension_numbers<[1], [0], [0], [1], [0, 0, 1, 1], [], []>} : vector<1x128xf32>, vector<128x16xf32>, vector<1x16xf32> -> vector<1x16xf32>
      %c0_21 = arith.constant 0 : index
      %c0_22 = arith.constant 0 : index
      %27 = vector.load %arg10[%c0_21, %c0_22] : memref<1x128xf32, #tpu.memory_space<vmem>>, vector<1x128xf32>
      %c0_23 = arith.constant 0 : index
      %c0_24 = arith.constant 0 : index
      %28 = vector.load %arg3[%c0_23, %c0_24] : memref<128x16xf32, #tpu.memory_space<vmem>>, vector<128x16xf32>
      %cst_25 = arith.constant dense<0.000000e+00> : vector<1x16xf32>
      %29 = tpu.matmul %27, %28, %cst_25 {dimension_numbers = #tpu.dot_dimension_numbers<[1], [0], [0], [1], [0, 0, 1, 1], [], []>} : vector<1x128xf32>, vector<128x16xf32>, vector<1x16xf32> -> vector<1x16xf32>
      %cst_26 = arith.constant 4.46428574E-4 : f32
      %30 = vector.broadcast %cst_26 : f32 to vector<1x16xf32>
      %31 = arith.mulf %26, %30 : vector<1x16xf32>
      %cst_27 = arith.constant 4.46428574E-4 : f32
      %32 = vector.broadcast %cst_27 : f32 to vector<1x16xf32>
      %33 = arith.mulf %29, %32 : vector<1x16xf32>
      %34 = arith.mulf %31, %31 : vector<1x16xf32>
      %35 = arith.subf %33, %34 : vector<1x16xf32>
      %c0_28 = arith.constant 0 : index
      %c0_29 = arith.constant 0 : index
      %36 = vector.load %arg5[%c0_28, %c0_29] : memref<1x16xf32, #tpu.memory_space<vmem>>, vector<1x16xf32>
      %cst_30 = arith.constant 9.99999974E-6 : f32
      %37 = vector.broadcast %cst_30 : f32 to vector<1x16xf32>
      %38 = arith.addf %35, %37 : vector<1x16xf32>
      %39 = math.rsqrt %38 : vector<1x16xf32>
      %40 = arith.mulf %36, %39 : vector<1x16xf32>
      %c0_31 = arith.constant 0 : index
      %c0_32 = arith.constant 0 : index
      %41 = vector.load %arg6[%c0_31, %c0_32] : memref<1x16xf32, #tpu.memory_space<vmem>>, vector<1x16xf32>
      %42 = arith.mulf %31, %40 : vector<1x16xf32>
      %43 = arith.subf %41, %42 : vector<1x16xf32>
      %c0_33 = arith.constant 0 : index
      %c0_34 = arith.constant 0 : index
      %44 = vector.load %arg4[%c0_33, %c0_34] : memref<16x128xf32, #tpu.memory_space<vmem>>, vector<16x128xf32>
      %cst_35 = arith.constant dense<0.000000e+00> : vector<1x128xf32>
      %45 = tpu.matmul %40, %44, %cst_35 {dimension_numbers = #tpu.dot_dimension_numbers<[1], [0], [0], [1], [0, 0, 1, 1], [], []>} : vector<1x16xf32>, vector<16x128xf32>, vector<1x128xf32> -> vector<1x128xf32>
      %c0_36 = arith.constant 0 : index
      %c0_37 = arith.constant 0 : index
      %46 = vector.load %arg4[%c0_36, %c0_37] : memref<16x128xf32, #tpu.memory_space<vmem>>, vector<16x128xf32>
      %cst_38 = arith.constant dense<0.000000e+00> : vector<1x128xf32>
      %47 = tpu.matmul %43, %46, %cst_38 {dimension_numbers = #tpu.dot_dimension_numbers<[1], [0], [0], [1], [0, 0, 1, 1], [], []>} : vector<1x16xf32>, vector<16x128xf32>, vector<1x128xf32> -> vector<1x128xf32>
      %c0_39 = arith.constant 0 : index
      %c0_40 = arith.constant 0 : index
      %48 = vector.load %arg8[%c0_39, %c0_40] : memref<280x128xf32, #tpu.memory_space<vmem>>, vector<280x128xf32>
      %49 = vector.broadcast %45 : vector<1x128xf32> to vector<280x128xf32>
      %50 = arith.mulf %48, %49 : vector<280x128xf32>
      %51 = vector.broadcast %47 : vector<1x128xf32> to vector<280x128xf32>
      %52 = arith.addf %50, %51 : vector<280x128xf32>
      %cst_41 = arith.constant 0.000000e+00 : f32
      %53 = vector.broadcast %cst_41 : f32 to vector<280x128xf32>
      %54 = arith.maximumf %52, %53 : vector<280x128xf32>
      %55 = vector.extract_strided_slice %54 {offsets = [0, 0], sizes = [70, 128], strides = [1, 1]} : vector<280x128xf32> to vector<70x128xf32>
      %56 = vector.extract_strided_slice %54 {offsets = [70, 0], sizes = [70, 128], strides = [1, 1]} : vector<280x128xf32> to vector<70x128xf32>
      %57 = arith.maximumf %55, %56 : vector<70x128xf32>
      %58 = vector.extract_strided_slice %54 {offsets = [140, 0], sizes = [70, 128], strides = [1, 1]} : vector<280x128xf32> to vector<70x128xf32>
      %59 = vector.extract_strided_slice %54 {offsets = [210, 0], sizes = [70, 128], strides = [1, 1]} : vector<280x128xf32> to vector<70x128xf32>
      %60 = arith.maximumf %58, %59 : vector<70x128xf32>
      %61 = arith.maximumf %57, %60 : vector<70x128xf32>
      %62 = arith.truncf %61 : vector<70x128xf32> to vector<70x128xbf16>
      %c0_42 = arith.constant 0 : index
      %c0_43 = arith.constant 0 : index
      %63 = vector.load %arg7[%c0_42, %c0_43] : memref<70x128xbf16, #tpu.memory_space<vmem>>, vector<70x128xbf16>
      tpu.vector_store %arg7[%c0_42, %c0_43], %62 {strides = array<i32>} : memref<70x128xbf16, #tpu.memory_space<vmem>>, vector<70x128xbf16>,
    } else {
    }
    return
  }
  func.func @transform_0(%arg0: i32) -> (i32, i32) {
    %c0_i32 = arith.constant 0 : i32
    %c0_i32_0 = arith.constant 0 : i32
    return %arg0, %c0_i32 : i32, i32
  }
  func.func @transform_1(%arg0: i32) -> (i32, i32) {
    %c0_i32 = arith.constant 0 : i32
    %c0_i32_0 = arith.constant 0 : i32
    %c0_i32_1 = arith.constant 0 : i32
    return %c0_i32, %c0_i32_0 : i32, i32
  }
  func.func @transform_2(%arg0: i32) -> (i32, i32) {
    %c0_i32 = arith.constant 0 : i32
    %c0_i32_0 = arith.constant 0 : i32
    %c0_i32_1 = arith.constant 0 : i32
    return %c0_i32, %c0_i32_0 : i32, i32
  }
  func.func @transform_3(%arg0: i32) -> (i32, i32) {
    %c0_i32 = arith.constant 0 : i32
    %c0_i32_0 = arith.constant 0 : i32
    %c0_i32_1 = arith.constant 0 : i32
    return %c0_i32, %c0_i32_0 : i32, i32
  }
  func.func @transform_4(%arg0: i32) -> (i32, i32) {
    %c0_i32 = arith.constant 0 : i32
    %c0_i32_0 = arith.constant 0 : i32
    %c0_i32_1 = arith.constant 0 : i32
    return %c0_i32, %c0_i32_0 : i32, i32
  }
  func.func @transform_5(%arg0: i32) -> (i32, i32) {
    %c0_i32 = arith.constant 0 : i32
    %c0_i32_0 = arith.constant 0 : i32
    %c0_i32_1 = arith.constant 0 : i32
    return %c0_i32, %c0_i32_0 : i32, i32
  }
  func.func @transform_6(%arg0: i32) -> (i32, i32) {
    %c0_i32 = arith.constant 0 : i32
    %c0_i32_0 = arith.constant 0 : i32
    %c0_i32_1 = arith.constant 0 : i32
    return %c0_i32, %c0_i32_0 : i32, i32
  }
}

module attributes {stable_mosaic.version = 11 : i64} {
  func.func @_conv_stage_kernel(%arg0: i32, %arg1: memref<35x576xbf16, #tpu.memory_space<vmem>>, %arg2: memref<576x128xbf16, #tpu.memory_space<vmem>>, %arg3: memref<128x32xf32, #tpu.memory_space<vmem>>, %arg4: memref<32x128xf32, #tpu.memory_space<vmem>>, %arg5: memref<1x32xf32, #tpu.memory_space<vmem>>, %arg6: memref<1x32xf32, #tpu.memory_space<vmem>>, %arg7: memref<35x128xbf16, #tpu.memory_space<vmem>>, %arg8: memref<35x128xf32, #tpu.memory_space<vmem>>, %arg9: memref<1x128xf32, #tpu.memory_space<vmem>>, %arg10: memref<1x128xf32, #tpu.memory_space<vmem>>) attributes {dimension_semantics = [#tpu.dimension_semantics<arbitrary>], iteration_bounds = array<i64: 1>, scalar_prefetch = 0 : i64, scratch_operands = 3 : i64, tpu.core_type = #tpu.core_type<tc>, window_params = [{transform_indices = @transform_0, window_bounds = array<i64: 35, 576>}, {pipeline_mode = #tpu.pipeline_mode<synchronous>, transform_indices = @transform_1, window_bounds = array<i64: 576, 128>}, {pipeline_mode = #tpu.pipeline_mode<synchronous>, transform_indices = @transform_2, window_bounds = array<i64: 128, 32>}, {pipeline_mode = #tpu.pipeline_mode<synchronous>, transform_indices = @transform_3, window_bounds = array<i64: 32, 128>}, {pipeline_mode = #tpu.pipeline_mode<synchronous>, transform_indices = @transform_4, window_bounds = array<i64: 1, 32>}, {pipeline_mode = #tpu.pipeline_mode<synchronous>, transform_indices = @transform_5, window_bounds = array<i64: 1, 32>}, {pipeline_mode = #tpu.pipeline_mode<synchronous>, transform_indices = @transform_6, window_bounds = array<i64: 35, 128>}]} {
    %c0_i32 = arith.constant 0 : i32
    %0 = arith.cmpi eq, %arg0, %c0_i32 : i32
    %1 = arith.extui %0 : i1 to i32
    %c0_i32_0 = arith.constant 0 : i32
    %2 = arith.cmpi ne, %1, %c0_i32_0 : i32
    scf.if %2 {
      %cst_18 = arith.constant 0.000000e+00 : f32
      %21 = vector.broadcast %cst_18 : f32 to vector<1x128xf32>
      %c0_19 = arith.constant 0 : index
      %c0_20 = arith.constant 0 : index
      %22 = vector.load %arg9[%c0_19, %c0_20] : memref<1x128xf32, #tpu.memory_space<vmem>>, vector<1x128xf32>
      tpu.vector_store %arg9[%c0_19, %c0_20], %21 {strides = array<i32>} : memref<1x128xf32, #tpu.memory_space<vmem>>, vector<1x128xf32>,
      %cst_21 = arith.constant 0.000000e+00 : f32
      %23 = vector.broadcast %cst_21 : f32 to vector<1x128xf32>
      %c0_22 = arith.constant 0 : index
      %c0_23 = arith.constant 0 : index
      %24 = vector.load %arg10[%c0_22, %c0_23] : memref<1x128xf32, #tpu.memory_space<vmem>>, vector<1x128xf32>
      tpu.vector_store %arg10[%c0_22, %c0_23], %23 {strides = array<i32>} : memref<1x128xf32, #tpu.memory_space<vmem>>, vector<1x128xf32>,
    } else {
    }
    %c0 = arith.constant 0 : index
    %c0_1 = arith.constant 0 : index
    %3 = vector.load %arg1[%c0, %c0_1] : memref<35x576xbf16, #tpu.memory_space<vmem>>, vector<35x576xbf16>
    %c0_2 = arith.constant 0 : index
    %c0_3 = arith.constant 0 : index
    %4 = vector.load %arg2[%c0_2, %c0_3] : memref<576x128xbf16, #tpu.memory_space<vmem>>, vector<576x128xbf16>
    %cst = arith.constant dense<0.000000e+00> : vector<35x128xf32>
    %5 = tpu.matmul %3, %4, %cst {dimension_numbers = #tpu.dot_dimension_numbers<[1], [0], [0], [1], [0, 0, 1, 1], [], []>} : vector<35x576xbf16>, vector<576x128xbf16>, vector<35x128xf32> -> vector<35x128xf32>
    %c0_4 = arith.constant 0 : index
    %c0_5 = arith.constant 0 : index
    %6 = vector.load %arg8[%c0_4, %c0_5] : memref<35x128xf32, #tpu.memory_space<vmem>>, vector<35x128xf32>
    tpu.vector_store %arg8[%c0_4, %c0_5], %5 {strides = array<i32>} : memref<35x128xf32, #tpu.memory_space<vmem>>, vector<35x128xf32>,
    %c0_6 = arith.constant 0 : index
    %c0_7 = arith.constant 0 : index
    %7 = vector.load %arg9[%c0_6, %c0_7] : memref<1x128xf32, #tpu.memory_space<vmem>>, vector<1x128xf32>
    %cst_8 = arith.constant dense<0.000000e+00> : vector<128xf32>
    %8 = vector.multi_reduction <add>, %5, %cst_8 [0] : vector<35x128xf32> to vector<128xf32>
    %9 = vector.shape_cast %8 : vector<128xf32> to vector<1x128xf32>
    %10 = arith.addf %7, %9 : vector<1x128xf32>
    %c0_9 = arith.constant 0 : index
    %c0_10 = arith.constant 0 : index
    %11 = vector.load %arg9[%c0_9, %c0_10] : memref<1x128xf32, #tpu.memory_space<vmem>>, vector<1x128xf32>
    tpu.vector_store %arg9[%c0_9, %c0_10], %10 {strides = array<i32>} : memref<1x128xf32, #tpu.memory_space<vmem>>, vector<1x128xf32>,
    %c0_11 = arith.constant 0 : index
    %c0_12 = arith.constant 0 : index
    %12 = vector.load %arg10[%c0_11, %c0_12] : memref<1x128xf32, #tpu.memory_space<vmem>>, vector<1x128xf32>
    %13 = arith.mulf %5, %5 : vector<35x128xf32>
    %cst_13 = arith.constant dense<0.000000e+00> : vector<128xf32>
    %14 = vector.multi_reduction <add>, %13, %cst_13 [0] : vector<35x128xf32> to vector<128xf32>
    %15 = vector.shape_cast %14 : vector<128xf32> to vector<1x128xf32>
    %16 = arith.addf %12, %15 : vector<1x128xf32>
    %c0_14 = arith.constant 0 : index
    %c0_15 = arith.constant 0 : index
    %17 = vector.load %arg10[%c0_14, %c0_15] : memref<1x128xf32, #tpu.memory_space<vmem>>, vector<1x128xf32>
    tpu.vector_store %arg10[%c0_14, %c0_15], %16 {strides = array<i32>} : memref<1x128xf32, #tpu.memory_space<vmem>>, vector<1x128xf32>,
    %c0_i32_16 = arith.constant 0 : i32
    %18 = arith.cmpi eq, %arg0, %c0_i32_16 : i32
    %19 = arith.extui %18 : i1 to i32
    %c0_i32_17 = arith.constant 0 : i32
    %20 = arith.cmpi ne, %19, %c0_i32_17 : i32
    scf.if %20 {
      %c0_18 = arith.constant 0 : index
      %c0_19 = arith.constant 0 : index
      %21 = vector.load %arg9[%c0_18, %c0_19] : memref<1x128xf32, #tpu.memory_space<vmem>>, vector<1x128xf32>
      %c0_20 = arith.constant 0 : index
      %c0_21 = arith.constant 0 : index
      %22 = vector.load %arg3[%c0_20, %c0_21] : memref<128x32xf32, #tpu.memory_space<vmem>>, vector<128x32xf32>
      %cst_22 = arith.constant dense<0.000000e+00> : vector<1x32xf32>
      %23 = tpu.matmul %21, %22, %cst_22 {dimension_numbers = #tpu.dot_dimension_numbers<[1], [0], [0], [1], [0, 0, 1, 1], [], []>} : vector<1x128xf32>, vector<128x32xf32>, vector<1x32xf32> -> vector<1x32xf32>
      %c0_23 = arith.constant 0 : index
      %c0_24 = arith.constant 0 : index
      %24 = vector.load %arg10[%c0_23, %c0_24] : memref<1x128xf32, #tpu.memory_space<vmem>>, vector<1x128xf32>
      %c0_25 = arith.constant 0 : index
      %c0_26 = arith.constant 0 : index
      %25 = vector.load %arg3[%c0_25, %c0_26] : memref<128x32xf32, #tpu.memory_space<vmem>>, vector<128x32xf32>
      %cst_27 = arith.constant dense<0.000000e+00> : vector<1x32xf32>
      %26 = tpu.matmul %24, %25, %cst_27 {dimension_numbers = #tpu.dot_dimension_numbers<[1], [0], [0], [1], [0, 0, 1, 1], [], []>} : vector<1x128xf32>, vector<128x32xf32>, vector<1x32xf32> -> vector<1x32xf32>
      %cst_28 = arith.constant 0.00714285718 : f32
      %27 = vector.broadcast %cst_28 : f32 to vector<1x32xf32>
      %28 = arith.mulf %23, %27 : vector<1x32xf32>
      %cst_29 = arith.constant 0.00714285718 : f32
      %29 = vector.broadcast %cst_29 : f32 to vector<1x32xf32>
      %30 = arith.mulf %26, %29 : vector<1x32xf32>
      %31 = arith.mulf %28, %28 : vector<1x32xf32>
      %32 = arith.subf %30, %31 : vector<1x32xf32>
      %c0_30 = arith.constant 0 : index
      %c0_31 = arith.constant 0 : index
      %33 = vector.load %arg5[%c0_30, %c0_31] : memref<1x32xf32, #tpu.memory_space<vmem>>, vector<1x32xf32>
      %cst_32 = arith.constant 9.99999974E-6 : f32
      %34 = vector.broadcast %cst_32 : f32 to vector<1x32xf32>
      %35 = arith.addf %32, %34 : vector<1x32xf32>
      %36 = math.rsqrt %35 : vector<1x32xf32>
      %37 = arith.mulf %33, %36 : vector<1x32xf32>
      %c0_33 = arith.constant 0 : index
      %c0_34 = arith.constant 0 : index
      %38 = vector.load %arg6[%c0_33, %c0_34] : memref<1x32xf32, #tpu.memory_space<vmem>>, vector<1x32xf32>
      %39 = arith.mulf %28, %37 : vector<1x32xf32>
      %40 = arith.subf %38, %39 : vector<1x32xf32>
      %c0_35 = arith.constant 0 : index
      %c0_36 = arith.constant 0 : index
      %41 = vector.load %arg4[%c0_35, %c0_36] : memref<32x128xf32, #tpu.memory_space<vmem>>, vector<32x128xf32>
      %cst_37 = arith.constant dense<0.000000e+00> : vector<1x128xf32>
      %42 = tpu.matmul %37, %41, %cst_37 {dimension_numbers = #tpu.dot_dimension_numbers<[1], [0], [0], [1], [0, 0, 1, 1], [], []>} : vector<1x32xf32>, vector<32x128xf32>, vector<1x128xf32> -> vector<1x128xf32>
      %c0_38 = arith.constant 0 : index
      %c0_39 = arith.constant 0 : index
      %43 = vector.load %arg4[%c0_38, %c0_39] : memref<32x128xf32, #tpu.memory_space<vmem>>, vector<32x128xf32>
      %cst_40 = arith.constant dense<0.000000e+00> : vector<1x128xf32>
      %44 = tpu.matmul %40, %43, %cst_40 {dimension_numbers = #tpu.dot_dimension_numbers<[1], [0], [0], [1], [0, 0, 1, 1], [], []>} : vector<1x32xf32>, vector<32x128xf32>, vector<1x128xf32> -> vector<1x128xf32>
      %c0_41 = arith.constant 0 : index
      %c0_42 = arith.constant 0 : index
      %45 = vector.load %arg8[%c0_41, %c0_42] : memref<35x128xf32, #tpu.memory_space<vmem>>, vector<35x128xf32>
      %46 = vector.broadcast %42 : vector<1x128xf32> to vector<35x128xf32>
      %47 = arith.mulf %45, %46 : vector<35x128xf32>
      %48 = vector.broadcast %44 : vector<1x128xf32> to vector<35x128xf32>
      %49 = arith.addf %47, %48 : vector<35x128xf32>
      %cst_43 = arith.constant 0.000000e+00 : f32
      %50 = vector.broadcast %cst_43 : f32 to vector<35x128xf32>
      %51 = arith.maximumf %49, %50 : vector<35x128xf32>
      %52 = arith.truncf %51 : vector<35x128xf32> to vector<35x128xbf16>
      %c0_44 = arith.constant 0 : index
      %c0_45 = arith.constant 0 : index
      %53 = vector.load %arg7[%c0_44, %c0_45] : memref<35x128xbf16, #tpu.memory_space<vmem>>, vector<35x128xbf16>
      tpu.vector_store %arg7[%c0_44, %c0_45], %52 {strides = array<i32>} : memref<35x128xbf16, #tpu.memory_space<vmem>>, vector<35x128xbf16>,
    } else {
    }
    return
  }
  func.func @transform_0(%arg0: i32) -> (i32, i32) {
    %c0_i32 = arith.constant 0 : i32
    %c0_i32_0 = arith.constant 0 : i32
    return %arg0, %c0_i32 : i32, i32
  }
  func.func @transform_1(%arg0: i32) -> (i32, i32) {
    %c0_i32 = arith.constant 0 : i32
    %c0_i32_0 = arith.constant 0 : i32
    %c0_i32_1 = arith.constant 0 : i32
    return %c0_i32, %c0_i32_0 : i32, i32
  }
  func.func @transform_2(%arg0: i32) -> (i32, i32) {
    %c0_i32 = arith.constant 0 : i32
    %c0_i32_0 = arith.constant 0 : i32
    %c0_i32_1 = arith.constant 0 : i32
    return %c0_i32, %c0_i32_0 : i32, i32
  }
  func.func @transform_3(%arg0: i32) -> (i32, i32) {
    %c0_i32 = arith.constant 0 : i32
    %c0_i32_0 = arith.constant 0 : i32
    %c0_i32_1 = arith.constant 0 : i32
    return %c0_i32, %c0_i32_0 : i32, i32
  }
  func.func @transform_4(%arg0: i32) -> (i32, i32) {
    %c0_i32 = arith.constant 0 : i32
    %c0_i32_0 = arith.constant 0 : i32
    %c0_i32_1 = arith.constant 0 : i32
    return %c0_i32, %c0_i32_0 : i32, i32
  }
  func.func @transform_5(%arg0: i32) -> (i32, i32) {
    %c0_i32 = arith.constant 0 : i32
    %c0_i32_0 = arith.constant 0 : i32
    %c0_i32_1 = arith.constant 0 : i32
    return %c0_i32, %c0_i32_0 : i32, i32
  }
  func.func @transform_6(%arg0: i32) -> (i32, i32) {
    %c0_i32 = arith.constant 0 : i32
    %c0_i32_0 = arith.constant 0 : i32
    %c0_i32_1 = arith.constant 0 : i32
    return %c0_i32, %c0_i32_0 : i32, i32
  }
}

module attributes {stable_mosaic.version = 11 : i64} {
  func.func @_linear_kernel(%arg0: i32, %arg1: memref<2x2240xbf16, #tpu.memory_space<vmem>>, %arg2: memref<2240x128xbf16, #tpu.memory_space<vmem>>, %arg3: memref<1x128xf32, #tpu.memory_space<vmem>>, %arg4: memref<2x128xf32, #tpu.memory_space<vmem>>) attributes {dimension_semantics = [#tpu.dimension_semantics<arbitrary>], iteration_bounds = array<i64: 1>, scalar_prefetch = 0 : i64, scratch_operands = 0 : i64, tpu.core_type = #tpu.core_type<tc>, window_params = [{pipeline_mode = #tpu.pipeline_mode<synchronous>, transform_indices = @transform_0, window_bounds = array<i64: 2, 2240>}, {pipeline_mode = #tpu.pipeline_mode<synchronous>, transform_indices = @transform_1, window_bounds = array<i64: 2240, 128>}, {pipeline_mode = #tpu.pipeline_mode<synchronous>, transform_indices = @transform_2, window_bounds = array<i64: 1, 128>}, {pipeline_mode = #tpu.pipeline_mode<synchronous>, transform_indices = @transform_3, window_bounds = array<i64: 2, 128>}]} {
    %c0 = arith.constant 0 : index
    %c0_0 = arith.constant 0 : index
    %0 = vector.load %arg1[%c0, %c0_0] : memref<2x2240xbf16, #tpu.memory_space<vmem>>, vector<2x2240xbf16>
    %c0_1 = arith.constant 0 : index
    %c0_2 = arith.constant 0 : index
    %1 = vector.load %arg2[%c0_1, %c0_2] : memref<2240x128xbf16, #tpu.memory_space<vmem>>, vector<2240x128xbf16>
    %cst = arith.constant dense<0.000000e+00> : vector<2x128xf32>
    %2 = tpu.matmul %0, %1, %cst {dimension_numbers = #tpu.dot_dimension_numbers<[1], [0], [0], [1], [0, 0, 1, 1], [], []>} : vector<2x2240xbf16>, vector<2240x128xbf16>, vector<2x128xf32> -> vector<2x128xf32>
    %c0_3 = arith.constant 0 : index
    %c0_4 = arith.constant 0 : index
    %3 = vector.load %arg3[%c0_3, %c0_4] : memref<1x128xf32, #tpu.memory_space<vmem>>, vector<1x128xf32>
    %4 = vector.broadcast %3 : vector<1x128xf32> to vector<2x128xf32>
    %5 = arith.addf %2, %4 : vector<2x128xf32>
    %c0_5 = arith.constant 0 : index
    %c0_6 = arith.constant 0 : index
    %6 = vector.load %arg4[%c0_5, %c0_6] : memref<2x128xf32, #tpu.memory_space<vmem>>, vector<2x128xf32>
    tpu.vector_store %arg4[%c0_5, %c0_6], %5 {strides = array<i32>} : memref<2x128xf32, #tpu.memory_space<vmem>>, vector<2x128xf32>,
    return
  }
  func.func @transform_0(%arg0: i32) -> (i32, i32) {
    %c0_i32 = arith.constant 0 : i32
    %c0_i32_0 = arith.constant 0 : i32
    %c0_i32_1 = arith.constant 0 : i32
    return %c0_i32, %c0_i32_0 : i32, i32
  }
  func.func @transform_1(%arg0: i32) -> (i32, i32) {
    %c0_i32 = arith.constant 0 : i32
    %c0_i32_0 = arith.constant 0 : i32
    %c0_i32_1 = arith.constant 0 : i32
    return %c0_i32, %c0_i32_0 : i32, i32
  }
  func.func @transform_2(%arg0: i32) -> (i32, i32) {
    %c0_i32 = arith.constant 0 : i32
    %c0_i32_0 = arith.constant 0 : i32
    %c0_i32_1 = arith.constant 0 : i32
    return %c0_i32, %c0_i32_0 : i32, i32
  }
  func.func @transform_3(%arg0: i32) -> (i32, i32) {
    %c0_i32 = arith.constant 0 : i32
    %c0_i32_0 = arith.constant 0 : i32
    %c0_i32_1 = arith.constant 0 : i32
    return %c0_i32, %c0_i32_0 : i32, i32
  }
}

</mosaic_0001>

<llo_original>
// kernel: encoder_forward.4
$region0: #{encoder_forward.4}
  #allocation0 [shape = 'u32[]', space=smem, size = 0x4, offset = 0x4, fixed_abs, tag = 'smem constant byte address 0x4 - core index']
  #allocation1 [shape = 'u32[144,128]{1,0:T(1,128)}', space=vmem, size = 0x12000, scoped, tag = 'internal scratch']
  #allocation2 [shape = 'f32[2240,128]{1,0:T(8,128)}', space=vmem, size = 0x118000, scoped, tag = 'scratch operand']
  #allocation3 [shape = 'f32[1,128]{1,0:T(1,128)}', space=vmem, size = 0x200, scoped, tag = 'scratch operand']
  #allocation4 [shape = 'f32[1,128]{1,0:T(1,128)}', space=vmem, size = 0x200, scoped, tag = 'scratch operand']
  %s0 = inlined_call_operand.vmem [shape: bf16[2240,432], index: 0, kind: input, shape index: {}]
  %s1 = inlined_call_operand.vmem [shape: bf16[432,128], index: 1, kind: input, shape index: {}]
  %s2 = inlined_call_operand.vmem [shape: f32[128,8], index: 2, kind: input, shape index: {}]
  %s3 = inlined_call_operand.vmem [shape: f32[8,128], index: 3, kind: input, shape index: {}]
  %s4 = inlined_call_operand.vmem [shape: f32[1,8], index: 4, kind: input, shape index: {}]
  %s5 = inlined_call_operand.vmem [shape: f32[1,8], index: 5, kind: input, shape index: {}]
  %s6 = inlined_call_operand.vmem [shape: bf16[560,128], index: 6, kind: output, shape index: {}]
  %s7 = sld [smem:[#allocation0]]
  $region65: #{encoder_forward.4} parent=0
    _
  %s9 = ssub.s32 1, %s7
  %s10 = scalar_select 0, %s9, %s7
  loop: start=0, step=1, limit=6
  $region2: #{encoder_forward.4} parent=0 // loop_pre_header
    _
  $region3: #{encoder_forward.4} parent=0 // loop_header
    %s12 = sphi 0, %s16
    %p13 = scmp.ge.s32.totalorder %s12, 6
    %s22 = sphi 0, %s24
    %s25 = sphi 0, %s22
    %s26 = sphi 0, %s25
    %s42 = sphi 0, %s26
    %s46 = sphi 0, %s46
    %s48 = sphi 0, %s46
    %s49 = sphi 0, %s48
    %s63 = sphi 0, %s49
    %s67 = sphi 0, %s67
    %s69 = sphi 0, %s67
    %s70 = sphi 0, %s69
    %s84 = sphi 0, %s70
    %s88 = sphi 0, %s88
    %s90 = sphi 0, %s88
    %s91 = sphi 0, %s90
    %s105 = sphi 0, %s91
    %s109 = sphi 0, %s109
    %s111 = sphi 0, %s109
    %s112 = sphi 0, %s111
    %s126 = sphi 0, %s112
    %s130 = sphi 0, %s130
    %s132 = sphi 0, %s130
    %s133 = sphi 0, %s132
    %s147 = sphi 0, %s133
    %s151 = sphi 0, %s151
    %s153 = sphi 0, %s151
    %s154 = sphi 0, %s153
    %s168 = sphi 0, %s154
  $region4: #{encoder_forward.4} parent=0 // loop_header_branch
    %15 = sbr.rel (%p13) target = $region8
  $region5: #{encoder_forward.4} parent=0 // loop_body
    %s17 = ssub.s32 %s12, 1
    %s18 = ssub.s32 %s12, 2
    %s19 = sadd.s32 %s12, 1
    %s20 = ssub.s32 %s12, %s19
    %p21 = scmp.eq.s32.totalorder %s20, 0
    %s23 = sadd.s32 %s22, 1
    %s24 = scalar_select %p21, %s22, %s23
    %p27 = pneg %p21
    %p28 = scmp.eq.s32.totalorder %s12, 3
    %p29 = por %p27, %p28
    %p30 = scmp.ne.s32.totalorder %s22, %s25
    %p31 = scmp.eq.s32.totalorder %s12, 0
    %p32 = por %p30, %p31
    %p33 = scmp.ne.s32.totalorder %s22, %s25
    %p34 = scmp.eq.s32.totalorder %s17, 3
    %p35 = por %p33, %p34
    %p36 = scmp.ne.s32.totalorder %s25, %s26
    %p37 = scmp.eq.s32.totalorder %s17, 0
    %p38 = por %p36, %p37
    %p39 = scmp.ne.s32.totalorder %s25, %s26
    %p40 = scmp.eq.s32.totalorder %s18, 3
    %p41 = por %p39, %p40
    %p43 = scmp.ne.s32.totalorder %s26, %s42
    %p44 = scmp.eq.s32.totalorder %s18, 0
    %p45 = por %p43, %p44
    %s47 = sadd.s32 %s46, 1
    %p50 = scmp.eq.s32.totalorder %s12, 3
    %p51 = scmp.ne.s32.totalorder %s46, %s48
    %p52 = scmp.eq.s32.totalorder %s12, 0
    %p53 = por %p51, %p52
    %p54 = scmp.ne.s32.totalorder %s46, %s48
    %p55 = scmp.eq.s32.totalorder %s17, 3
    %p56 = por %p54, %p55
    %p57 = scmp.ne.s32.totalorder %s48, %s49
    %p58 = scmp.eq.s32.totalorder %s17, 0
    %p59 = por %p57, %p58
    %p60 = scmp.ne.s32.totalorder %s48, %s49
    %p61 = scmp.eq.s32.totalorder %s18, 3
    %p62 = por %p60, %p61
    %p64 = scmp.ne.s32.totalorder %s49, %s63
    %p65 = scmp.eq.s32.totalorder %s18, 0
    %p66 = por %p64, %p65
    %s68 = sadd.s32 %s67, 1
    %p71 = scmp.eq.s32.totalorder %s12, 3
    %p72 = scmp.ne.s32.totalorder %s67, %s69
    %p73 = scmp.eq.s32.totalorder %s12, 0
    %p74 = por %p72, %p73
    %p75 = scmp.ne.s32.totalorder %s67, %s69
    %p76 = scmp.eq.s32.totalorder %s17, 3
    %p77 = por %p75, %p76
    %p78 = scmp.ne.s32.totalorder %s69, %s70
    %p79 = scmp.eq.s32.totalorder %s17, 0
    %p80 = por %p78, %p79
    %p81 = scmp.ne.s32.totalorder %s69, %s70
    %p82 = scmp.eq.s32.totalorder %s18, 3
    %p83 = por %p81, %p82
    %p85 = scmp.ne.s32.totalorder %s70, %s84
    %p86 = scmp.eq.s32.totalorder %s18, 0
    %p87 = por %p85, %p86
    %s89 = sadd.s32 %s88, 1
    %p92 = scmp.eq.s32.totalorder %s12, 3
    %p93 = scmp.ne.s32.totalorder %s88, %s90
    %p94 = scmp.eq.s32.totalorder %s12, 0
    %p95 = por %p93, %p94
    %p96 = scmp.ne.s32.totalorder %s88, %s90
    %p97 = scmp.eq.s32.totalorder %s17, 3
    %p98 = por %p96, %p97
    %p99 = scmp.ne.s32.totalorder %s90, %s91
    %p100 = scmp.eq.s32.totalorder %s17, 0
    %p101 = por %p99, %p100
    %p102 = scmp.ne.s32.totalorder %s90, %s91
    %p103 = scmp.eq.s32.totalorder %s18, 3
    %p104 = por %p102, %p103
    %p106 = scmp.ne.s32.totalorder %s91, %s105
    %p107 = scmp.eq.s32.totalorder %s18, 0
    %p108 = por %p106, %p107
    %s110 = sadd.s32 %s109, 1
    %p113 = scmp.eq.s32.totalorder %s12, 3
    %p114 = scmp.ne.s32.totalorder %s109, %s111
    %p115 = scmp.eq.s32.totalorder %s12, 0
    %p116 = por %p114, %p115
    %p117 = scmp.ne.s32.totalorder %s109, %s111
    %p118 = scmp.eq.s32.totalorder %s17, 3
    %p119 = por %p117, %p118
    %p120 = scmp.ne.s32.totalorder %s111, %s112
    %p121 = scmp.eq.s32.totalorder %s17, 0
    %p122 = por %p120, %p121
    %p123 = scmp.ne.s32.totalorder %s111, %s112
    %p124 = scmp.eq.s32.totalorder %s18, 3
    %p125 = por %p123, %p124
    %p127 = scmp.ne.s32.totalorder %s112, %s126
    %p128 = scmp.eq.s32.totalorder %s18, 0
    %p129 = por %p127, %p128
    %s131 = sadd.s32 %s130, 1
    %p134 = scmp.eq.s32.totalorder %s12, 3
    %p135 = scmp.ne.s32.totalorder %s130, %s132
    %p136 = scmp.eq.s32.totalorder %s12, 0
    %p137 = por %p135, %p136
    %p138 = scmp.ne.s32.totalorder %s130, %s132
    %p139 = scmp.eq.s32.totalorder %s17, 3
    %p140 = por %p138, %p139
    %p141 = scmp.ne.s32.totalorder %s132, %s133
    %p142 = scmp.eq.s32.totalorder %s17, 0
    %p143 = por %p141, %p142
    %p144 = scmp.ne.s32.totalorder %s132, %s133
    %p145 = scmp.eq.s32.totalorder %s18, 3
    %p146 = por %p144, %p145
    %p148 = scmp.ne.s32.totalorder %s133, %s147
    %p149 = scmp.eq.s32.totalorder %s18, 0
    %p150 = por %p148, %p149
    %s152 = sadd.s32 %s151, 1
    %p155 = scmp.eq.s32.totalorder %s12, 3
    %p156 = scmp.ne.s32.totalorder %s151, %s153
    %p157 = scmp.eq.s32.totalorder %s12, 0
    %p158 = por %p156, %p157
    %p159 = scmp.ne.s32.totalorder %s151, %s153
    %p160 = scmp.eq.s32.totalorder %s17, 3
    %p161 = por %p159, %p160
    %p162 = scmp.ne.s32.totalorder %s153, %s154
    %p163 = scmp.eq.s32.totalorder %s17, 0
    %p164 = por %p162, %p163
    %p165 = scmp.ne.s32.totalorder %s153, %s154
    %p166 = scmp.eq.s32.totalorder %s18, 3
    %p167 = por %p165, %p166
    %p169 = scmp.ne.s32.totalorder %s154, %s168
    %p170 = scmp.eq.s32.totalorder %s18, 0
    %p171 = por %p169, %p170
    %p172 = scmp.le.s32.totalorder 1, %s12
    %p173 = scmp.lt.s32.totalorder %s12, 5
    %p174 = pnand %p172, %p173
    %p175 = pneg %p174
    // Predicated region
    $region9: #{encoder_forward.4} parent=5 // pred_check
      _
    $region10: #{encoder_forward.4} parent=5 // pred_check_branch
      %177 = sbr.rel (%p174) target = $region12
    $region11: #{encoder_forward.4} parent=5 // pred_region
      %s178 = ssub.s32 %s12, 1
      // Predicated region
      $region13: #{encoder_forward.4} parent=11 // pred_check
        %p179 = pneg %p59
      $region14: #{encoder_forward.4} parent=11 // pred_check_branch
        %181 = sbr.rel (%p179) target = $region16
      $region15: #{encoder_forward.4} parent=11 // pred_region
        _
      $region16: #{encoder_forward.4} parent=11 // pred_fallthru
        _
      // Predicated region
      $region17: #{encoder_forward.4} parent=11 // pred_check
        %p182 = pneg %p80
      $region18: #{encoder_forward.4} parent=11 // pred_check_branch
        %184 = sbr.rel (%p182) target = $region20
      $region19: #{encoder_forward.4} parent=11 // pred_region
        _
      $region20: #{encoder_forward.4} parent=11 // pred_fallthru
        _
      // Predicated region
      $region21: #{encoder_forward.4} parent=11 // pred_check
        %p185 = pneg %p101
      $region22: #{encoder_forward.4} parent=11 // pred_check_branch
        %187 = sbr.rel (%p185) target = $region24
      $region23: #{encoder_forward.4} parent=11 // pred_region
        _
      $region24: #{encoder_forward.4} parent=11 // pred_fallthru
        _
      // Predicated region
      $region25: #{encoder_forward.4} parent=11 // pred_check
        %p188 = pneg %p122
      $region26: #{encoder_forward.4} parent=11 // pred_check_branch
        %190 = sbr.rel (%p188) target = $region28
      $region27: #{encoder_forward.4} parent=11 // pred_region
        _
      $region28: #{encoder_forward.4} parent=11 // pred_fallthru
        _
      // Predicated region
      $region29: #{encoder_forward.4} parent=11 // pred_check
        %p191 = pneg %p143
      $region30: #{encoder_forward.4} parent=11 // pred_check_branch
        %193 = sbr.rel (%p191) target = $region32
      $region31: #{encoder_forward.4} parent=11 // pred_region
        _
      $region32: #{encoder_forward.4} parent=11 // pred_fallthru
        _
    $region12: #{encoder_forward.4} parent=5 // pred_fallthru
      _
    %p194 = scmp.lt.s32.totalorder %s12, 4
    // Predicated region
    $region33: #{encoder_forward.4} parent=5 // pred_check
      %p195 = pneg %p194
    $region34: #{encoder_forward.4} parent=5 // pred_check_branch
      %197 = sbr.rel (%p195) target = $region36
    $region35: #{encoder_forward.4} parent=5 // pred_region
      // Predicated region
      $region37: #{encoder_forward.4} parent=35 // pred_check
        %p198 = pneg %p32
      $region38: #{encoder_forward.4} parent=35 // pred_check_branch
        %200 = sbr.rel (%p198) target = $region40
      $region39: #{encoder_forward.4} parent=35 // pred_region
        %s201 = smul.u32 70, %s12
        %p202 = scmp.lt.s32.totalorder %s201, 279
        %s203 = scalar_select %p202, %s201, 279
        %s204 = smul.addr %s203, 4
        %s205 = smul.addr %s204, 4
        %s206 = scalar_lea.vmem %s0, %s205
        %s207 = smul.u32 70, %s12
      $region40: #{encoder_forward.4} parent=35 // pred_fallthru
        _
    $region36: #{encoder_forward.4} parent=5 // pred_fallthru
      _
    %p208 = scmp.le.s32.totalorder 1, %s12
    %p209 = scmp.lt.s32.totalorder %s12, 5
    %p210 = pnand %p208, %p209
    %p211 = pneg %p210
    // Predicated region
    $region41: #{encoder_forward.4} parent=5 // pred_check
      _
    $region42: #{encoder_forward.4} parent=5 // pred_check_branch
      %213 = sbr.rel (%p210) target = $region44
    $region43: #{encoder_forward.4} parent=5 // pred_region
      %s214 = ssub.s32 %s12, 1
      %s215 = smul.u32 70, %s17
      %p216 = scmp.lt.s32.totalorder %s215, 279
      %s217 = scalar_select %p216, %s215, 279
      %s218 = smul.addr %s217, 4
      %s219 = smul.addr %s218, 4
      %s220 = scalar_lea.vmem %s0, %s219
      %p221 = pneg %p38
      %p222 = pneg %p35
      %p223 = pneg %p59
      %p224 = pneg %p56
      %p225 = pneg %p80
      %p226 = pneg %p77
      %p227 = pneg %p101
      %p228 = pneg %p98
      %p229 = pneg %p122
      %p230 = pneg %p119
      %p231 = pneg %p143
      %p232 = pneg %p140
      %p233 = pneg %p164
      %p234 = pneg %p161
      %s235 = smul.u32 70, %s17
      %p236 = scmp.lt.s32.totalorder %s235, 279
      %s237 = scalar_select %p236, %s235, 279
      %s238 = smul.addr %s237, 4
      %s239 = smul.addr %s238, 4
      %s240 = scalar_lea.vmem %s0, %s239
      %s241 = smul.u32 70, %s17
      %p243 = scmp.eq.s32.totalorder %s17, 0
      // Predicated region
      $region45: #{encoder_forward.4} parent=43 // pred_check
        %p244 = pneg %p243
      $region46: #{encoder_forward.4} parent=43 // pred_check_branch
        %246 = sbr.rel (%p244) target = $region48
      $region47: #{encoder_forward.4} parent=43 // pred_region
        %247 = vst [vmem:[#allocation3] sm:$0x1] 0.0
        %248 = vst [vmem:[#allocation4] sm:$0x1] 0.0
      $region48: #{encoder_forward.4} parent=43 // pred_fallthru
        _
      %v249 = vld [vmem:[%s240] sm:$0xff]
      %v250 = vld [vmem:[%s240 + $0x8] sm:$0xff]
      %v251 = vld [vmem:[%s240 + $0x10] sm:$0xff]
      %v252 = vld [vmem:[%s240 + $0x18] sm:$0xff]
      %v253 = vld [vmem:[%s240 + $0x20] sm:$0xff]
      %v254 = vld [vmem:[%s240 + $0x28] sm:$0xff]
      %v255 = vld [vmem:[%s240 + $0x30] sm:$0xff]
      %v256 = vld [vmem:[%s240 + $0x38] sm:$0xff]
      %v257 = vld [vmem:[%s240 + $0x40] sm:$0xff]
      %v258 = vld [vmem:[%s240 + $0x48] sm:$0xff]
      %v259 = vld [vmem:[%s240 + $0x50] sm:$0xff]
      %v260 = vld [vmem:[%s240 + $0x58] sm:$0xff]
      %v261 = vld [vmem:[%s240 + $0x60] sm:$0xff]
      %v262 = vld [vmem:[%s240 + $0x68] sm:$0xff]
      %v263 = vld [vmem:[%s240 + $0x70] sm:$0xff]
      %v264 = vld [vmem:[%s240 + $0x78] sm:$0xff]
      %v265 = vld [vmem:[%s240 + $0x80] sm:$0xff]
      %v266 = vld [vmem:[%s240 + $0x88] sm:$0xff]
      %v267 = vld [vmem:[%s240 + $0x90] sm:$0xff]
      %v268 = vld [vmem:[%s240 + $0x98] sm:$0xff]
      %v269 = vld [vmem:[%s240 + $0xa0] sm:$0xff]
      %v270 = vld [vmem:[%s240 + $0xa8] sm:$0xff]
      %v271 = vld [vmem:[%s240 + $0xb0] sm:$0xff]
      %v272 = vld [vmem:[%s240 + $0xb8] sm:$0xff]
      %v273 = vld [vmem:[%s240 + $0xc0] sm:$0xff]
      %v274 = vld [vmem:[%s240 + $0xc8] sm:$0xff]
      %v275 = vld [vmem:[%s240 + $0xd0] sm:$0xff]
      %v276 = vld [vmem:[%s240 + $0xd8] sm:$0xff]
      %v277 = vld [vmem:[%s240 + $0xe0] sm:$0xff]
      %v278 = vld [vmem:[%s240 + $0xe8] sm:$0xff]
      %v279 = vld [vmem:[%s240 + $0xf0] sm:$0xff]
      %v280 = vld [vmem:[%s240 + $0xf8] sm:$0xff]
      %v281 = vld [vmem:[%s240 + $0x100] sm:$0xff]
      %v282 = vld [vmem:[%s240 + $0x108] sm:$0xff]
      %v283 = vld [vmem:[%s240 + $0x110] sm:$0xff]
      %v284 = vld [vmem:[%s240 + $0x118] sm:$0xff]
      %v285 = vld [vmem:[%s240 + $0x120] sm:$0xff]
      %v286 = vld [vmem:[%s240 + $0x128] sm:$0xff]
      %v287 = vld [vmem:[%s240 + $0x130] sm:$0xff]
      %v288 = vld [vmem:[%s240 + $0x138] sm:$0xff]
      %v289 = vld [vmem:[%s240 + $0x140] sm:$0xff]
      %v290 = vld [vmem:[%s240 + $0x148] sm:$0xff]
      %v291 = vld [vmem:[%s240 + $0x150] sm:$0xff]
      %v292 = vld [vmem:[%s240 + $0x158] sm:$0xff]
      %v293 = vld [vmem:[%s240 + $0x160] sm:$0xff]
      %v294 = vld [vmem:[%s240 + $0x168] sm:$0xff]
      %v295 = vld [vmem:[%s240 + $0x170] sm:$0xff]
      %v296 = vld [vmem:[%s240 + $0x178] sm:$0xff]
      %v297 = vld [vmem:[%s240 + $0x180] sm:$0xff]
      %v298 = vld [vmem:[%s240 + $0x188] sm:$0xff]
      %v299 = vld [vmem:[%s240 + $0x190] sm:$0xff]
      %v300 = vld [vmem:[%s240 + $0x198] sm:$0xff]
      %v301 = vld [vmem:[%s240 + $0x1a0] sm:$0xff]
      %v302 = vld [vmem:[%s240 + $0x1a8] sm:$0xff]
      %v303 = vld [vmem:[%s240 + $0x1b0] sm:$0xff]
      %v304 = vld [vmem:[%s240 + $0x1b8] sm:$0xff]
      %v305 = vld [vmem:[%s240 + $0x1c0] sm:$0xff]
      %v306 = vld [vmem:[%s240 + $0x1c8] sm:$0xff]
      %v307 = vld [vmem:[%s240 + $0x1d0] sm:$0xff]
      %v308 = vld [vmem:[%s240 + $0x1d8] sm:$0xff]
      %v309 = vld [vmem:[%s240 + $0x1e0] sm:$0xff]
      %v310 = vld [vmem:[%s240 + $0x1e8] sm:$0xff]
      %v311 = vld [vmem:[%s240 + $0x1f0] sm:$0xff]
      %v312 = vld [vmem:[%s240 + $0x1f8] sm:$0xff]
      %v313 = vld [vmem:[%s240 + $0x200] sm:$0xff]
      %v314 = vld [vmem:[%s240 + $0x208] sm:$0xff]
      %v315 = vld [vmem:[%s240 + $0x210] sm:$0xff]
      %v316 = vld [vmem:[%s240 + $0x218] sm:$0xff]
      %v317 = vld [vmem:[%s240 + $0x220] sm:$0xff]
      %v318 = vld [vmem:[%s240 + $0x228] sm:$0xff]
      %v319 = vld [vmem:[%s240 + $0x230] sm:$0xff]
      %v320 = vld [vmem:[%s240 + $0x238] sm:$0xff]
      %v321 = vld [vmem:[%s240 + $0x240] sm:$0xff]
      %v322 = vld [vmem:[%s240 + $0x248] sm:$0xff]
      %v323 = vld [vmem:[%s240 + $0x250] sm:$0xff]
      %v324 = vld [vmem:[%s240 + $0x258] sm:$0xff]
      %v325 = vld [vmem:[%s240 + $0x260] sm:$0xff]
      %v326 = vld [vmem:[%s240 + $0x268] sm:$0xff]
      %v327 = vld [vmem:[%s240 + $0x270] sm:$0xff]
      %v328 = vld [vmem:[%s240 + $0x278] sm:$0xff]
      %v329 = vld [vmem:[%s240 + $0x280] sm:$0xff]
      %v330 = vld [vmem:[%s240 + $0x288] sm:$0xff]
      %v331 = vld [vmem:[%s240 + $0x290] sm:$0xff]
      %v332 = vld [vmem:[%s240 + $0x298] sm:$0xff]
      %v333 = vld [vmem:[%s240 + $0x2a0] sm:$0xff]
      %v334 = vld [vmem:[%s240 + $0x2a8] sm:$0xff]
      %v335 = vld [vmem:[%s240 + $0x2b0] sm:$0xff]
      %v336 = vld [vmem:[%s240 + $0x2b8] sm:$0xff]
      %v337 = vld [vmem:[%s240 + $0x2c0] sm:$0xff]
      %v338 = vld [vmem:[%s240 + $0x2c8] sm:$0xff]
      %v339 = vld [vmem:[%s240 + $0x2d0] sm:$0xff]
      %v340 = vld [vmem:[%s240 + $0x2d8] sm:$0xff]
      %v341 = vld [vmem:[%s240 + $0x2e0] sm:$0xff]
      %v342 = vld [vmem:[%s240 + $0x2e8] sm:$0xff]
      %v343 = vld [vmem:[%s240 + $0x2f0] sm:$0xff]
      %v344 = vld [vmem:[%s240 + $0x2f8] sm:$0xff]
      %v345 = vld [vmem:[%s240 + $0x300] sm:$0xff]
      %v346 = vld [vmem:[%s240 + $0x308] sm:$0xff]
      %v347 = vld [vmem:[%s240 + $0x310] sm:$0xff]
      %v348 = vld [vmem:[%s240 + $0x318] sm:$0xff]
      %v349 = vld [vmem:[%s240 + $0x320] sm:$0xff]
      %v350 = vld [vmem:[%s240 + $0x328] sm:$0xff]
      %v351 = vld [vmem:[%s240 + $0x330] sm:$0xff]
      %v352 = vld [vmem:[%s240 + $0x338] sm:$0xff]
      %v353 = vld [vmem:[%s240 + $0x340] sm:$0xff]
      %v354 = vld [vmem:[%s240 + $0x348] sm:$0xff]
      %v355 = vld [vmem:[%s240 + $0x350] sm:$0xff]
      %v356 = vld [vmem:[%s240 + $0x358] sm:$0xff]
      %v357 = vld [vmem:[%s240 + $0x360] sm:$0xff]
      %v358 = vld [vmem:[%s240 + $0x368] sm:$0xff]
      %v359 = vld [vmem:[%s240 + $0x370] sm:$0xff]
      %v360 = vld [vmem:[%s240 + $0x378] sm:$0xff]
      %v361 = vld [vmem:[%s240 + $0x380] sm:$0xff]
      %v362 = vld [vmem:[%s240 + $0x388] sm:$0xff]
      %v363 = vld [vmem:[%s240 + $0x390] sm:$0xff]
      %v364 = vld [vmem:[%s240 + $0x398] sm:$0xff]
      %v365 = vld [vmem:[%s240 + $0x3a0] sm:$0xff]
      %v366 = vld [vmem:[%s240 + $0x3a8] sm:$0xff]
      %v367 = vld [vmem:[%s240 + $0x3b0] sm:$0xff]
      %v368 = vld [vmem:[%s240 + $0x3b8] sm:$0xff]
      %v369 = vld [vmem:[%s240 + $0x3c0] sm:$0xff]
      %v370 = vld [vmem:[%s240 + $0x3c8] sm:$0xff]
      %v371 = vld [vmem:[%s240 + $0x3d0] sm:$0xff]
      %v372 = vld [vmem:[%s240 + $0x3d8] sm:$0xff]
      %v373 = vld [vmem:[%s240 + $0x3e0] sm:$0xff]
      %v374 = vld [vmem:[%s240 + $0x3e8] sm:$0xff]
      %v375 = vld [vmem:[%s240 + $0x3f0] sm:$0xff]
      %v376 = vld [vmem:[%s240 + $0x3f8] sm:$0xff]
      %v377 = vld [vmem:[%s240 + $0x400] sm:$0xff]
      %v378 = vld [vmem:[%s240 + $0x408] sm:$0xff]
      %v379 = vld [vmem:[%s240 + $0x410] sm:$0xff]
      %v380 = vld [vmem:[%s240 + $0x418] sm:$0xff]
      %v381 = vld [vmem:[%s240 + $0x420] sm:$0xff]
      %v382 = vld [vmem:[%s240 + $0x428] sm:$0xff]
      %v383 = vld [vmem:[%s240 + $0x430] sm:$0xff]
      %v384 = vld [vmem:[%s240 + $0x438] sm:$0xff]
      %v385 = vld [vmem:[%s240 + $0x440] sm:$0xff]
      %v386 = vld [vmem:[%s240 + $0x448] sm:$0xff]
      %v387 = vld [vmem:[%s240 + $0x450] sm:$0xff]
      %v388 = vld [vmem:[%s240 + $0x458] sm:$0xff]
      %v389 = vld [vmem:[%s1] sm:$0xf]
      %v390 = vld [vmem:[%s1 + $0x4] sm:$0xf]
      %v391 = vld [vmem:[%s1 + $0x8] sm:$0xf]
      %v392 = vld [vmem:[%s1 + $0xc] sm:$0xf]
      %v393 = vld [vmem:[%s1 + $0x10] sm:$0xf]
      %v394 = vld [vmem:[%s1 + $0x14] sm:$0xf]
      %v395 = vld [vmem:[%s1 + $0x18] sm:$0xf]
      %v396 = vld [vmem:[%s1 + $0x1c] sm:$0xf]
      %v397 = vld [vmem:[%s1 + $0x20] sm:$0xf]
      %v398 = vld [vmem:[%s1 + $0x24] sm:$0xf]
      %v399 = vld [vmem:[%s1 + $0x28] sm:$0xf]
      %v400 = vld [vmem:[%s1 + $0x2c] sm:$0xf]
      %v401 = vld [vmem:[%s1 + $0x30] sm:$0xf]
      %v402 = vld [vmem:[%s1 + $0x34] sm:$0xf]
      %v403 = vld [vmem:[%s1 + $0x38] sm:$0xf]
      %v404 = vld [vmem:[%s1 + $0x3c] sm:$0xf]
      %v405 = vld [vmem:[%s1 + $0x40] sm:$0xf]
      %v406 = vld [vmem:[%s1 + $0x44] sm:$0xf]
      %v407 = vld [vmem:[%s1 + $0x48] sm:$0xf]
      %v408 = vld [vmem:[%s1 + $0x4c] sm:$0xf]
      %v409 = vld [vmem:[%s1 + $0x50] sm:$0xf]
      %v410 = vld [vmem:[%s1 + $0x54] sm:$0xf]
      %v411 = vld [vmem:[%s1 + $0x58] sm:$0xf]
      %v412 = vld [vmem:[%s1 + $0x5c] sm:$0xf]
      %v413 = vld [vmem:[%s1 + $0x60] sm:$0xf]
      %v414 = vld [vmem:[%s1 + $0x64] sm:$0xf]
      %v415 = vld [vmem:[%s1 + $0x68] sm:$0xf]
      %v416 = vld [vmem:[%s1 + $0x6c] sm:$0xf]
      %v417 = vld [vmem:[%s1 + $0x70] sm:$0xf]
      %v418 = vld [vmem:[%s1 + $0x74] sm:$0xf]
      %v419 = vld [vmem:[%s1 + $0x78] sm:$0xf]
      %v420 = vld [vmem:[%s1 + $0x7c] sm:$0xf]
      %v421 = vld [vmem:[%s1 + $0x80] sm:$0xf]
      %v422 = vld [vmem:[%s1 + $0x84] sm:$0xf]
      %v423 = vld [vmem:[%s1 + $0x88] sm:$0xf]
      %v424 = vld [vmem:[%s1 + $0x8c] sm:$0xf]
      %v425 = vld [vmem:[%s1 + $0x90] sm:$0xf]
      %v426 = vld [vmem:[%s1 + $0x94] sm:$0xf]
      %v427 = vld [vmem:[%s1 + $0x98] sm:$0xf]
      %v428 = vld [vmem:[%s1 + $0x9c] sm:$0xf]
      %v429 = vld [vmem:[%s1 + $0xa0] sm:$0xf]
      %v430 = vld [vmem:[%s1 + $0xa4] sm:$0xf]
      %v431 = vld [vmem:[%s1 + $0xa8] sm:$0xf]
      %v432 = vld [vmem:[%s1 + $0xac] sm:$0xf]
      %v433 = vld [vmem:[%s1 + $0xb0] sm:$0xf]
      %v434 = vld [vmem:[%s1 + $0xb4] sm:$0xf]
      %v435 = vld [vmem:[%s1 + $0xb8] sm:$0xf]
      %v436 = vld [vmem:[%s1 + $0xbc] sm:$0xf]
      %v437 = vld [vmem:[%s1 + $0xc0] sm:$0xf]
      %v438 = vld [vmem:[%s1 + $0xc4] sm:$0xf]
      %v439 = vld [vmem:[%s1 + $0xc8] sm:$0xf]
      %v440 = vld [vmem:[%s1 + $0xcc] sm:$0xf]
      %v441 = vld [vmem:[%s1 + $0xd0] sm:$0xf]
      %v442 = vld [vmem:[%s1 + $0xd4] sm:$0xf]
      %v583 = vunpack.c.l.b16 %v249
      %v584 = vunpack.c.h.b16 %v249
      %v585 = vunpack.c.l.b16 %v250
      %v586 = vunpack.c.h.b16 %v250
      %v587 = vunpack.c.l.b16 %v251
      %v588 = vunpack.c.h.b16 %v251
      %v589 = vunpack.c.l.b16 %v252
      %v590 = vunpack.c.h.b16 %v252
      %v591 = vunpack.c.l.b16 %v253
      %v592 = vunpack.c.h.b16 %v253
      %v593 = vunpack.c.l.b16 %v254
      %v594 = vunpack.c.h.b16 %v254
      %v595 = vunpack.c.l.b16 %v255
      %v596 = vunpack.c.h.b16 %v255
      %v597 = vunpack.c.l.b16 %v256
      %v598 = vunpack.c.h.b16 %v256
      %v599 = vunpack.c.l.b16 %v257
      %v600 = vunpack.c.h.b16 %v257
      %v601 = vunpack.c.l.b16 %v258
      %v602 = vunpack.c.h.b16 %v258
      %v603 = vunpack.c.l.b16 %v259
      %v604 = vunpack.c.h.b16 %v259
      %v605 = vunpack.c.l.b16 %v260
      %v606 = vunpack.c.h.b16 %v260
      %v607 = vunpack.c.l.b16 %v261
      %v608 = vunpack.c.h.b16 %v261
      %v609 = vunpack.c.l.b16 %v262
      %v610 = vunpack.c.h.b16 %v262
      %v611 = vunpack.c.l.b16 %v263
      %v612 = vunpack.c.h.b16 %v263
      %v613 = vunpack.c.l.b16 %v264
      %v614 = vunpack.c.h.b16 %v264
      %v615 = vunpack.c.l.b16 %v265
      %v616 = vunpack.c.h.b16 %v265
      %v617 = vunpack.c.l.b16 %v266
      %v618 = vunpack.c.h.b16 %v266
      %v619 = vunpack.c.l.b16 %v267
      %v620 = vunpack.c.h.b16 %v267
      %v621 = vunpack.c.l.b16 %v268
      %v622 = vunpack.c.h.b16 %v268
      %v623 = vunpack.c.l.b16 %v269
      %v624 = vunpack.c.h.b16 %v269
      %v625 = vunpack.c.l.b16 %v270
      %v626 = vunpack.c.h.b16 %v270
      %v627 = vunpack.c.l.b16 %v271
      %v628 = vunpack.c.h.b16 %v271
      %v629 = vunpack.c.l.b16 %v272
      %v630 = vunpack.c.h.b16 %v272
      %v631 = vunpack.c.l.b16 %v273
      %v632 = vunpack.c.h.b16 %v273
      %v633 = vunpack.c.l.b16 %v274
      %v634 = vunpack.c.h.b16 %v274
      %v635 = vunpack.c.l.b16 %v275
      %v636 = vunpack.c.h.b16 %v275
      %v637 = vunpack.c.l.b16 %v276
      %v638 = vunpack.c.h.b16 %v276
      %v639 = vunpack.c.l.b16 %v277
      %v640 = vunpack.c.h.b16 %v277
      %v641 = vunpack.c.l.b16 %v278
      %v642 = vunpack.c.h.b16 %v278
      %v643 = vunpack.c.l.b16 %v279
      %v644 = vunpack.c.h.b16 %v279
      %v645 = vunpack.c.l.b16 %v280
      %v646 = vunpack.c.h.b16 %v280
      %v647 = vunpack.c.l.b16 %v281
      %v648 = vunpack.c.h.b16 %v281
      %v649 = vunpack.c.l.b16 %v282
      %v650 = vunpack.c.h.b16 %v282
      %v651 = vunpack.c.l.b16 %v283
      %v652 = vunpack.c.h.b16 %v283
      %v653 = vunpack.c.l.b16 %v284
      %v654 = vunpack.c.h.b16 %v284
      %v655 = vunpack.c.l.b16 %v285
      %v656 = vunpack.c.h.b16 %v285
      %v657 = vunpack.c.l.b16 %v286
      %v658 = vunpack.c.h.b16 %v286
      %v659 = vunpack.c.l.b16 %v287
      %v660 = vunpack.c.h.b16 %v287
      %v661 = vunpack.c.l.b16 %v288
      %v662 = vunpack.c.h.b16 %v288
      %v663 = vunpack.c.l.b16 %v289
      %v664 = vunpack.c.h.b16 %v289
      %v665 = vunpack.c.l.b16 %v290
      %v666 = vunpack.c.h.b16 %v290
      %v667 = vunpack.c.l.b16 %v291
      %v668 = vunpack.c.h.b16 %v291
      %v669 = vunpack.c.l.b16 %v292
      %v670 = vunpack.c.h.b16 %v292
      %v671 = vunpack.c.l.b16 %v293
      %v672 = vunpack.c.h.b16 %v293
      %v673 = vunpack.c.l.b16 %v294
      %v674 = vunpack.c.h.b16 %v294
      %v675 = vunpack.c.l.b16 %v295
      %v676 = vunpack.c.h.b16 %v295
      %v677 = vunpack.c.l.b16 %v296
      %v678 = vunpack.c.h.b16 %v296
      %v679 = vunpack.c.l.b16 %v297
      %v680 = vunpack.c.h.b16 %v297
      %v681 = vunpack.c.l.b16 %v298
      %v682 = vunpack.c.h.b16 %v298
      %v683 = vunpack.c.l.b16 %v299
      %v684 = vunpack.c.h.b16 %v299
      %v685 = vunpack.c.l.b16 %v300
      %v686 = vunpack.c.h.b16 %v300
      %v687 = vunpack.c.l.b16 %v301
      %v688 = vunpack.c.h.b16 %v301
      %v689 = vunpack.c.l.b16 %v302
      %v690 = vunpack.c.h.b16 %v302
      %v691 = vunpack.c.l.b16 %v303
      %v692 = vunpack.c.h.b16 %v303
      %v693 = vunpack.c.l.b16 %v304
      %v694 = vunpack.c.h.b16 %v304
      %v695 = vunpack.c.l.b16 %v305
      %v696 = vunpack.c.h.b16 %v305
      %v697 = vunpack.c.l.b16 %v306
      %v698 = vunpack.c.h.b16 %v306
      %v699 = vunpack.c.l.b16 %v307
      %v700 = vunpack.c.h.b16 %v307
      %v701 = vunpack.c.l.b16 %v308
      %v702 = vunpack.c.h.b16 %v308
      %v703 = vunpack.c.l.b16 %v309
      %v704 = vunpack.c.h.b16 %v309
      %v705 = vunpack.c.l.b16 %v310
      %v706 = vunpack.c.h.b16 %v310
      %v707 = vunpack.c.l.b16 %v311
      %v708 = vunpack.c.h.b16 %v311
      %v709 = vunpack.c.l.b16 %v312
      %v710 = vunpack.c.h.b16 %v312
      %v711 = vunpack.c.l.b16 %v313
      %v712 = vunpack.c.h.b16 %v313
      %v713 = vunpack.c.l.b16 %v314
      %v714 = vunpack.c.h.b16 %v314
      %v715 = vunpack.c.l.b16 %v315
      %v716 = vunpack.c.h.b16 %v315
      %v717 = vunpack.c.l.b16 %v316
      %v718 = vunpack.c.h.b16 %v316
      %v719 = vunpack.c.l.b16 %v317
      %v720 = vunpack.c.h.b16 %v317
      %v721 = vunpack.c.l.b16 %v318
      %v722 = vunpack.c.h.b16 %v318
      %v723 = vunpack.c.l.b16 %v319
      %v724 = vunpack.c.h.b16 %v319
      %v725 = vunpack.c.l.b16 %v320
      %v726 = vunpack.c.h.b16 %v320
      %v727 = vunpack.c.l.b16 %v321
      %v728 = vunpack.c.h.b16 %v321
      %v729 = vunpack.c.l.b16 %v322
      %v730 = vunpack.c.h.b16 %v322
      %v731 = vunpack.c.l.b16 %v323
      %v732 = vunpack.c.h.b16 %v323
      %v733 = vunpack.c.l.b16 %v324
      %v734 = vunpack.c.h.b16 %v324
      %v735 = vunpack.c.l.b16 %v325
      %v736 = vunpack.c.h.b16 %v325
      %v737 = vunpack.c.l.b16 %v326
      %v738 = vunpack.c.h.b16 %v326
      %v739 = vunpack.c.l.b16 %v327
      %v740 = vunpack.c.h.b16 %v327
      %v741 = vunpack.c.l.b16 %v328
      %v742 = vunpack.c.h.b16 %v328
      %v743 = vunpack.c.l.b16 %v329
      %v744 = vunpack.c.h.b16 %v329
      %v745 = vunpack.c.l.b16 %v330
      %v746 = vunpack.c.h.b16 %v330
      %v747 = vunpack.c.l.b16 %v331
      %v748 = vunpack.c.h.b16 %v331
      %v749 = vunpack.c.l.b16 %v332
      %v750 = vunpack.c.h.b16 %v332
      %v751 = vunpack.c.l.b16 %v333
      %v752 = vunpack.c.h.b16 %v333
      %v753 = vunpack.c.l.b16 %v334
      %v754 = vunpack.c.h.b16 %v334
      %v755 = vunpack.c.l.b16 %v335
      %v756 = vunpack.c.h.b16 %v335
      %v757 = vunpack.c.l.b16 %v336
      %v758 = vunpack.c.h.b16 %v336
      %v759 = vunpack.c.l.b16 %v337
      %v760 = vunpack.c.h.b16 %v337
      %v761 = vunpack.c.l.b16 %v338
      %v762 = vunpack.c.h.b16 %v338
      %v763 = vunpack.c.l.b16 %v339
      %v764 = vunpack.c.h.b16 %v339
      %v765 = vunpack.c.l.b16 %v340
      %v766 = vunpack.c.h.b16 %v340
      %v767 = vunpack.c.l.b16 %v341
      %v768 = vunpack.c.h.b16 %v341
      %v769 = vunpack.c.l.b16 %v342
      %v770 = vunpack.c.h.b16 %v342
      %v771 = vunpack.c.l.b16 %v343
      %v772 = vunpack.c.h.b16 %v343
      %v773 = vunpack.c.l.b16 %v344
      %v774 = vunpack.c.h.b16 %v344
      %v775 = vunpack.c.l.b16 %v345
      %v776 = vunpack.c.h.b16 %v345
      %v777 = vunpack.c.l.b16 %v346
      %v778 = vunpack.c.h.b16 %v346
      %v779 = vunpack.c.l.b16 %v347
      %v780 = vunpack.c.h.b16 %v347
      %v781 = vunpack.c.l.b16 %v348
      %v782 = vunpack.c.h.b16 %v348
      %v783 = vunpack.c.l.b16 %v349
      %v784 = vunpack.c.h.b16 %v349
      %v785 = vunpack.c.l.b16 %v350
      %v786 = vunpack.c.h.b16 %v350
      %v787 = vunpack.c.l.b16 %v351
      %v788 = vunpack.c.h.b16 %v351
      %v789 = vunpack.c.l.b16 %v352
      %v790 = vunpack.c.h.b16 %v352
      %v791 = vunpack.c.l.b16 %v353
      %v792 = vunpack.c.h.b16 %v353
      %v793 = vunpack.c.l.b16 %v354
      %v794 = vunpack.c.h.b16 %v354
      %v795 = vunpack.c.l.b16 %v355
      %v796 = vunpack.c.h.b16 %v355
      %v797 = vunpack.c.l.b16 %v356
      %v798 = vunpack.c.h.b16 %v356
      %v799 = vunpack.c.l.b16 %v357
      %v800 = vunpack.c.h.b16 %v357
      %v801 = vunpack.c.l.b16 %v358
      %v802 = vunpack.c.h.b16 %v358
      %v803 = vunpack.c.l.b16 %v359
      %v804 = vunpack.c.h.b16 %v359
      %v805 = vunpack.c.l.b16 %v360
      %v806 = vunpack.c.h.b16 %v360
      %v807 = vunpack.c.l.b16 %v361
      %v808 = vunpack.c.h.b16 %v361
      %v809 = vunpack.c.l.b16 %v362
      %v810 = vunpack.c.h.b16 %v362
      %v811 = vunpack.c.l.b16 %v363
      %v812 = vunpack.c.h.b16 %v363
      %v813 = vunpack.c.l.b16 %v364
      %v814 = vunpack.c.h.b16 %v364
      %v815 = vunpack.c.l.b16 %v365
      %v816 = vunpack.c.h.b16 %v365
      %v817 = vunpack.c.l.b16 %v366
      %v818 = vunpack.c.h.b16 %v366
      %v819 = vunpack.c.l.b16 %v367
      %v820 = vunpack.c.h.b16 %v367
      %v821 = vunpack.c.l.b16 %v368
      %v822 = vunpack.c.h.b16 %v368
      %v823 = vunpack.c.l.b16 %v369
      %v824 = vunpack.c.h.b16 %v369
      %v825 = vunpack.c.l.b16 %v370
      %v826 = vunpack.c.h.b16 %v370
      %v827 = vunpack.c.l.b16 %v371
      %v828 = vunpack.c.h.b16 %v371
      %v829 = vunpack.c.l.b16 %v372
      %v830 = vunpack.c.h.b16 %v372
      %v831 = vunpack.c.l.b16 %v373
      %v832 = vunpack.c.h.b16 %v373
      %v833 = vunpack.c.l.b16 %v374
      %v834 = vunpack.c.h.b16 %v374
      %v835 = vunpack.c.l.b16 %v375
      %v836 = vunpack.c.h.b16 %v375
      %v837 = vunpack.c.l.b16 %v376
      %v838 = vunpack.c.h.b16 %v376
      %v839 = vunpack.c.l.b16 %v377
      %v840 = vunpack.c.h.b16 %v377
      %v841 = vunpack.c.l.b16 %v378
      %v842 = vunpack.c.h.b16 %v378
      %v843 = vunpack.c.l.b16 %v379
      %v844 = vunpack.c.h.b16 %v379
      %v845 = vunpack.c.l.b16 %v380
      %v846 = vunpack.c.h.b16 %v380
      %v847 = vunpack.c.l.b16 %v381
      %v848 = vunpack.c.h.b16 %v381
      %v849 = vunpack.c.l.b16 %v382
      %v850 = vunpack.c.h.b16 %v382
      %v851 = vunpack.c.l.b16 %v383
      %v852 = vunpack.c.h.b16 %v383
      %v853 = vunpack.c.l.b16 %v384
      %v854 = vunpack.c.h.b16 %v384
      %v855 = vunpack.c.l.b16 %v385
      %v856 = vunpack.c.h.b16 %v385
      %v857 = vunpack.c.l.b16 %v386
      %v858 = vunpack.c.h.b16 %v386
      %v859 = vunpack.c.l.b16 %v387
      %v860 = vunpack.c.h.b16 %v387
      %v861 = vunpack.c.l.b16 %v388
      %v862 = vunpack.c.h.b16 %v388
      %v863 = vpack.c.b16 %v587, %v583
      %v864 = vpack.c.b16 %v588, %v584
      %v865 = vpack.c.b16 %v589, %v585
      %v866 = vpack.c.b16 %v590, %v586
      %v867 = vpack.c.b16 %v595, %v591
      %v868 = vpack.c.b16 %v596, %v592
      %v869 = vpack.c.b16 %v597, %v593
      %v870 = vpack.c.b16 %v598, %v594
      %v871 = vpack.c.b16 %v603, %v599
      %v872 = vpack.c.b16 %v604, %v600
      %v873 = vpack.c.b16 %v605, %v601
      %v874 = vpack.c.b16 %v606, %v602
      %v875 = vpack.c.b16 %v611, %v607
      %v876 = vpack.c.b16 %v612, %v608
      %v877 = vpack.c.b16 %v613, %v609
      %v878 = vpack.c.b16 %v614, %v610
      %v879 = vpack.c.b16 %v619, %v615
      %v880 = vpack.c.b16 %v620, %v616
      %v881 = vpack.c.b16 %v621, %v617
      %v882 = vpack.c.b16 %v622, %v618
      %v883 = vpack.c.b16 %v627, %v623
      %v884 = vpack.c.b16 %v628, %v624
      %v885 = vpack.c.b16 %v629, %v625
      %v886 = vpack.c.b16 %v630, %v626
      %v887 = vpack.c.b16 %v635, %v631
      %v888 = vpack.c.b16 %v636, %v632
      %v889 = vpack.c.b16 %v637, %v633
      %v890 = vpack.c.b16 %v638, %v634
      %v891 = vpack.c.b16 %v643, %v639
      %v892 = vpack.c.b16 %v644, %v640
      %v893 = vpack.c.b16 %v645, %v641
      %v894 = vpack.c.b16 %v646, %v642
      %v895 = vpack.c.b16 %v651, %v647
      %v896 = vpack.c.b16 %v652, %v648
      %v897 = vpack.c.b16 %v653, %v649
      %v898 = vpack.c.b16 %v654, %v650
      %v899 = vpack.c.b16 %v659, %v655
      %v900 = vpack.c.b16 %v660, %v656
      %v901 = vpack.c.b16 %v661, %v657
      %v902 = vpack.c.b16 %v662, %v658
      %v903 = vpack.c.b16 %v667, %v663
      %v904 = vpack.c.b16 %v668, %v664
      %v905 = vpack.c.b16 %v669, %v665
      %v906 = vpack.c.b16 %v670, %v666
      %v907 = vpack.c.b16 %v675, %v671
      %v908 = vpack.c.b16 %v676, %v672
      %v909 = vpack.c.b16 %v677, %v673
      %v910 = vpack.c.b16 %v678, %v674
      %v911 = vpack.c.b16 %v683, %v679
      %v912 = vpack.c.b16 %v684, %v680
      %v913 = vpack.c.b16 %v685, %v681
      %v914 = vpack.c.b16 %v686, %v682
      %v915 = vpack.c.b16 %v691, %v687
      %v916 = vpack.c.b16 %v692, %v688
      %v917 = vpack.c.b16 %v693, %v689
      %v918 = vpack.c.b16 %v694, %v690
      %v919 = vpack.c.b16 %v699, %v695
      %v920 = vpack.c.b16 %v700, %v696
      %v921 = vpack.c.b16 %v701, %v697
      %v922 = vpack.c.b16 %v702, %v698
      %v923 = vpack.c.b16 %v707, %v703
      %v924 = vpack.c.b16 %v708, %v704
      %v925 = vpack.c.b16 %v709, %v705
      %v926 = vpack.c.b16 %v710, %v706
      %v927 = vpack.c.b16 %v715, %v711
      %v928 = vpack.c.b16 %v716, %v712
      %v929 = vpack.c.b16 %v717, %v713
      %v930 = vpack.c.b16 %v718, %v714
      %v931 = vpack.c.b16 %v723, %v719
      %v932 = vpack.c.b16 %v724, %v720
      %v933 = vpack.c.b16 %v725, %v721
      %v934 = vpack.c.b16 %v726, %v722
      %v935 = vpack.c.b16 %v731, %v727
      %v936 = vpack.c.b16 %v732, %v728
      %v937 = vpack.c.b16 %v733, %v729
      %v938 = vpack.c.b16 %v734, %v730
      %v939 = vpack.c.b16 %v739, %v735
      %v940 = vpack.c.b16 %v740, %v736
      %v941 = vpack.c.b16 %v741, %v737
      %v942 = vpack.c.b16 %v742, %v738
      %v943 = vpack.c.b16 %v747, %v743
      %v944 = vpack.c.b16 %v748, %v744
      %v945 = vpack.c.b16 %v749, %v745
      %v946 = vpack.c.b16 %v750, %v746
      %v947 = vpack.c.b16 %v755, %v751
      %v948 = vpack.c.b16 %v756, %v752
      %v949 = vpack.c.b16 %v757, %v753
      %v950 = vpack.c.b16 %v758, %v754
      %v951 = vpack.c.b16 %v763, %v759
      %v952 = vpack.c.b16 %v764, %v760
      %v953 = vpack.c.b16 %v765, %v761
      %v954 = vpack.c.b16 %v766, %v762
      %v955 = vpack.c.b16 %v771, %v767
      %v956 = vpack.c.b16 %v772, %v768
      %v957 = vpack.c.b16 %v773, %v769
      %v958 = vpack.c.b16 %v774, %v770
      %v959 = vpack.c.b16 %v779, %v775
      %v960 = vpack.c.b16 %v780, %v776
      %v961 = vpack.c.b16 %v781, %v777
      %v962 = vpack.c.b16 %v782, %v778
      %v963 = vpack.c.b16 %v787, %v783
      %v964 = vpack.c.b16 %v788, %v784
      %v965 = vpack.c.b16 %v789, %v785
      %v966 = vpack.c.b16 %v790, %v786
      %v967 = vpack.c.b16 %v795, %v791
      %v968 = vpack.c.b16 %v796, %v792
      %v969 = vpack.c.b16 %v797, %v793
      %v970 = vpack.c.b16 %v798, %v794
      %v971 = vpack.c.b16 %v803, %v799
      %v972 = vpack.c.b16 %v804, %v800
      %v973 = vpack.c.b16 %v805, %v801
      %v974 = vpack.c.b16 %v806, %v802
      %v975 = vpack.c.b16 %v811, %v807
      %v976 = vpack.c.b16 %v812, %v808
      %v977 = vpack.c.b16 %v813, %v809
      %v978 = vpack.c.b16 %v814, %v810
      %v979 = vpack.c.b16 %v819, %v815
      %v980 = vpack.c.b16 %v820, %v816
      %v981 = vpack.c.b16 %v821, %v817
      %v982 = vpack.c.b16 %v822, %v818
      %v983 = vpack.c.b16 %v827, %v823
      %v984 = vpack.c.b16 %v828, %v824
      %v985 = vpack.c.b16 %v829, %v825
      %v986 = vpack.c.b16 %v830, %v826
      %v987 = vpack.c.b16 %v835, %v831
      %v988 = vpack.c.b16 %v836, %v832
      %v989 = vpack.c.b16 %v837, %v833
      %v990 = vpack.c.b16 %v838, %v834
      %v991 = vpack.c.b16 %v843, %v839
      %v992 = vpack.c.b16 %v844, %v840
      %v993 = vpack.c.b16 %v845, %v841
      %v994 = vpack.c.b16 %v846, %v842
      %v995 = vpack.c.b16 %v851, %v847
      %v996 = vpack.c.b16 %v852, %v848
      %v997 = vpack.c.b16 %v853, %v849
      %v998 = vpack.c.b16 %v854, %v850
      %v999 = vpack.c.b16 %v859, %v855
      %v1000 = vpack.c.b16 %v860, %v856
      %v1001 = vpack.c.b16 %v861, %v857
      %v1002 = vpack.c.b16 %v862, %v858
      %v1162 = vunpack.c.l.b16 %v389
      %v1163 = vunpack.c.l.b16 %v390
      %v1164 = vunpack.c.l.b16 %v391
      %v1165 = vunpack.c.l.b16 %v392
      %v1166 = vunpack.c.l.b16 %v393
      %v1167 = vunpack.c.l.b16 %v394
      %v1168 = vunpack.c.l.b16 %v395
      %v1169 = vunpack.c.l.b16 %v396
      %v1170 = vunpack.c.l.b16 %v397
      %v1171 = vunpack.c.l.b16 %v398
      %v1172 = vunpack.c.l.b16 %v399
      %v1173 = vunpack.c.l.b16 %v400
      %v1174 = vunpack.c.l.b16 %v401
      %v1175 = vunpack.c.l.b16 %v402
      %v1176 = vunpack.c.l.b16 %v403
      %v1177 = vunpack.c.l.b16 %v404
      %v1178 = vunpack.c.l.b16 %v405
      %v1179 = vunpack.c.l.b16 %v406
      %v1180 = vunpack.c.l.b16 %v407
      %v1181 = vunpack.c.l.b16 %v408
      %v1182 = vunpack.c.l.b16 %v409
      %v1183 = vunpack.c.l.b16 %v410
      %v1184 = vunpack.c.l.b16 %v411
      %v1185 = vunpack.c.l.b16 %v412
      %v1186 = vunpack.c.l.b16 %v413
      %v1187 = vunpack.c.l.b16 %v414
      %v1188 = vunpack.c.l.b16 %v415
      %v1189 = vunpack.c.l.b16 %v416
      %v1190 = vunpack.c.l.b16 %v417
      %v1191 = vunpack.c.l.b16 %v418
      %v1192 = vunpack.c.l.b16 %v419
      %v1193 = vunpack.c.l.b16 %v420
      %v1194 = vunpack.c.l.b16 %v421
      %v1195 = vunpack.c.l.b16 %v422
      %v1196 = vunpack.c.l.b16 %v423
      %v1197 = vunpack.c.l.b16 %v424
      %v1198 = vunpack.c.l.b16 %v425
      %v1199 = vunpack.c.l.b16 %v426
      %v1200 = vunpack.c.l.b16 %v427
      %v1201 = vunpack.c.l.b16 %v428
      %v1202 = vunpack.c.l.b16 %v429
      %v1203 = vunpack.c.l.b16 %v430
      %v1204 = vunpack.c.l.b16 %v431
      %v1205 = vunpack.c.l.b16 %v432
      %v1206 = vunpack.c.l.b16 %v433
      %v1207 = vunpack.c.l.b16 %v434
      %v1208 = vunpack.c.l.b16 %v435
      %v1209 = vunpack.c.l.b16 %v436
      %v1210 = vunpack.c.l.b16 %v437
      %v1211 = vunpack.c.l.b16 %v438
      %v1212 = vunpack.c.l.b16 %v439
      %v1213 = vunpack.c.l.b16 %v440
      %v1214 = vunpack.c.l.b16 %v441
      %v1215 = vunpack.c.l.b16 %v442
      %v1216 = vpack.c.b16 %v1163, %v1162
      %v1217 = vpack.c.b16 %v1165, %v1164
      %v1218 = vpack.c.b16 %v1167, %v1166
      %v1219 = vpack.c.b16 %v1169, %v1168
      %v1220 = vpack.c.b16 %v1171, %v1170
      %v1221 = vpack.c.b16 %v1173, %v1172
      %v1222 = vpack.c.b16 %v1175, %v1174
      %v1223 = vpack.c.b16 %v1177, %v1176
      %v1224 = vpack.c.b16 %v1179, %v1178
      %v1225 = vpack.c.b16 %v1181, %v1180
      %v1226 = vpack.c.b16 %v1183, %v1182
      %v1227 = vpack.c.b16 %v1185, %v1184
      %v1228 = vpack.c.b16 %v1187, %v1186
      %v1229 = vpack.c.b16 %v1189, %v1188
      %v1230 = vpack.c.b16 %v1191, %v1190
      %v1231 = vpack.c.b16 %v1193, %v1192
      %v1232 = vpack.c.b16 %v1195, %v1194
      %v1233 = vpack.c.b16 %v1197, %v1196
      %v1234 = vpack.c.b16 %v1199, %v1198
      %v1235 = vpack.c.b16 %v1201, %v1200
      %v1236 = vpack.c.b16 %v1203, %v1202
      %v1237 = vpack.c.b16 %v1205, %v1204
      %v1238 = vpack.c.b16 %v1207, %v1206
      %v1239 = vpack.c.b16 %v1209, %v1208
      %v1240 = vpack.c.b16 %v1211, %v1210
      %v1241 = vpack.c.b16 %v1213, %v1212
      %v1242 = vpack.c.b16 %v1215, %v1214
      %vm1270 = vcmask 392192
      %v1272 = vsel %vm1270, %v866, 0
      %v1275 = vsel %vm1270, %v870, 0
      %v1278 = vsel %vm1270, %v874, 0
      %v1281 = vsel %vm1270, %v878, 0
      %v1284 = vsel %vm1270, %v882, 0
      %v1287 = vsel %vm1270, %v886, 0
      %v1290 = vsel %vm1270, %v890, 0
      %v1293 = vsel %vm1270, %v894, 0
      %v1296 = vsel %vm1270, %v898, 0
      %v1299 = vsel %vm1270, %v902, 0
      %v1302 = vsel %vm1270, %v906, 0
      %v1305 = vsel %vm1270, %v910, 0
      %v1308 = vsel %vm1270, %v914, 0
      %v1311 = vsel %vm1270, %v918, 0
      %v1314 = vsel %vm1270, %v922, 0
      %v1317 = vsel %vm1270, %v926, 0
      %v1320 = vsel %vm1270, %v930, 0
      %v1323 = vsel %vm1270, %v934, 0
      %v1326 = vsel %vm1270, %v938, 0
      %v1329 = vsel %vm1270, %v942, 0
      %v1332 = vsel %vm1270, %v946, 0
      %v1335 = vsel %vm1270, %v950, 0
      %v1338 = vsel %vm1270, %v954, 0
      %v1341 = vsel %vm1270, %v958, 0
      %v1344 = vsel %vm1270, %v962, 0
      %v1347 = vsel %vm1270, %v966, 0
      %v1350 = vsel %vm1270, %v970, 0
      %v1353 = vsel %vm1270, %v974, 0
      %v1356 = vsel %vm1270, %v978, 0
      %v1359 = vsel %vm1270, %v982, 0
      %v1362 = vsel %vm1270, %v986, 0
      %v1365 = vsel %vm1270, %v990, 0
      %v1368 = vsel %vm1270, %v994, 0
      %v1371 = vsel %vm1270, %v998, 0
      %v1374 = vsel %vm1270, %v1002, 0
      %1376 = vmatprep.subr.bf16.mxu0 0
      %1377 = vmatpush1.bf16.msra.mxu0 %v1223
      %1378 = vmatprep.subr.bf16.mxu0 0
      %1379 = vmatpush1.bf16.msra.mxu0 %v1222
      %1380 = vmatprep.subr.bf16.mxu0 0
      %1381 = vmatpush1.bf16.msra.mxu0 %v1221
      %1382 = vmatprep.subr.bf16.mxu0 0
      %1383 = vmatpush1.bf16.msra.mxu0 %v1220
      %1384 = vmatprep.subr.bf16.mxu0 0
      %1385 = vmatpush1.bf16.msra.mxu0 %v1219
      %1386 = vmatprep.subr.bf16.mxu0 0
      %1387 = vmatpush1.bf16.msra.mxu0 %v1218
      %1388 = vmatprep.subr.bf16.mxu0 0
      %1389 = vmatpush1.bf16.msra.mxu0 %v1217
      %1390 = vmatprep.subr.bf16.mxu0 0
      %1391 = vmatpush1.bf16.msra.mxu0 %v1216
      %1392 = vmatprep.subr.bf16.mxu0 0
      %1393 = vmatpush2.bf16.msra.mxu0 %v1231
      %1394 = vmatprep.subr.bf16.mxu0 0
      %1395 = vmatpush2.bf16.msra.mxu0 %v1230
      %1396 = vmatprep.subr.bf16.mxu0 0
      %1397 = vmatpush2.bf16.msra.mxu0 %v1229
      %1398 = vmatprep.subr.bf16.mxu0 0
      %1399 = vmatpush2.bf16.msra.mxu0 %v1228
      %1400 = vmatprep.subr.bf16.mxu0 0
      %1401 = vmatpush2.bf16.msra.mxu0 %v1227
      %1402 = vmatprep.subr.bf16.mxu0 0
      %1403 = vmatpush2.bf16.msra.mxu0 %v1226
      %1404 = vmatprep.subr.bf16.mxu0 0
      %1405 = vmatpush2.bf16.msra.mxu0 %v1225
      %1406 = vmatprep.subr.bf16.mxu0 0
      %1407 = vmatpush2.bf16.msra.mxu0 %v1224
      %1408 = vmatprep.mubr.bf16.mxu0 %v864
      %1409 = vmatmul.mubr.bf16.gmra.mxu0 %v863
      %v1410 = vpop.f32.mrf.mxu0
      %v1411 = vadd.f32 0.0, %v1410
      %v1412 = vpop.f32.mrf.mxu0
      %v1413 = vpop.f32.mrf.mxu0
      %v1414 = vadd.f32 0.0, %v1413
      %v1415 = vpop.f32.mrf.mxu0
      %1416 = vmatprep.mubr.bf16.mxu0 %v868
      %1417 = vmatmul.mubr.bf16.gmra.mxu0 %v867
      %v1418 = vpop.f32.mrf.mxu0
      %v1419 = vadd.f32 0.0, %v1418
      %v1420 = vpop.f32.mrf.mxu0
      %v1421 = vpop.f32.mrf.mxu0
      %v1422 = vadd.f32 0.0, %v1421
      %v1423 = vpop.f32.mrf.mxu0
      %1424 = vmatprep.mubr.bf16.mxu0 %v872
      %1425 = vmatmul.mubr.bf16.gmra.mxu0 %v871
      %v1426 = vpop.f32.mrf.mxu0
      %v1427 = vadd.f32 0.0, %v1426
      %v1428 = vpop.f32.mrf.mxu0
      %v1429 = vpop.f32.mrf.mxu0
      %v1430 = vadd.f32 0.0, %v1429
      %v1431 = vpop.f32.mrf.mxu0
      %1432 = vmatprep.mubr.bf16.mxu0 %v876
      %1433 = vmatmul.mubr.bf16.gmra.mxu0 %v875
      %v1434 = vpop.f32.mrf.mxu0
      %v1435 = vadd.f32 0.0, %v1434
      %v1436 = vpop.f32.mrf.mxu0
      %v1437 = vpop.f32.mrf.mxu0
      %v1438 = vadd.f32 0.0, %v1437
      %v1439 = vpop.f32.mrf.mxu0
      %1440 = vmatprep.mubr.bf16.mxu0 %v880
      %1441 = vmatmul.mubr.bf16.gmra.mxu0 %v879
      %v1442 = vpop.f32.mrf.mxu0
      %v1443 = vadd.f32 0.0, %v1442
      %v1444 = vpop.f32.mrf.mxu0
      %v1445 = vpop.f32.mrf.mxu0
      %v1446 = vadd.f32 0.0, %v1445
      %v1447 = vpop.f32.mrf.mxu0
      %1448 = vmatprep.mubr.bf16.mxu0 %v884
      %1449 = vmatmul.mubr.bf16.gmra.mxu0 %v883
      %v1450 = vpop.f32.mrf.mxu0
      %v1451 = vadd.f32 0.0, %v1450
      %v1452 = vpop.f32.mrf.mxu0
      %v1453 = vpop.f32.mrf.mxu0
      %v1454 = vadd.f32 0.0, %v1453
      %v1455 = vpop.f32.mrf.mxu0
      %1456 = vmatprep.mubr.bf16.mxu0 %v888
      %1457 = vmatmul.mubr.bf16.gmra.mxu0 %v887
      %v1458 = vpop.f32.mrf.mxu0
      %v1459 = vadd.f32 0.0, %v1458
      %v1460 = vpop.f32.mrf.mxu0
      %v1461 = vpop.f32.mrf.mxu0
      %v1462 = vadd.f32 0.0, %v1461
      %v1463 = vpop.f32.mrf.mxu0
      %1464 = vmatprep.mubr.bf16.mxu0 %v892
      %1465 = vmatmul.mubr.bf16.gmra.mxu0 %v891
      %v1466 = vpop.f32.mrf.mxu0
      %v1467 = vadd.f32 0.0, %v1466
      %v1468 = vpop.f32.mrf.mxu0
      %v1469 = vpop.f32.mrf.mxu0
      %v1470 = vadd.f32 0.0, %v1469
      %v1471 = vpop.f32.mrf.mxu0
      %1472 = vmatprep.mubr.bf16.mxu0 %v896
      %1473 = vmatmul.mubr.bf16.gmra.mxu0 %v895
      %v1474 = vpop.f32.mrf.mxu0
      %v1475 = vadd.f32 0.0, %v1474
      %v1476 = vpop.f32.mrf.mxu0
      %v1477 = vpop.f32.mrf.mxu0
      %v1478 = vadd.f32 0.0, %v1477
      %v1479 = vpop.f32.mrf.mxu0
      %1480 = vmatprep.mubr.bf16.mxu0 %v900
      %1481 = vmatmul.mubr.bf16.gmra.mxu0 %v899
      %v1482 = vpop.f32.mrf.mxu0
      %v1483 = vadd.f32 0.0, %v1482
      %v1484 = vpop.f32.mrf.mxu0
      %v1485 = vpop.f32.mrf.mxu0
      %v1486 = vadd.f32 0.0, %v1485
      %v1487 = vpop.f32.mrf.mxu0
      %1488 = vmatprep.mubr.bf16.mxu0 %v904
      %1489 = vmatmul.mubr.bf16.gmra.mxu0 %v903
      %v1490 = vpop.f32.mrf.mxu0
      %v1491 = vadd.f32 0.0, %v1490
      %v1492 = vpop.f32.mrf.mxu0
      %v1493 = vpop.f32.mrf.mxu0
      %v1494 = vadd.f32 0.0, %v1493
      %v1495 = vpop.f32.mrf.mxu0
      %1496 = vmatprep.mubr.bf16.mxu0 %v908
      %1497 = vmatmul.mubr.bf16.gmra.mxu0 %v907
      %v1498 = vpop.f32.mrf.mxu0
      %v1499 = vadd.f32 0.0, %v1498
      %v1500 = vpop.f32.mrf.mxu0
      %v1501 = vpop.f32.mrf.mxu0
      %v1502 = vadd.f32 0.0, %v1501
      %v1503 = vpop.f32.mrf.mxu0
      %1504 = vmatprep.mubr.bf16.mxu0 %v912
      %1505 = vmatmul.mubr.bf16.gmra.mxu0 %v911
      %v1506 = vpop.f32.mrf.mxu0
      %v1507 = vadd.f32 0.0, %v1506
      %v1508 = vpop.f32.mrf.mxu0
      %v1509 = vpop.f32.mrf.mxu0
      %v1510 = vadd.f32 0.0, %v1509
      %v1511 = vpop.f32.mrf.mxu0
      %1512 = vmatprep.mubr.bf16.mxu0 %v916
      %1513 = vmatmul.mubr.bf16.gmra.mxu0 %v915
      %v1514 = vpop.f32.mrf.mxu0
      %v1515 = vadd.f32 0.0, %v1514
      %v1516 = vpop.f32.mrf.mxu0
      %v1517 = vpop.f32.mrf.mxu0
      %v1518 = vadd.f32 0.0, %v1517
      %v1519 = vpop.f32.mrf.mxu0
      %1520 = vmatprep.mubr.bf16.mxu0 %v920
      %1521 = vmatmul.mubr.bf16.gmra.mxu0 %v919
      %v1522 = vpop.f32.mrf.mxu0
      %v1523 = vadd.f32 0.0, %v1522
      %v1524 = vpop.f32.mrf.mxu0
      %v1525 = vpop.f32.mrf.mxu0
      %v1526 = vadd.f32 0.0, %v1525
      %v1527 = vpop.f32.mrf.mxu0
      %1528 = vmatprep.mubr.bf16.mxu0 %v924
      %1529 = vmatmul.mubr.bf16.gmra.mxu0 %v923
      %v1530 = vpop.f32.mrf.mxu0
      %v1531 = vadd.f32 0.0, %v1530
      %v1532 = vpop.f32.mrf.mxu0
      %v1533 = vpop.f32.mrf.mxu0
      %v1534 = vadd.f32 0.0, %v1533
      %v1535 = vpop.f32.mrf.mxu0
      %1536 = vmatprep.mubr.bf16.mxu0 %v928
      %1537 = vmatmul.mubr.bf16.gmra.mxu0 %v927
      %v1538 = vpop.f32.mrf.mxu0
      %v1539 = vadd.f32 0.0, %v1538
      %v1540 = vpop.f32.mrf.mxu0
      %v1541 = vpop.f32.mrf.mxu0
      %v1542 = vadd.f32 0.0, %v1541
      %v1543 = vpop.f32.mrf.mxu0
      %1544 = vmatprep.mubr.bf16.mxu0 %v932
      %1545 = vmatmul.mubr.bf16.gmra.mxu0 %v931
      %v1546 = vpop.f32.mrf.mxu0
      %v1547 = vadd.f32 0.0, %v1546
      %v1548 = vpop.f32.mrf.mxu0
      %v1549 = vpop.f32.mrf.mxu0
      %v1550 = vadd.f32 0.0, %v1549
      %v1551 = vpop.f32.mrf.mxu0
      %1552 = vmatprep.mubr.bf16.mxu0 %v936
      %1553 = vmatmul.mubr.bf16.gmra.mxu0 %v935
      %v1554 = vpop.f32.mrf.mxu0
      %v1555 = vadd.f32 0.0, %v1554
      %v1556 = vpop.f32.mrf.mxu0
      %v1557 = vpop.f32.mrf.mxu0
      %v1558 = vadd.f32 0.0, %v1557
      %v1559 = vpop.f32.mrf.mxu0
      %1560 = vmatprep.mubr.bf16.mxu0 %v940
      %1561 = vmatmul.mubr.bf16.gmra.mxu0 %v939
      %v1562 = vpop.f32.mrf.mxu0
      %v1563 = vadd.f32 0.0, %v1562
      %v1564 = vpop.f32.mrf.mxu0
      %v1565 = vpop.f32.mrf.mxu0
      %v1566 = vadd.f32 0.0, %v1565
      %v1567 = vpop.f32.mrf.mxu0
      %1568 = vmatprep.mubr.bf16.mxu0 %v944
      %1569 = vmatmul.mubr.bf16.gmra.mxu0 %v943
      %v1570 = vpop.f32.mrf.mxu0
      %v1571 = vadd.f32 0.0, %v1570
      %v1572 = vpop.f32.mrf.mxu0
      %v1573 = vpop.f32.mrf.mxu0
      %v1574 = vadd.f32 0.0, %v1573
      %v1575 = vpop.f32.mrf.mxu0
      %1576 = vmatprep.mubr.bf16.mxu0 %v948
      %1577 = vmatmul.mubr.bf16.gmra.mxu0 %v947
      %v1578 = vpop.f32.mrf.mxu0
      %v1579 = vadd.f32 0.0, %v1578
      %v1580 = vpop.f32.mrf.mxu0
      %v1581 = vpop.f32.mrf.mxu0
      %v1582 = vadd.f32 0.0, %v1581
      %v1583 = vpop.f32.mrf.mxu0
      %1584 = vmatprep.mubr.bf16.mxu0 %v952
      %1585 = vmatmul.mubr.bf16.gmra.mxu0 %v951
      %v1586 = vpop.f32.mrf.mxu0
      %v1587 = vadd.f32 0.0, %v1586
      %v1588 = vpop.f32.mrf.mxu0
      %v1589 = vpop.f32.mrf.mxu0
      %v1590 = vadd.f32 0.0, %v1589
      %v1591 = vpop.f32.mrf.mxu0
      %1592 = vmatprep.mubr.bf16.mxu0 %v956
      %1593 = vmatmul.mubr.bf16.gmra.mxu0 %v955
      %v1594 = vpop.f32.mrf.mxu0
      %v1595 = vadd.f32 0.0, %v1594
      %v1596 = vpop.f32.mrf.mxu0
      %v1597 = vpop.f32.mrf.mxu0
      %v1598 = vadd.f32 0.0, %v1597
      %v1599 = vpop.f32.mrf.mxu0
      %1600 = vmatprep.mubr.bf16.mxu0 %v960
      %1601 = vmatmul.mubr.bf16.gmra.mxu0 %v959
      %v1602 = vpop.f32.mrf.mxu0
      %v1603 = vadd.f32 0.0, %v1602
      %v1604 = vpop.f32.mrf.mxu0
      %v1605 = vpop.f32.mrf.mxu0
      %v1606 = vadd.f32 0.0, %v1605
      %v1607 = vpop.f32.mrf.mxu0
      %1608 = vmatprep.mubr.bf16.mxu0 %v964
      %1609 = vmatmul.mubr.bf16.gmra.mxu0 %v963
      %v1610 = vpop.f32.mrf.mxu0
      %v1611 = vadd.f32 0.0, %v1610
      %v1612 = vpop.f32.mrf.mxu0
      %v1613 = vpop.f32.mrf.mxu0
      %v1614 = vadd.f32 0.0, %v1613
      %v1615 = vpop.f32.mrf.mxu0
      %1616 = vmatprep.mubr.bf16.mxu0 %v968
      %1617 = vmatmul.mubr.bf16.gmra.mxu0 %v967
      %v1618 = vpop.f32.mrf.mxu0
      %v1619 = vadd.f32 0.0, %v1618
      %v1620 = vpop.f32.mrf.mxu0
      %v1621 = vpop.f32.mrf.mxu0
      %v1622 = vadd.f32 0.0, %v1621
      %v1623 = vpop.f32.mrf.mxu0
      %1624 = vmatprep.mubr.bf16.mxu0 %v972
      %1625 = vmatmul.mubr.bf16.gmra.mxu0 %v971
      %v1626 = vpop.f32.mrf.mxu0
      %v1627 = vadd.f32 0.0, %v1626
      %v1628 = vpop.f32.mrf.mxu0
      %v1629 = vpop.f32.mrf.mxu0
      %v1630 = vadd.f32 0.0, %v1629
      %v1631 = vpop.f32.mrf.mxu0
      %1632 = vmatprep.mubr.bf16.mxu0 %v976
      %1633 = vmatmul.mubr.bf16.gmra.mxu0 %v975
      %v1634 = vpop.f32.mrf.mxu0
      %v1635 = vadd.f32 0.0, %v1634
      %v1636 = vpop.f32.mrf.mxu0
      %v1637 = vpop.f32.mrf.mxu0
      %v1638 = vadd.f32 0.0, %v1637
      %v1639 = vpop.f32.mrf.mxu0
      %1640 = vmatprep.mubr.bf16.mxu0 %v980
      %1641 = vmatmul.mubr.bf16.gmra.mxu0 %v979
      %v1642 = vpop.f32.mrf.mxu0
      %v1643 = vadd.f32 0.0, %v1642
      %v1644 = vpop.f32.mrf.mxu0
      %v1645 = vpop.f32.mrf.mxu0
      %v1646 = vadd.f32 0.0, %v1645
      %v1647 = vpop.f32.mrf.mxu0
      %1648 = vmatprep.mubr.bf16.mxu0 %v984
      %1649 = vmatmul.mubr.bf16.gmra.mxu0 %v983
      %v1650 = vpop.f32.mrf.mxu0
      %v1651 = vadd.f32 0.0, %v1650
      %v1652 = vpop.f32.mrf.mxu0
      %v1653 = vpop.f32.mrf.mxu0
      %v1654 = vadd.f32 0.0, %v1653
      %v1655 = vpop.f32.mrf.mxu0
      %1656 = vmatprep.mubr.bf16.mxu0 %v988
      %1657 = vmatmul.mubr.bf16.gmra.mxu0 %v987
      %v1658 = vpop.f32.mrf.mxu0
      %v1659 = vadd.f32 0.0, %v1658
      %v1660 = vpop.f32.mrf.mxu0
      %v1661 = vpop.f32.mrf.mxu0
      %v1662 = vadd.f32 0.0, %v1661
      %v1663 = vpop.f32.mrf.mxu0
      %1664 = vmatprep.mubr.bf16.mxu0 %v992
      %1665 = vmatmul.mubr.bf16.gmra.mxu0 %v991
      %v1666 = vpop.f32.mrf.mxu0
      %v1667 = vadd.f32 0.0, %v1666
      %v1668 = vpop.f32.mrf.mxu0
      %v1669 = vpop.f32.mrf.mxu0
      %v1670 = vadd.f32 0.0, %v1669
      %v1671 = vpop.f32.mrf.mxu0
      %1672 = vmatprep.mubr.bf16.mxu0 %v996
      %1673 = vmatmul.mubr.bf16.gmra.mxu0 %v995
      %v1674 = vpop.f32.mrf.mxu0
      %v1675 = vadd.f32 0.0, %v1674
      %v1676 = vpop.f32.mrf.mxu0
      %v1677 = vpop.f32.mrf.mxu0
      %v1678 = vadd.f32 0.0, %v1677
      %v1679 = vpop.f32.mrf.mxu0
      %1680 = vmatprep.mubr.bf16.mxu0 %v1000
      %1681 = vmatmul.mubr.bf16.gmra.mxu0 %v999
      %v1682 = vpop.f32.mrf.mxu0
      %v1683 = vadd.f32 0.0, %v1682
      %v1684 = vpop.f32.mrf.mxu0
      %v1685 = vpop.f32.mrf.mxu0
      %v1686 = vadd.f32 0.0, %v1685
      %v1687 = vpop.f32.mrf.mxu0
      %1688 = vdwg.mxu0
      %1689 = vmatprep.subr.bf16.mxu0 0
      %1690 = vmatpush1.bf16.msra.mxu0 %v1239
      %1691 = vmatprep.subr.bf16.mxu0 0
      %1692 = vmatpush1.bf16.msra.mxu0 %v1238
      %1693 = vmatprep.subr.bf16.mxu0 0
      %1694 = vmatpush1.bf16.msra.mxu0 %v1237
      %1695 = vmatprep.subr.bf16.mxu0 0
      %1696 = vmatpush1.bf16.msra.mxu0 %v1236
      %1697 = vmatprep.subr.bf16.mxu0 0
      %1698 = vmatpush1.bf16.msra.mxu0 %v1235
      %1699 = vmatprep.subr.bf16.mxu0 0
      %1700 = vmatpush1.bf16.msra.mxu0 %v1234
      %1701 = vmatprep.subr.bf16.mxu0 0
      %1702 = vmatpush1.bf16.msra.mxu0 %v1233
      %1703 = vmatprep.subr.bf16.mxu0 0
      %1704 = vmatpush1.bf16.msra.mxu0 %v1232
      %1705 = vmatprep.subr.bf16.mxu0 0
      %1706 = vmatpush2.bf16.msra.mxu0 0
      %1707 = vmatprep.subr.bf16.mxu0 0
      %1708 = vmatpush2.bf16.msra.mxu0 0
      %1709 = vmatprep.subr.bf16.mxu0 0
      %1710 = vmatpush2.bf16.msra.mxu0 0
      %1711 = vmatprep.subr.bf16.mxu0 0
      %1712 = vmatpush2.bf16.msra.mxu0 0
      %1713 = vmatprep.subr.bf16.mxu0 0
      %1714 = vmatpush2.bf16.msra.mxu0 0
      %1715 = vmatprep.subr.bf16.mxu0 0
      %1716 = vmatpush2.bf16.msra.mxu0 %v1242
      %1717 = vmatprep.subr.bf16.mxu0 0
      %1718 = vmatpush2.bf16.msra.mxu0 %v1241
      %1719 = vmatprep.subr.bf16.mxu0 0
      %1720 = vmatpush2.bf16.msra.mxu0 %v1240
      %1721 = vmatprep.mubr.bf16.mxu0 %v1272
      %1722 = vmatmul.mubr.bf16.gmra.mxu0 %v865
      %v1723 = vpop.f32.mrf.mxu0
      %v1724 = vadd.f32 %v1411, %v1723
      %v1725 = vpop.f32.mrf.mxu0
      %v1726 = vpop.f32.mrf.mxu0
      %v1727 = vadd.f32 %v1414, %v1726
      %v1728 = vpop.f32.mrf.mxu0
      %1729 = vmatprep.mubr.bf16.mxu0 %v1275
      %1730 = vmatmul.mubr.bf16.gmra.mxu0 %v869
      %v1731 = vpop.f32.mrf.mxu0
      %v1732 = vadd.f32 %v1419, %v1731
      %v1733 = vpop.f32.mrf.mxu0
      %v1734 = vpop.f32.mrf.mxu0
      %v1735 = vadd.f32 %v1422, %v1734
      %v1736 = vpop.f32.mrf.mxu0
      %1737 = vmatprep.mubr.bf16.mxu0 %v1278
      %1738 = vmatmul.mubr.bf16.gmra.mxu0 %v873
      %v1739 = vpop.f32.mrf.mxu0
      %v1740 = vadd.f32 %v1427, %v1739
      %v1741 = vpop.f32.mrf.mxu0
      %v1742 = vpop.f32.mrf.mxu0
      %v1743 = vadd.f32 %v1430, %v1742
      %v1744 = vpop.f32.mrf.mxu0
      %1745 = vmatprep.mubr.bf16.mxu0 %v1281
      %1746 = vmatmul.mubr.bf16.gmra.mxu0 %v877
      %v1747 = vpop.f32.mrf.mxu0
      %v1748 = vadd.f32 %v1435, %v1747
      %v1749 = vpop.f32.mrf.mxu0
      %v1750 = vpop.f32.mrf.mxu0
      %v1751 = vadd.f32 %v1438, %v1750
      %v1752 = vpop.f32.mrf.mxu0
      %1753 = vmatprep.mubr.bf16.mxu0 %v1284
      %1754 = vmatmul.mubr.bf16.gmra.mxu0 %v881
      %v1755 = vpop.f32.mrf.mxu0
      %v1756 = vadd.f32 %v1443, %v1755
      %v1757 = vpop.f32.mrf.mxu0
      %v1758 = vpop.f32.mrf.mxu0
      %v1759 = vadd.f32 %v1446, %v1758
      %v1760 = vpop.f32.mrf.mxu0
      %1761 = vmatprep.mubr.bf16.mxu0 %v1287
      %1762 = vmatmul.mubr.bf16.gmra.mxu0 %v885
      %v1763 = vpop.f32.mrf.mxu0
      %v1764 = vadd.f32 %v1451, %v1763
      %v1765 = vpop.f32.mrf.mxu0
      %v1766 = vpop.f32.mrf.mxu0
      %v1767 = vadd.f32 %v1454, %v1766
      %v1768 = vpop.f32.mrf.mxu0
      %1769 = vmatprep.mubr.bf16.mxu0 %v1290
      %1770 = vmatmul.mubr.bf16.gmra.mxu0 %v889
      %v1771 = vpop.f32.mrf.mxu0
      %v1772 = vadd.f32 %v1459, %v1771
      %v1773 = vpop.f32.mrf.mxu0
      %v1774 = vpop.f32.mrf.mxu0
      %v1775 = vadd.f32 %v1462, %v1774
      %v1776 = vpop.f32.mrf.mxu0
      %1777 = vmatprep.mubr.bf16.mxu0 %v1293
      %1778 = vmatmul.mubr.bf16.gmra.mxu0 %v893
      %v1779 = vpop.f32.mrf.mxu0
      %v1780 = vadd.f32 %v1467, %v1779
      %v1781 = vpop.f32.mrf.mxu0
      %v1782 = vpop.f32.mrf.mxu0
      %v1783 = vadd.f32 %v1470, %v1782
      %v1784 = vpop.f32.mrf.mxu0
      %1785 = vmatprep.mubr.bf16.mxu0 %v1296
      %1786 = vmatmul.mubr.bf16.gmra.mxu0 %v897
      %v1787 = vpop.f32.mrf.mxu0
      %v1788 = vadd.f32 %v1475, %v1787
      %v1789 = vpop.f32.mrf.mxu0
      %v1790 = vpop.f32.mrf.mxu0
      %v1791 = vadd.f32 %v1478, %v1790
      %v1792 = vpop.f32.mrf.mxu0
      %1793 = vmatprep.mubr.bf16.mxu0 %v1299
      %1794 = vmatmul.mubr.bf16.gmra.mxu0 %v901
      %v1795 = vpop.f32.mrf.mxu0
      %v1796 = vadd.f32 %v1483, %v1795
      %v1797 = vpop.f32.mrf.mxu0
      %v1798 = vpop.f32.mrf.mxu0
      %v1799 = vadd.f32 %v1486, %v1798
      %v1800 = vpop.f32.mrf.mxu0
      %1801 = vmatprep.mubr.bf16.mxu0 %v1302
      %1802 = vmatmul.mubr.bf16.gmra.mxu0 %v905
      %v1803 = vpop.f32.mrf.mxu0
      %v1804 = vadd.f32 %v1491, %v1803
      %v1805 = vpop.f32.mrf.mxu0
      %v1806 = vpop.f32.mrf.mxu0
      %v1807 = vadd.f32 %v1494, %v1806
      %v1808 = vpop.f32.mrf.mxu0
      %1809 = vmatprep.mubr.bf16.mxu0 %v1305
      %1810 = vmatmul.mubr.bf16.gmra.mxu0 %v909
      %v1811 = vpop.f32.mrf.mxu0
      %v1812 = vadd.f32 %v1499, %v1811
      %v1813 = vpop.f32.mrf.mxu0
      %v1814 = vpop.f32.mrf.mxu0
      %v1815 = vadd.f32 %v1502, %v1814
      %v1816 = vpop.f32.mrf.mxu0
      %1817 = vmatprep.mubr.bf16.mxu0 %v1308
      %1818 = vmatmul.mubr.bf16.gmra.mxu0 %v913
      %v1819 = vpop.f32.mrf.mxu0
      %v1820 = vadd.f32 %v1507, %v1819
      %v1821 = vpop.f32.mrf.mxu0
      %v1822 = vpop.f32.mrf.mxu0
      %v1823 = vadd.f32 %v1510, %v1822
      %v1824 = vpop.f32.mrf.mxu0
      %1825 = vmatprep.mubr.bf16.mxu0 %v1311
      %1826 = vmatmul.mubr.bf16.gmra.mxu0 %v917
      %v1827 = vpop.f32.mrf.mxu0
      %v1828 = vadd.f32 %v1515, %v1827
      %v1829 = vpop.f32.mrf.mxu0
      %v1830 = vpop.f32.mrf.mxu0
      %v1831 = vadd.f32 %v1518, %v1830
      %v1832 = vpop.f32.mrf.mxu0
      %1833 = vmatprep.mubr.bf16.mxu0 %v1314
      %1834 = vmatmul.mubr.bf16.gmra.mxu0 %v921
      %v1835 = vpop.f32.mrf.mxu0
      %v1836 = vadd.f32 %v1523, %v1835
      %v1837 = vpop.f32.mrf.mxu0
      %v1838 = vpop.f32.mrf.mxu0
      %v1839 = vadd.f32 %v1526, %v1838
      %v1840 = vpop.f32.mrf.mxu0
      %1841 = vmatprep.mubr.bf16.mxu0 %v1317
      %1842 = vmatmul.mubr.bf16.gmra.mxu0 %v925
      %v1843 = vpop.f32.mrf.mxu0
      %v1844 = vadd.f32 %v1531, %v1843
      %v1845 = vpop.f32.mrf.mxu0
      %v1846 = vpop.f32.mrf.mxu0
      %v1847 = vadd.f32 %v1534, %v1846
      %v1848 = vpop.f32.mrf.mxu0
      %1849 = vmatprep.mubr.bf16.mxu0 %v1320
      %1850 = vmatmul.mubr.bf16.gmra.mxu0 %v929
      %v1851 = vpop.f32.mrf.mxu0
      %v1852 = vadd.f32 %v1539, %v1851
      %v1853 = vpop.f32.mrf.mxu0
      %v1854 = vpop.f32.mrf.mxu0
      %v1855 = vadd.f32 %v1542, %v1854
      %v1856 = vpop.f32.mrf.mxu0
      %1857 = vmatprep.mubr.bf16.mxu0 %v1323
      %1858 = vmatmul.mubr.bf16.gmra.mxu0 %v933
      %v1859 = vpop.f32.mrf.mxu0
      %v1860 = vadd.f32 %v1547, %v1859
      %v1861 = vpop.f32.mrf.mxu0
      %v1862 = vpop.f32.mrf.mxu0
      %v1863 = vadd.f32 %v1550, %v1862
      %v1864 = vpop.f32.mrf.mxu0
      %1865 = vmatprep.mubr.bf16.mxu0 %v1326
      %1866 = vmatmul.mubr.bf16.gmra.mxu0 %v937
      %v1867 = vpop.f32.mrf.mxu0
      %v1868 = vadd.f32 %v1555, %v1867
      %v1869 = vpop.f32.mrf.mxu0
      %v1870 = vpop.f32.mrf.mxu0
      %v1871 = vadd.f32 %v1558, %v1870
      %v1872 = vpop.f32.mrf.mxu0
      %1873 = vmatprep.mubr.bf16.mxu0 %v1329
      %1874 = vmatmul.mubr.bf16.gmra.mxu0 %v941
      %v1875 = vpop.f32.mrf.mxu0
      %v1876 = vadd.f32 %v1563, %v1875
      %v1877 = vpop.f32.mrf.mxu0
      %v1878 = vpop.f32.mrf.mxu0
      %v1879 = vadd.f32 %v1566, %v1878
      %v1880 = vpop.f32.mrf.mxu0
      %1881 = vmatprep.mubr.bf16.mxu0 %v1332
      %1882 = vmatmul.mubr.bf16.gmra.mxu0 %v945
      %v1883 = vpop.f32.mrf.mxu0
      %v1884 = vadd.f32 %v1571, %v1883
      %v1885 = vpop.f32.mrf.mxu0
      %v1886 = vpop.f32.mrf.mxu0
      %v1887 = vadd.f32 %v1574, %v1886
      %v1888 = vpop.f32.mrf.mxu0
      %1889 = vmatprep.mubr.bf16.mxu0 %v1335
      %1890 = vmatmul.mubr.bf16.gmra.mxu0 %v949
      %v1891 = vpop.f32.mrf.mxu0
      %v1892 = vadd.f32 %v1579, %v1891
      %v1893 = vpop.f32.mrf.mxu0
      %v1894 = vpop.f32.mrf.mxu0
      %v1895 = vadd.f32 %v1582, %v1894
      %v1896 = vpop.f32.mrf.mxu0
      %1897 = vmatprep.mubr.bf16.mxu0 %v1338
      %1898 = vmatmul.mubr.bf16.gmra.mxu0 %v953
      %v1899 = vpop.f32.mrf.mxu0
      %v1900 = vadd.f32 %v1587, %v1899
      %v1901 = vpop.f32.mrf.mxu0
      %v1902 = vpop.f32.mrf.mxu0
      %v1903 = vadd.f32 %v1590, %v1902
      %v1904 = vpop.f32.mrf.mxu0
      %1905 = vmatprep.mubr.bf16.mxu0 %v1341
      %1906 = vmatmul.mubr.bf16.gmra.mxu0 %v957
      %v1907 = vpop.f32.mrf.mxu0
      %v1908 = vadd.f32 %v1595, %v1907
      %v1909 = vpop.f32.mrf.mxu0
      %v1910 = vpop.f32.mrf.mxu0
      %v1911 = vadd.f32 %v1598, %v1910
      %v1912 = vpop.f32.mrf.mxu0
      %1913 = vmatprep.mubr.bf16.mxu0 %v1344
      %1914 = vmatmul.mubr.bf16.gmra.mxu0 %v961
      %v1915 = vpop.f32.mrf.mxu0
      %v1916 = vadd.f32 %v1603, %v1915
      %v1917 = vpop.f32.mrf.mxu0
      %v1918 = vpop.f32.mrf.mxu0
      %v1919 = vadd.f32 %v1606, %v1918
      %v1920 = vpop.f32.mrf.mxu0
      %1921 = vmatprep.mubr.bf16.mxu0 %v1347
      %1922 = vmatmul.mubr.bf16.gmra.mxu0 %v965
      %v1923 = vpop.f32.mrf.mxu0
      %v1924 = vadd.f32 %v1611, %v1923
      %v1925 = vpop.f32.mrf.mxu0
      %v1926 = vpop.f32.mrf.mxu0
      %v1927 = vadd.f32 %v1614, %v1926
      %v1928 = vpop.f32.mrf.mxu0
      %1929 = vmatprep.mubr.bf16.mxu0 %v1350
      %1930 = vmatmul.mubr.bf16.gmra.mxu0 %v969
      %v1931 = vpop.f32.mrf.mxu0
      %v1932 = vadd.f32 %v1619, %v1931
      %v1933 = vpop.f32.mrf.mxu0
      %v1934 = vpop.f32.mrf.mxu0
      %v1935 = vadd.f32 %v1622, %v1934
      %v1936 = vpop.f32.mrf.mxu0
      %1937 = vmatprep.mubr.bf16.mxu0 %v1353
      %1938 = vmatmul.mubr.bf16.gmra.mxu0 %v973
      %v1939 = vpop.f32.mrf.mxu0
      %v1940 = vadd.f32 %v1627, %v1939
      %v1941 = vpop.f32.mrf.mxu0
      %v1942 = vpop.f32.mrf.mxu0
      %v1943 = vadd.f32 %v1630, %v1942
      %v1944 = vpop.f32.mrf.mxu0
      %1945 = vmatprep.mubr.bf16.mxu0 %v1356
      %1946 = vmatmul.mubr.bf16.gmra.mxu0 %v977
      %v1947 = vpop.f32.mrf.mxu0
      %v1948 = vadd.f32 %v1635, %v1947
      %v1949 = vpop.f32.mrf.mxu0
      %v1950 = vpop.f32.mrf.mxu0
      %v1951 = vadd.f32 %v1638, %v1950
      %v1952 = vpop.f32.mrf.mxu0
      %1953 = vmatprep.mubr.bf16.mxu0 %v1359
      %1954 = vmatmul.mubr.bf16.gmra.mxu0 %v981
      %v1955 = vpop.f32.mrf.mxu0
      %v1956 = vadd.f32 %v1643, %v1955
      %v1957 = vpop.f32.mrf.mxu0
      %v1958 = vpop.f32.mrf.mxu0
      %v1959 = vadd.f32 %v1646, %v1958
      %v1960 = vpop.f32.mrf.mxu0
      %1961 = vmatprep.mubr.bf16.mxu0 %v1362
      %1962 = vmatmul.mubr.bf16.gmra.mxu0 %v985
      %v1963 = vpop.f32.mrf.mxu0
      %v1964 = vadd.f32 %v1651, %v1963
      %v1965 = vpop.f32.mrf.mxu0
      %v1966 = vpop.f32.mrf.mxu0
      %v1967 = vadd.f32 %v1654, %v1966
      %v1968 = vpop.f32.mrf.mxu0
      %1969 = vmatprep.mubr.bf16.mxu0 %v1365
      %1970 = vmatmul.mubr.bf16.gmra.mxu0 %v989
      %v1971 = vpop.f32.mrf.mxu0
      %v1972 = vadd.f32 %v1659, %v1971
      %v1973 = vpop.f32.mrf.mxu0
      %v1974 = vpop.f32.mrf.mxu0
      %v1975 = vadd.f32 %v1662, %v1974
      %v1976 = vpop.f32.mrf.mxu0
      %1977 = vmatprep.mubr.bf16.mxu0 %v1368
      %1978 = vmatmul.mubr.bf16.gmra.mxu0 %v993
      %v1979 = vpop.f32.mrf.mxu0
      %v1980 = vadd.f32 %v1667, %v1979
      %v1981 = vpop.f32.mrf.mxu0
      %v1982 = vpop.f32.mrf.mxu0
      %v1983 = vadd.f32 %v1670, %v1982
      %v1984 = vpop.f32.mrf.mxu0
      %1985 = vmatprep.mubr.bf16.mxu0 %v1371
      %1986 = vmatmul.mubr.bf16.gmra.mxu0 %v997
      %v1987 = vpop.f32.mrf.mxu0
      %v1988 = vadd.f32 %v1675, %v1987
      %v1989 = vpop.f32.mrf.mxu0
      %v1990 = vpop.f32.mrf.mxu0
      %v1991 = vadd.f32 %v1678, %v1990
      %v1992 = vpop.f32.mrf.mxu0
      %1993 = vmatprep.mubr.bf16.mxu0 %v1374
      %1994 = vmatmul.mubr.bf16.gmra.mxu0 %v1001
      %v1995 = vpop.f32.mrf.mxu0
      %v1996 = vadd.f32 %v1683, %v1995
      %v1997 = vpop.f32.mrf.mxu0
      %v1998 = vpop.f32.mrf.mxu0
      %v1999 = vadd.f32 %v1686, %v1998
      %v2000 = vpop.f32.mrf.mxu0
      %2001 = vdwg.mxu0
      %s2002 = smul.u32 %s17, 560
      %s2003 = scalar_lea.vmem [#allocation2], %s2002
      %2004 = vst [vmem:[%s2003] sm:$0xff] %v1724
      %2005 = vst [vmem:[%s2003 + $0x8] sm:$0xff] %v1727
      %2006 = vst [vmem:[%s2003 + $0x10] sm:$0xff] %v1732
      %2007 = vst [vmem:[%s2003 + $0x18] sm:$0xff] %v1735
      %2008 = vst [vmem:[%s2003 + $0x20] sm:$0xff] %v1740
      %2009 = vst [vmem:[%s2003 + $0x28] sm:$0xff] %v1743
      %2010 = vst [vmem:[%s2003 + $0x30] sm:$0xff] %v1748
      %2011 = vst [vmem:[%s2003 + $0x38] sm:$0xff] %v1751
      %2012 = vst [vmem:[%s2003 + $0x40] sm:$0xff] %v1756
      %2013 = vst [vmem:[%s2003 + $0x48] sm:$0xff] %v1759
      %2014 = vst [vmem:[%s2003 + $0x50] sm:$0xff] %v1764
      %2015 = vst [vmem:[%s2003 + $0x58] sm:$0xff] %v1767
      %2016 = vst [vmem:[%s2003 + $0x60] sm:$0xff] %v1772
      %2017 = vst [vmem:[%s2003 + $0x68] sm:$0xff] %v1775
      %2018 = vst [vmem:[%s2003 + $0x70] sm:$0xff] %v1780
      %2019 = vst [vmem:[%s2003 + $0x78] sm:$0xff] %v1783
      %2020 = vst [vmem:[%s2003 + $0x80] sm:$0xff] %v1788
      %2021 = vst [vmem:[%s2003 + $0x88] sm:$0xff] %v1791
      %2022 = vst [vmem:[%s2003 + $0x90] sm:$0xff] %v1796
      %2023 = vst [vmem:[%s2003 + $0x98] sm:$0xff] %v1799
      %2024 = vst [vmem:[%s2003 + $0xa0] sm:$0xff] %v1804
      %2025 = vst [vmem:[%s2003 + $0xa8] sm:$0xff] %v1807
      %2026 = vst [vmem:[%s2003 + $0xb0] sm:$0xff] %v1812
      %2027 = vst [vmem:[%s2003 + $0xb8] sm:$0xff] %v1815
      %2028 = vst [vmem:[%s2003 + $0xc0] sm:$0xff] %v1820
      %2029 = vst [vmem:[%s2003 + $0xc8] sm:$0xff] %v1823
      %2030 = vst [vmem:[%s2003 + $0xd0] sm:$0xff] %v1828
      %2031 = vst [vmem:[%s2003 + $0xd8] sm:$0xff] %v1831
      %2032 = vst [vmem:[%s2003 + $0xe0] sm:$0xff] %v1836
      %2033 = vst [vmem:[%s2003 + $0xe8] sm:$0xff] %v1839
      %2034 = vst [vmem:[%s2003 + $0xf0] sm:$0xff] %v1844
      %2035 = vst [vmem:[%s2003 + $0xf8] sm:$0xff] %v1847
      %2036 = vst [vmem:[%s2003 + $0x100] sm:$0xff] %v1852
      %2037 = vst [vmem:[%s2003 + $0x108] sm:$0xff] %v1855
      %2038 = vst [vmem:[%s2003 + $0x110] sm:$0xff] %v1860
      %2039 = vst [vmem:[%s2003 + $0x118] sm:$0xff] %v1863
      %2040 = vst [vmem:[%s2003 + $0x120] sm:$0xff] %v1868
      %2041 = vst [vmem:[%s2003 + $0x128] sm:$0xff] %v1871
      %2042 = vst [vmem:[%s2003 + $0x130] sm:$0xff] %v1876
      %2043 = vst [vmem:[%s2003 + $0x138] sm:$0xff] %v1879
      %2044 = vst [vmem:[%s2003 + $0x140] sm:$0xff] %v1884
      %2045 = vst [vmem:[%s2003 + $0x148] sm:$0xff] %v1887
      %2046 = vst [vmem:[%s2003 + $0x150] sm:$0xff] %v1892
      %2047 = vst [vmem:[%s2003 + $0x158] sm:$0xff] %v1895
      %2048 = vst [vmem:[%s2003 + $0x160] sm:$0xff] %v1900
      %2049 = vst [vmem:[%s2003 + $0x168] sm:$0xff] %v1903
      %2050 = vst [vmem:[%s2003 + $0x170] sm:$0xff] %v1908
      %2051 = vst [vmem:[%s2003 + $0x178] sm:$0xff] %v1911
      %2052 = vst [vmem:[%s2003 + $0x180] sm:$0xff] %v1916
      %2053 = vst [vmem:[%s2003 + $0x188] sm:$0xff] %v1919
      %2054 = vst [vmem:[%s2003 + $0x190] sm:$0xff] %v1924
      %2055 = vst [vmem:[%s2003 + $0x198] sm:$0xff] %v1927
      %2056 = vst [vmem:[%s2003 + $0x1a0] sm:$0xff] %v1932
      %2057 = vst [vmem:[%s2003 + $0x1a8] sm:$0xff] %v1935
      %2058 = vst [vmem:[%s2003 + $0x1b0] sm:$0xff] %v1940
      %2059 = vst [vmem:[%s2003 + $0x1b8] sm:$0xff] %v1943
      %2060 = vst [vmem:[%s2003 + $0x1c0] sm:$0xff] %v1948
      %2061 = vst [vmem:[%s2003 + $0x1c8] sm:$0xff] %v1951
      %2062 = vst [vmem:[%s2003 + $0x1d0] sm:$0xff] %v1956
      %2063 = vst [vmem:[%s2003 + $0x1d8] sm:$0xff] %v1959
      %2064 = vst [vmem:[%s2003 + $0x1e0] sm:$0xff] %v1964
      %2065 = vst [vmem:[%s2003 + $0x1e8] sm:$0xff] %v1967
      %2066 = vst [vmem:[%s2003 + $0x1f0] sm:$0xff] %v1972
      %2067 = vst [vmem:[%s2003 + $0x1f8] sm:$0xff] %v1975
      %2068 = vst [vmem:[%s2003 + $0x200] sm:$0xff] %v1980
      %2069 = vst [vmem:[%s2003 + $0x208] sm:$0xff] %v1983
      %2070 = vst [vmem:[%s2003 + $0x210] sm:$0xff] %v1988
      %2071 = vst [vmem:[%s2003 + $0x218] sm:$0xff] %v1991
      %2072 = vst [vmem:[%s2003 + $0x220] sm:$0xff] %v1996
      %2073 = vst [vmem:[%s2003 + $0x228] sm:$0xff] %v1999
      %v2074 = vld [vmem:[#allocation3] sm:$0x1]
      %v2075 = vadd.f32 %v1724, %v1727
      %v2076 = vadd.f32 %v2075, %v1732
      %v2077 = vadd.f32 %v2076, %v1735
      %v2078 = vadd.f32 %v2077, %v1740
      %v2079 = vadd.f32 %v2078, %v1743
      %v2080 = vadd.f32 %v2079, %v1748
      %v2081 = vadd.f32 %v2080, %v1751
      %v2082 = vadd.f32 %v2081, %v1756
      %v2083 = vadd.f32 %v2082, %v1759
      %v2084 = vadd.f32 %v2083, %v1764
      %v2085 = vadd.f32 %v2084, %v1767
      %v2086 = vadd.f32 %v2085, %v1772
      %v2087 = vadd.f32 %v2086, %v1775
      %v2088 = vadd.f32 %v2087, %v1780
      %v2089 = vadd.f32 %v2088, %v1783
      %v2090 = vadd.f32 %v2089, %v1788
      %v2091 = vadd.f32 %v2090, %v1791
      %v2092 = vadd.f32 %v2091, %v1796
      %v2093 = vadd.f32 %v2092, %v1799
      %v2094 = vadd.f32 %v2093, %v1804
      %v2095 = vadd.f32 %v2094, %v1807
      %v2096 = vadd.f32 %v2095, %v1812
      %v2097 = vadd.f32 %v2096, %v1815
      %v2098 = vadd.f32 %v2097, %v1820
      %v2099 = vadd.f32 %v2098, %v1823
      %v2100 = vadd.f32 %v2099, %v1828
      %v2101 = vadd.f32 %v2100, %v1831
      %v2102 = vadd.f32 %v2101, %v1836
      %v2103 = vadd.f32 %v2102, %v1839
      %v2104 = vadd.f32 %v2103, %v1844
      %v2105 = vadd.f32 %v2104, %v1847
      %v2106 = vadd.f32 %v2105, %v1852
      %v2107 = vadd.f32 %v2106, %v1855
      %v2108 = vadd.f32 %v2107, %v1860
      %v2109 = vadd.f32 %v2108, %v1863
      %v2110 = vadd.f32 %v2109, %v1868
      %v2111 = vadd.f32 %v2110, %v1871
      %v2112 = vadd.f32 %v2111, %v1876
      %v2113 = vadd.f32 %v2112, %v1879
      %v2114 = vadd.f32 %v2113, %v1884
      %v2115 = vadd.f32 %v2114, %v1887
      %v2116 = vadd.f32 %v2115, %v1892
      %v2117 = vadd.f32 %v2116, %v1895
      %v2118 = vadd.f32 %v2117, %v1900
      %v2119 = vadd.f32 %v2118, %v1903
      %v2120 = vadd.f32 %v2119, %v1908
      %v2121 = vadd.f32 %v2120, %v1911
      %v2122 = vadd.f32 %v2121, %v1916
      %v2123 = vadd.f32 %v2122, %v1919
      %v2124 = vadd.f32 %v2123, %v1924
      %v2125 = vadd.f32 %v2124, %v1927
      %v2126 = vadd.f32 %v2125, %v1932
      %v2127 = vadd.f32 %v2126, %v1935
      %v2128 = vadd.f32 %v2127, %v1940
      %v2129 = vadd.f32 %v2128, %v1943
      %v2130 = vadd.f32 %v2129, %v1948
      %v2131 = vadd.f32 %v2130, %v1951
      %v2132 = vadd.f32 %v2131, %v1956
      %v2133 = vadd.f32 %v2132, %v1959
      %v2134 = vadd.f32 %v2133, %v1964
      %v2135 = vadd.f32 %v2134, %v1967
      %v2136 = vadd.f32 %v2135, %v1972
      %v2137 = vadd.f32 %v2136, %v1975
      %v2138 = vadd.f32 %v2137, %v1980
      %v2139 = vadd.f32 %v2138, %v1983
      %v2140 = vadd.f32 %v2139, %v1988
      %v2141 = vadd.f32 %v2140, %v1991
      %v2142 = vadd.f32 %v2141, %v1996
      %v2143 = vadd.f32 %v2142, %v1999
      %v2144 = vrot.slane %v2143, 4
      %v2145 = vadd.f32 %v2143, %v2144
      %v2146 = vrot.slane %v2145, 2
      %v2147 = vadd.f32 %v2145, %v2146
      %v2148 = vrot.slane %v2147, 1
      %v2149 = vadd.f32 %v2147, %v2148
      %v2150 = vadd.f32 %v2074, %v2149
      %2151 = vst [vmem:[#allocation3] sm:$0x1] %v2150
      %v2152 = vld [vmem:[#allocation4] sm:$0x1]
      %v2153 = vmul.f32 %v1724, %v1724
      %v2154 = vmul.f32 %v1727, %v1727
      %v2155 = vmul.f32 %v1732, %v1732
      %v2156 = vmul.f32 %v1735, %v1735
      %v2157 = vmul.f32 %v1740, %v1740
      %v2158 = vmul.f32 %v1743, %v1743
      %v2159 = vmul.f32 %v1748, %v1748
      %v2160 = vmul.f32 %v1751, %v1751
      %v2161 = vmul.f32 %v1756, %v1756
      %v2162 = vmul.f32 %v1759, %v1759
      %v2163 = vmul.f32 %v1764, %v1764
      %v2164 = vmul.f32 %v1767, %v1767
      %v2165 = vmul.f32 %v1772, %v1772
      %v2166 = vmul.f32 %v1775, %v1775
      %v2167 = vmul.f32 %v1780, %v1780
      %v2168 = vmul.f32 %v1783, %v1783
      %v2169 = vmul.f32 %v1788, %v1788
      %v2170 = vmul.f32 %v1791, %v1791
      %v2171 = vmul.f32 %v1796, %v1796
      %v2172 = vmul.f32 %v1799, %v1799
      %v2173 = vmul.f32 %v1804, %v1804
      %v2174 = vmul.f32 %v1807, %v1807
      %v2175 = vmul.f32 %v1812, %v1812
      %v2176 = vmul.f32 %v1815, %v1815
      %v2177 = vmul.f32 %v1820, %v1820
      %v2178 = vmul.f32 %v1823, %v1823
      %v2179 = vmul.f32 %v1828, %v1828
      %v2180 = vmul.f32 %v1831, %v1831
      %v2181 = vmul.f32 %v1836, %v1836
      %v2182 = vmul.f32 %v1839, %v1839
      %v2183 = vmul.f32 %v1844, %v1844
      %v2184 = vmul.f32 %v1847, %v1847
      %v2185 = vmul.f32 %v1852, %v1852
      %v2186 = vmul.f32 %v1855, %v1855
      %v2187 = vmul.f32 %v1860, %v1860
      %v2188 = vmul.f32 %v1863, %v1863
      %v2189 = vmul.f32 %v1868, %v1868
      %v2190 = vmul.f32 %v1871, %v1871
      %v2191 = vmul.f32 %v1876, %v1876
      %v2192 = vmul.f32 %v1879, %v1879
      %v2193 = vmul.f32 %v1884, %v1884
      %v2194 = vmul.f32 %v1887, %v1887
      %v2195 = vmul.f32 %v1892, %v1892
      %v2196 = vmul.f32 %v1895, %v1895
      %v2197 = vmul.f32 %v1900, %v1900
      %v2198 = vmul.f32 %v1903, %v1903
      %v2199 = vmul.f32 %v1908, %v1908
      %v2200 = vmul.f32 %v1911, %v1911
      %v2201 = vmul.f32 %v1916, %v1916
      %v2202 = vmul.f32 %v1919, %v1919
      %v2203 = vmul.f32 %v1924, %v1924
      %v2204 = vmul.f32 %v1927, %v1927
      %v2205 = vmul.f32 %v1932, %v1932
      %v2206 = vmul.f32 %v1935, %v1935
      %v2207 = vmul.f32 %v1940, %v1940
      %v2208 = vmul.f32 %v1943, %v1943
      %v2209 = vmul.f32 %v1948, %v1948
      %v2210 = vmul.f32 %v1951, %v1951
      %v2211 = vmul.f32 %v1956, %v1956
      %v2212 = vmul.f32 %v1959, %v1959
      %v2213 = vmul.f32 %v1964, %v1964
      %v2214 = vmul.f32 %v1967, %v1967
      %v2215 = vmul.f32 %v1972, %v1972
      %v2216 = vmul.f32 %v1975, %v1975
      %v2217 = vmul.f32 %v1980, %v1980
      %v2218 = vmul.f32 %v1983, %v1983
      %v2219 = vmul.f32 %v1988, %v1988
      %v2220 = vmul.f32 %v1991, %v1991
      %v2221 = vmul.f32 %v1996, %v1996
      %v2222 = vmul.f32 %v1999, %v1999
      %v2223 = vadd.f32 %v2153, %v2154
      %v2224 = vadd.f32 %v2223, %v2155
      %v2225 = vadd.f32 %v2224, %v2156
      %v2226 = vadd.f32 %v2225, %v2157
      %v2227 = vadd.f32 %v2226, %v2158
      %v2228 = vadd.f32 %v2227, %v2159
      %v2229 = vadd.f32 %v2228, %v2160
      %v2230 = vadd.f32 %v2229, %v2161
      %v2231 = vadd.f32 %v2230, %v2162
      %v2232 = vadd.f32 %v2231, %v2163
      %v2233 = vadd.f32 %v2232, %v2164
      %v2234 = vadd.f32 %v2233, %v2165
      %v2235 = vadd.f32 %v2234, %v2166
      %v2236 = vadd.f32 %v2235, %v2167
      %v2237 = vadd.f32 %v2236, %v2168
      %v2238 = vadd.f32 %v2237, %v2169
      %v2239 = vadd.f32 %v2238, %v2170
      %v2240 = vadd.f32 %v2239, %v2171
      %v2241 = vadd.f32 %v2240, %v2172
      %v2242 = vadd.f32 %v2241, %v2173
      %v2243 = vadd.f32 %v2242, %v2174
      %v2244 = vadd.f32 %v2243, %v2175
      %v2245 = vadd.f32 %v2244, %v2176
      %v2246 = vadd.f32 %v2245, %v2177
      %v2247 = vadd.f32 %v2246, %v2178
      %v2248 = vadd.f32 %v2247, %v2179
      %v2249 = vadd.f32 %v2248, %v2180
      %v2250 = vadd.f32 %v2249, %v2181
      %v2251 = vadd.f32 %v2250, %v2182
      %v2252 = vadd.f32 %v2251, %v2183
      %v2253 = vadd.f32 %v2252, %v2184
      %v2254 = vadd.f32 %v2253, %v2185
      %v2255 = vadd.f32 %v2254, %v2186
      %v2256 = vadd.f32 %v2255, %v2187
      %v2257 = vadd.f32 %v2256, %v2188
      %v2258 = vadd.f32 %v2257, %v2189
      %v2259 = vadd.f32 %v2258, %v2190
      %v2260 = vadd.f32 %v2259, %v2191
      %v2261 = vadd.f32 %v2260, %v2192
      %v2262 = vadd.f32 %v2261, %v2193
      %v2263 = vadd.f32 %v2262, %v2194
      %v2264 = vadd.f32 %v2263, %v2195
      %v2265 = vadd.f32 %v2264, %v2196
      %v2266 = vadd.f32 %v2265, %v2197
      %v2267 = vadd.f32 %v2266, %v2198
      %v2268 = vadd.f32 %v2267, %v2199
      %v2269 = vadd.f32 %v2268, %v2200
      %v2270 = vadd.f32 %v2269, %v2201
      %v2271 = vadd.f32 %v2270, %v2202
      %v2272 = vadd.f32 %v2271, %v2203
      %v2273 = vadd.f32 %v2272, %v2204
      %v2274 = vadd.f32 %v2273, %v2205
      %v2275 = vadd.f32 %v2274, %v2206
      %v2276 = vadd.f32 %v2275, %v2207
      %v2277 = vadd.f32 %v2276, %v2208
      %v2278 = vadd.f32 %v2277, %v2209
      %v2279 = vadd.f32 %v2278, %v2210
      %v2280 = vadd.f32 %v2279, %v2211
      %v2281 = vadd.f32 %v2280, %v2212
      %v2282 = vadd.f32 %v2281, %v2213
      %v2283 = vadd.f32 %v2282, %v2214
      %v2284 = vadd.f32 %v2283, %v2215
      %v2285 = vadd.f32 %v2284, %v2216
      %v2286 = vadd.f32 %v2285, %v2217
      %v2287 = vadd.f32 %v2286, %v2218
      %v2288 = vadd.f32 %v2287, %v2219
      %v2289 = vadd.f32 %v2288, %v2220
      %v2290 = vadd.f32 %v2289, %v2221
      %v2291 = vadd.f32 %v2290, %v2222
      %v2292 = vrot.slane %v2291, 4
      %v2293 = vadd.f32 %v2291, %v2292
      %v2294 = vrot.slane %v2293, 2
      %v2295 = vadd.f32 %v2293, %v2294
      %v2296 = vrot.slane %v2295, 1
      %v2297 = vadd.f32 %v2295, %v2296
      %v2298 = vadd.f32 %v2152, %v2297
      %2299 = vst [vmem:[#allocation4] sm:$0x1] %v2298
      %p2300 = scmp.eq.s32.totalorder %s17, 3
      // Predicated region
      $region49: #{encoder_forward.4} parent=43 // pred_check
        %p2301 = pneg %p2300
      $region50: #{encoder_forward.4} parent=43 // pred_check_branch
        %2303 = sbr.rel (%p2301) target = $region52
      $region51: #{encoder_forward.4} parent=43 // pred_region
        %v2304 = vld [vmem:[#allocation3] sm:$0x1]
        %v2305 = vld [vmem:[%s2] sm:$0xff]
        %v2306 = vld [vmem:[%s2 + $0x8] sm:$0xff]
        %v2307 = vld [vmem:[%s2 + $0x10] sm:$0xff]
        %v2308 = vld [vmem:[%s2 + $0x18] sm:$0xff]
        %v2309 = vld [vmem:[%s2 + $0x20] sm:$0xff]
        %v2310 = vld [vmem:[%s2 + $0x28] sm:$0xff]
        %v2311 = vld [vmem:[%s2 + $0x30] sm:$0xff]
        %v2312 = vld [vmem:[%s2 + $0x38] sm:$0xff]
        %v2313 = vld [vmem:[%s2 + $0x40] sm:$0xff]
        %v2314 = vld [vmem:[%s2 + $0x48] sm:$0xff]
        %v2315 = vld [vmem:[%s2 + $0x50] sm:$0xff]
        %v2316 = vld [vmem:[%s2 + $0x58] sm:$0xff]
        %v2317 = vld [vmem:[%s2 + $0x60] sm:$0xff]
        %v2318 = vld [vmem:[%s2 + $0x68] sm:$0xff]
        %v2319 = vld [vmem:[%s2 + $0x70] sm:$0xff]
        %v2320 = vld [vmem:[%s2 + $0x78] sm:$0xff]
        %2321 = vmatprep.subr.mxu0 0.0
        %2322 = vmatpush1.msra.mxu0 %v2320
        %2323 = vmatprep.subr.mxu0 0.0
        %2324 = vmatpush1.msra.mxu0 %v2319
        %2325 = vmatprep.subr.mxu0 0.0
        %2326 = vmatpush1.msra.mxu0 %v2318
        %2327 = vmatprep.subr.mxu0 0.0
        %2328 = vmatpush1.msra.mxu0 %v2317
        %2329 = vmatprep.subr.mxu0 0.0
        %2330 = vmatpush1.msra.mxu0 %v2316
        %2331 = vmatprep.subr.mxu0 0.0
        %2332 = vmatpush1.msra.mxu0 %v2315
        %2333 = vmatprep.subr.mxu0 0.0
        %2334 = vmatpush1.msra.mxu0 %v2314
        %2335 = vmatprep.subr.mxu0 0.0
        %2336 = vmatpush1.msra.mxu0 %v2313
        %2337 = vmatprep.subr.mxu0 0.0
        %2338 = vmatpush1.msra.mxu0 %v2312
        %2339 = vmatprep.subr.mxu0 0.0
        %2340 = vmatpush1.msra.mxu0 %v2311
        %2341 = vmatprep.subr.mxu0 0.0
        %2342 = vmatpush1.msra.mxu0 %v2310
        %2343 = vmatprep.subr.mxu0 0.0
        %2344 = vmatpush1.msra.mxu0 %v2309
        %2345 = vmatprep.subr.mxu0 0.0
        %2346 = vmatpush1.msra.mxu0 %v2308
        %2347 = vmatprep.subr.mxu0 0.0
        %2348 = vmatpush1.msra.mxu0 %v2307
        %2349 = vmatprep.subr.mxu0 0.0
        %2350 = vmatpush1.msra.mxu0 %v2306
        %2351 = vmatprep.subr.mxu0 0.0
        %2352 = vmatpush1.msra.mxu0 %v2305
        %2353 = vmatprep.subr.mxu0 0.0
        %2354 = vmatpush2.msra.mxu0 0.0
        %2355 = vmatprep.subr.mxu0 0.0
        %2356 = vmatpush2.msra.mxu0 0.0
        %2357 = vmatprep.subr.mxu0 0.0
        %2358 = vmatpush2.msra.mxu0 0.0
        %2359 = vmatprep.subr.mxu0 0.0
        %2360 = vmatpush2.msra.mxu0 0.0
        %2361 = vmatprep.subr.mxu0 0.0
        %2362 = vmatpush2.msra.mxu0 0.0
        %2363 = vmatprep.subr.mxu0 0.0
        %2364 = vmatpush2.msra.mxu0 0.0
        %2365 = vmatprep.subr.mxu0 0.0
        %2366 = vmatpush2.msra.mxu0 0.0
        %2367 = vmatprep.subr.mxu0 0.0
        %2368 = vmatpush2.msra.mxu0 0.0
        %2369 = vmatprep.subr.mxu0 0.0
        %2370 = vmatpush2.msra.mxu0 0.0
        %2371 = vmatprep.subr.mxu0 0.0
        %2372 = vmatpush2.msra.mxu0 0.0
        %2373 = vmatprep.subr.mxu0 0.0
        %2374 = vmatpush2.msra.mxu0 0.0
        %2375 = vmatprep.subr.mxu0 0.0
        %2376 = vmatpush2.msra.mxu0 0.0
        %2377 = vmatprep.subr.mxu0 0.0
        %2378 = vmatpush2.msra.mxu0 0.0
        %2379 = vmatprep.subr.mxu0 0.0
        %2380 = vmatpush2.msra.mxu0 0.0
        %2381 = vmatprep.subr.mxu0 0.0
        %2382 = vmatpush2.msra.mxu0 0.0
        %2383 = vmatprep.subr.mxu0 0.0
        %2384 = vmatpush2.msra.mxu0 0.0
        %2385 = vmatprep.mubr.f32.mxu0 0.0
        %2386 = vmatmul.mubr.f32.gmra.mxu0 %v2304
        %v2387 = vpop.f32.mrf.mxu0
        %v2388 = vadd.f32 0.0, %v2387
        %v2389 = vpop.f32.mrf.mxu0
        %2390 = vdwg.mxu0
        %v2391 = vld [vmem:[#allocation4] sm:$0x1]
        %2392 = vmatprep.subr.mxu0 0.0
        %2393 = vmatpush1.msra.mxu0 %v2320
        %2394 = vmatprep.subr.mxu0 0.0
        %2395 = vmatpush1.msra.mxu0 %v2319
        %2396 = vmatprep.subr.mxu0 0.0
        %2397 = vmatpush1.msra.mxu0 %v2318
        %2398 = vmatprep.subr.mxu0 0.0
        %2399 = vmatpush1.msra.mxu0 %v2317
        %2400 = vmatprep.subr.mxu0 0.0
        %2401 = vmatpush1.msra.mxu0 %v2316
        %2402 = vmatprep.subr.mxu0 0.0
        %2403 = vmatpush1.msra.mxu0 %v2315
        %2404 = vmatprep.subr.mxu0 0.0
        %2405 = vmatpush1.msra.mxu0 %v2314
        %2406 = vmatprep.subr.mxu0 0.0
        %2407 = vmatpush1.msra.mxu0 %v2313
        %2408 = vmatprep.subr.mxu0 0.0
        %2409 = vmatpush1.msra.mxu0 %v2312
        %2410 = vmatprep.subr.mxu0 0.0
        %2411 = vmatpush1.msra.mxu0 %v2311
        %2412 = vmatprep.subr.mxu0 0.0
        %2413 = vmatpush1.msra.mxu0 %v2310
        %2414 = vmatprep.subr.mxu0 0.0
        %2415 = vmatpush1.msra.mxu0 %v2309
        %2416 = vmatprep.subr.mxu0 0.0
        %2417 = vmatpush1.msra.mxu0 %v2308
        %2418 = vmatprep.subr.mxu0 0.0
        %2419 = vmatpush1.msra.mxu0 %v2307
        %2420 = vmatprep.subr.mxu0 0.0
        %2421 = vmatpush1.msra.mxu0 %v2306
        %2422 = vmatprep.subr.mxu0 0.0
        %2423 = vmatpush1.msra.mxu0 %v2305
        %2424 = vmatprep.subr.mxu0 0.0
        %2425 = vmatpush2.msra.mxu0 0.0
        %2426 = vmatprep.subr.mxu0 0.0
        %2427 = vmatpush2.msra.mxu0 0.0
        %2428 = vmatprep.subr.mxu0 0.0
        %2429 = vmatpush2.msra.mxu0 0.0
        %2430 = vmatprep.subr.mxu0 0.0
        %2431 = vmatpush2.msra.mxu0 0.0
        %2432 = vmatprep.subr.mxu0 0.0
        %2433 = vmatpush2.msra.mxu0 0.0
        %2434 = vmatprep.subr.mxu0 0.0
        %2435 = vmatpush2.msra.mxu0 0.0
        %2436 = vmatprep.subr.mxu0 0.0
        %2437 = vmatpush2.msra.mxu0 0.0
        %2438 = vmatprep.subr.mxu0 0.0
        %2439 = vmatpush2.msra.mxu0 0.0
        %2440 = vmatprep.subr.mxu0 0.0
        %2441 = vmatpush2.msra.mxu0 0.0
        %2442 = vmatprep.subr.mxu0 0.0
        %2443 = vmatpush2.msra.mxu0 0.0
        %2444 = vmatprep.subr.mxu0 0.0
        %2445 = vmatpush2.msra.mxu0 0.0
        %2446 = vmatprep.subr.mxu0 0.0
        %2447 = vmatpush2.msra.mxu0 0.0
        %2448 = vmatprep.subr.mxu0 0.0
        %2449 = vmatpush2.msra.mxu0 0.0
        %2450 = vmatprep.subr.mxu0 0.0
        %2451 = vmatpush2.msra.mxu0 0.0
        %2452 = vmatprep.subr.mxu0 0.0
        %2453 = vmatpush2.msra.mxu0 0.0
        %2454 = vmatprep.subr.mxu0 0.0
        %2455 = vmatpush2.msra.mxu0 0.0
        %2456 = vmatprep.mubr.f32.mxu0 0.0
        %2457 = vmatmul.mubr.f32.gmra.mxu0 %v2391
        %v2458 = vpop.f32.mrf.mxu0
        %v2459 = vadd.f32 0.0, %v2458
        %v2460 = vpop.f32.mrf.mxu0
        %2461 = vdwg.mxu0
        %v2462 = vmul.f32 %v2388, 2.7901786e-05
        %v2463 = vmul.f32 %v2459, 2.7901786e-05
        %v2464 = vmul.f32 %v2462, %v2462
        %v2465 = vsub.f32 %v2463, %v2464
        %v2466 = vld [vmem:[%s4] sm:$0x1]
        %v2467 = vadd.f32 %v2465, 1e-05
        %v2468 = vrsqrt.pop %v2467
        %v2469 = vmul.f32 %v2466, %v2468
        %v2470 = vld [vmem:[%s5] sm:$0x1]
        %v2471 = vmul.f32 %v2462, %v2469
        %v2472 = vsub.f32 %v2470, %v2471
        %v2473 = vld [vmem:[%s3] sm:$0xff]
        %vm2474 = vcmask 64512
        %v2476 = vsel %vm2474, %v2469, 0
        %2478 = vmatprep.subr.mxu0 0.0
        %2479 = vmatpush1.msra.mxu0 0.0
        %2480 = vmatprep.subr.mxu0 0.0
        %2481 = vmatpush1.msra.mxu0 0.0
        %2482 = vmatprep.subr.mxu0 0.0
        %2483 = vmatpush1.msra.mxu0 0.0
        %2484 = vmatprep.subr.mxu0 0.0
        %2485 = vmatpush1.msra.mxu0 0.0
        %2486 = vmatprep.subr.mxu0 0.0
        %2487 = vmatpush1.msra.mxu0 0.0
        %2488 = vmatprep.subr.mxu0 0.0
        %2489 = vmatpush1.msra.mxu0 0.0
        %2490 = vmatprep.subr.mxu0 0.0
        %2491 = vmatpush1.msra.mxu0 0.0
        %2492 = vmatprep.subr.mxu0 0.0
        %2493 = vmatpush1.msra.mxu0 0.0
        %2494 = vmatprep.subr.mxu0 0.0
        %2495 = vmatpush1.msra.mxu0 0.0
        %2496 = vmatprep.subr.mxu0 0.0
        %2497 = vmatpush1.msra.mxu0 0.0
        %2498 = vmatprep.subr.mxu0 0.0
        %2499 = vmatpush1.msra.mxu0 0.0
        %2500 = vmatprep.subr.mxu0 0.0
        %2501 = vmatpush1.msra.mxu0 0.0
        %2502 = vmatprep.subr.mxu0 0.0
        %2503 = vmatpush1.msra.mxu0 0.0
        %2504 = vmatprep.subr.mxu0 0.0
        %2505 = vmatpush1.msra.mxu0 0.0
        %2506 = vmatprep.subr.mxu0 0.0
        %2507 = vmatpush1.msra.mxu0 0.0
        %2508 = vmatprep.subr.mxu0 0.0
        %2509 = vmatpush1.msra.mxu0 %v2473
        %2510 = vmatprep.subr.mxu0 0.0
        %2511 = vmatpush2.msra.mxu0 0.0
        %2512 = vmatprep.subr.mxu0 0.0
        %2513 = vmatpush2.msra.mxu0 0.0
        %2514 = vmatprep.subr.mxu0 0.0
        %2515 = vmatpush2.msra.mxu0 0.0
        %2516 = vmatprep.subr.mxu0 0.0
        %2517 = vmatpush2.msra.mxu0 0.0
        %2518 = vmatprep.subr.mxu0 0.0
        %2519 = vmatpush2.msra.mxu0 0.0
        %2520 = vmatprep.subr.mxu0 0.0
        %2521 = vmatpush2.msra.mxu0 0.0
        %2522 = vmatprep.subr.mxu0 0.0
        %2523 = vmatpush2.msra.mxu0 0.0
        %2524 = vmatprep.subr.mxu0 0.0
        %2525 = vmatpush2.msra.mxu0 0.0
        %2526 = vmatprep.subr.mxu0 0.0
        %2527 = vmatpush2.msra.mxu0 0.0
        %2528 = vmatprep.subr.mxu0 0.0
        %2529 = vmatpush2.msra.mxu0 0.0
        %2530 = vmatprep.subr.mxu0 0.0
        %2531 = vmatpush2.msra.mxu0 0.0
        %2532 = vmatprep.subr.mxu0 0.0
        %2533 = vmatpush2.msra.mxu0 0.0
        %2534 = vmatprep.subr.mxu0 0.0
        %2535 = vmatpush2.msra.mxu0 0.0
        %2536 = vmatprep.subr.mxu0 0.0
        %2537 = vmatpush2.msra.mxu0 0.0
        %2538 = vmatprep.subr.mxu0 0.0
        %2539 = vmatpush2.msra.mxu0 0.0
        %2540 = vmatprep.subr.mxu0 0.0
        %2541 = vmatpush2.msra.mxu0 0.0
        %2542 = vmatprep.mubr.f32.mxu0 0.0
        %2543 = vmatmul.mubr.f32.gmra.mxu0 %v2476
        %v2544 = vpop.f32.mrf.mxu0
        %v2545 = vadd.f32 0.0, %v2544
        %v2546 = vpop.f32.mrf.mxu0
        %2547 = vdwg.mxu0
        %v2549 = vsel %vm2474, %v2472, 0
        %2551 = vmatprep.subr.mxu0 0.0
        %2552 = vmatpush1.msra.mxu0 0.0
        %2553 = vmatprep.subr.mxu0 0.0
        %2554 = vmatpush1.msra.mxu0 0.0
        %2555 = vmatprep.subr.mxu0 0.0
        %2556 = vmatpush1.msra.mxu0 0.0
        %2557 = vmatprep.subr.mxu0 0.0
        %2558 = vmatpush1.msra.mxu0 0.0
        %2559 = vmatprep.subr.mxu0 0.0
        %2560 = vmatpush1.msra.mxu0 0.0
        %2561 = vmatprep.subr.mxu0 0.0
        %2562 = vmatpush1.msra.mxu0 0.0
        %2563 = vmatprep.subr.mxu0 0.0
        %2564 = vmatpush1.msra.mxu0 0.0
        %2565 = vmatprep.subr.mxu0 0.0
        %2566 = vmatpush1.msra.mxu0 0.0
        %2567 = vmatprep.subr.mxu0 0.0
        %2568 = vmatpush1.msra.mxu0 0.0
        %2569 = vmatprep.subr.mxu0 0.0
        %2570 = vmatpush1.msra.mxu0 0.0
        %2571 = vmatprep.subr.mxu0 0.0
        %2572 = vmatpush1.msra.mxu0 0.0
        %2573 = vmatprep.subr.mxu0 0.0
        %2574 = vmatpush1.msra.mxu0 0.0
        %2575 = vmatprep.subr.mxu0 0.0
        %2576 = vmatpush1.msra.mxu0 0.0
        %2577 = vmatprep.subr.mxu0 0.0
        %2578 = vmatpush1.msra.mxu0 0.0
        %2579 = vmatprep.subr.mxu0 0.0
        %2580 = vmatpush1.msra.mxu0 0.0
        %2581 = vmatprep.subr.mxu0 0.0
        %2582 = vmatpush1.msra.mxu0 %v2473
        %2583 = vmatprep.subr.mxu0 0.0
        %2584 = vmatpush2.msra.mxu0 0.0
        %2585 = vmatprep.subr.mxu0 0.0
        %2586 = vmatpush2.msra.mxu0 0.0
        %2587 = vmatprep.subr.mxu0 0.0
        %2588 = vmatpush2.msra.mxu0 0.0
        %2589 = vmatprep.subr.mxu0 0.0
        %2590 = vmatpush2.msra.mxu0 0.0
        %2591 = vmatprep.subr.mxu0 0.0
        %2592 = vmatpush2.msra.mxu0 0.0
        %2593 = vmatprep.subr.mxu0 0.0
        %2594 = vmatpush2.msra.mxu0 0.0
        %2595 = vmatprep.subr.mxu0 0.0
        %2596 = vmatpush2.msra.mxu0 0.0
        %2597 = vmatprep.subr.mxu0 0.0
        %2598 = vmatpush2.msra.mxu0 0.0
        %2599 = vmatprep.subr.mxu0 0.0
        %2600 = vmatpush2.msra.mxu0 0.0
        %2601 = vmatprep.subr.mxu0 0.0
        %2602 = vmatpush2.msra.mxu0 0.0
        %2603 = vmatprep.subr.mxu0 0.0
        %2604 = vmatpush2.msra.mxu0 0.0
        %2605 = vmatprep.subr.mxu0 0.0
        %2606 = vmatpush2.msra.mxu0 0.0
        %2607 = vmatprep.subr.mxu0 0.0
        %2608 = vmatpush2.msra.mxu0 0.0
        %2609 = vmatprep.subr.mxu0 0.0
        %2610 = vmatpush2.msra.mxu0 0.0
        %2611 = vmatprep.subr.mxu0 0.0
        %2612 = vmatpush2.msra.mxu0 0.0
        %2613 = vmatprep.subr.mxu0 0.0
        %2614 = vmatpush2.msra.mxu0 0.0
        %2615 = vmatprep.mubr.f32.mxu0 0.0
        %2616 = vmatmul.mubr.f32.gmra.mxu0 %v2549
        %v2617 = vpop.f32.mrf.mxu0
        %v2618 = vadd.f32 0.0, %v2617
        %v2619 = vpop.f32.mrf.mxu0
        %2620 = vdwg.mxu0
        %v2621 = vld [vmem:[#allocation2] sm:$0xff]
        %v2622 = vld [vmem:[#allocation2 + $0x8] sm:$0xff]
        %v2623 = vld [vmem:[#allocation2 + $0x10] sm:$0xff]
        %v2624 = vld [vmem:[#allocation2 + $0x18] sm:$0xff]
        %v2625 = vld [vmem:[#allocation2 + $0x20] sm:$0xff]
        %v2626 = vld [vmem:[#allocation2 + $0x28] sm:$0xff]
        %v2627 = vld [vmem:[#allocation2 + $0x30] sm:$0xff]
        %v2628 = vld [vmem:[#allocation2 + $0x38] sm:$0xff]
        %v2629 = vld [vmem:[#allocation2 + $0x40] sm:$0xff]
        %v2630 = vld [vmem:[#allocation2 + $0x48] sm:$0xff]
        %v2631 = vld [vmem:[#allocation2 + $0x50] sm:$0xff]
        %v2632 = vld [vmem:[#allocation2 + $0x58] sm:$0xff]
        %v2633 = vld [vmem:[#allocation2 + $0x60] sm:$0xff]
        %v2634 = vld [vmem:[#allocation2 + $0x68] sm:$0xff]
        %v2635 = vld [vmem:[#allocation2 + $0x70] sm:$0xff]
        %v2636 = vld [vmem:[#allocation2 + $0x78] sm:$0xff]
        %v2637 = vld [vmem:[#allocation2 + $0x80] sm:$0xff]
        %v2638 = vld [vmem:[#allocation2 + $0x88] sm:$0xff]
        %v2639 = vld [vmem:[#allocation2 + $0x90] sm:$0xff]
        %v2640 = vld [vmem:[#allocation2 + $0x98] sm:$0xff]
        %v2641 = vld [vmem:[#allocation2 + $0xa0] sm:$0xff]
        %v2642 = vld [vmem:[#allocation2 + $0xa8] sm:$0xff]
        %v2643 = vld [vmem:[#allocation2 + $0xb0] sm:$0xff]
        %v2644 = vld [vmem:[#allocation2 + $0xb8] sm:$0xff]
        %v2645 = vld [vmem:[#allocation2 + $0xc0] sm:$0xff]
        %v2646 = vld [vmem:[#allocation2 + $0xc8] sm:$0xff]
        %v2647 = vld [vmem:[#allocation2 + $0xd0] sm:$0xff]
        %v2648 = vld [vmem:[#allocation2 + $0xd8] sm:$0xff]
        %v2649 = vld [vmem:[#allocation2 + $0xe0] sm:$0xff]
        %v2650 = vld [vmem:[#allocation2 + $0xe8] sm:$0xff]
        %v2651 = vld [vmem:[#allocation2 + $0xf0] sm:$0xff]
        %v2652 = vld [vmem:[#allocation2 + $0xf8] sm:$0xff]
        %v2653 = vld [vmem:[#allocation2 + $0x100] sm:$0xff]
        %v2654 = vld [vmem:[#allocation2 + $0x108] sm:$0xff]
        %v2655 = vld [vmem:[#allocation2 + $0x110] sm:$0xff]
        %v2656 = vld [vmem:[#allocation2 + $0x118] sm:$0xff]
        %v2657 = vld [vmem:[#allocation2 + $0x120] sm:$0xff]
        %v2658 = vld [vmem:[#allocation2 + $0x128] sm:$0xff]
        %v2659 = vld [vmem:[#allocation2 + $0x130] sm:$0xff]
        %v2660 = vld [vmem:[#allocation2 + $0x138] sm:$0xff]
        %v2661 = vld [vmem:[#allocation2 + $0x140] sm:$0xff]
        %v2662 = vld [vmem:[#allocation2 + $0x148] sm:$0xff]
        %v2663 = vld [vmem:[#allocation2 + $0x150] sm:$0xff]
        %v2664 = vld [vmem:[#allocation2 + $0x158] sm:$0xff]
        %v2665 = vld [vmem:[#allocation2 + $0x160] sm:$0xff]
        %v2666 = vld [vmem:[#allocation2 + $0x168] sm:$0xff]
        %v2667 = vld [vmem:[#allocation2 + $0x170] sm:$0xff]
        %v2668 = vld [vmem:[#allocation2 + $0x178] sm:$0xff]
        %v2669 = vld [vmem:[#allocation2 + $0x180] sm:$0xff]
        %v2670 = vld [vmem:[#allocation2 + $0x188] sm:$0xff]
        %v2671 = vld [vmem:[#allocation2 + $0x190] sm:$0xff]
        %v2672 = vld [vmem:[#allocation2 + $0x198] sm:$0xff]
        %v2673 = vld [vmem:[#allocation2 + $0x1a0] sm:$0xff]
        %v2674 = vld [vmem:[#allocation2 + $0x1a8] sm:$0xff]
        %v2675 = vld [vmem:[#allocation2 + $0x1b0] sm:$0xff]
        %v2676 = vld [vmem:[#allocation2 + $0x1b8] sm:$0xff]
        %v2677 = vld [vmem:[#allocation2 + $0x1c0] sm:$0xff]
        %v2678 = vld [vmem:[#allocation2 + $0x1c8] sm:$0xff]
        %v2679 = vld [vmem:[#allocation2 + $0x1d0] sm:$0xff]
        %v2680 = vld [vmem:[#allocation2 + $0x1d8] sm:$0xff]
        %v2681 = vld [vmem:[#allocation2 + $0x1e0] sm:$0xff]
        %v2682 = vld [vmem:[#allocation2 + $0x1e8] sm:$0xff]
        %v2683 = vld [vmem:[#allocation2 + $0x1f0] sm:$0xff]
        %v2684 = vld [vmem:[#allocation2 + $0x1f8] sm:$0xff]
        %v2685 = vld [vmem:[#allocation2 + $0x200] sm:$0xff]
        %v2686 = vld [vmem:[#allocation2 + $0x208] sm:$0xff]
        %v2687 = vld [vmem:[#allocation2 + $0x210] sm:$0xff]
        %v2688 = vld [vmem:[#allocation2 + $0x218] sm:$0xff]
        %v2689 = vld [vmem:[#allocation2 + $0x220] sm:$0xff]
        %v2690 = vld [vmem:[#allocation2 + $0x228] sm:$0xff]
        %v2691 = vld [vmem:[#allocation2 + $0x230] sm:$0xff]
        %v2692 = vld [vmem:[#allocation2 + $0x238] sm:$0xff]
        %v2693 = vld [vmem:[#allocation2 + $0x240] sm:$0xff]
        %v2694 = vld [vmem:[#allocation2 + $0x248] sm:$0xff]
        %v2695 = vld [vmem:[#allocation2 + $0x250] sm:$0xff]
        %v2696 = vld [vmem:[#allocation2 + $0x258] sm:$0xff]
        %v2697 = vld [vmem:[#allocation2 + $0x260] sm:$0xff]
        %v2698 = vld [vmem:[#allocation2 + $0x268] sm:$0xff]
        %v2699 = vld [vmem:[#allocation2 + $0x270] sm:$0xff]
        %v2700 = vld [vmem:[#allocation2 + $0x278] sm:$0xff]
        %v2701 = vld [vmem:[#allocation2 + $0x280] sm:$0xff]
        %v2702 = vld [vmem:[#allocation2 + $0x288] sm:$0xff]
        %v2703 = vld [vmem:[#allocation2 + $0x290] sm:$0xff]
        %v2704 = vld [vmem:[#allocation2 + $0x298] sm:$0xff]
        %v2705 = vld [vmem:[#allocation2 + $0x2a0] sm:$0xff]
        %v2706 = vld [vmem:[#allocation2 + $0x2a8] sm:$0xff]
        %v2707 = vld [vmem:[#allocation2 + $0x2b0] sm:$0xff]
        %v2708 = vld [vmem:[#allocation2 + $0x2b8] sm:$0xff]
        %v2709 = vld [vmem:[#allocation2 + $0x2c0] sm:$0xff]
        %v2710 = vld [vmem:[#allocation2 + $0x2c8] sm:$0xff]
        %v2711 = vld [vmem:[#allocation2 + $0x2d0] sm:$0xff]
        %v2712 = vld [vmem:[#allocation2 + $0x2d8] sm:$0xff]
        %v2713 = vld [vmem:[#allocation2 + $0x2e0] sm:$0xff]
        %v2714 = vld [vmem:[#allocation2 + $0x2e8] sm:$0xff]
        %v2715 = vld [vmem:[#allocation2 + $0x2f0] sm:$0xff]
        %v2716 = vld [vmem:[#allocation2 + $0x2f8] sm:$0xff]
        %v2717 = vld [vmem:[#allocation2 + $0x300] sm:$0xff]
        %v2718 = vld [vmem:[#allocation2 + $0x308] sm:$0xff]
        %v2719 = vld [vmem:[#allocation2 + $0x310] sm:$0xff]
        %v2720 = vld [vmem:[#allocation2 + $0x318] sm:$0xff]
        %v2721 = vld [vmem:[#allocation2 + $0x320] sm:$0xff]
        %v2722 = vld [vmem:[#allocation2 + $0x328] sm:$0xff]
        %v2723 = vld [vmem:[#allocation2 + $0x330] sm:$0xff]
        %v2724 = vld [vmem:[#allocation2 + $0x338] sm:$0xff]
        %v2725 = vld [vmem:[#allocation2 + $0x340] sm:$0xff]
        %v2726 = vld [vmem:[#allocation2 + $0x348] sm:$0xff]
        %v2727 = vld [vmem:[#allocation2 + $0x350] sm:$0xff]
        %v2728 = vld [vmem:[#allocation2 + $0x358] sm:$0xff]
        %v2729 = vld [vmem:[#allocation2 + $0x360] sm:$0xff]
        %v2730 = vld [vmem:[#allocation2 + $0x368] sm:$0xff]
        %v2731 = vld [vmem:[#allocation2 + $0x370] sm:$0xff]
        %v2732 = vld [vmem:[#allocation2 + $0x378] sm:$0xff]
        %v2733 = vld [vmem:[#allocation2 + $0x380] sm:$0xff]
        %v2734 = vld [vmem:[#allocation2 + $0x388] sm:$0xff]
        %v2735 = vld [vmem:[#allocation2 + $0x390] sm:$0xff]
        %v2736 = vld [vmem:[#allocation2 + $0x398] sm:$0xff]
        %v2737 = vld [vmem:[#allocation2 + $0x3a0] sm:$0xff]
        %v2738 = vld [vmem:[#allocation2 + $0x3a8] sm:$0xff]
        %v2739 = vld [vmem:[#allocation2 + $0x3b0] sm:$0xff]
        %v2740 = vld [vmem:[#allocation2 + $0x3b8] sm:$0xff]
        %v2741 = vld [vmem:[#allocation2 + $0x3c0] sm:$0xff]
        %v2742 = vld [vmem:[#allocation2 + $0x3c8] sm:$0xff]
        %v2743 = vld [vmem:[#allocation2 + $0x3d0] sm:$0xff]
        %v2744 = vld [vmem:[#allocation2 + $0x3d8] sm:$0xff]
        %v2745 = vld [vmem:[#allocation2 + $0x3e0] sm:$0xff]
        %v2746 = vld [vmem:[#allocation2 + $0x3e8] sm:$0xff]
        %v2747 = vld [vmem:[#allocation2 + $0x3f0] sm:$0xff]
        %v2748 = vld [vmem:[#allocation2 + $0x3f8] sm:$0xff]
        %v2749 = vld [vmem:[#allocation2 + $0x400] sm:$0xff]
        %v2750 = vld [vmem:[#allocation2 + $0x408] sm:$0xff]
        %v2751 = vld [vmem:[#allocation2 + $0x410] sm:$0xff]
        %v2752 = vld [vmem:[#allocation2 + $0x418] sm:$0xff]
        %v2753 = vld [vmem:[#allocation2 + $0x420] sm:$0xff]
        %v2754 = vld [vmem:[#allocation2 + $0x428] sm:$0xff]
        %v2755 = vld [vmem:[#allocation2 + $0x430] sm:$0xff]
        %v2756 = vld [vmem:[#allocation2 + $0x438] sm:$0xff]
        %v2757 = vld [vmem:[#allocation2 + $0x440] sm:$0xff]
        %v2758 = vld [vmem:[#allocation2 + $0x448] sm:$0xff]
        %v2759 = vld [vmem:[#allocation2 + $0x450] sm:$0xff]
        %v2760 = vld [vmem:[#allocation2 + $0x458] sm:$0xff]
        %v2761 = vld [vmem:[#allocation2 + $0x460] sm:$0xff]
        %v2762 = vld [vmem:[#allocation2 + $0x468] sm:$0xff]
        %v2763 = vld [vmem:[#allocation2 + $0x470] sm:$0xff]
        %v2764 = vld [vmem:[#allocation2 + $0x478] sm:$0xff]
        %v2765 = vld [vmem:[#allocation2 + $0x480] sm:$0xff]
        %v2766 = vld [vmem:[#allocation2 + $0x488] sm:$0xff]
        %v2767 = vld [vmem:[#allocation2 + $0x490] sm:$0xff]
        %v2768 = vld [vmem:[#allocation2 + $0x498] sm:$0xff]
        %v2769 = vld [vmem:[#allocation2 + $0x4a0] sm:$0xff]
        %v2770 = vld [vmem:[#allocation2 + $0x4a8] sm:$0xff]
        %v2771 = vld [vmem:[#allocation2 + $0x4b0] sm:$0xff]
        %v2772 = vld [vmem:[#allocation2 + $0x4b8] sm:$0xff]
        %v2773 = vld [vmem:[#allocation2 + $0x4c0] sm:$0xff]
        %v2774 = vld [vmem:[#allocation2 + $0x4c8] sm:$0xff]
        %v2775 = vld [vmem:[#allocation2 + $0x4d0] sm:$0xff]
        %v2776 = vld [vmem:[#allocation2 + $0x4d8] sm:$0xff]
        %v2777 = vld [vmem:[#allocation2 + $0x4e0] sm:$0xff]
        %v2778 = vld [vmem:[#allocation2 + $0x4e8] sm:$0xff]
        %v2779 = vld [vmem:[#allocation2 + $0x4f0] sm:$0xff]
        %v2780 = vld [vmem:[#allocation2 + $0x4f8] sm:$0xff]
        %v2781 = vld [vmem:[#allocation2 + $0x500] sm:$0xff]
        %v2782 = vld [vmem:[#allocation2 + $0x508] sm:$0xff]
        %v2783 = vld [vmem:[#allocation2 + $0x510] sm:$0xff]
        %v2784 = vld [vmem:[#allocation2 + $0x518] sm:$0xff]
        %v2785 = vld [vmem:[#allocation2 + $0x520] sm:$0xff]
        %v2786 = vld [vmem:[#allocation2 + $0x528] sm:$0xff]
        %v2787 = vld [vmem:[#allocation2 + $0x530] sm:$0xff]
        %v2788 = vld [vmem:[#allocation2 + $0x538] sm:$0xff]
        %v2789 = vld [vmem:[#allocation2 + $0x540] sm:$0xff]
        %v2790 = vld [vmem:[#allocation2 + $0x548] sm:$0xff]
        %v2791 = vld [vmem:[#allocation2 + $0x550] sm:$0xff]
        %v2792 = vld [vmem:[#allocation2 + $0x558] sm:$0xff]
        %v2793 = vld [vmem:[#allocation2 + $0x560] sm:$0xff]
        %v2794 = vld [vmem:[#allocation2 + $0x568] sm:$0xff]
        %v2795 = vld [vmem:[#allocation2 + $0x570] sm:$0xff]
        %v2796 = vld [vmem:[#allocation2 + $0x578] sm:$0xff]
        %v2797 = vld [vmem:[#allocation2 + $0x580] sm:$0xff]
        %v2798 = vld [vmem:[#allocation2 + $0x588] sm:$0xff]
        %v2799 = vld [vmem:[#allocation2 + $0x590] sm:$0xff]
        %v2800 = vld [vmem:[#allocation2 + $0x598] sm:$0xff]
        %v2801 = vld [vmem:[#allocation2 + $0x5a0] sm:$0xff]
        %v2802 = vld [vmem:[#allocation2 + $0x5a8] sm:$0xff]
        %v2803 = vld [vmem:[#allocation2 + $0x5b0] sm:$0xff]
        %v2804 = vld [vmem:[#allocation2 + $0x5b8] sm:$0xff]
        %v2805 = vld [vmem:[#allocation2 + $0x5c0] sm:$0xff]
        %v2806 = vld [vmem:[#allocation2 + $0x5c8] sm:$0xff]
        %v2807 = vld [vmem:[#allocation2 + $0x5d0] sm:$0xff]
        %v2808 = vld [vmem:[#allocation2 + $0x5d8] sm:$0xff]
        %v2809 = vld [vmem:[#allocation2 + $0x5e0] sm:$0xff]
        %v2810 = vld [vmem:[#allocation2 + $0x5e8] sm:$0xff]
        %v2811 = vld [vmem:[#allocation2 + $0x5f0] sm:$0xff]
        %v2812 = vld [vmem:[#allocation2 + $0x5f8] sm:$0xff]
        %v2813 = vld [vmem:[#allocation2 + $0x600] sm:$0xff]
        %v2814 = vld [vmem:[#allocation2 + $0x608] sm:$0xff]
        %v2815 = vld [vmem:[#allocation2 + $0x610] sm:$0xff]
        %v2816 = vld [vmem:[#allocation2 + $0x618] sm:$0xff]
        %v2817 = vld [vmem:[#allocation2 + $0x620] sm:$0xff]
        %v2818 = vld [vmem:[#allocation2 + $0x628] sm:$0xff]
        %v2819 = vld [vmem:[#allocation2 + $0x630] sm:$0xff]
        %v2820 = vld [vmem:[#allocation2 + $0x638] sm:$0xff]
        %v2821 = vld [vmem:[#allocation2 + $0x640] sm:$0xff]
        %v2822 = vld [vmem:[#allocation2 + $0x648] sm:$0xff]
        %v2823 = vld [vmem:[#allocation2 + $0x650] sm:$0xff]
        %v2824 = vld [vmem:[#allocation2 + $0x658] sm:$0xff]
        %v2825 = vld [vmem:[#allocation2 + $0x660] sm:$0xff]
        %v2826 = vld [vmem:[#allocation2 + $0x668] sm:$0xff]
        %v2827 = vld [vmem:[#allocation2 + $0x670] sm:$0xff]
        %v2828 = vld [vmem:[#allocation2 + $0x678] sm:$0xff]
        %v2829 = vld [vmem:[#allocation2 + $0x680] sm:$0xff]
        %v2830 = vld [vmem:[#allocation2 + $0x688] sm:$0xff]
        %v2831 = vld [vmem:[#allocation2 + $0x690] sm:$0xff]
        %v2832 = vld [vmem:[#allocation2 + $0x698] sm:$0xff]
        %v2833 = vld [vmem:[#allocation2 + $0x6a0] sm:$0xff]
        %v2834 = vld [vmem:[#allocation2 + $0x6a8] sm:$0xff]
        %v2835 = vld [vmem:[#allocation2 + $0x6b0] sm:$0xff]
        %v2836 = vld [vmem:[#allocation2 + $0x6b8] sm:$0xff]
        %v2837 = vld [vmem:[#allocation2 + $0x6c0] sm:$0xff]
        %v2838 = vld [vmem:[#allocation2 + $0x6c8] sm:$0xff]
        %v2839 = vld [vmem:[#allocation2 + $0x6d0] sm:$0xff]
        %v2840 = vld [vmem:[#allocation2 + $0x6d8] sm:$0xff]
        %v2841 = vld [vmem:[#allocation2 + $0x6e0] sm:$0xff]
        %v2842 = vld [vmem:[#allocation2 + $0x6e8] sm:$0xff]
        %v2843 = vld [vmem:[#allocation2 + $0x6f0] sm:$0xff]
        %v2844 = vld [vmem:[#allocation2 + $0x6f8] sm:$0xff]
        %v2845 = vld [vmem:[#allocation2 + $0x700] sm:$0xff]
        %v2846 = vld [vmem:[#allocation2 + $0x708] sm:$0xff]
        %v2847 = vld [vmem:[#allocation2 + $0x710] sm:$0xff]
        %v2848 = vld [vmem:[#allocation2 + $0x718] sm:$0xff]
        %v2849 = vld [vmem:[#allocation2 + $0x720] sm:$0xff]
        %v2850 = vld [vmem:[#allocation2 + $0x728] sm:$0xff]
        %v2851 = vld [vmem:[#allocation2 + $0x730] sm:$0xff]
        %v2852 = vld [vmem:[#allocation2 + $0x738] sm:$0xff]
        %v2853 = vld [vmem:[#allocation2 + $0x740] sm:$0xff]
        %v2854 = vld [vmem:[#allocation2 + $0x748] sm:$0xff]
        %v2855 = vld [vmem:[#allocation2 + $0x750] sm:$0xff]
        %v2856 = vld [vmem:[#allocation2 + $0x758] sm:$0xff]
        %v2857 = vld [vmem:[#allocation2 + $0x760] sm:$0xff]
        %v2858 = vld [vmem:[#allocation2 + $0x768] sm:$0xff]
        %v2859 = vld [vmem:[#allocation2 + $0x770] sm:$0xff]
        %v2860 = vld [vmem:[#allocation2 + $0x778] sm:$0xff]
        %v2861 = vld [vmem:[#allocation2 + $0x780] sm:$0xff]
        %v2862 = vld [vmem:[#allocation2 + $0x788] sm:$0xff]
        %v2863 = vld [vmem:[#allocation2 + $0x790] sm:$0xff]
        %v2864 = vld [vmem:[#allocation2 + $0x798] sm:$0xff]
        %v2865 = vld [vmem:[#allocation2 + $0x7a0] sm:$0xff]
        %v2866 = vld [vmem:[#allocation2 + $0x7a8] sm:$0xff]
        %v2867 = vld [vmem:[#allocation2 + $0x7b0] sm:$0xff]
        %v2868 = vld [vmem:[#allocation2 + $0x7b8] sm:$0xff]
        %v2869 = vld [vmem:[#allocation2 + $0x7c0] sm:$0xff]
        %v2870 = vld [vmem:[#allocation2 + $0x7c8] sm:$0xff]
        %v2871 = vld [vmem:[#allocation2 + $0x7d0] sm:$0xff]
        %v2872 = vld [vmem:[#allocation2 + $0x7d8] sm:$0xff]
        %v2873 = vld [vmem:[#allocation2 + $0x7e0] sm:$0xff]
        %v2874 = vld [vmem:[#allocation2 + $0x7e8] sm:$0xff]
        %v2875 = vld [vmem:[#allocation2 + $0x7f0] sm:$0xff]
        %v2876 = vld [vmem:[#allocation2 + $0x7f8] sm:$0xff]
        %v2877 = vld [vmem:[#allocation2 + $0x800] sm:$0xff]
        %v2878 = vld [vmem:[#allocation2 + $0x808] sm:$0xff]
        %v2879 = vld [vmem:[#allocation2 + $0x810] sm:$0xff]
        %v2880 = vld [vmem:[#allocation2 + $0x818] sm:$0xff]
        %v2881 = vld [vmem:[#allocation2 + $0x820] sm:$0xff]
        %v2882 = vld [vmem:[#allocation2 + $0x828] sm:$0xff]
        %v2883 = vld [vmem:[#allocation2 + $0x830] sm:$0xff]
        %v2884 = vld [vmem:[#allocation2 + $0x838] sm:$0xff]
        %v2885 = vld [vmem:[#allocation2 + $0x840] sm:$0xff]
        %v2886 = vld [vmem:[#allocation2 + $0x848] sm:$0xff]
        %v2887 = vld [vmem:[#allocation2 + $0x850] sm:$0xff]
        %v2888 = vld [vmem:[#allocation2 + $0x858] sm:$0xff]
        %v2889 = vld [vmem:[#allocation2 + $0x860] sm:$0xff]
        %v2890 = vld [vmem:[#allocation2 + $0x868] sm:$0xff]
        %v2891 = vld [vmem:[#allocation2 + $0x870] sm:$0xff]
        %v2892 = vld [vmem:[#allocation2 + $0x878] sm:$0xff]
        %v2893 = vld [vmem:[#allocation2 + $0x880] sm:$0xff]
        %v2894 = vld [vmem:[#allocation2 + $0x888] sm:$0xff]
        %v2895 = vld [vmem:[#allocation2 + $0x890] sm:$0xff]
        %v2896 = vld [vmem:[#allocation2 + $0x898] sm:$0xff]
        %v2897 = vld [vmem:[#allocation2 + $0x8a0] sm:$0xff]
        %v2898 = vld [vmem:[#allocation2 + $0x8a8] sm:$0xff]
        %v2899 = vld [vmem:[#allocation2 + $0x8b0] sm:$0xff]
        %v2900 = vld [vmem:[#allocation2 + $0x8b8] sm:$0xff]
        %v2901 = vlaneseq
        %v2902 = vshrl.u32 %v2901, 7
        %v2903 = vsub.s32 0, %v2902
        %v2904 = vrot.slane %v2545, %v2903
        %v2905 = vmul.f32 %v2621, %v2904
        %v2906 = vmul.f32 %v2622, %v2904
        %v2907 = vmul.f32 %v2623, %v2904
        %v2908 = vmul.f32 %v2624, %v2904
        %v2909 = vmul.f32 %v2625, %v2904
        %v2910 = vmul.f32 %v2626, %v2904
        %v2911 = vmul.f32 %v2627, %v2904
        %v2912 = vmul.f32 %v2628, %v2904
        %v2913 = vmul.f32 %v2629, %v2904
        %v2914 = vmul.f32 %v2630, %v2904
        %v2915 = vmul.f32 %v2631, %v2904
        %v2916 = vmul.f32 %v2632, %v2904
        %v2917 = vmul.f32 %v2633, %v2904
        %v2918 = vmul.f32 %v2634, %v2904
        %v2919 = vmul.f32 %v2635, %v2904
        %v2920 = vmul.f32 %v2636, %v2904
        %v2921 = vmul.f32 %v2637, %v2904
        %v2922 = vmul.f32 %v2638, %v2904
        %v2923 = vmul.f32 %v2639, %v2904
        %v2924 = vmul.f32 %v2640, %v2904
        %v2925 = vmul.f32 %v2641, %v2904
        %v2926 = vmul.f32 %v2642, %v2904
        %v2927 = vmul.f32 %v2643, %v2904
        %v2928 = vmul.f32 %v2644, %v2904
        %v2929 = vmul.f32 %v2645, %v2904
        %v2930 = vmul.f32 %v2646, %v2904
        %v2931 = vmul.f32 %v2647, %v2904
        %v2932 = vmul.f32 %v2648, %v2904
        %v2933 = vmul.f32 %v2649, %v2904
        %v2934 = vmul.f32 %v2650, %v2904
        %v2935 = vmul.f32 %v2651, %v2904
        %v2936 = vmul.f32 %v2652, %v2904
        %v2937 = vmul.f32 %v2653, %v2904
        %v2938 = vmul.f32 %v2654, %v2904
        %v2939 = vmul.f32 %v2655, %v2904
        %v2940 = vmul.f32 %v2656, %v2904
        %v2941 = vmul.f32 %v2657, %v2904
        %v2942 = vmul.f32 %v2658, %v2904
        %v2943 = vmul.f32 %v2659, %v2904
        %v2944 = vmul.f32 %v2660, %v2904
        %v2945 = vmul.f32 %v2661, %v2904
        %v2946 = vmul.f32 %v2662, %v2904
        %v2947 = vmul.f32 %v2663, %v2904
        %v2948 = vmul.f32 %v2664, %v2904
        %v2949 = vmul.f32 %v2665, %v2904
        %v2950 = vmul.f32 %v2666, %v2904
        %v2951 = vmul.f32 %v2667, %v2904
        %v2952 = vmul.f32 %v2668, %v2904
        %v2953 = vmul.f32 %v2669, %v2904
        %v2954 = vmul.f32 %v2670, %v2904
        %v2955 = vmul.f32 %v2671, %v2904
        %v2956 = vmul.f32 %v2672, %v2904
        %v2957 = vmul.f32 %v2673, %v2904
        %v2958 = vmul.f32 %v2674, %v2904
        %v2959 = vmul.f32 %v2675, %v2904
        %v2960 = vmul.f32 %v2676, %v2904
        %v2961 = vmul.f32 %v2677, %v2904
        %v2962 = vmul.f32 %v2678, %v2904
        %v2963 = vmul.f32 %v2679, %v2904
        %v2964 = vmul.f32 %v2680, %v2904
        %v2965 = vmul.f32 %v2681, %v2904
        %v2966 = vmul.f32 %v2682, %v2904
        %v2967 = vmul.f32 %v2683, %v2904
        %v2968 = vmul.f32 %v2684, %v2904
        %v2969 = vmul.f32 %v2685, %v2904
        %v2970 = vmul.f32 %v2686, %v2904
        %v2971 = vmul.f32 %v2687, %v2904
        %v2972 = vmul.f32 %v2688, %v2904
        %v2973 = vmul.f32 %v2689, %v2904
        %v2974 = vmul.f32 %v2690, %v2904
        %v2975 = vmul.f32 %v2691, %v2904
        %v2976 = vmul.f32 %v2692, %v2904
        %v2977 = vmul.f32 %v2693, %v2904
        %v2978 = vmul.f32 %v2694, %v2904
        %v2979 = vmul.f32 %v2695, %v2904
        %v2980 = vmul.f32 %v2696, %v2904
        %v2981 = vmul.f32 %v2697, %v2904
        %v2982 = vmul.f32 %v2698, %v2904
        %v2983 = vmul.f32 %v2699, %v2904
        %v2984 = vmul.f32 %v2700, %v2904
        %v2985 = vmul.f32 %v2701, %v2904
        %v2986 = vmul.f32 %v2702, %v2904
        %v2987 = vmul.f32 %v2703, %v2904
        %v2988 = vmul.f32 %v2704, %v2904
        %v2989 = vmul.f32 %v2705, %v2904
        %v2990 = vmul.f32 %v2706, %v2904
        %v2991 = vmul.f32 %v2707, %v2904
        %v2992 = vmul.f32 %v2708, %v2904
        %v2993 = vmul.f32 %v2709, %v2904
        %v2994 = vmul.f32 %v2710, %v2904
        %v2995 = vmul.f32 %v2711, %v2904
        %v2996 = vmul.f32 %v2712, %v2904
        %v2997 = vmul.f32 %v2713, %v2904
        %v2998 = vmul.f32 %v2714, %v2904
        %v2999 = vmul.f32 %v2715, %v2904
        %v3000 = vmul.f32 %v2716, %v2904
        %v3001 = vmul.f32 %v2717, %v2904
        %v3002 = vmul.f32 %v2718, %v2904
        %v3003 = vmul.f32 %v2719, %v2904
        %v3004 = vmul.f32 %v2720, %v2904
        %v3005 = vmul.f32 %v2721, %v2904
        %v3006 = vmul.f32 %v2722, %v2904
        %v3007 = vmul.f32 %v2723, %v2904
        %v3008 = vmul.f32 %v2724, %v2904
        %v3009 = vmul.f32 %v2725, %v2904
        %v3010 = vmul.f32 %v2726, %v2904
        %v3011 = vmul.f32 %v2727, %v2904
        %v3012 = vmul.f32 %v2728, %v2904
        %v3013 = vmul.f32 %v2729, %v2904
        %v3014 = vmul.f32 %v2730, %v2904
        %v3015 = vmul.f32 %v2731, %v2904
        %v3016 = vmul.f32 %v2732, %v2904
        %v3017 = vmul.f32 %v2733, %v2904
        %v3018 = vmul.f32 %v2734, %v2904
        %v3019 = vmul.f32 %v2735, %v2904
        %v3020 = vmul.f32 %v2736, %v2904
        %v3021 = vmul.f32 %v2737, %v2904
        %v3022 = vmul.f32 %v2738, %v2904
        %v3023 = vmul.f32 %v2739, %v2904
        %v3024 = vmul.f32 %v2740, %v2904
        %v3025 = vmul.f32 %v2741, %v2904
        %v3026 = vmul.f32 %v2742, %v2904
        %v3027 = vmul.f32 %v2743, %v2904
        %v3028 = vmul.f32 %v2744, %v2904
        %v3029 = vmul.f32 %v2745, %v2904
        %v3030 = vmul.f32 %v2746, %v2904
        %v3031 = vmul.f32 %v2747, %v2904
        %v3032 = vmul.f32 %v2748, %v2904
        %v3033 = vmul.f32 %v2749, %v2904
        %v3034 = vmul.f32 %v2750, %v2904
        %v3035 = vmul.f32 %v2751, %v2904
        %v3036 = vmul.f32 %v2752, %v2904
        %v3037 = vmul.f32 %v2753, %v2904
        %v3038 = vmul.f32 %v2754, %v2904
        %v3039 = vmul.f32 %v2755, %v2904
        %v3040 = vmul.f32 %v2756, %v2904
        %v3041 = vmul.f32 %v2757, %v2904
        %v3042 = vmul.f32 %v2758, %v2904
        %v3043 = vmul.f32 %v2759, %v2904
        %v3044 = vmul.f32 %v2760, %v2904
        %v3045 = vmul.f32 %v2761, %v2904
        %v3046 = vmul.f32 %v2762, %v2904
        %v3047 = vmul.f32 %v2763, %v2904
        %v3048 = vmul.f32 %v2764, %v2904
        %v3049 = vmul.f32 %v2765, %v2904
        %v3050 = vmul.f32 %v2766, %v2904
        %v3051 = vmul.f32 %v2767, %v2904
        %v3052 = vmul.f32 %v2768, %v2904
        %v3053 = vmul.f32 %v2769, %v2904
        %v3054 = vmul.f32 %v2770, %v2904
        %v3055 = vmul.f32 %v2771, %v2904
        %v3056 = vmul.f32 %v2772, %v2904
        %v3057 = vmul.f32 %v2773, %v2904
        %v3058 = vmul.f32 %v2774, %v2904
        %v3059 = vmul.f32 %v2775, %v2904
        %v3060 = vmul.f32 %v2776, %v2904
        %v3061 = vmul.f32 %v2777, %v2904
        %v3062 = vmul.f32 %v2778, %v2904
        %v3063 = vmul.f32 %v2779, %v2904
        %v3064 = vmul.f32 %v2780, %v2904
        %v3065 = vmul.f32 %v2781, %v2904
        %v3066 = vmul.f32 %v2782, %v2904
        %v3067 = vmul.f32 %v2783, %v2904
        %v3068 = vmul.f32 %v2784, %v2904
        %v3069 = vmul.f32 %v2785, %v2904
        %v3070 = vmul.f32 %v2786, %v2904
        %v3071 = vmul.f32 %v2787, %v2904
        %v3072 = vmul.f32 %v2788, %v2904
        %v3073 = vmul.f32 %v2789, %v2904
        %v3074 = vmul.f32 %v2790, %v2904
        %v3075 = vmul.f32 %v2791, %v2904
        %v3076 = vmul.f32 %v2792, %v2904
        %v3077 = vmul.f32 %v2793, %v2904
        %v3078 = vmul.f32 %v2794, %v2904
        %v3079 = vmul.f32 %v2795, %v2904
        %v3080 = vmul.f32 %v2796, %v2904
        %v3081 = vmul.f32 %v2797, %v2904
        %v3082 = vmul.f32 %v2798, %v2904
        %v3083 = vmul.f32 %v2799, %v2904
        %v3084 = vmul.f32 %v2800, %v2904
        %v3085 = vmul.f32 %v2801, %v2904
        %v3086 = vmul.f32 %v2802, %v2904
        %v3087 = vmul.f32 %v2803, %v2904
        %v3088 = vmul.f32 %v2804, %v2904
        %v3089 = vmul.f32 %v2805, %v2904
        %v3090 = vmul.f32 %v2806, %v2904
        %v3091 = vmul.f32 %v2807, %v2904
        %v3092 = vmul.f32 %v2808, %v2904
        %v3093 = vmul.f32 %v2809, %v2904
        %v3094 = vmul.f32 %v2810, %v2904
        %v3095 = vmul.f32 %v2811, %v2904
        %v3096 = vmul.f32 %v2812, %v2904
        %v3097 = vmul.f32 %v2813, %v2904
        %v3098 = vmul.f32 %v2814, %v2904
        %v3099 = vmul.f32 %v2815, %v2904
        %v3100 = vmul.f32 %v2816, %v2904
        %v3101 = vmul.f32 %v2817, %v2904
        %v3102 = vmul.f32 %v2818, %v2904
        %v3103 = vmul.f32 %v2819, %v2904
        %v3104 = vmul.f32 %v2820, %v2904
        %v3105 = vmul.f32 %v2821, %v2904
        %v3106 = vmul.f32 %v2822, %v2904
        %v3107 = vmul.f32 %v2823, %v2904
        %v3108 = vmul.f32 %v2824, %v2904
        %v3109 = vmul.f32 %v2825, %v2904
        %v3110 = vmul.f32 %v2826, %v2904
        %v3111 = vmul.f32 %v2827, %v2904
        %v3112 = vmul.f32 %v2828, %v2904
        %v3113 = vmul.f32 %v2829, %v2904
        %v3114 = vmul.f32 %v2830, %v2904
        %v3115 = vmul.f32 %v2831, %v2904
        %v3116 = vmul.f32 %v2832, %v2904
        %v3117 = vmul.f32 %v2833, %v2904
        %v3118 = vmul.f32 %v2834, %v2904
        %v3119 = vmul.f32 %v2835, %v2904
        %v3120 = vmul.f32 %v2836, %v2904
        %v3121 = vmul.f32 %v2837, %v2904
        %v3122 = vmul.f32 %v2838, %v2904
        %v3123 = vmul.f32 %v2839, %v2904
        %v3124 = vmul.f32 %v2840, %v2904
        %v3125 = vmul.f32 %v2841, %v2904
        %v3126 = vmul.f32 %v2842, %v2904
        %v3127 = vmul.f32 %v2843, %v2904
        %v3128 = vmul.f32 %v2844, %v2904
        %v3129 = vmul.f32 %v2845, %v2904
        %v3130 = vmul.f32 %v2846, %v2904
        %v3131 = vmul.f32 %v2847, %v2904
        %v3132 = vmul.f32 %v2848, %v2904
        %v3133 = vmul.f32 %v2849, %v2904
        %v3134 = vmul.f32 %v2850, %v2904
        %v3135 = vmul.f32 %v2851, %v2904
        %v3136 = vmul.f32 %v2852, %v2904
        %v3137 = vmul.f32 %v2853, %v2904
        %v3138 = vmul.f32 %v2854, %v2904
        %v3139 = vmul.f32 %v2855, %v2904
        %v3140 = vmul.f32 %v2856, %v2904
        %v3141 = vmul.f32 %v2857, %v2904
        %v3142 = vmul.f32 %v2858, %v2904
        %v3143 = vmul.f32 %v2859, %v2904
        %v3144 = vmul.f32 %v2860, %v2904
        %v3145 = vmul.f32 %v2861, %v2904
        %v3146 = vmul.f32 %v2862, %v2904
        %v3147 = vmul.f32 %v2863, %v2904
        %v3148 = vmul.f32 %v2864, %v2904
        %v3149 = vmul.f32 %v2865, %v2904
        %v3150 = vmul.f32 %v2866, %v2904
        %v3151 = vmul.f32 %v2867, %v2904
        %v3152 = vmul.f32 %v2868, %v2904
        %v3153 = vmul.f32 %v2869, %v2904
        %v3154 = vmul.f32 %v2870, %v2904
        %v3155 = vmul.f32 %v2871, %v2904
        %v3156 = vmul.f32 %v2872, %v2904
        %v3157 = vmul.f32 %v2873, %v2904
        %v3158 = vmul.f32 %v2874, %v2904
        %v3159 = vmul.f32 %v2875, %v2904
        %v3160 = vmul.f32 %v2876, %v2904
        %v3161 = vmul.f32 %v2877, %v2904
        %v3162 = vmul.f32 %v2878, %v2904
        %v3163 = vmul.f32 %v2879, %v2904
        %v3164 = vmul.f32 %v2880, %v2904
        %v3165 = vmul.f32 %v2881, %v2904
        %v3166 = vmul.f32 %v2882, %v2904
        %v3167 = vmul.f32 %v2883, %v2904
        %v3168 = vmul.f32 %v2884, %v2904
        %v3169 = vmul.f32 %v2885, %v2904
        %v3170 = vmul.f32 %v2886, %v2904
        %v3171 = vmul.f32 %v2887, %v2904
        %v3172 = vmul.f32 %v2888, %v2904
        %v3173 = vmul.f32 %v2889, %v2904
        %v3174 = vmul.f32 %v2890, %v2904
        %v3175 = vmul.f32 %v2891, %v2904
        %v3176 = vmul.f32 %v2892, %v2904
        %v3177 = vmul.f32 %v2893, %v2904
        %v3178 = vmul.f32 %v2894, %v2904
        %v3179 = vmul.f32 %v2895, %v2904
        %v3180 = vmul.f32 %v2896, %v2904
        %v3181 = vmul.f32 %v2897, %v2904
        %v3182 = vmul.f32 %v2898, %v2904
        %v3183 = vmul.f32 %v2899, %v2904
        %v3184 = vmul.f32 %v2900, %v2904
        %v3185 = vlaneseq
        %v3186 = vshrl.u32 %v3185, 7
        %v3187 = vsub.s32 0, %v3186
        %v3188 = vrot.slane %v2618, %v3187
        %v3189 = vadd.f32 %v2905, %v3188
        %v3190 = vadd.f32 %v2906, %v3188
        %v3191 = vadd.f32 %v2907, %v3188
        %v3192 = vadd.f32 %v2908, %v3188
        %v3193 = vadd.f32 %v2909, %v3188
        %v3194 = vadd.f32 %v2910, %v3188
        %v3195 = vadd.f32 %v2911, %v3188
        %v3196 = vadd.f32 %v2912, %v3188
        %v3197 = vadd.f32 %v2913, %v3188
        %v3198 = vadd.f32 %v2914, %v3188
        %v3199 = vadd.f32 %v2915, %v3188
        %v3200 = vadd.f32 %v2916, %v3188
        %v3201 = vadd.f32 %v2917, %v3188
        %v3202 = vadd.f32 %v2918, %v3188
        %v3203 = vadd.f32 %v2919, %v3188
        %v3204 = vadd.f32 %v2920, %v3188
        %v3205 = vadd.f32 %v2921, %v3188
        %v3206 = vadd.f32 %v2922, %v3188
        %v3207 = vadd.f32 %v2923, %v3188
        %v3208 = vadd.f32 %v2924, %v3188
        %v3209 = vadd.f32 %v2925, %v3188
        %v3210 = vadd.f32 %v2926, %v3188
        %v3211 = vadd.f32 %v2927, %v3188
        %v3212 = vadd.f32 %v2928, %v3188
        %v3213 = vadd.f32 %v2929, %v3188
        %v3214 = vadd.f32 %v2930, %v3188
        %v3215 = vadd.f32 %v2931, %v3188
        %v3216 = vadd.f32 %v2932, %v3188
        %v3217 = vadd.f32 %v2933, %v3188
        %v3218 = vadd.f32 %v2934, %v3188
        %v3219 = vadd.f32 %v2935, %v3188
        %v3220 = vadd.f32 %v2936, %v3188
        %v3221 = vadd.f32 %v2937, %v3188
        %v3222 = vadd.f32 %v2938, %v3188
        %v3223 = vadd.f32 %v2939, %v3188
        %v3224 = vadd.f32 %v2940, %v3188
        %v3225 = vadd.f32 %v2941, %v3188
        %v3226 = vadd.f32 %v2942, %v3188
        %v3227 = vadd.f32 %v2943, %v3188
        %v3228 = vadd.f32 %v2944, %v3188
        %v3229 = vadd.f32 %v2945, %v3188
        %v3230 = vadd.f32 %v2946, %v3188
        %v3231 = vadd.f32 %v2947, %v3188
        %v3232 = vadd.f32 %v2948, %v3188
        %v3233 = vadd.f32 %v2949, %v3188
        %v3234 = vadd.f32 %v2950, %v3188
        %v3235 = vadd.f32 %v2951, %v3188
        %v3236 = vadd.f32 %v2952, %v3188
        %v3237 = vadd.f32 %v2953, %v3188
        %v3238 = vadd.f32 %v2954, %v3188
        %v3239 = vadd.f32 %v2955, %v3188
        %v3240 = vadd.f32 %v2956, %v3188
        %v3241 = vadd.f32 %v2957, %v3188
        %v3242 = vadd.f32 %v2958, %v3188
        %v3243 = vadd.f32 %v2959, %v3188
        %v3244 = vadd.f32 %v2960, %v3188
        %v3245 = vadd.f32 %v2961, %v3188
        %v3246 = vadd.f32 %v2962, %v3188
        %v3247 = vadd.f32 %v2963, %v3188
        %v3248 = vadd.f32 %v2964, %v3188
        %v3249 = vadd.f32 %v2965, %v3188
        %v3250 = vadd.f32 %v2966, %v3188
        %v3251 = vadd.f32 %v2967, %v3188
        %v3252 = vadd.f32 %v2968, %v3188
        %v3253 = vadd.f32 %v2969, %v3188
        %v3254 = vadd.f32 %v2970, %v3188
        %v3255 = vadd.f32 %v2971, %v3188
        %v3256 = vadd.f32 %v2972, %v3188
        %v3257 = vadd.f32 %v2973, %v3188
        %v3258 = vadd.f32 %v2974, %v3188
        %v3259 = vadd.f32 %v2975, %v3188
        %v3260 = vadd.f32 %v2976, %v3188
        %v3261 = vadd.f32 %v2977, %v3188
        %v3262 = vadd.f32 %v2978, %v3188
        %v3263 = vadd.f32 %v2979, %v3188
        %v3264 = vadd.f32 %v2980, %v3188
        %v3265 = vadd.f32 %v2981, %v3188
        %v3266 = vadd.f32 %v2982, %v3188
        %v3267 = vadd.f32 %v2983, %v3188
        %v3268 = vadd.f32 %v2984, %v3188
        %v3269 = vadd.f32 %v2985, %v3188
        %v3270 = vadd.f32 %v2986, %v3188
        %v3271 = vadd.f32 %v2987, %v3188
        %v3272 = vadd.f32 %v2988, %v3188
        %v3273 = vadd.f32 %v2989, %v3188
        %v3274 = vadd.f32 %v2990, %v3188
        %v3275 = vadd.f32 %v2991, %v3188
        %v3276 = vadd.f32 %v2992, %v3188
        %v3277 = vadd.f32 %v2993, %v3188
        %v3278 = vadd.f32 %v2994, %v3188
        %v3279 = vadd.f32 %v2995, %v3188
        %v3280 = vadd.f32 %v2996, %v3188
        %v3281 = vadd.f32 %v2997, %v3188
        %v3282 = vadd.f32 %v2998, %v3188
        %v3283 = vadd.f32 %v2999, %v3188
        %v3284 = vadd.f32 %v3000, %v3188
        %v3285 = vadd.f32 %v3001, %v3188
        %v3286 = vadd.f32 %v3002, %v3188
        %v3287 = vadd.f32 %v3003, %v3188
        %v3288 = vadd.f32 %v3004, %v3188
        %v3289 = vadd.f32 %v3005, %v3188
        %v3290 = vadd.f32 %v3006, %v3188
        %v3291 = vadd.f32 %v3007, %v3188
        %v3292 = vadd.f32 %v3008, %v3188
        %v3293 = vadd.f32 %v3009, %v3188
        %v3294 = vadd.f32 %v3010, %v3188
        %v3295 = vadd.f32 %v3011, %v3188
        %v3296 = vadd.f32 %v3012, %v3188
        %v3297 = vadd.f32 %v3013, %v3188
        %v3298 = vadd.f32 %v3014, %v3188
        %v3299 = vadd.f32 %v3015, %v3188
        %v3300 = vadd.f32 %v3016, %v3188
        %v3301 = vadd.f32 %v3017, %v3188
        %v3302 = vadd.f32 %v3018, %v3188
        %v3303 = vadd.f32 %v3019, %v3188
        %v3304 = vadd.f32 %v3020, %v3188
        %v3305 = vadd.f32 %v3021, %v3188
        %v3306 = vadd.f32 %v3022, %v3188
        %v3307 = vadd.f32 %v3023, %v3188
        %v3308 = vadd.f32 %v3024, %v3188
        %v3309 = vadd.f32 %v3025, %v3188
        %v3310 = vadd.f32 %v3026, %v3188
        %v3311 = vadd.f32 %v3027, %v3188
        %v3312 = vadd.f32 %v3028, %v3188
        %v3313 = vadd.f32 %v3029, %v3188
        %v3314 = vadd.f32 %v3030, %v3188
        %v3315 = vadd.f32 %v3031, %v3188
        %v3316 = vadd.f32 %v3032, %v3188
        %v3317 = vadd.f32 %v3033, %v3188
        %v3318 = vadd.f32 %v3034, %v3188
        %v3319 = vadd.f32 %v3035, %v3188
        %v3320 = vadd.f32 %v3036, %v3188
        %v3321 = vadd.f32 %v3037, %v3188
        %v3322 = vadd.f32 %v3038, %v3188
        %v3323 = vadd.f32 %v3039, %v3188
        %v3324 = vadd.f32 %v3040, %v3188
        %v3325 = vadd.f32 %v3041, %v3188
        %v3326 = vadd.f32 %v3042, %v3188
        %v3327 = vadd.f32 %v3043, %v3188
        %v3328 = vadd.f32 %v3044, %v3188
        %v3329 = vadd.f32 %v3045, %v3188
        %v3330 = vadd.f32 %v3046, %v3188
        %v3331 = vadd.f32 %v3047, %v3188
        %v3332 = vadd.f32 %v3048, %v3188
        %v3333 = vadd.f32 %v3049, %v3188
        %v3334 = vadd.f32 %v3050, %v3188
        %v3335 = vadd.f32 %v3051, %v3188
        %v3336 = vadd.f32 %v3052, %v3188
        %v3337 = vadd.f32 %v3053, %v3188
        %v3338 = vadd.f32 %v3054, %v3188
        %v3339 = vadd.f32 %v3055, %v3188
        %v3340 = vadd.f32 %v3056, %v3188
        %v3341 = vadd.f32 %v3057, %v3188
        %v3342 = vadd.f32 %v3058, %v3188
        %v3343 = vadd.f32 %v3059, %v3188
        %v3344 = vadd.f32 %v3060, %v3188
        %v3345 = vadd.f32 %v3061, %v3188
        %v3346 = vadd.f32 %v3062, %v3188
        %v3347 = vadd.f32 %v3063, %v3188
        %v3348 = vadd.f32 %v3064, %v3188
        %v3349 = vadd.f32 %v3065, %v3188
        %v3350 = vadd.f32 %v3066, %v3188
        %v3351 = vadd.f32 %v3067, %v3188
        %v3352 = vadd.f32 %v3068, %v3188
        %v3353 = vadd.f32 %v3069, %v3188
        %v3354 = vadd.f32 %v3070, %v3188
        %v3355 = vadd.f32 %v3071, %v3188
        %v3356 = vadd.f32 %v3072, %v3188
        %v3357 = vadd.f32 %v3073, %v3188
        %v3358 = vadd.f32 %v3074, %v3188
        %v3359 = vadd.f32 %v3075, %v3188
        %v3360 = vadd.f32 %v3076, %v3188
        %v3361 = vadd.f32 %v3077, %v3188
        %v3362 = vadd.f32 %v3078, %v3188
        %v3363 = vadd.f32 %v3079, %v3188
        %v3364 = vadd.f32 %v3080, %v3188
        %v3365 = vadd.f32 %v3081, %v3188
        %v3366 = vadd.f32 %v3082, %v3188
        %v3367 = vadd.f32 %v3083, %v3188
        %v3368 = vadd.f32 %v3084, %v3188
        %v3369 = vadd.f32 %v3085, %v3188
        %v3370 = vadd.f32 %v3086, %v3188
        %v3371 = vadd.f32 %v3087, %v3188
        %v3372 = vadd.f32 %v3088, %v3188
        %v3373 = vadd.f32 %v3089, %v3188
        %v3374 = vadd.f32 %v3090, %v3188
        %v3375 = vadd.f32 %v3091, %v3188
        %v3376 = vadd.f32 %v3092, %v3188
        %v3377 = vadd.f32 %v3093, %v3188
        %v3378 = vadd.f32 %v3094, %v3188
        %v3379 = vadd.f32 %v3095, %v3188
        %v3380 = vadd.f32 %v3096, %v3188
        %v3381 = vadd.f32 %v3097, %v3188
        %v3382 = vadd.f32 %v3098, %v3188
        %v3383 = vadd.f32 %v3099, %v3188
        %v3384 = vadd.f32 %v3100, %v3188
        %v3385 = vadd.f32 %v3101, %v3188
        %v3386 = vadd.f32 %v3102, %v3188
        %v3387 = vadd.f32 %v3103, %v3188
        %v3388 = vadd.f32 %v3104, %v3188
        %v3389 = vadd.f32 %v3105, %v3188
        %v3390 = vadd.f32 %v3106, %v3188
        %v3391 = vadd.f32 %v3107, %v3188
        %v3392 = vadd.f32 %v3108, %v3188
        %v3393 = vadd.f32 %v3109, %v3188
        %v3394 = vadd.f32 %v3110, %v3188
        %v3395 = vadd.f32 %v3111, %v3188
        %v3396 = vadd.f32 %v3112, %v3188
        %v3397 = vadd.f32 %v3113, %v3188
        %v3398 = vadd.f32 %v3114, %v3188
        %v3399 = vadd.f32 %v3115, %v3188
        %v3400 = vadd.f32 %v3116, %v3188
        %v3401 = vadd.f32 %v3117, %v3188
        %v3402 = vadd.f32 %v3118, %v3188
        %v3403 = vadd.f32 %v3119, %v3188
        %v3404 = vadd.f32 %v3120, %v3188
        %v3405 = vadd.f32 %v3121, %v3188
        %v3406 = vadd.f32 %v3122, %v3188
        %v3407 = vadd.f32 %v3123, %v3188
        %v3408 = vadd.f32 %v3124, %v3188
        %v3409 = vadd.f32 %v3125, %v3188
        %v3410 = vadd.f32 %v3126, %v3188
        %v3411 = vadd.f32 %v3127, %v3188
        %v3412 = vadd.f32 %v3128, %v3188
        %v3413 = vadd.f32 %v3129, %v3188
        %v3414 = vadd.f32 %v3130, %v3188
        %v3415 = vadd.f32 %v3131, %v3188
        %v3416 = vadd.f32 %v3132, %v3188
        %v3417 = vadd.f32 %v3133, %v3188
        %v3418 = vadd.f32 %v3134, %v3188
        %v3419 = vadd.f32 %v3135, %v3188
        %v3420 = vadd.f32 %v3136, %v3188
        %v3421 = vadd.f32 %v3137, %v3188
        %v3422 = vadd.f32 %v3138, %v3188
        %v3423 = vadd.f32 %v3139, %v3188
        %v3424 = vadd.f32 %v3140, %v3188
        %v3425 = vadd.f32 %v3141, %v3188
        %v3426 = vadd.f32 %v3142, %v3188
        %v3427 = vadd.f32 %v3143, %v3188
        %v3428 = vadd.f32 %v3144, %v3188
        %v3429 = vadd.f32 %v3145, %v3188
        %v3430 = vadd.f32 %v3146, %v3188
        %v3431 = vadd.f32 %v3147, %v3188
        %v3432 = vadd.f32 %v3148, %v3188
        %v3433 = vadd.f32 %v3149, %v3188
        %v3434 = vadd.f32 %v3150, %v3188
        %v3435 = vadd.f32 %v3151, %v3188
        %v3436 = vadd.f32 %v3152, %v3188
        %v3437 = vadd.f32 %v3153, %v3188
        %v3438 = vadd.f32 %v3154, %v3188
        %v3439 = vadd.f32 %v3155, %v3188
        %v3440 = vadd.f32 %v3156, %v3188
        %v3441 = vadd.f32 %v3157, %v3188
        %v3442 = vadd.f32 %v3158, %v3188
        %v3443 = vadd.f32 %v3159, %v3188
        %v3444 = vadd.f32 %v3160, %v3188
        %v3445 = vadd.f32 %v3161, %v3188
        %v3446 = vadd.f32 %v3162, %v3188
        %v3447 = vadd.f32 %v3163, %v3188
        %v3448 = vadd.f32 %v3164, %v3188
        %v3449 = vadd.f32 %v3165, %v3188
        %v3450 = vadd.f32 %v3166, %v3188
        %v3451 = vadd.f32 %v3167, %v3188
        %v3452 = vadd.f32 %v3168, %v3188
        %v3453 = vadd.f32 %v3169, %v3188
        %v3454 = vadd.f32 %v3170, %v3188
        %v3455 = vadd.f32 %v3171, %v3188
        %v3456 = vadd.f32 %v3172, %v3188
        %v3457 = vadd.f32 %v3173, %v3188
        %v3458 = vadd.f32 %v3174, %v3188
        %v3459 = vadd.f32 %v3175, %v3188
        %v3460 = vadd.f32 %v3176, %v3188
        %v3461 = vadd.f32 %v3177, %v3188
        %v3462 = vadd.f32 %v3178, %v3188
        %v3463 = vadd.f32 %v3179, %v3188
        %v3464 = vadd.f32 %v3180, %v3188
        %v3465 = vadd.f32 %v3181, %v3188
        %v3466 = vadd.f32 %v3182, %v3188
        %v3467 = vadd.f32 %v3183, %v3188
        %v3468 = vadd.f32 %v3184, %v3188
        %v3469 = vmax.f32 %v3189, 0.0
        %v3470 = vmax.f32 %v3190, 0.0
        %v3471 = vmax.f32 %v3191, 0.0
        %v3472 = vmax.f32 %v3192, 0.0
        %v3473 = vmax.f32 %v3193, 0.0
        %v3474 = vmax.f32 %v3194, 0.0
        %v3475 = vmax.f32 %v3195, 0.0
        %v3476 = vmax.f32 %v3196, 0.0
        %v3477 = vmax.f32 %v3197, 0.0
        %v3478 = vmax.f32 %v3198, 0.0
        %v3479 = vmax.f32 %v3199, 0.0
        %v3480 = vmax.f32 %v3200, 0.0
        %v3481 = vmax.f32 %v3201, 0.0
        %v3482 = vmax.f32 %v3202, 0.0
        %v3483 = vmax.f32 %v3203, 0.0
        %v3484 = vmax.f32 %v3204, 0.0
        %v3485 = vmax.f32 %v3205, 0.0
        %v3486 = vmax.f32 %v3206, 0.0
        %v3487 = vmax.f32 %v3207, 0.0
        %v3488 = vmax.f32 %v3208, 0.0
        %v3489 = vmax.f32 %v3209, 0.0
        %v3490 = vmax.f32 %v3210, 0.0
        %v3491 = vmax.f32 %v3211, 0.0
        %v3492 = vmax.f32 %v3212, 0.0
        %v3493 = vmax.f32 %v3213, 0.0
        %v3494 = vmax.f32 %v3214, 0.0
        %v3495 = vmax.f32 %v3215, 0.0
        %v3496 = vmax.f32 %v3216, 0.0
        %v3497 = vmax.f32 %v3217, 0.0
        %v3498 = vmax.f32 %v3218, 0.0
        %v3499 = vmax.f32 %v3219, 0.0
        %v3500 = vmax.f32 %v3220, 0.0
        %v3501 = vmax.f32 %v3221, 0.0
        %v3502 = vmax.f32 %v3222, 0.0
        %v3503 = vmax.f32 %v3223, 0.0
        %v3504 = vmax.f32 %v3224, 0.0
        %v3505 = vmax.f32 %v3225, 0.0
        %v3506 = vmax.f32 %v3226, 0.0
        %v3507 = vmax.f32 %v3227, 0.0
        %v3508 = vmax.f32 %v3228, 0.0
        %v3509 = vmax.f32 %v3229, 0.0
        %v3510 = vmax.f32 %v3230, 0.0
        %v3511 = vmax.f32 %v3231, 0.0
        %v3512 = vmax.f32 %v3232, 0.0
        %v3513 = vmax.f32 %v3233, 0.0
        %v3514 = vmax.f32 %v3234, 0.0
        %v3515 = vmax.f32 %v3235, 0.0
        %v3516 = vmax.f32 %v3236, 0.0
        %v3517 = vmax.f32 %v3237, 0.0
        %v3518 = vmax.f32 %v3238, 0.0
        %v3519 = vmax.f32 %v3239, 0.0
        %v3520 = vmax.f32 %v3240, 0.0
        %v3521 = vmax.f32 %v3241, 0.0
        %v3522 = vmax.f32 %v3242, 0.0
        %v3523 = vmax.f32 %v3243, 0.0
        %v3524 = vmax.f32 %v3244, 0.0
        %v3525 = vmax.f32 %v3245, 0.0
        %v3526 = vmax.f32 %v3246, 0.0
        %v3527 = vmax.f32 %v3247, 0.0
        %v3528 = vmax.f32 %v3248, 0.0
        %v3529 = vmax.f32 %v3249, 0.0
        %v3530 = vmax.f32 %v3250, 0.0
        %v3531 = vmax.f32 %v3251, 0.0
        %v3532 = vmax.f32 %v3252, 0.0
        %v3533 = vmax.f32 %v3253, 0.0
        %v3534 = vmax.f32 %v3254, 0.0
        %v3535 = vmax.f32 %v3255, 0.0
        %v3536 = vmax.f32 %v3256, 0.0
        %v3537 = vmax.f32 %v3257, 0.0
        %v3538 = vmax.f32 %v3258, 0.0
        %v3539 = vmax.f32 %v3259, 0.0
        %v3540 = vmax.f32 %v3260, 0.0
        %v3541 = vmax.f32 %v3261, 0.0
        %v3542 = vmax.f32 %v3262, 0.0
        %v3543 = vmax.f32 %v3263, 0.0
        %v3544 = vmax.f32 %v3264, 0.0
        %v3545 = vmax.f32 %v3265, 0.0
        %v3546 = vmax.f32 %v3266, 0.0
        %v3547 = vmax.f32 %v3267, 0.0
        %v3548 = vmax.f32 %v3268, 0.0
        %v3549 = vmax.f32 %v3269, 0.0
        %v3550 = vmax.f32 %v3270, 0.0
        %v3551 = vmax.f32 %v3271, 0.0
        %v3552 = vmax.f32 %v3272, 0.0
        %v3553 = vmax.f32 %v3273, 0.0
        %v3554 = vmax.f32 %v3274, 0.0
        %v3555 = vmax.f32 %v3275, 0.0
        %v3556 = vmax.f32 %v3276, 0.0
        %v3557 = vmax.f32 %v3277, 0.0
        %v3558 = vmax.f32 %v3278, 0.0
        %v3559 = vmax.f32 %v3279, 0.0
        %v3560 = vmax.f32 %v3280, 0.0
        %v3561 = vmax.f32 %v3281, 0.0
        %v3562 = vmax.f32 %v3282, 0.0
        %v3563 = vmax.f32 %v3283, 0.0
        %v3564 = vmax.f32 %v3284, 0.0
        %v3565 = vmax.f32 %v3285, 0.0
        %v3566 = vmax.f32 %v3286, 0.0
        %v3567 = vmax.f32 %v3287, 0.0
        %v3568 = vmax.f32 %v3288, 0.0
        %v3569 = vmax.f32 %v3289, 0.0
        %v3570 = vmax.f32 %v3290, 0.0
        %v3571 = vmax.f32 %v3291, 0.0
        %v3572 = vmax.f32 %v3292, 0.0
        %v3573 = vmax.f32 %v3293, 0.0
        %v3574 = vmax.f32 %v3294, 0.0
        %v3575 = vmax.f32 %v3295, 0.0
        %v3576 = vmax.f32 %v3296, 0.0
        %v3577 = vmax.f32 %v3297, 0.0
        %v3578 = vmax.f32 %v3298, 0.0
        %v3579 = vmax.f32 %v3299, 0.0
        %v3580 = vmax.f32 %v3300, 0.0
        %v3581 = vmax.f32 %v3301, 0.0
        %v3582 = vmax.f32 %v3302, 0.0
        %v3583 = vmax.f32 %v3303, 0.0
        %v3584 = vmax.f32 %v3304, 0.0
        %v3585 = vmax.f32 %v3305, 0.0
        %v3586 = vmax.f32 %v3306, 0.0
        %v3587 = vmax.f32 %v3307, 0.0
        %v3588 = vmax.f32 %v3308, 0.0
        %v3589 = vmax.f32 %v3309, 0.0
        %v3590 = vmax.f32 %v3310, 0.0
        %v3591 = vmax.f32 %v3311, 0.0
        %v3592 = vmax.f32 %v3312, 0.0
        %v3593 = vmax.f32 %v3313, 0.0
        %v3594 = vmax.f32 %v3314, 0.0
        %v3595 = vmax.f32 %v3315, 0.0
        %v3596 = vmax.f32 %v3316, 0.0
        %v3597 = vmax.f32 %v3317, 0.0
        %v3598 = vmax.f32 %v3318, 0.0
        %v3599 = vmax.f32 %v3319, 0.0
        %v3600 = vmax.f32 %v3320, 0.0
        %v3601 = vmax.f32 %v3321, 0.0
        %v3602 = vmax.f32 %v3322, 0.0
        %v3603 = vmax.f32 %v3323, 0.0
        %v3604 = vmax.f32 %v3324, 0.0
        %v3605 = vmax.f32 %v3325, 0.0
        %v3606 = vmax.f32 %v3326, 0.0
        %v3607 = vmax.f32 %v3327, 0.0
        %v3608 = vmax.f32 %v3328, 0.0
        %v3609 = vmax.f32 %v3329, 0.0
        %v3610 = vmax.f32 %v3330, 0.0
        %v3611 = vmax.f32 %v3331, 0.0
        %v3612 = vmax.f32 %v3332, 0.0
        %v3613 = vmax.f32 %v3333, 0.0
        %v3614 = vmax.f32 %v3334, 0.0
        %v3615 = vmax.f32 %v3335, 0.0
        %v3616 = vmax.f32 %v3336, 0.0
        %v3617 = vmax.f32 %v3337, 0.0
        %v3618 = vmax.f32 %v3338, 0.0
        %v3619 = vmax.f32 %v3339, 0.0
        %v3620 = vmax.f32 %v3340, 0.0
        %v3621 = vmax.f32 %v3341, 0.0
        %v3622 = vmax.f32 %v3342, 0.0
        %v3623 = vmax.f32 %v3343, 0.0
        %v3624 = vmax.f32 %v3344, 0.0
        %v3625 = vmax.f32 %v3345, 0.0
        %v3626 = vmax.f32 %v3346, 0.0
        %v3627 = vmax.f32 %v3347, 0.0
        %v3628 = vmax.f32 %v3348, 0.0
        %v3629 = vmax.f32 %v3349, 0.0
        %v3630 = vmax.f32 %v3350, 0.0
        %v3631 = vmax.f32 %v3351, 0.0
        %v3632 = vmax.f32 %v3352, 0.0
        %v3633 = vmax.f32 %v3353, 0.0
        %v3634 = vmax.f32 %v3354, 0.0
        %v3635 = vmax.f32 %v3355, 0.0
        %v3636 = vmax.f32 %v3356, 0.0
        %v3637 = vmax.f32 %v3357, 0.0
        %v3638 = vmax.f32 %v3358, 0.0
        %v3639 = vmax.f32 %v3359, 0.0
        %v3640 = vmax.f32 %v3360, 0.0
        %v3641 = vmax.f32 %v3361, 0.0
        %v3642 = vmax.f32 %v3362, 0.0
        %v3643 = vmax.f32 %v3363, 0.0
        %v3644 = vmax.f32 %v3364, 0.0
        %v3645 = vmax.f32 %v3365, 0.0
        %v3646 = vmax.f32 %v3366, 0.0
        %v3647 = vmax.f32 %v3367, 0.0
        %v3648 = vmax.f32 %v3368, 0.0
        %v3649 = vmax.f32 %v3369, 0.0
        %v3650 = vmax.f32 %v3370, 0.0
        %v3651 = vmax.f32 %v3371, 0.0
        %v3652 = vmax.f32 %v3372, 0.0
        %v3653 = vmax.f32 %v3373, 0.0
        %v3654 = vmax.f32 %v3374, 0.0
        %v3655 = vmax.f32 %v3375, 0.0
        %v3656 = vmax.f32 %v3376, 0.0
        %v3657 = vmax.f32 %v3377, 0.0
        %v3658 = vmax.f32 %v3378, 0.0
        %v3659 = vmax.f32 %v3379, 0.0
        %v3660 = vmax.f32 %v3380, 0.0
        %v3661 = vmax.f32 %v3381, 0.0
        %v3662 = vmax.f32 %v3382, 0.0
        %v3663 = vmax.f32 %v3383, 0.0
        %v3664 = vmax.f32 %v3384, 0.0
        %v3665 = vmax.f32 %v3385, 0.0
        %v3666 = vmax.f32 %v3386, 0.0
        %v3667 = vmax.f32 %v3387, 0.0
        %v3668 = vmax.f32 %v3388, 0.0
        %v3669 = vmax.f32 %v3389, 0.0
        %v3670 = vmax.f32 %v3390, 0.0
        %v3671 = vmax.f32 %v3391, 0.0
        %v3672 = vmax.f32 %v3392, 0.0
        %v3673 = vmax.f32 %v3393, 0.0
        %v3674 = vmax.f32 %v3394, 0.0
        %v3675 = vmax.f32 %v3395, 0.0
        %v3676 = vmax.f32 %v3396, 0.0
        %v3677 = vmax.f32 %v3397, 0.0
        %v3678 = vmax.f32 %v3398, 0.0
        %v3679 = vmax.f32 %v3399, 0.0
        %v3680 = vmax.f32 %v3400, 0.0
        %v3681 = vmax.f32 %v3401, 0.0
        %v3682 = vmax.f32 %v3402, 0.0
        %v3683 = vmax.f32 %v3403, 0.0
        %v3684 = vmax.f32 %v3404, 0.0
        %v3685 = vmax.f32 %v3405, 0.0
        %v3686 = vmax.f32 %v3406, 0.0
        %v3687 = vmax.f32 %v3407, 0.0
        %v3688 = vmax.f32 %v3408, 0.0
        %v3689 = vmax.f32 %v3409, 0.0
        %v3690 = vmax.f32 %v3410, 0.0
        %v3691 = vmax.f32 %v3411, 0.0
        %v3692 = vmax.f32 %v3412, 0.0
        %v3693 = vmax.f32 %v3413, 0.0
        %v3694 = vmax.f32 %v3414, 0.0
        %v3695 = vmax.f32 %v3415, 0.0
        %v3696 = vmax.f32 %v3416, 0.0
        %v3697 = vmax.f32 %v3417, 0.0
        %v3698 = vmax.f32 %v3418, 0.0
        %v3699 = vmax.f32 %v3419, 0.0
        %v3700 = vmax.f32 %v3420, 0.0
        %v3701 = vmax.f32 %v3421, 0.0
        %v3702 = vmax.f32 %v3422, 0.0
        %v3703 = vmax.f32 %v3423, 0.0
        %v3704 = vmax.f32 %v3424, 0.0
        %v3705 = vmax.f32 %v3425, 0.0
        %v3706 = vmax.f32 %v3426, 0.0
        %v3707 = vmax.f32 %v3427, 0.0
        %v3708 = vmax.f32 %v3428, 0.0
        %v3709 = vmax.f32 %v3429, 0.0
        %v3710 = vmax.f32 %v3430, 0.0
        %v3711 = vmax.f32 %v3431, 0.0
        %v3712 = vmax.f32 %v3432, 0.0
        %v3713 = vmax.f32 %v3433, 0.0
        %v3714 = vmax.f32 %v3434, 0.0
        %v3715 = vmax.f32 %v3435, 0.0
        %v3716 = vmax.f32 %v3436, 0.0
        %v3717 = vmax.f32 %v3437, 0.0
        %v3718 = vmax.f32 %v3438, 0.0
        %v3719 = vmax.f32 %v3439, 0.0
        %v3720 = vmax.f32 %v3440, 0.0
        %v3721 = vmax.f32 %v3441, 0.0
        %v3722 = vmax.f32 %v3442, 0.0
        %v3723 = vmax.f32 %v3443, 0.0
        %v3724 = vmax.f32 %v3444, 0.0
        %v3725 = vmax.f32 %v3445, 0.0
        %v3726 = vmax.f32 %v3446, 0.0
        %v3727 = vmax.f32 %v3447, 0.0
        %v3728 = vmax.f32 %v3448, 0.0
        %v3729 = vmax.f32 %v3449, 0.0
        %v3730 = vmax.f32 %v3450, 0.0
        %v3731 = vmax.f32 %v3451, 0.0
        %v3732 = vmax.f32 %v3452, 0.0
        %v3733 = vmax.f32 %v3453, 0.0
        %v3734 = vmax.f32 %v3454, 0.0
        %v3735 = vmax.f32 %v3455, 0.0
        %v3736 = vmax.f32 %v3456, 0.0
        %v3737 = vmax.f32 %v3457, 0.0
        %v3738 = vmax.f32 %v3458, 0.0
        %v3739 = vmax.f32 %v3459, 0.0
        %v3740 = vmax.f32 %v3460, 0.0
        %v3741 = vmax.f32 %v3461, 0.0
        %v3742 = vmax.f32 %v3462, 0.0
        %v3743 = vmax.f32 %v3463, 0.0
        %v3744 = vmax.f32 %v3464, 0.0
        %v3745 = vmax.f32 %v3465, 0.0
        %v3746 = vmax.f32 %v3466, 0.0
        %v3747 = vmax.f32 %v3467, 0.0
        %v3748 = vmax.f32 %v3468, 0.0
        %v3749 = vmax.f32 %v3469, %v3539
        %v3750 = vmax.f32 %v3470, %v3540
        %v3751 = vmax.f32 %v3471, %v3541
        %v3752 = vmax.f32 %v3472, %v3542
        %v3753 = vmax.f32 %v3473, %v3543
        %v3754 = vmax.f32 %v3474, %v3544
        %v3755 = vmax.f32 %v3475, %v3545
        %v3756 = vmax.f32 %v3476, %v3546
        %v3757 = vmax.f32 %v3477, %v3547
        %v3758 = vmax.f32 %v3478, %v3548
        %v3759 = vmax.f32 %v3479, %v3549
        %v3760 = vmax.f32 %v3480, %v3550
        %v3761 = vmax.f32 %v3481, %v3551
        %v3762 = vmax.f32 %v3482, %v3552
        %v3763 = vmax.f32 %v3483, %v3553
        %v3764 = vmax.f32 %v3484, %v3554
        %v3765 = vmax.f32 %v3485, %v3555
        %v3766 = vmax.f32 %v3486, %v3556
        %v3767 = vmax.f32 %v3487, %v3557
        %v3768 = vmax.f32 %v3488, %v3558
        %v3769 = vmax.f32 %v3489, %v3559
        %v3770 = vmax.f32 %v3490, %v3560
        %v3771 = vmax.f32 %v3491, %v3561
        %v3772 = vmax.f32 %v3492, %v3562
        %v3773 = vmax.f32 %v3493, %v3563
        %v3774 = vmax.f32 %v3494, %v3564
        %v3775 = vmax.f32 %v3495, %v3565
        %v3776 = vmax.f32 %v3496, %v3566
        %v3777 = vmax.f32 %v3497, %v3567
        %v3778 = vmax.f32 %v3498, %v3568
        %v3779 = vmax.f32 %v3499, %v3569
        %v3780 = vmax.f32 %v3500, %v3570
        %v3781 = vmax.f32 %v3501, %v3571
        %v3782 = vmax.f32 %v3502, %v3572
        %v3783 = vmax.f32 %v3503, %v3573
        %v3784 = vmax.f32 %v3504, %v3574
        %v3785 = vmax.f32 %v3505, %v3575
        %v3786 = vmax.f32 %v3506, %v3576
        %v3787 = vmax.f32 %v3507, %v3577
        %v3788 = vmax.f32 %v3508, %v3578
        %v3789 = vmax.f32 %v3509, %v3579
        %v3790 = vmax.f32 %v3510, %v3580
        %v3791 = vmax.f32 %v3511, %v3581
        %v3792 = vmax.f32 %v3512, %v3582
        %v3793 = vmax.f32 %v3513, %v3583
        %v3794 = vmax.f32 %v3514, %v3584
        %v3795 = vmax.f32 %v3515, %v3585
        %v3796 = vmax.f32 %v3516, %v3586
        %v3797 = vmax.f32 %v3517, %v3587
        %v3798 = vmax.f32 %v3518, %v3588
        %v3799 = vmax.f32 %v3519, %v3589
        %v3800 = vmax.f32 %v3520, %v3590
        %v3801 = vmax.f32 %v3521, %v3591
        %v3802 = vmax.f32 %v3522, %v3592
        %v3803 = vmax.f32 %v3523, %v3593
        %v3804 = vmax.f32 %v3524, %v3594
        %v3805 = vmax.f32 %v3525, %v3595
        %v3806 = vmax.f32 %v3526, %v3596
        %v3807 = vmax.f32 %v3527, %v3597
        %v3808 = vmax.f32 %v3528, %v3598
        %v3809 = vmax.f32 %v3529, %v3599
        %v3810 = vmax.f32 %v3530, %v3600
        %v3811 = vmax.f32 %v3531, %v3601
        %v3812 = vmax.f32 %v3532, %v3602
        %v3813 = vmax.f32 %v3533, %v3603
        %v3814 = vmax.f32 %v3534, %v3604
        %v3815 = vmax.f32 %v3535, %v3605
        %v3816 = vmax.f32 %v3536, %v3606
        %v3817 = vmax.f32 %v3537, %v3607
        %v3818 = vmax.f32 %v3538, %v3608
        %v3819 = vmax.f32 %v3609, %v3679
        %v3820 = vmax.f32 %v3610, %v3680
        %v3821 = vmax.f32 %v3611, %v3681
        %v3822 = vmax.f32 %v3612, %v3682
        %v3823 = vmax.f32 %v3613, %v3683
        %v3824 = vmax.f32 %v3614, %v3684
        %v3825 = vmax.f32 %v3615, %v3685
        %v3826 = vmax.f32 %v3616, %v3686
        %v3827 = vmax.f32 %v3617, %v3687
        %v3828 = vmax.f32 %v3618, %v3688
        %v3829 = vmax.f32 %v3619, %v3689
        %v3830 = vmax.f32 %v3620, %v3690
        %v3831 = vmax.f32 %v3621, %v3691
        %v3832 = vmax.f32 %v3622, %v3692
        %v3833 = vmax.f32 %v3623, %v3693
        %v3834 = vmax.f32 %v3624, %v3694
        %v3835 = vmax.f32 %v3625, %v3695
        %v3836 = vmax.f32 %v3626, %v3696
        %v3837 = vmax.f32 %v3627, %v3697
        %v3838 = vmax.f32 %v3628, %v3698
        %v3839 = vmax.f32 %v3629, %v3699
        %v3840 = vmax.f32 %v3630, %v3700
        %v3841 = vmax.f32 %v3631, %v3701
        %v3842 = vmax.f32 %v3632, %v3702
        %v3843 = vmax.f32 %v3633, %v3703
        %v3844 = vmax.f32 %v3634, %v3704
        %v3845 = vmax.f32 %v3635, %v3705
        %v3846 = vmax.f32 %v3636, %v3706
        %v3847 = vmax.f32 %v3637, %v3707
        %v3848 = vmax.f32 %v3638, %v3708
        %v3849 = vmax.f32 %v3639, %v3709
        %v3850 = vmax.f32 %v3640, %v3710
        %v3851 = vmax.f32 %v3641, %v3711
        %v3852 = vmax.f32 %v3642, %v3712
        %v3853 = vmax.f32 %v3643, %v3713
        %v3854 = vmax.f32 %v3644, %v3714
        %v3855 = vmax.f32 %v3645, %v3715
        %v3856 = vmax.f32 %v3646, %v3716
        %v3857 = vmax.f32 %v3647, %v3717
        %v3858 = vmax.f32 %v3648, %v3718
        %v3859 = vmax.f32 %v3649, %v3719
        %v3860 = vmax.f32 %v3650, %v3720
        %v3861 = vmax.f32 %v3651, %v3721
        %v3862 = vmax.f32 %v3652, %v3722
        %v3863 = vmax.f32 %v3653, %v3723
        %v3864 = vmax.f32 %v3654, %v3724
        %v3865 = vmax.f32 %v3655, %v3725
        %v3866 = vmax.f32 %v3656, %v3726
        %v3867 = vmax.f32 %v3657, %v3727
        %v3868 = vmax.f32 %v3658, %v3728
        %v3869 = vmax.f32 %v3659, %v3729
        %v3870 = vmax.f32 %v3660, %v3730
        %v3871 = vmax.f32 %v3661, %v3731
        %v3872 = vmax.f32 %v3662, %v3732
        %v3873 = vmax.f32 %v3663, %v3733
        %v3874 = vmax.f32 %v3664, %v3734
        %v3875 = vmax.f32 %v3665, %v3735
        %v3876 = vmax.f32 %v3666, %v3736
        %v3877 = vmax.f32 %v3667, %v3737
        %v3878 = vmax.f32 %v3668, %v3738
        %v3879 = vmax.f32 %v3669, %v3739
        %v3880 = vmax.f32 %v3670, %v3740
        %v3881 = vmax.f32 %v3671, %v3741
        %v3882 = vmax.f32 %v3672, %v3742
        %v3883 = vmax.f32 %v3673, %v3743
        %v3884 = vmax.f32 %v3674, %v3744
        %v3885 = vmax.f32 %v3675, %v3745
        %v3886 = vmax.f32 %v3676, %v3746
        %v3887 = vmax.f32 %v3677, %v3747
        %v3888 = vmax.f32 %v3678, %v3748
        %v3889 = vmax.f32 %v3749, %v3819
        %v3890 = vmax.f32 %v3750, %v3820
        %v3891 = vmax.f32 %v3751, %v3821
        %v3892 = vmax.f32 %v3752, %v3822
        %v3893 = vmax.f32 %v3753, %v3823
        %v3894 = vmax.f32 %v3754, %v3824
        %v3895 = vmax.f32 %v3755, %v3825
        %v3896 = vmax.f32 %v3756, %v3826
        %v3897 = vmax.f32 %v3757, %v3827
        %v3898 = vmax.f32 %v3758, %v3828
        %v3899 = vmax.f32 %v3759, %v3829
        %v3900 = vmax.f32 %v3760, %v3830
        %v3901 = vmax.f32 %v3761, %v3831
        %v3902 = vmax.f32 %v3762, %v3832
        %v3903 = vmax.f32 %v3763, %v3833
        %v3904 = vmax.f32 %v3764, %v3834
        %v3905 = vmax.f32 %v3765, %v3835
        %v3906 = vmax.f32 %v3766, %v3836
        %v3907 = vmax.f32 %v3767, %v3837
        %v3908 = vmax.f32 %v3768, %v3838
        %v3909 = vmax.f32 %v3769, %v3839
        %v3910 = vmax.f32 %v3770, %v3840
        %v3911 = vmax.f32 %v3771, %v3841
        %v3912 = vmax.f32 %v3772, %v3842
        %v3913 = vmax.f32 %v3773, %v3843
        %v3914 = vmax.f32 %v3774, %v3844
        %v3915 = vmax.f32 %v3775, %v3845
        %v3916 = vmax.f32 %v3776, %v3846
        %v3917 = vmax.f32 %v3777, %v3847
        %v3918 = vmax.f32 %v3778, %v3848
        %v3919 = vmax.f32 %v3779, %v3849
        %v3920 = vmax.f32 %v3780, %v3850
        %v3921 = vmax.f32 %v3781, %v3851
        %v3922 = vmax.f32 %v3782, %v3852
        %v3923 = vmax.f32 %v3783, %v3853
        %v3924 = vmax.f32 %v3784, %v3854
        %v3925 = vmax.f32 %v3785, %v3855
        %v3926 = vmax.f32 %v3786, %v3856
        %v3927 = vmax.f32 %v3787, %v3857
        %v3928 = vmax.f32 %v3788, %v3858
        %v3929 = vmax.f32 %v3789, %v3859
        %v3930 = vmax.f32 %v3790, %v3860
        %v3931 = vmax.f32 %v3791, %v3861
        %v3932 = vmax.f32 %v3792, %v3862
        %v3933 = vmax.f32 %v3793, %v3863
        %v3934 = vmax.f32 %v3794, %v3864
        %v3935 = vmax.f32 %v3795, %v3865
        %v3936 = vmax.f32 %v3796, %v3866
        %v3937 = vmax.f32 %v3797, %v3867
        %v3938 = vmax.f32 %v3798, %v3868
        %v3939 = vmax.f32 %v3799, %v3869
        %v3940 = vmax.f32 %v3800, %v3870
        %v3941 = vmax.f32 %v3801, %v3871
        %v3942 = vmax.f32 %v3802, %v3872
        %v3943 = vmax.f32 %v3803, %v3873
        %v3944 = vmax.f32 %v3804, %v3874
        %v3945 = vmax.f32 %v3805, %v3875
        %v3946 = vmax.f32 %v3806, %v3876
        %v3947 = vmax.f32 %v3807, %v3877
        %v3948 = vmax.f32 %v3808, %v3878
        %v3949 = vmax.f32 %v3809, %v3879
        %v3950 = vmax.f32 %v3810, %v3880
        %v3951 = vmax.f32 %v3811, %v3881
        %v3952 = vmax.f32 %v3812, %v3882
        %v3953 = vmax.f32 %v3813, %v3883
        %v3954 = vmax.f32 %v3814, %v3884
        %v3955 = vmax.f32 %v3815, %v3885
        %v3956 = vmax.f32 %v3816, %v3886
        %v3957 = vmax.f32 %v3817, %v3887
        %v3958 = vmax.f32 %v3818, %v3888
        %v3959 = vpack.c.bf16 %v3890, %v3889
        %v3960 = vpack.c.bf16 %v3892, %v3891
        %v3961 = vpack.c.bf16 %v3894, %v3893
        %v3962 = vpack.c.bf16 %v3896, %v3895
        %v3963 = vpack.c.bf16 %v3898, %v3897
        %v3964 = vpack.c.bf16 %v3900, %v3899
        %v3965 = vpack.c.bf16 %v3902, %v3901
        %v3966 = vpack.c.bf16 %v3904, %v3903
        %v3967 = vpack.c.bf16 %v3906, %v3905
        %v3968 = vpack.c.bf16 %v3908, %v3907
        %v3969 = vpack.c.bf16 %v3910, %v3909
        %v3970 = vpack.c.bf16 %v3912, %v3911
        %v3971 = vpack.c.bf16 %v3914, %v3913
        %v3972 = vpack.c.bf16 %v3916, %v3915
        %v3973 = vpack.c.bf16 %v3918, %v3917
        %v3974 = vpack.c.bf16 %v3920, %v3919
        %v3975 = vpack.c.bf16 %v3922, %v3921
        %v3976 = vpack.c.bf16 %v3924, %v3923
        %v3977 = vpack.c.bf16 %v3926, %v3925
        %v3978 = vpack.c.bf16 %v3928, %v3927
        %v3979 = vpack.c.bf16 %v3930, %v3929
        %v3980 = vpack.c.bf16 %v3932, %v3931
        %v3981 = vpack.c.bf16 %v3934, %v3933
        %v3982 = vpack.c.bf16 %v3936, %v3935
        %v3983 = vpack.c.bf16 %v3938, %v3937
        %v3984 = vpack.c.bf16 %v3940, %v3939
        %v3985 = vpack.c.bf16 %v3942, %v3941
        %v3986 = vpack.c.bf16 %v3944, %v3943
        %v3987 = vpack.c.bf16 %v3946, %v3945
        %v3988 = vpack.c.bf16 %v3948, %v3947
        %v3989 = vpack.c.bf16 %v3950, %v3949
        %v3990 = vpack.c.bf16 %v3952, %v3951
        %v3991 = vpack.c.bf16 %v3954, %v3953
        %v3992 = vpack.c.bf16 %v3956, %v3955
        %v3993 = vpack.c.bf16 %v3958, %v3957
        %v4029 = vunpack.c.l.b16 %v3959
        %v4030 = vunpack.c.h.b16 %v3959
        %v4031 = vunpack.c.l.b16 %v3960
        %v4032 = vunpack.c.h.b16 %v3960
        %v4033 = vunpack.c.l.b16 %v3961
        %v4034 = vunpack.c.h.b16 %v3961
        %v4035 = vunpack.c.l.b16 %v3962
        %v4036 = vunpack.c.h.b16 %v3962
        %v4037 = vunpack.c.l.b16 %v3963
        %v4038 = vunpack.c.h.b16 %v3963
        %v4039 = vunpack.c.l.b16 %v3964
        %v4040 = vunpack.c.h.b16 %v3964
        %v4041 = vunpack.c.l.b16 %v3965
        %v4042 = vunpack.c.h.b16 %v3965
        %v4043 = vunpack.c.l.b16 %v3966
        %v4044 = vunpack.c.h.b16 %v3966
        %v4045 = vunpack.c.l.b16 %v3967
        %v4046 = vunpack.c.h.b16 %v3967
        %v4047 = vunpack.c.l.b16 %v3968
        %v4048 = vunpack.c.h.b16 %v3968
        %v4049 = vunpack.c.l.b16 %v3969
        %v4050 = vunpack.c.h.b16 %v3969
        %v4051 = vunpack.c.l.b16 %v3970
        %v4052 = vunpack.c.h.b16 %v3970
        %v4053 = vunpack.c.l.b16 %v3971
        %v4054 = vunpack.c.h.b16 %v3971
        %v4055 = vunpack.c.l.b16 %v3972
        %v4056 = vunpack.c.h.b16 %v3972
        %v4057 = vunpack.c.l.b16 %v3973
        %v4058 = vunpack.c.h.b16 %v3973
        %v4059 = vunpack.c.l.b16 %v3974
        %v4060 = vunpack.c.h.b16 %v3974
        %v4061 = vunpack.c.l.b16 %v3975
        %v4062 = vunpack.c.h.b16 %v3975
        %v4063 = vunpack.c.l.b16 %v3976
        %v4064 = vunpack.c.h.b16 %v3976
        %v4065 = vunpack.c.l.b16 %v3977
        %v4066 = vunpack.c.h.b16 %v3977
        %v4067 = vunpack.c.l.b16 %v3978
        %v4068 = vunpack.c.h.b16 %v3978
        %v4069 = vunpack.c.l.b16 %v3979
        %v4070 = vunpack.c.h.b16 %v3979
        %v4071 = vunpack.c.l.b16 %v3980
        %v4072 = vunpack.c.h.b16 %v3980
        %v4073 = vunpack.c.l.b16 %v3981
        %v4074 = vunpack.c.h.b16 %v3981
        %v4075 = vunpack.c.l.b16 %v3982
        %v4076 = vunpack.c.h.b16 %v3982
        %v4077 = vunpack.c.l.b16 %v3983
        %v4078 = vunpack.c.h.b16 %v3983
        %v4079 = vunpack.c.l.b16 %v3984
        %v4080 = vunpack.c.h.b16 %v3984
        %v4081 = vunpack.c.l.b16 %v3985
        %v4082 = vunpack.c.h.b16 %v3985
        %v4083 = vunpack.c.l.b16 %v3986
        %v4084 = vunpack.c.h.b16 %v3986
        %v4085 = vunpack.c.l.b16 %v3987
        %v4086 = vunpack.c.h.b16 %v3987
        %v4087 = vunpack.c.l.b16 %v3988
        %v4088 = vunpack.c.h.b16 %v3988
        %v4089 = vunpack.c.l.b16 %v3989
        %v4090 = vunpack.c.h.b16 %v3989
        %v4091 = vunpack.c.l.b16 %v3990
        %v4092 = vunpack.c.h.b16 %v3990
        %v4093 = vunpack.c.l.b16 %v3991
        %v4094 = vunpack.c.h.b16 %v3991
        %v4095 = vunpack.c.l.b16 %v3992
        %v4096 = vunpack.c.h.b16 %v3992
        %v4097 = vunpack.c.l.b16 %v3993
        %v4098 = vunpack.c.h.b16 %v3993
        %v4099 = vpack.c.b16 %v4029, %v4029
        %v4100 = vpack.c.b16 %v4030, %v4030
        %v4101 = vpack.c.b16 %v4031, %v4031
        %v4102 = vpack.c.b16 %v4032, %v4032
        %v4103 = vpack.c.b16 %v4033, %v4033
        %v4104 = vpack.c.b16 %v4034, %v4034
        %v4105 = vpack.c.b16 %v4035, %v4035
        %v4106 = vpack.c.b16 %v4036, %v4036
        %v4107 = vpack.c.b16 %v4037, %v4037
        %v4108 = vpack.c.b16 %v4038, %v4038
        %v4109 = vpack.c.b16 %v4039, %v4039
        %v4110 = vpack.c.b16 %v4040, %v4040
        %v4111 = vpack.c.b16 %v4041, %v4041
        %v4112 = vpack.c.b16 %v4042, %v4042
        %v4113 = vpack.c.b16 %v4043, %v4043
        %v4114 = vpack.c.b16 %v4044, %v4044
        %v4115 = vpack.c.b16 %v4045, %v4045
        %v4116 = vpack.c.b16 %v4046, %v4046
        %v4117 = vpack.c.b16 %v4047, %v4047
        %v4118 = vpack.c.b16 %v4048, %v4048
        %v4119 = vpack.c.b16 %v4049, %v4049
        %v4120 = vpack.c.b16 %v4050, %v4050
        %v4121 = vpack.c.b16 %v4051, %v4051
        %v4122 = vpack.c.b16 %v4052, %v4052
        %v4123 = vpack.c.b16 %v4053, %v4053
        %v4124 = vpack.c.b16 %v4054, %v4054
        %v4125 = vpack.c.b16 %v4055, %v4055
        %v4126 = vpack.c.b16 %v4056, %v4056
        %v4127 = vpack.c.b16 %v4057, %v4057
        %v4128 = vpack.c.b16 %v4058, %v4058
        %v4129 = vpack.c.b16 %v4059, %v4059
        %v4130 = vpack.c.b16 %v4060, %v4060
        %v4131 = vpack.c.b16 %v4061, %v4061
        %v4132 = vpack.c.b16 %v4062, %v4062
        %v4133 = vpack.c.b16 %v4063, %v4063
        %v4134 = vpack.c.b16 %v4064, %v4064
        %v4135 = vpack.c.b16 %v4065, %v4065
        %v4136 = vpack.c.b16 %v4066, %v4066
        %v4137 = vpack.c.b16 %v4067, %v4067
        %v4138 = vpack.c.b16 %v4068, %v4068
        %v4139 = vpack.c.b16 %v4069, %v4069
        %v4140 = vpack.c.b16 %v4070, %v4070
        %v4141 = vpack.c.b16 %v4071, %v4071
        %v4142 = vpack.c.b16 %v4072, %v4072
        %v4143 = vpack.c.b16 %v4073, %v4073
        %v4144 = vpack.c.b16 %v4074, %v4074
        %v4145 = vpack.c.b16 %v4075, %v4075
        %v4146 = vpack.c.b16 %v4076, %v4076
        %v4147 = vpack.c.b16 %v4077, %v4077
        %v4148 = vpack.c.b16 %v4078, %v4078
        %v4149 = vpack.c.b16 %v4079, %v4079
        %v4150 = vpack.c.b16 %v4080, %v4080
        %v4151 = vpack.c.b16 %v4081, %v4081
        %v4152 = vpack.c.b16 %v4082, %v4082
        %v4153 = vpack.c.b16 %v4083, %v4083
        %v4154 = vpack.c.b16 %v4084, %v4084
        %v4155 = vpack.c.b16 %v4085, %v4085
        %v4156 = vpack.c.b16 %v4086, %v4086
        %v4157 = vpack.c.b16 %v4087, %v4087
        %v4158 = vpack.c.b16 %v4088, %v4088
        %v4159 = vpack.c.b16 %v4089, %v4089
        %v4160 = vpack.c.b16 %v4090, %v4090
        %v4161 = vpack.c.b16 %v4091, %v4091
        %v4162 = vpack.c.b16 %v4092, %v4092
        %v4163 = vpack.c.b16 %v4093, %v4093
        %v4164 = vpack.c.b16 %v4094, %v4094
        %v4165 = vpack.c.b16 %v4095, %v4095
        %v4166 = vpack.c.b16 %v4096, %v4096
        %v4167 = vpack.c.b16 %v4097, %v4097
        %v4168 = vpack.c.b16 %v4098, %v4098
        %4239 = vst [vmem:[%s6] sm:$0xf] %v4099
        %4240 = vst [vmem:[%s6 + $0x4] sm:$0xf] %v4100
        %4241 = vst [vmem:[%s6 + $0x8] sm:$0xf] %v4101
        %4242 = vst [vmem:[%s6 + $0xc] sm:$0xf] %v4102
        %4243 = vst [vmem:[%s6 + $0x10] sm:$0xf] %v4103
        %4244 = vst [vmem:[%s6 + $0x14] sm:$0xf] %v4104
        %4245 = vst [vmem:[%s6 + $0x18] sm:$0xf] %v4105
        %4246 = vst [vmem:[%s6 + $0x1c] sm:$0xf] %v4106
        %4247 = vst [vmem:[%s6 + $0x20] sm:$0xf] %v4107
        %4248 = vst [vmem:[%s6 + $0x24] sm:$0xf] %v4108
        %4249 = vst [vmem:[%s6 + $0x28] sm:$0xf] %v4109
        %4250 = vst [vmem:[%s6 + $0x2c] sm:$0xf] %v4110
        %4251 = vst [vmem:[%s6 + $0x30] sm:$0xf] %v4111
        %4252 = vst [vmem:[%s6 + $0x34] sm:$0xf] %v4112
        %4253 = vst [vmem:[%s6 + $0x38] sm:$0xf] %v4113
        %4254 = vst [vmem:[%s6 + $0x3c] sm:$0xf] %v4114
        %4255 = vst [vmem:[%s6 + $0x40] sm:$0xf] %v4115
        %4256 = vst [vmem:[%s6 + $0x44] sm:$0xf] %v4116
        %4257 = vst [vmem:[%s6 + $0x48] sm:$0xf] %v4117
        %4258 = vst [vmem:[%s6 + $0x4c] sm:$0xf] %v4118
        %4259 = vst [vmem:[%s6 + $0x50] sm:$0xf] %v4119
        %4260 = vst [vmem:[%s6 + $0x54] sm:$0xf] %v4120
        %4261 = vst [vmem:[%s6 + $0x58] sm:$0xf] %v4121
        %4262 = vst [vmem:[%s6 + $0x5c] sm:$0xf] %v4122
        %4263 = vst [vmem:[%s6 + $0x60] sm:$0xf] %v4123
        %4264 = vst [vmem:[%s6 + $0x64] sm:$0xf] %v4124
        %4265 = vst [vmem:[%s6 + $0x68] sm:$0xf] %v4125
        %4266 = vst [vmem:[%s6 + $0x6c] sm:$0xf] %v4126
        %4267 = vst [vmem:[%s6 + $0x70] sm:$0xf] %v4127
        %4268 = vst [vmem:[%s6 + $0x74] sm:$0xf] %v4128
        %4269 = vst [vmem:[%s6 + $0x78] sm:$0xf] %v4129
        %4270 = vst [vmem:[%s6 + $0x7c] sm:$0xf] %v4130
        %4271 = vst [vmem:[%s6 + $0x80] sm:$0xf] %v4131
        %4272 = vst [vmem:[%s6 + $0x84] sm:$0xf] %v4132
        %4273 = vst [vmem:[%s6 + $0x88] sm:$0xf] %v4133
        %4274 = vst [vmem:[%s6 + $0x8c] sm:$0xf] %v4134
        %4275 = vst [vmem:[%s6 + $0x90] sm:$0xf] %v4135
        %4276 = vst [vmem:[%s6 + $0x94] sm:$0xf] %v4136
        %4277 = vst [vmem:[%s6 + $0x98] sm:$0xf] %v4137
        %4278 = vst [vmem:[%s6 + $0x9c] sm:$0xf] %v4138
        %4279 = vst [vmem:[%s6 + $0xa0] sm:$0xf] %v4139
        %4280 = vst [vmem:[%s6 + $0xa4] sm:$0xf] %v4140
        %4281 = vst [vmem:[%s6 + $0xa8] sm:$0xf] %v4141
        %4282 = vst [vmem:[%s6 + $0xac] sm:$0xf] %v4142
        %4283 = vst [vmem:[%s6 + $0xb0] sm:$0xf] %v4143
        %4284 = vst [vmem:[%s6 + $0xb4] sm:$0xf] %v4144
        %4285 = vst [vmem:[%s6 + $0xb8] sm:$0xf] %v4145
        %4286 = vst [vmem:[%s6 + $0xbc] sm:$0xf] %v4146
        %4287 = vst [vmem:[%s6 + $0xc0] sm:$0xf] %v4147
        %4288 = vst [vmem:[%s6 + $0xc4] sm:$0xf] %v4148
        %4289 = vst [vmem:[%s6 + $0xc8] sm:$0xf] %v4149
        %4290 = vst [vmem:[%s6 + $0xcc] sm:$0xf] %v4150
        %4291 = vst [vmem:[%s6 + $0xd0] sm:$0xf] %v4151
        %4292 = vst [vmem:[%s6 + $0xd4] sm:$0xf] %v4152
        %4293 = vst [vmem:[%s6 + $0xd8] sm:$0xf] %v4153
        %4294 = vst [vmem:[%s6 + $0xdc] sm:$0xf] %v4154
        %4295 = vst [vmem:[%s6 + $0xe0] sm:$0xf] %v4155
        %4296 = vst [vmem:[%s6 + $0xe4] sm:$0xf] %v4156
        %4297 = vst [vmem:[%s6 + $0xe8] sm:$0xf] %v4157
        %4298 = vst [vmem:[%s6 + $0xec] sm:$0xf] %v4158
        %4299 = vst [vmem:[%s6 + $0xf0] sm:$0xf] %v4159
        %4300 = vst [vmem:[%s6 + $0xf4] sm:$0xf] %v4160
        %4301 = vst [vmem:[%s6 + $0xf8] sm:$0xf] %v4161
        %4302 = vst [vmem:[%s6 + $0xfc] sm:$0xf] %v4162
        %4303 = vst [vmem:[%s6 + $0x100] sm:$0xf] %v4163
        %4304 = vst [vmem:[%s6 + $0x104] sm:$0xf] %v4164
        %4305 = vst [vmem:[%s6 + $0x108] sm:$0xf] %v4165
        %4306 = vst [vmem:[%s6 + $0x10c] sm:$0xf] %v4166
        %4307 = vst [vmem:[%s6 + $0x110] sm:$0xf] %v4167
        %4308 = vst [vmem:[%s6 + $0x114] sm:$0xf] %v4168
      $region52: #{encoder_forward.4} parent=43 // pred_fallthru
        _
      // Predicated region
      $region53: #{encoder_forward.4} parent=43 // pred_check
        %p4309 = pneg %p161
      $region54: #{encoder_forward.4} parent=43 // pred_check_branch
        %4311 = sbr.rel (%p4309) target = $region56
      $region55: #{encoder_forward.4} parent=43 // pred_region
        _
      $region56: #{encoder_forward.4} parent=43 // pred_fallthru
        _
      // Predicated region
      $region57: #{encoder_forward.4} parent=43 // pred_check
        %p4312 = pneg %p161
      $region58: #{encoder_forward.4} parent=43 // pred_check_branch
        %4314 = sbr.rel (%p4312) target = $region60
      $region59: #{encoder_forward.4} parent=43 // pred_region
        _
      $region60: #{encoder_forward.4} parent=43 // pred_fallthru
        _
    $region44: #{encoder_forward.4} parent=5 // pred_fallthru
      _
    %p4315 = scmp.le.s32.totalorder 2, %s12
    // Predicated region
    $region61: #{encoder_forward.4} parent=5 // pred_check
      %p4316 = pneg %p4315
    $region62: #{encoder_forward.4} parent=5 // pred_check_branch
      %4318 = sbr.rel (%p4316) target = $region64
    $region63: #{encoder_forward.4} parent=5 // pred_region
      %s4319 = ssub.s32 %s12, 2
    $region64: #{encoder_forward.4} parent=5 // pred_fallthru
      _
  $region6: #{encoder_forward.4} parent=0 // loop_footer
    %s16 = sadd.s32 1, %s12
  $region7: #{encoder_forward.4} parent=0 // loop_footer_branch
    %11 = sbr.rel target = $region3
  $region8: #{encoder_forward.4} parent=0 // loop_exit
    _

// kernel: encoder_forward.5
$region0: #{encoder_forward.5}
  #allocation0 [shape = 'u32[]', space=smem, size = 0x4, offset = 0x4, fixed_abs, tag = 'smem constant byte address 0x4 - core index']
  #allocation1 [shape = 'u32[144,128]{1,0:T(1,128)}', space=vmem, size = 0x12000, scoped, tag = 'internal scratch']
  #allocation2 [shape = 'f32[280,128]{1,0:T(8,128)}', space=vmem, size = 0x23000, scoped, tag = 'scratch operand']
  #allocation3 [shape = 'f32[1,128]{1,0:T(1,128)}', space=vmem, size = 0x200, scoped, tag = 'scratch operand']
  #allocation4 [shape = 'f32[1,128]{1,0:T(1,128)}', space=vmem, size = 0x200, scoped, tag = 'scratch operand']
  %s0 = inlined_call_operand.vmem [shape: bf16[280,576], index: 0, kind: input, shape index: {}]
  %s1 = inlined_call_operand.vmem [shape: bf16[576,128], index: 1, kind: input, shape index: {}]
  %s2 = inlined_call_operand.vmem [shape: f32[128,16], index: 2, kind: input, shape index: {}]
  %s3 = inlined_call_operand.vmem [shape: f32[16,128], index: 3, kind: input, shape index: {}]
  %s4 = inlined_call_operand.vmem [shape: f32[1,16], index: 4, kind: input, shape index: {}]
  %s5 = inlined_call_operand.vmem [shape: f32[1,16], index: 5, kind: input, shape index: {}]
  %s6 = inlined_call_operand.vmem [shape: bf16[70,128], index: 6, kind: output, shape index: {}]
  %s7 = sld [smem:[#allocation0]]
  $region65: #{encoder_forward.5} parent=0
    _
  %s9 = ssub.s32 1, %s7
  %s10 = scalar_select 0, %s9, %s7
  loop: start=0, step=1, limit=7
  $region2: #{encoder_forward.5} parent=0 // loop_pre_header
    _
  $region3: #{encoder_forward.5} parent=0 // loop_header
    %s12 = sphi 0, %s16
    %p13 = scmp.ge.s32.totalorder %s12, 7
    %s22 = sphi 0, %s24
    %s25 = sphi 0, %s22
    %s26 = sphi 0, %s25
    %s42 = sphi 0, %s26
    %s46 = sphi 0, %s46
    %s48 = sphi 0, %s46
    %s49 = sphi 0, %s48
    %s63 = sphi 0, %s49
    %s67 = sphi 0, %s67
    %s69 = sphi 0, %s67
    %s70 = sphi 0, %s69
    %s84 = sphi 0, %s70
    %s88 = sphi 0, %s88
    %s90 = sphi 0, %s88
    %s91 = sphi 0, %s90
    %s105 = sphi 0, %s91
    %s109 = sphi 0, %s109
    %s111 = sphi 0, %s109
    %s112 = sphi 0, %s111
    %s126 = sphi 0, %s112
    %s130 = sphi 0, %s130
    %s132 = sphi 0, %s130
    %s133 = sphi 0, %s132
    %s147 = sphi 0, %s133
    %s151 = sphi 0, %s151
    %s153 = sphi 0, %s151
    %s154 = sphi 0, %s153
    %s168 = sphi 0, %s154
  $region4: #{encoder_forward.5} parent=0 // loop_header_branch
    %15 = sbr.rel (%p13) target = $region8
  $region5: #{encoder_forward.5} parent=0 // loop_body
    %s17 = ssub.s32 %s12, 1
    %s18 = ssub.s32 %s12, 2
    %s19 = sadd.s32 %s12, 1
    %s20 = ssub.s32 %s12, %s19
    %p21 = scmp.eq.s32.totalorder %s20, 0
    %s23 = sadd.s32 %s22, 1
    %s24 = scalar_select %p21, %s22, %s23
    %p27 = pneg %p21
    %p28 = scmp.eq.s32.totalorder %s12, 4
    %p29 = por %p27, %p28
    %p30 = scmp.ne.s32.totalorder %s22, %s25
    %p31 = scmp.eq.s32.totalorder %s12, 0
    %p32 = por %p30, %p31
    %p33 = scmp.ne.s32.totalorder %s22, %s25
    %p34 = scmp.eq.s32.totalorder %s17, 4
    %p35 = por %p33, %p34
    %p36 = scmp.ne.s32.totalorder %s25, %s26
    %p37 = scmp.eq.s32.totalorder %s17, 0
    %p38 = por %p36, %p37
    %p39 = scmp.ne.s32.totalorder %s25, %s26
    %p40 = scmp.eq.s32.totalorder %s18, 4
    %p41 = por %p39, %p40
    %p43 = scmp.ne.s32.totalorder %s26, %s42
    %p44 = scmp.eq.s32.totalorder %s18, 0
    %p45 = por %p43, %p44
    %s47 = sadd.s32 %s46, 1
    %p50 = scmp.eq.s32.totalorder %s12, 4
    %p51 = scmp.ne.s32.totalorder %s46, %s48
    %p52 = scmp.eq.s32.totalorder %s12, 0
    %p53 = por %p51, %p52
    %p54 = scmp.ne.s32.totalorder %s46, %s48
    %p55 = scmp.eq.s32.totalorder %s17, 4
    %p56 = por %p54, %p55
    %p57 = scmp.ne.s32.totalorder %s48, %s49
    %p58 = scmp.eq.s32.totalorder %s17, 0
    %p59 = por %p57, %p58
    %p60 = scmp.ne.s32.totalorder %s48, %s49
    %p61 = scmp.eq.s32.totalorder %s18, 4
    %p62 = por %p60, %p61
    %p64 = scmp.ne.s32.totalorder %s49, %s63
    %p65 = scmp.eq.s32.totalorder %s18, 0
    %p66 = por %p64, %p65
    %s68 = sadd.s32 %s67, 1
    %p71 = scmp.eq.s32.totalorder %s12, 4
    %p72 = scmp.ne.s32.totalorder %s67, %s69
    %p73 = scmp.eq.s32.totalorder %s12, 0
    %p74 = por %p72, %p73
    %p75 = scmp.ne.s32.totalorder %s67, %s69
    %p76 = scmp.eq.s32.totalorder %s17, 4
    %p77 = por %p75, %p76
    %p78 = scmp.ne.s32.totalorder %s69, %s70
    %p79 = scmp.eq.s32.totalorder %s17, 0
    %p80 = por %p78, %p79
    %p81 = scmp.ne.s32.totalorder %s69, %s70
    %p82 = scmp.eq.s32.totalorder %s18, 4
    %p83 = por %p81, %p82
    %p85 = scmp.ne.s32.totalorder %s70, %s84
    %p86 = scmp.eq.s32.totalorder %s18, 0
    %p87 = por %p85, %p86
    %s89 = sadd.s32 %s88, 1
    %p92 = scmp.eq.s32.totalorder %s12, 4
    %p93 = scmp.ne.s32.totalorder %s88, %s90
    %p94 = scmp.eq.s32.totalorder %s12, 0
    %p95 = por %p93, %p94
    %p96 = scmp.ne.s32.totalorder %s88, %s90
    %p97 = scmp.eq.s32.totalorder %s17, 4
    %p98 = por %p96, %p97
    %p99 = scmp.ne.s32.totalorder %s90, %s91
    %p100 = scmp.eq.s32.totalorder %s17, 0
    %p101 = por %p99, %p100
    %p102 = scmp.ne.s32.totalorder %s90, %s91
    %p103 = scmp.eq.s32.totalorder %s18, 4
    %p104 = por %p102, %p103
    %p106 = scmp.ne.s32.totalorder %s91, %s105
    %p107 = scmp.eq.s32.totalorder %s18, 0
    %p108 = por %p106, %p107
    %s110 = sadd.s32 %s109, 1
    %p113 = scmp.eq.s32.totalorder %s12, 4
    %p114 = scmp.ne.s32.totalorder %s109, %s111
    %p115 = scmp.eq.s32.totalorder %s12, 0
    %p116 = por %p114, %p115
    %p117 = scmp.ne.s32.totalorder %s109, %s111
    %p118 = scmp.eq.s32.totalorder %s17, 4
    %p119 = por %p117, %p118
    %p120 = scmp.ne.s32.totalorder %s111, %s112
    %p121 = scmp.eq.s32.totalorder %s17, 0
    %p122 = por %p120, %p121
    %p123 = scmp.ne.s32.totalorder %s111, %s112
    %p124 = scmp.eq.s32.totalorder %s18, 4
    %p125 = por %p123, %p124
    %p127 = scmp.ne.s32.totalorder %s112, %s126
    %p128 = scmp.eq.s32.totalorder %s18, 0
    %p129 = por %p127, %p128
    %s131 = sadd.s32 %s130, 1
    %p134 = scmp.eq.s32.totalorder %s12, 4
    %p135 = scmp.ne.s32.totalorder %s130, %s132
    %p136 = scmp.eq.s32.totalorder %s12, 0
    %p137 = por %p135, %p136
    %p138 = scmp.ne.s32.totalorder %s130, %s132
    %p139 = scmp.eq.s32.totalorder %s17, 4
    %p140 = por %p138, %p139
    %p141 = scmp.ne.s32.totalorder %s132, %s133
    %p142 = scmp.eq.s32.totalorder %s17, 0
    %p143 = por %p141, %p142
    %p144 = scmp.ne.s32.totalorder %s132, %s133
    %p145 = scmp.eq.s32.totalorder %s18, 4
    %p146 = por %p144, %p145
    %p148 = scmp.ne.s32.totalorder %s133, %s147
    %p149 = scmp.eq.s32.totalorder %s18, 0
    %p150 = por %p148, %p149
    %s152 = sadd.s32 %s151, 1
    %p155 = scmp.eq.s32.totalorder %s12, 4
    %p156 = scmp.ne.s32.totalorder %s151, %s153
    %p157 = scmp.eq.s32.totalorder %s12, 0
    %p158 = por %p156, %p157
    %p159 = scmp.ne.s32.totalorder %s151, %s153
    %p160 = scmp.eq.s32.totalorder %s17, 4
    %p161 = por %p159, %p160
    %p162 = scmp.ne.s32.totalorder %s153, %s154
    %p163 = scmp.eq.s32.totalorder %s17, 0
    %p164 = por %p162, %p163
    %p165 = scmp.ne.s32.totalorder %s153, %s154
    %p166 = scmp.eq.s32.totalorder %s18, 4
    %p167 = por %p165, %p166
    %p169 = scmp.ne.s32.totalorder %s154, %s168
    %p170 = scmp.eq.s32.totalorder %s18, 0
    %p171 = por %p169, %p170
    %p172 = scmp.le.s32.totalorder 1, %s12
    %p173 = scmp.lt.s32.totalorder %s12, 6
    %p174 = pnand %p172, %p173
    %p175 = pneg %p174
    // Predicated region
    $region9: #{encoder_forward.5} parent=5 // pred_check
      _
    $region10: #{encoder_forward.5} parent=5 // pred_check_branch
      %177 = sbr.rel (%p174) target = $region12
    $region11: #{encoder_forward.5} parent=5 // pred_region
      %s178 = ssub.s32 %s12, 1
      // Predicated region
      $region13: #{encoder_forward.5} parent=11 // pred_check
        %p179 = pneg %p59
      $region14: #{encoder_forward.5} parent=11 // pred_check_branch
        %181 = sbr.rel (%p179) target = $region16
      $region15: #{encoder_forward.5} parent=11 // pred_region
        _
      $region16: #{encoder_forward.5} parent=11 // pred_fallthru
        _
      // Predicated region
      $region17: #{encoder_forward.5} parent=11 // pred_check
        %p182 = pneg %p80
      $region18: #{encoder_forward.5} parent=11 // pred_check_branch
        %184 = sbr.rel (%p182) target = $region20
      $region19: #{encoder_forward.5} parent=11 // pred_region
        _
      $region20: #{encoder_forward.5} parent=11 // pred_fallthru
        _
      // Predicated region
      $region21: #{encoder_forward.5} parent=11 // pred_check
        %p185 = pneg %p101
      $region22: #{encoder_forward.5} parent=11 // pred_check_branch
        %187 = sbr.rel (%p185) target = $region24
      $region23: #{encoder_forward.5} parent=11 // pred_region
        _
      $region24: #{encoder_forward.5} parent=11 // pred_fallthru
        _
      // Predicated region
      $region25: #{encoder_forward.5} parent=11 // pred_check
        %p188 = pneg %p122
      $region26: #{encoder_forward.5} parent=11 // pred_check_branch
        %190 = sbr.rel (%p188) target = $region28
      $region27: #{encoder_forward.5} parent=11 // pred_region
        _
      $region28: #{encoder_forward.5} parent=11 // pred_fallthru
        _
      // Predicated region
      $region29: #{encoder_forward.5} parent=11 // pred_check
        %p191 = pneg %p143
      $region30: #{encoder_forward.5} parent=11 // pred_check_branch
        %193 = sbr.rel (%p191) target = $region32
      $region31: #{encoder_forward.5} parent=11 // pred_region
        _
      $region32: #{encoder_forward.5} parent=11 // pred_fallthru
        _
    $region12: #{encoder_forward.5} parent=5 // pred_fallthru
      _
    %p194 = scmp.lt.s32.totalorder %s12, 5
    // Predicated region
    $region33: #{encoder_forward.5} parent=5 // pred_check
      %p195 = pneg %p194
    $region34: #{encoder_forward.5} parent=5 // pred_check_branch
      %197 = sbr.rel (%p195) target = $region36
    $region35: #{encoder_forward.5} parent=5 // pred_region
      // Predicated region
      $region37: #{encoder_forward.5} parent=35 // pred_check
        %p198 = pneg %p32
      $region38: #{encoder_forward.5} parent=35 // pred_check_branch
        %200 = sbr.rel (%p198) target = $region40
      $region39: #{encoder_forward.5} parent=35 // pred_region
        %s201 = smul.u32 7, %s12
        %p202 = scmp.lt.s32.totalorder %s201, 34
        %s203 = scalar_select %p202, %s201, 34
        %s204 = smul.addr %s203, 5
        %s205 = smul.addr %s204, 4
        %s206 = scalar_lea.vmem %s0, %s205
        %s207 = smul.u32 7, %s12
      $region40: #{encoder_forward.5} parent=35 // pred_fallthru
        _
    $region36: #{encoder_forward.5} parent=5 // pred_fallthru
      _
    %p208 = scmp.le.s32.totalorder 1, %s12
    %p209 = scmp.lt.s32.totalorder %s12, 6
    %p210 = pnand %p208, %p209
    %p211 = pneg %p210
    // Predicated region
    $region41: #{encoder_forward.5} parent=5 // pred_check
      _
    $region42: #{encoder_forward.5} parent=5 // pred_check_branch
      %213 = sbr.rel (%p210) target = $region44
    $region43: #{encoder_forward.5} parent=5 // pred_region
      %s214 = ssub.s32 %s12, 1
      %s215 = smul.u32 7, %s17
      %p216 = scmp.lt.s32.totalorder %s215, 34
      %s217 = scalar_select %p216, %s215, 34
      %s218 = smul.addr %s217, 5
      %s219 = smul.addr %s218, 4
      %s220 = scalar_lea.vmem %s0, %s219
      %p221 = pneg %p38
      %p222 = pneg %p35
      %p223 = pneg %p59
      %p224 = pneg %p56
      %p225 = pneg %p80
      %p226 = pneg %p77
      %p227 = pneg %p101
      %p228 = pneg %p98
      %p229 = pneg %p122
      %p230 = pneg %p119
      %p231 = pneg %p143
      %p232 = pneg %p140
      %p233 = pneg %p164
      %p234 = pneg %p161
      %s235 = smul.u32 7, %s17
      %p236 = scmp.lt.s32.totalorder %s235, 34
      %s237 = scalar_select %p236, %s235, 34
      %s238 = smul.addr %s237, 5
      %s239 = smul.addr %s238, 4
      %s240 = scalar_lea.vmem %s0, %s239
      %s241 = smul.u32 7, %s17
      %p243 = scmp.eq.s32.totalorder %s17, 0
      // Predicated region
      $region45: #{encoder_forward.5} parent=43 // pred_check
        %p244 = pneg %p243
      $region46: #{encoder_forward.5} parent=43 // pred_check_branch
        %246 = sbr.rel (%p244) target = $region48
      $region47: #{encoder_forward.5} parent=43 // pred_region
        %247 = vst [vmem:[#allocation3] sm:$0x1] 0.0
        %248 = vst [vmem:[#allocation4] sm:$0x1] 0.0
      $region48: #{encoder_forward.5} parent=43 // pred_fallthru
        _
      %v249 = vld [vmem:[%s240] sm:$0xff]
      %v250 = vld [vmem:[%s240 + $0x8] sm:$0xff]
      %v251 = vld [vmem:[%s240 + $0x10] sm:$0xf]
      %v252 = vld [vmem:[%s240 + $0x14] sm:$0xff]
      %v253 = vld [vmem:[%s240 + $0x1c] sm:$0xff]
      %v254 = vld [vmem:[%s240 + $0x24] sm:$0xf]
      %v255 = vld [vmem:[%s240 + $0x28] sm:$0xff]
      %v256 = vld [vmem:[%s240 + $0x30] sm:$0xff]
      %v257 = vld [vmem:[%s240 + $0x38] sm:$0xf]
      %v258 = vld [vmem:[%s240 + $0x3c] sm:$0xff]
      %v259 = vld [vmem:[%s240 + $0x44] sm:$0xff]
      %v260 = vld [vmem:[%s240 + $0x4c] sm:$0xf]
      %v261 = vld [vmem:[%s240 + $0x50] sm:$0xff]
      %v262 = vld [vmem:[%s240 + $0x58] sm:$0xff]
      %v263 = vld [vmem:[%s240 + $0x60] sm:$0xf]
      %v264 = vld [vmem:[%s240 + $0x64] sm:$0xff]
      %v265 = vld [vmem:[%s240 + $0x6c] sm:$0xff]
      %v266 = vld [vmem:[%s240 + $0x74] sm:$0xf]
      %v267 = vld [vmem:[%s240 + $0x78] sm:$0xff]
      %v268 = vld [vmem:[%s240 + $0x80] sm:$0xff]
      %v269 = vld [vmem:[%s240 + $0x88] sm:$0xf]
      %v270 = vld [vmem:[%s1] sm:$0xf]
      %v271 = vld [vmem:[%s1 + $0x4] sm:$0xf]
      %v272 = vld [vmem:[%s1 + $0x8] sm:$0xf]
      %v273 = vld [vmem:[%s1 + $0xc] sm:$0xf]
      %v274 = vld [vmem:[%s1 + $0x10] sm:$0xf]
      %v275 = vld [vmem:[%s1 + $0x14] sm:$0xf]
      %v276 = vld [vmem:[%s1 + $0x18] sm:$0xf]
      %v277 = vld [vmem:[%s1 + $0x1c] sm:$0xf]
      %v278 = vld [vmem:[%s1 + $0x20] sm:$0xf]
      %v279 = vld [vmem:[%s1 + $0x24] sm:$0xf]
      %v280 = vld [vmem:[%s1 + $0x28] sm:$0xf]
      %v281 = vld [vmem:[%s1 + $0x2c] sm:$0xf]
      %v282 = vld [vmem:[%s1 + $0x30] sm:$0xf]
      %v283 = vld [vmem:[%s1 + $0x34] sm:$0xf]
      %v284 = vld [vmem:[%s1 + $0x38] sm:$0xf]
      %v285 = vld [vmem:[%s1 + $0x3c] sm:$0xf]
      %v286 = vld [vmem:[%s1 + $0x40] sm:$0xf]
      %v287 = vld [vmem:[%s1 + $0x44] sm:$0xf]
      %v288 = vld [vmem:[%s1 + $0x48] sm:$0xf]
      %v289 = vld [vmem:[%s1 + $0x4c] sm:$0xf]
      %v290 = vld [vmem:[%s1 + $0x50] sm:$0xf]
      %v291 = vld [vmem:[%s1 + $0x54] sm:$0xf]
      %v292 = vld [vmem:[%s1 + $0x58] sm:$0xf]
      %v293 = vld [vmem:[%s1 + $0x5c] sm:$0xf]
      %v294 = vld [vmem:[%s1 + $0x60] sm:$0xf]
      %v295 = vld [vmem:[%s1 + $0x64] sm:$0xf]
      %v296 = vld [vmem:[%s1 + $0x68] sm:$0xf]
      %v297 = vld [vmem:[%s1 + $0x6c] sm:$0xf]
      %v298 = vld [vmem:[%s1 + $0x70] sm:$0xf]
      %v299 = vld [vmem:[%s1 + $0x74] sm:$0xf]
      %v300 = vld [vmem:[%s1 + $0x78] sm:$0xf]
      %v301 = vld [vmem:[%s1 + $0x7c] sm:$0xf]
      %v302 = vld [vmem:[%s1 + $0x80] sm:$0xf]
      %v303 = vld [vmem:[%s1 + $0x84] sm:$0xf]
      %v304 = vld [vmem:[%s1 + $0x88] sm:$0xf]
      %v305 = vld [vmem:[%s1 + $0x8c] sm:$0xf]
      %v306 = vld [vmem:[%s1 + $0x90] sm:$0xf]
      %v307 = vld [vmem:[%s1 + $0x94] sm:$0xf]
      %v308 = vld [vmem:[%s1 + $0x98] sm:$0xf]
      %v309 = vld [vmem:[%s1 + $0x9c] sm:$0xf]
      %v310 = vld [vmem:[%s1 + $0xa0] sm:$0xf]
      %v311 = vld [vmem:[%s1 + $0xa4] sm:$0xf]
      %v312 = vld [vmem:[%s1 + $0xa8] sm:$0xf]
      %v313 = vld [vmem:[%s1 + $0xac] sm:$0xf]
      %v314 = vld [vmem:[%s1 + $0xb0] sm:$0xf]
      %v315 = vld [vmem:[%s1 + $0xb4] sm:$0xf]
      %v316 = vld [vmem:[%s1 + $0xb8] sm:$0xf]
      %v317 = vld [vmem:[%s1 + $0xbc] sm:$0xf]
      %v318 = vld [vmem:[%s1 + $0xc0] sm:$0xf]
      %v319 = vld [vmem:[%s1 + $0xc4] sm:$0xf]
      %v320 = vld [vmem:[%s1 + $0xc8] sm:$0xf]
      %v321 = vld [vmem:[%s1 + $0xcc] sm:$0xf]
      %v322 = vld [vmem:[%s1 + $0xd0] sm:$0xf]
      %v323 = vld [vmem:[%s1 + $0xd4] sm:$0xf]
      %v324 = vld [vmem:[%s1 + $0xd8] sm:$0xf]
      %v325 = vld [vmem:[%s1 + $0xdc] sm:$0xf]
      %v326 = vld [vmem:[%s1 + $0xe0] sm:$0xf]
      %v327 = vld [vmem:[%s1 + $0xe4] sm:$0xf]
      %v328 = vld [vmem:[%s1 + $0xe8] sm:$0xf]
      %v329 = vld [vmem:[%s1 + $0xec] sm:$0xf]
      %v330 = vld [vmem:[%s1 + $0xf0] sm:$0xf]
      %v331 = vld [vmem:[%s1 + $0xf4] sm:$0xf]
      %v332 = vld [vmem:[%s1 + $0xf8] sm:$0xf]
      %v333 = vld [vmem:[%s1 + $0xfc] sm:$0xf]
      %v334 = vld [vmem:[%s1 + $0x100] sm:$0xf]
      %v335 = vld [vmem:[%s1 + $0x104] sm:$0xf]
      %v336 = vld [vmem:[%s1 + $0x108] sm:$0xf]
      %v337 = vld [vmem:[%s1 + $0x10c] sm:$0xf]
      %v338 = vld [vmem:[%s1 + $0x110] sm:$0xf]
      %v339 = vld [vmem:[%s1 + $0x114] sm:$0xf]
      %v340 = vld [vmem:[%s1 + $0x118] sm:$0xf]
      %v341 = vld [vmem:[%s1 + $0x11c] sm:$0xf]
      %v363 = vunpack.c.l.b16 %v249
      %v364 = vunpack.c.h.b16 %v249
      %v365 = vunpack.c.l.b16 %v250
      %v366 = vunpack.c.h.b16 %v250
      %v367 = vunpack.c.l.b16 %v251
      %v368 = vunpack.c.l.b16 %v252
      %v369 = vunpack.c.h.b16 %v252
      %v370 = vunpack.c.l.b16 %v253
      %v371 = vunpack.c.h.b16 %v253
      %v372 = vunpack.c.l.b16 %v254
      %v373 = vunpack.c.l.b16 %v255
      %v374 = vunpack.c.h.b16 %v255
      %v375 = vunpack.c.l.b16 %v256
      %v376 = vunpack.c.h.b16 %v256
      %v377 = vunpack.c.l.b16 %v257
      %v378 = vunpack.c.l.b16 %v258
      %v379 = vunpack.c.h.b16 %v258
      %v380 = vunpack.c.l.b16 %v259
      %v381 = vunpack.c.h.b16 %v259
      %v382 = vunpack.c.l.b16 %v260
      %v383 = vunpack.c.l.b16 %v261
      %v384 = vunpack.c.h.b16 %v261
      %v385 = vunpack.c.l.b16 %v262
      %v386 = vunpack.c.h.b16 %v262
      %v387 = vunpack.c.l.b16 %v263
      %v388 = vunpack.c.l.b16 %v264
      %v389 = vunpack.c.h.b16 %v264
      %v390 = vunpack.c.l.b16 %v265
      %v391 = vunpack.c.h.b16 %v265
      %v392 = vunpack.c.l.b16 %v266
      %v393 = vunpack.c.l.b16 %v267
      %v394 = vunpack.c.h.b16 %v267
      %v395 = vunpack.c.l.b16 %v268
      %v396 = vunpack.c.h.b16 %v268
      %v397 = vunpack.c.l.b16 %v269
      %v398 = vpack.c.b16 %v368, %v363
      %v399 = vpack.c.b16 %v369, %v364
      %v400 = vpack.c.b16 %v370, %v365
      %v401 = vpack.c.b16 %v371, %v366
      %v402 = vpack.c.b16 %v372, %v367
      %v403 = vpack.c.b16 %v378, %v373
      %v404 = vpack.c.b16 %v379, %v374
      %v405 = vpack.c.b16 %v380, %v375
      %v406 = vpack.c.b16 %v381, %v376
      %v407 = vpack.c.b16 %v382, %v377
      %v408 = vpack.c.b16 %v388, %v383
      %v409 = vpack.c.b16 %v389, %v384
      %v410 = vpack.c.b16 %v390, %v385
      %v411 = vpack.c.b16 %v391, %v386
      %v412 = vpack.c.b16 %v392, %v387
      %v413 = vpack.c.b16 %v393, %v393
      %v414 = vpack.c.b16 %v394, %v394
      %v415 = vpack.c.b16 %v395, %v395
      %v416 = vpack.c.b16 %v396, %v396
      %v417 = vpack.c.b16 %v397, %v397
      %v506 = vunpack.c.l.b16 %v270
      %v507 = vunpack.c.l.b16 %v271
      %v508 = vunpack.c.l.b16 %v272
      %v509 = vunpack.c.l.b16 %v273
      %v510 = vunpack.c.l.b16 %v274
      %v511 = vunpack.c.l.b16 %v275
      %v512 = vunpack.c.l.b16 %v276
      %v513 = vunpack.c.l.b16 %v277
      %v514 = vunpack.c.l.b16 %v278
      %v515 = vunpack.c.l.b16 %v279
      %v516 = vunpack.c.l.b16 %v280
      %v517 = vunpack.c.l.b16 %v281
      %v518 = vunpack.c.l.b16 %v282
      %v519 = vunpack.c.l.b16 %v283
      %v520 = vunpack.c.l.b16 %v284
      %v521 = vunpack.c.l.b16 %v285
      %v522 = vunpack.c.l.b16 %v286
      %v523 = vunpack.c.l.b16 %v287
      %v524 = vunpack.c.l.b16 %v288
      %v525 = vunpack.c.l.b16 %v289
      %v526 = vunpack.c.l.b16 %v290
      %v527 = vunpack.c.l.b16 %v291
      %v528 = vunpack.c.l.b16 %v292
      %v529 = vunpack.c.l.b16 %v293
      %v530 = vunpack.c.l.b16 %v294
      %v531 = vunpack.c.l.b16 %v295
      %v532 = vunpack.c.l.b16 %v296
      %v533 = vunpack.c.l.b16 %v297
      %v534 = vunpack.c.l.b16 %v298
      %v535 = vunpack.c.l.b16 %v299
      %v536 = vunpack.c.l.b16 %v300
      %v537 = vunpack.c.l.b16 %v301
      %v538 = vunpack.c.l.b16 %v302
      %v539 = vunpack.c.l.b16 %v303
      %v540 = vunpack.c.l.b16 %v304
      %v541 = vunpack.c.l.b16 %v305
      %v542 = vunpack.c.l.b16 %v306
      %v543 = vunpack.c.l.b16 %v307
      %v544 = vunpack.c.l.b16 %v308
      %v545 = vunpack.c.l.b16 %v309
      %v546 = vunpack.c.l.b16 %v310
      %v547 = vunpack.c.l.b16 %v311
      %v548 = vunpack.c.l.b16 %v312
      %v549 = vunpack.c.l.b16 %v313
      %v550 = vunpack.c.l.b16 %v314
      %v551 = vunpack.c.l.b16 %v315
      %v552 = vunpack.c.l.b16 %v316
      %v553 = vunpack.c.l.b16 %v317
      %v554 = vunpack.c.l.b16 %v318
      %v555 = vunpack.c.l.b16 %v319
      %v556 = vunpack.c.l.b16 %v320
      %v557 = vunpack.c.l.b16 %v321
      %v558 = vunpack.c.l.b16 %v322
      %v559 = vunpack.c.l.b16 %v323
      %v560 = vunpack.c.l.b16 %v324
      %v561 = vunpack.c.l.b16 %v325
      %v562 = vunpack.c.l.b16 %v326
      %v563 = vunpack.c.l.b16 %v327
      %v564 = vunpack.c.l.b16 %v328
      %v565 = vunpack.c.l.b16 %v329
      %v566 = vunpack.c.l.b16 %v330
      %v567 = vunpack.c.l.b16 %v331
      %v568 = vunpack.c.l.b16 %v332
      %v569 = vunpack.c.l.b16 %v333
      %v570 = vunpack.c.l.b16 %v334
      %v571 = vunpack.c.l.b16 %v335
      %v572 = vunpack.c.l.b16 %v336
      %v573 = vunpack.c.l.b16 %v337
      %v574 = vunpack.c.l.b16 %v338
      %v575 = vunpack.c.l.b16 %v339
      %v576 = vunpack.c.l.b16 %v340
      %v577 = vunpack.c.l.b16 %v341
      %v578 = vpack.c.b16 %v507, %v506
      %v579 = vpack.c.b16 %v509, %v508
      %v580 = vpack.c.b16 %v511, %v510
      %v581 = vpack.c.b16 %v513, %v512
      %v582 = vpack.c.b16 %v515, %v514
      %v583 = vpack.c.b16 %v517, %v516
      %v584 = vpack.c.b16 %v519, %v518
      %v585 = vpack.c.b16 %v521, %v520
      %v586 = vpack.c.b16 %v523, %v522
      %v587 = vpack.c.b16 %v525, %v524
      %v588 = vpack.c.b16 %v527, %v526
      %v589 = vpack.c.b16 %v529, %v528
      %v590 = vpack.c.b16 %v531, %v530
      %v591 = vpack.c.b16 %v533, %v532
      %v592 = vpack.c.b16 %v535, %v534
      %v593 = vpack.c.b16 %v537, %v536
      %v594 = vpack.c.b16 %v539, %v538
      %v595 = vpack.c.b16 %v541, %v540
      %v596 = vpack.c.b16 %v543, %v542
      %v597 = vpack.c.b16 %v545, %v544
      %v598 = vpack.c.b16 %v547, %v546
      %v599 = vpack.c.b16 %v549, %v548
      %v600 = vpack.c.b16 %v551, %v550
      %v601 = vpack.c.b16 %v553, %v552
      %v602 = vpack.c.b16 %v555, %v554
      %v603 = vpack.c.b16 %v557, %v556
      %v604 = vpack.c.b16 %v559, %v558
      %v605 = vpack.c.b16 %v561, %v560
      %v606 = vpack.c.b16 %v563, %v562
      %v607 = vpack.c.b16 %v565, %v564
      %v608 = vpack.c.b16 %v567, %v566
      %v609 = vpack.c.b16 %v569, %v568
      %v610 = vpack.c.b16 %v571, %v570
      %v611 = vpack.c.b16 %v573, %v572
      %v612 = vpack.c.b16 %v575, %v574
      %v613 = vpack.c.b16 %v577, %v576
      %vm650 = vcmask 523264
      %v652 = vsel %vm650, %v402, 0
      %v655 = vsel %vm650, %v407, 0
      %v658 = vsel %vm650, %v412, 0
      %v661 = vsel %vm650, %v417, 0
      %663 = vmatprep.subr.bf16.mxu0 0
      %664 = vmatpush1.bf16.msra.mxu0 %v585
      %665 = vmatprep.subr.bf16.mxu0 0
      %666 = vmatpush1.bf16.msra.mxu0 %v584
      %667 = vmatprep.subr.bf16.mxu0 0
      %668 = vmatpush1.bf16.msra.mxu0 %v583
      %669 = vmatprep.subr.bf16.mxu0 0
      %670 = vmatpush1.bf16.msra.mxu0 %v582
      %671 = vmatprep.subr.bf16.mxu0 0
      %672 = vmatpush1.bf16.msra.mxu0 %v581
      %673 = vmatprep.subr.bf16.mxu0 0
      %674 = vmatpush1.bf16.msra.mxu0 %v580
      %675 = vmatprep.subr.bf16.mxu0 0
      %676 = vmatpush1.bf16.msra.mxu0 %v579
      %677 = vmatprep.subr.bf16.mxu0 0
      %678 = vmatpush1.bf16.msra.mxu0 %v578
      %679 = vmatprep.subr.bf16.mxu0 0
      %680 = vmatpush2.bf16.msra.mxu0 %v593
      %681 = vmatprep.subr.bf16.mxu0 0
      %682 = vmatpush2.bf16.msra.mxu0 %v592
      %683 = vmatprep.subr.bf16.mxu0 0
      %684 = vmatpush2.bf16.msra.mxu0 %v591
      %685 = vmatprep.subr.bf16.mxu0 0
      %686 = vmatpush2.bf16.msra.mxu0 %v590
      %687 = vmatprep.subr.bf16.mxu0 0
      %688 = vmatpush2.bf16.msra.mxu0 %v589
      %689 = vmatprep.subr.bf16.mxu0 0
      %690 = vmatpush2.bf16.msra.mxu0 %v588
      %691 = vmatprep.subr.bf16.mxu0 0
      %692 = vmatpush2.bf16.msra.mxu0 %v587
      %693 = vmatprep.subr.bf16.mxu0 0
      %694 = vmatpush2.bf16.msra.mxu0 %v586
      %695 = vmatprep.mubr.bf16.mxu0 %v399
      %696 = vmatmul.mubr.bf16.gmra.mxu0 %v398
      %v697 = vpop.f32.mrf.mxu0
      %v698 = vadd.f32 0.0, %v697
      %v699 = vpop.f32.mrf.mxu0
      %v700 = vpop.f32.mrf.mxu0
      %v701 = vadd.f32 0.0, %v700
      %v702 = vpop.f32.mrf.mxu0
      %703 = vmatprep.mubr.bf16.mxu0 %v404
      %704 = vmatmul.mubr.bf16.gmra.mxu0 %v403
      %v705 = vpop.f32.mrf.mxu0
      %v706 = vadd.f32 0.0, %v705
      %v707 = vpop.f32.mrf.mxu0
      %v708 = vpop.f32.mrf.mxu0
      %v709 = vadd.f32 0.0, %v708
      %v710 = vpop.f32.mrf.mxu0
      %711 = vmatprep.mubr.bf16.mxu0 %v409
      %712 = vmatmul.mubr.bf16.gmra.mxu0 %v408
      %v713 = vpop.f32.mrf.mxu0
      %v714 = vadd.f32 0.0, %v713
      %v715 = vpop.f32.mrf.mxu0
      %v716 = vpop.f32.mrf.mxu0
      %v717 = vadd.f32 0.0, %v716
      %v718 = vpop.f32.mrf.mxu0
      %719 = vmatprep.mubr.bf16.mxu0 %v414
      %720 = vmatmul.mubr.bf16.gmra.mxu0 %v413
      %v721 = vpop.f32.mrf.mxu0
      %v722 = vadd.f32 0.0, %v721
      %v723 = vpop.f32.mrf.mxu0
      %v724 = vpop.f32.mrf.mxu0
      %v725 = vpop.f32.mrf.mxu0
      %726 = vdwg.mxu0
      %727 = vmatprep.subr.bf16.mxu0 0
      %728 = vmatpush1.bf16.msra.mxu0 %v601
      %729 = vmatprep.subr.bf16.mxu0 0
      %730 = vmatpush1.bf16.msra.mxu0 %v600
      %731 = vmatprep.subr.bf16.mxu0 0
      %732 = vmatpush1.bf16.msra.mxu0 %v599
      %733 = vmatprep.subr.bf16.mxu0 0
      %734 = vmatpush1.bf16.msra.mxu0 %v598
      %735 = vmatprep.subr.bf16.mxu0 0
      %736 = vmatpush1.bf16.msra.mxu0 %v597
      %737 = vmatprep.subr.bf16.mxu0 0
      %738 = vmatpush1.bf16.msra.mxu0 %v596
      %739 = vmatprep.subr.bf16.mxu0 0
      %740 = vmatpush1.bf16.msra.mxu0 %v595
      %741 = vmatprep.subr.bf16.mxu0 0
      %742 = vmatpush1.bf16.msra.mxu0 %v594
      %743 = vmatprep.subr.bf16.mxu0 0
      %744 = vmatpush2.bf16.msra.mxu0 %v609
      %745 = vmatprep.subr.bf16.mxu0 0
      %746 = vmatpush2.bf16.msra.mxu0 %v608
      %747 = vmatprep.subr.bf16.mxu0 0
      %748 = vmatpush2.bf16.msra.mxu0 %v607
      %749 = vmatprep.subr.bf16.mxu0 0
      %750 = vmatpush2.bf16.msra.mxu0 %v606
      %751 = vmatprep.subr.bf16.mxu0 0
      %752 = vmatpush2.bf16.msra.mxu0 %v605
      %753 = vmatprep.subr.bf16.mxu0 0
      %754 = vmatpush2.bf16.msra.mxu0 %v604
      %755 = vmatprep.subr.bf16.mxu0 0
      %756 = vmatpush2.bf16.msra.mxu0 %v603
      %757 = vmatprep.subr.bf16.mxu0 0
      %758 = vmatpush2.bf16.msra.mxu0 %v602
      %759 = vmatprep.mubr.bf16.mxu0 %v401
      %760 = vmatmul.mubr.bf16.gmra.mxu0 %v400
      %v761 = vpop.f32.mrf.mxu0
      %v762 = vadd.f32 %v698, %v761
      %v763 = vpop.f32.mrf.mxu0
      %v764 = vpop.f32.mrf.mxu0
      %v765 = vadd.f32 %v701, %v764
      %v766 = vpop.f32.mrf.mxu0
      %767 = vmatprep.mubr.bf16.mxu0 %v406
      %768 = vmatmul.mubr.bf16.gmra.mxu0 %v405
      %v769 = vpop.f32.mrf.mxu0
      %v770 = vadd.f32 %v706, %v769
      %v771 = vpop.f32.mrf.mxu0
      %v772 = vpop.f32.mrf.mxu0
      %v773 = vadd.f32 %v709, %v772
      %v774 = vpop.f32.mrf.mxu0
      %775 = vmatprep.mubr.bf16.mxu0 %v411
      %776 = vmatmul.mubr.bf16.gmra.mxu0 %v410
      %v777 = vpop.f32.mrf.mxu0
      %v778 = vadd.f32 %v714, %v777
      %v779 = vpop.f32.mrf.mxu0
      %v780 = vpop.f32.mrf.mxu0
      %v781 = vadd.f32 %v717, %v780
      %v782 = vpop.f32.mrf.mxu0
      %783 = vmatprep.mubr.bf16.mxu0 %v416
      %784 = vmatmul.mubr.bf16.gmra.mxu0 %v415
      %v785 = vpop.f32.mrf.mxu0
      %v786 = vadd.f32 %v722, %v785
      %v787 = vpop.f32.mrf.mxu0
      %v788 = vpop.f32.mrf.mxu0
      %v789 = vpop.f32.mrf.mxu0
      %790 = vdwg.mxu0
      %791 = vmatprep.subr.bf16.mxu0 0
      %792 = vmatpush1.bf16.msra.mxu0 0
      %793 = vmatprep.subr.bf16.mxu0 0
      %794 = vmatpush1.bf16.msra.mxu0 0
      %795 = vmatprep.subr.bf16.mxu0 0
      %796 = vmatpush1.bf16.msra.mxu0 0
      %797 = vmatprep.subr.bf16.mxu0 0
      %798 = vmatpush1.bf16.msra.mxu0 0
      %799 = vmatprep.subr.bf16.mxu0 0
      %800 = vmatpush1.bf16.msra.mxu0 %v613
      %801 = vmatprep.subr.bf16.mxu0 0
      %802 = vmatpush1.bf16.msra.mxu0 %v612
      %803 = vmatprep.subr.bf16.mxu0 0
      %804 = vmatpush1.bf16.msra.mxu0 %v611
      %805 = vmatprep.subr.bf16.mxu0 0
      %806 = vmatpush1.bf16.msra.mxu0 %v610
      %807 = vmatprep.subr.bf16.mxu0 0
      %808 = vmatpush2.bf16.msra.mxu0 0
      %809 = vmatprep.subr.bf16.mxu0 0
      %810 = vmatpush2.bf16.msra.mxu0 0
      %811 = vmatprep.subr.bf16.mxu0 0
      %812 = vmatpush2.bf16.msra.mxu0 0
      %813 = vmatprep.subr.bf16.mxu0 0
      %814 = vmatpush2.bf16.msra.mxu0 0
      %815 = vmatprep.subr.bf16.mxu0 0
      %816 = vmatpush2.bf16.msra.mxu0 0
      %817 = vmatprep.subr.bf16.mxu0 0
      %818 = vmatpush2.bf16.msra.mxu0 0
      %819 = vmatprep.subr.bf16.mxu0 0
      %820 = vmatpush2.bf16.msra.mxu0 0
      %821 = vmatprep.subr.bf16.mxu0 0
      %822 = vmatpush2.bf16.msra.mxu0 0
      %823 = vmatprep.mubr.bf16.mxu0 0
      %824 = vmatmul.mubr.bf16.gmra.mxu0 %v652
      %v825 = vpop.f32.mrf.mxu0
      %v826 = vadd.f32 %v762, %v825
      %v827 = vpop.f32.mrf.mxu0
      %v828 = vpop.f32.mrf.mxu0
      %v829 = vadd.f32 %v765, %v828
      %v830 = vpop.f32.mrf.mxu0
      %831 = vmatprep.mubr.bf16.mxu0 0
      %832 = vmatmul.mubr.bf16.gmra.mxu0 %v655
      %v833 = vpop.f32.mrf.mxu0
      %v834 = vadd.f32 %v770, %v833
      %v835 = vpop.f32.mrf.mxu0
      %v836 = vpop.f32.mrf.mxu0
      %v837 = vadd.f32 %v773, %v836
      %v838 = vpop.f32.mrf.mxu0
      %839 = vmatprep.mubr.bf16.mxu0 0
      %840 = vmatmul.mubr.bf16.gmra.mxu0 %v658
      %v841 = vpop.f32.mrf.mxu0
      %v842 = vadd.f32 %v778, %v841
      %v843 = vpop.f32.mrf.mxu0
      %v844 = vpop.f32.mrf.mxu0
      %v845 = vadd.f32 %v781, %v844
      %v846 = vpop.f32.mrf.mxu0
      %847 = vmatprep.mubr.bf16.mxu0 0
      %848 = vmatmul.mubr.bf16.gmra.mxu0 %v661
      %v849 = vpop.f32.mrf.mxu0
      %v850 = vadd.f32 %v786, %v849
      %v851 = vpop.f32.mrf.mxu0
      %v852 = vpop.f32.mrf.mxu0
      %v853 = vpop.f32.mrf.mxu0
      %854 = vdwg.mxu0
      %s855 = smul.u32 %s17, 56
      %s856 = scalar_lea.vmem [#allocation2], %s855
      %857 = vst [vmem:[%s856] sm:$0xff] %v826
      %858 = vst [vmem:[%s856 + $0x8] sm:$0xff] %v829
      %859 = vst [vmem:[%s856 + $0x10] sm:$0xff] %v834
      %860 = vst [vmem:[%s856 + $0x18] sm:$0xff] %v837
      %861 = vst [vmem:[%s856 + $0x20] sm:$0xff] %v842
      %862 = vst [vmem:[%s856 + $0x28] sm:$0xff] %v845
      %863 = vst [vmem:[%s856 + $0x30] sm:$0xff] %v850
      %v864 = vld [vmem:[#allocation3] sm:$0x1]
      %v865 = vadd.f32 %v826, %v829
      %v866 = vadd.f32 %v865, %v834
      %v867 = vadd.f32 %v866, %v837
      %v868 = vadd.f32 %v867, %v842
      %v869 = vadd.f32 %v868, %v845
      %v870 = vadd.f32 %v869, %v850
      %v871 = vrot.slane %v870, 4
      %v872 = vadd.f32 %v870, %v871
      %v873 = vrot.slane %v872, 2
      %v874 = vadd.f32 %v872, %v873
      %v875 = vrot.slane %v874, 1
      %v876 = vadd.f32 %v874, %v875
      %v877 = vadd.f32 %v864, %v876
      %878 = vst [vmem:[#allocation3] sm:$0x1] %v877
      %v879 = vld [vmem:[#allocation4] sm:$0x1]
      %v880 = vmul.f32 %v826, %v826
      %v881 = vmul.f32 %v829, %v829
      %v882 = vmul.f32 %v834, %v834
      %v883 = vmul.f32 %v837, %v837
      %v884 = vmul.f32 %v842, %v842
      %v885 = vmul.f32 %v845, %v845
      %v886 = vmul.f32 %v850, %v850
      %v887 = vadd.f32 %v880, %v881
      %v888 = vadd.f32 %v887, %v882
      %v889 = vadd.f32 %v888, %v883
      %v890 = vadd.f32 %v889, %v884
      %v891 = vadd.f32 %v890, %v885
      %v892 = vadd.f32 %v891, %v886
      %v893 = vrot.slane %v892, 4
      %v894 = vadd.f32 %v892, %v893
      %v895 = vrot.slane %v894, 2
      %v896 = vadd.f32 %v894, %v895
      %v897 = vrot.slane %v896, 1
      %v898 = vadd.f32 %v896, %v897
      %v899 = vadd.f32 %v879, %v898
      %900 = vst [vmem:[#allocation4] sm:$0x1] %v899
      %p901 = scmp.eq.s32.totalorder %s17, 4
      // Predicated region
      $region49: #{encoder_forward.5} parent=43 // pred_check
        %p902 = pneg %p901
      $region50: #{encoder_forward.5} parent=43 // pred_check_branch
        %904 = sbr.rel (%p902) target = $region52
      $region51: #{encoder_forward.5} parent=43 // pred_region
        %v905 = vld [vmem:[#allocation3] sm:$0x1]
        %v906 = vld [vmem:[%s2] sm:$0xff]
        %v907 = vld [vmem:[%s2 + $0x8] sm:$0xff]
        %v908 = vld [vmem:[%s2 + $0x10] sm:$0xff]
        %v909 = vld [vmem:[%s2 + $0x18] sm:$0xff]
        %v910 = vld [vmem:[%s2 + $0x20] sm:$0xff]
        %v911 = vld [vmem:[%s2 + $0x28] sm:$0xff]
        %v912 = vld [vmem:[%s2 + $0x30] sm:$0xff]
        %v913 = vld [vmem:[%s2 + $0x38] sm:$0xff]
        %v914 = vld [vmem:[%s2 + $0x40] sm:$0xff]
        %v915 = vld [vmem:[%s2 + $0x48] sm:$0xff]
        %v916 = vld [vmem:[%s2 + $0x50] sm:$0xff]
        %v917 = vld [vmem:[%s2 + $0x58] sm:$0xff]
        %v918 = vld [vmem:[%s2 + $0x60] sm:$0xff]
        %v919 = vld [vmem:[%s2 + $0x68] sm:$0xff]
        %v920 = vld [vmem:[%s2 + $0x70] sm:$0xff]
        %v921 = vld [vmem:[%s2 + $0x78] sm:$0xff]
        %922 = vmatprep.subr.mxu0 0.0
        %923 = vmatpush1.msra.mxu0 %v921
        %924 = vmatprep.subr.mxu0 0.0
        %925 = vmatpush1.msra.mxu0 %v920
        %926 = vmatprep.subr.mxu0 0.0
        %927 = vmatpush1.msra.mxu0 %v919
        %928 = vmatprep.subr.mxu0 0.0
        %929 = vmatpush1.msra.mxu0 %v918
        %930 = vmatprep.subr.mxu0 0.0
        %931 = vmatpush1.msra.mxu0 %v917
        %932 = vmatprep.subr.mxu0 0.0
        %933 = vmatpush1.msra.mxu0 %v916
        %934 = vmatprep.subr.mxu0 0.0
        %935 = vmatpush1.msra.mxu0 %v915
        %936 = vmatprep.subr.mxu0 0.0
        %937 = vmatpush1.msra.mxu0 %v914
        %938 = vmatprep.subr.mxu0 0.0
        %939 = vmatpush1.msra.mxu0 %v913
        %940 = vmatprep.subr.mxu0 0.0
        %941 = vmatpush1.msra.mxu0 %v912
        %942 = vmatprep.subr.mxu0 0.0
        %943 = vmatpush1.msra.mxu0 %v911
        %944 = vmatprep.subr.mxu0 0.0
        %945 = vmatpush1.msra.mxu0 %v910
        %946 = vmatprep.subr.mxu0 0.0
        %947 = vmatpush1.msra.mxu0 %v909
        %948 = vmatprep.subr.mxu0 0.0
        %949 = vmatpush1.msra.mxu0 %v908
        %950 = vmatprep.subr.mxu0 0.0
        %951 = vmatpush1.msra.mxu0 %v907
        %952 = vmatprep.subr.mxu0 0.0
        %953 = vmatpush1.msra.mxu0 %v906
        %954 = vmatprep.subr.mxu0 0.0
        %955 = vmatpush2.msra.mxu0 0.0
        %956 = vmatprep.subr.mxu0 0.0
        %957 = vmatpush2.msra.mxu0 0.0
        %958 = vmatprep.subr.mxu0 0.0
        %959 = vmatpush2.msra.mxu0 0.0
        %960 = vmatprep.subr.mxu0 0.0
        %961 = vmatpush2.msra.mxu0 0.0
        %962 = vmatprep.subr.mxu0 0.0
        %963 = vmatpush2.msra.mxu0 0.0
        %964 = vmatprep.subr.mxu0 0.0
        %965 = vmatpush2.msra.mxu0 0.0
        %966 = vmatprep.subr.mxu0 0.0
        %967 = vmatpush2.msra.mxu0 0.0
        %968 = vmatprep.subr.mxu0 0.0
        %969 = vmatpush2.msra.mxu0 0.0
        %970 = vmatprep.subr.mxu0 0.0
        %971 = vmatpush2.msra.mxu0 0.0
        %972 = vmatprep.subr.mxu0 0.0
        %973 = vmatpush2.msra.mxu0 0.0
        %974 = vmatprep.subr.mxu0 0.0
        %975 = vmatpush2.msra.mxu0 0.0
        %976 = vmatprep.subr.mxu0 0.0
        %977 = vmatpush2.msra.mxu0 0.0
        %978 = vmatprep.subr.mxu0 0.0
        %979 = vmatpush2.msra.mxu0 0.0
        %980 = vmatprep.subr.mxu0 0.0
        %981 = vmatpush2.msra.mxu0 0.0
        %982 = vmatprep.subr.mxu0 0.0
        %983 = vmatpush2.msra.mxu0 0.0
        %984 = vmatprep.subr.mxu0 0.0
        %985 = vmatpush2.msra.mxu0 0.0
        %986 = vmatprep.mubr.f32.mxu0 0.0
        %987 = vmatmul.mubr.f32.gmra.mxu0 %v905
        %v988 = vpop.f32.mrf.mxu0
        %v989 = vadd.f32 0.0, %v988
        %v990 = vpop.f32.mrf.mxu0
        %991 = vdwg.mxu0
        %v992 = vld [vmem:[#allocation4] sm:$0x1]
        %993 = vmatprep.subr.mxu0 0.0
        %994 = vmatpush1.msra.mxu0 %v921
        %995 = vmatprep.subr.mxu0 0.0
        %996 = vmatpush1.msra.mxu0 %v920
        %997 = vmatprep.subr.mxu0 0.0
        %998 = vmatpush1.msra.mxu0 %v919
        %999 = vmatprep.subr.mxu0 0.0
        %1000 = vmatpush1.msra.mxu0 %v918
        %1001 = vmatprep.subr.mxu0 0.0
        %1002 = vmatpush1.msra.mxu0 %v917
        %1003 = vmatprep.subr.mxu0 0.0
        %1004 = vmatpush1.msra.mxu0 %v916
        %1005 = vmatprep.subr.mxu0 0.0
        %1006 = vmatpush1.msra.mxu0 %v915
        %1007 = vmatprep.subr.mxu0 0.0
        %1008 = vmatpush1.msra.mxu0 %v914
        %1009 = vmatprep.subr.mxu0 0.0
        %1010 = vmatpush1.msra.mxu0 %v913
        %1011 = vmatprep.subr.mxu0 0.0
        %1012 = vmatpush1.msra.mxu0 %v912
        %1013 = vmatprep.subr.mxu0 0.0
        %1014 = vmatpush1.msra.mxu0 %v911
        %1015 = vmatprep.subr.mxu0 0.0
        %1016 = vmatpush1.msra.mxu0 %v910
        %1017 = vmatprep.subr.mxu0 0.0
        %1018 = vmatpush1.msra.mxu0 %v909
        %1019 = vmatprep.subr.mxu0 0.0
        %1020 = vmatpush1.msra.mxu0 %v908
        %1021 = vmatprep.subr.mxu0 0.0
        %1022 = vmatpush1.msra.mxu0 %v907
        %1023 = vmatprep.subr.mxu0 0.0
        %1024 = vmatpush1.msra.mxu0 %v906
        %1025 = vmatprep.subr.mxu0 0.0
        %1026 = vmatpush2.msra.mxu0 0.0
        %1027 = vmatprep.subr.mxu0 0.0
        %1028 = vmatpush2.msra.mxu0 0.0
        %1029 = vmatprep.subr.mxu0 0.0
        %1030 = vmatpush2.msra.mxu0 0.0
        %1031 = vmatprep.subr.mxu0 0.0
        %1032 = vmatpush2.msra.mxu0 0.0
        %1033 = vmatprep.subr.mxu0 0.0
        %1034 = vmatpush2.msra.mxu0 0.0
        %1035 = vmatprep.subr.mxu0 0.0
        %1036 = vmatpush2.msra.mxu0 0.0
        %1037 = vmatprep.subr.mxu0 0.0
        %1038 = vmatpush2.msra.mxu0 0.0
        %1039 = vmatprep.subr.mxu0 0.0
        %1040 = vmatpush2.msra.mxu0 0.0
        %1041 = vmatprep.subr.mxu0 0.0
        %1042 = vmatpush2.msra.mxu0 0.0
        %1043 = vmatprep.subr.mxu0 0.0
        %1044 = vmatpush2.msra.mxu0 0.0
        %1045 = vmatprep.subr.mxu0 0.0
        %1046 = vmatpush2.msra.mxu0 0.0
        %1047 = vmatprep.subr.mxu0 0.0
        %1048 = vmatpush2.msra.mxu0 0.0
        %1049 = vmatprep.subr.mxu0 0.0
        %1050 = vmatpush2.msra.mxu0 0.0
        %1051 = vmatprep.subr.mxu0 0.0
        %1052 = vmatpush2.msra.mxu0 0.0
        %1053 = vmatprep.subr.mxu0 0.0
        %1054 = vmatpush2.msra.mxu0 0.0
        %1055 = vmatprep.subr.mxu0 0.0
        %1056 = vmatpush2.msra.mxu0 0.0
        %1057 = vmatprep.mubr.f32.mxu0 0.0
        %1058 = vmatmul.mubr.f32.gmra.mxu0 %v992
        %v1059 = vpop.f32.mrf.mxu0
        %v1060 = vadd.f32 0.0, %v1059
        %v1061 = vpop.f32.mrf.mxu0
        %1062 = vdwg.mxu0
        %v1063 = vmul.f32 %v989, 0.00044642857
        %v1064 = vmul.f32 %v1060, 0.00044642857
        %v1065 = vmul.f32 %v1063, %v1063
        %v1066 = vsub.f32 %v1064, %v1065
        %v1067 = vld [vmem:[%s4] sm:$0x1]
        %v1068 = vadd.f32 %v1066, 1e-05
        %v1069 = vrsqrt.pop %v1068
        %v1070 = vmul.f32 %v1067, %v1069
        %v1071 = vld [vmem:[%s5] sm:$0x1]
        %v1072 = vmul.f32 %v1063, %v1070
        %v1073 = vsub.f32 %v1071, %v1072
        %v1074 = vld [vmem:[%s3] sm:$0xff]
        %v1075 = vld [vmem:[%s3 + $0x8] sm:$0xff]
        %vm1076 = vcmask 130048
        %v1078 = vsel %vm1076, %v1070, 0
        %1080 = vmatprep.subr.mxu0 0.0
        %1081 = vmatpush1.msra.mxu0 0.0
        %1082 = vmatprep.subr.mxu0 0.0
        %1083 = vmatpush1.msra.mxu0 0.0
        %1084 = vmatprep.subr.mxu0 0.0
        %1085 = vmatpush1.msra.mxu0 0.0
        %1086 = vmatprep.subr.mxu0 0.0
        %1087 = vmatpush1.msra.mxu0 0.0
        %1088 = vmatprep.subr.mxu0 0.0
        %1089 = vmatpush1.msra.mxu0 0.0
        %1090 = vmatprep.subr.mxu0 0.0
        %1091 = vmatpush1.msra.mxu0 0.0
        %1092 = vmatprep.subr.mxu0 0.0
        %1093 = vmatpush1.msra.mxu0 0.0
        %1094 = vmatprep.subr.mxu0 0.0
        %1095 = vmatpush1.msra.mxu0 0.0
        %1096 = vmatprep.subr.mxu0 0.0
        %1097 = vmatpush1.msra.mxu0 0.0
        %1098 = vmatprep.subr.mxu0 0.0
        %1099 = vmatpush1.msra.mxu0 0.0
        %1100 = vmatprep.subr.mxu0 0.0
        %1101 = vmatpush1.msra.mxu0 0.0
        %1102 = vmatprep.subr.mxu0 0.0
        %1103 = vmatpush1.msra.mxu0 0.0
        %1104 = vmatprep.subr.mxu0 0.0
        %1105 = vmatpush1.msra.mxu0 0.0
        %1106 = vmatprep.subr.mxu0 0.0
        %1107 = vmatpush1.msra.mxu0 0.0
        %1108 = vmatprep.subr.mxu0 0.0
        %1109 = vmatpush1.msra.mxu0 %v1075
        %1110 = vmatprep.subr.mxu0 0.0
        %1111 = vmatpush1.msra.mxu0 %v1074
        %1112 = vmatprep.subr.mxu0 0.0
        %1113 = vmatpush2.msra.mxu0 0.0
        %1114 = vmatprep.subr.mxu0 0.0
        %1115 = vmatpush2.msra.mxu0 0.0
        %1116 = vmatprep.subr.mxu0 0.0
        %1117 = vmatpush2.msra.mxu0 0.0
        %1118 = vmatprep.subr.mxu0 0.0
        %1119 = vmatpush2.msra.mxu0 0.0
        %1120 = vmatprep.subr.mxu0 0.0
        %1121 = vmatpush2.msra.mxu0 0.0
        %1122 = vmatprep.subr.mxu0 0.0
        %1123 = vmatpush2.msra.mxu0 0.0
        %1124 = vmatprep.subr.mxu0 0.0
        %1125 = vmatpush2.msra.mxu0 0.0
        %1126 = vmatprep.subr.mxu0 0.0
        %1127 = vmatpush2.msra.mxu0 0.0
        %1128 = vmatprep.subr.mxu0 0.0
        %1129 = vmatpush2.msra.mxu0 0.0
        %1130 = vmatprep.subr.mxu0 0.0
        %1131 = vmatpush2.msra.mxu0 0.0
        %1132 = vmatprep.subr.mxu0 0.0
        %1133 = vmatpush2.msra.mxu0 0.0
        %1134 = vmatprep.subr.mxu0 0.0
        %1135 = vmatpush2.msra.mxu0 0.0
        %1136 = vmatprep.subr.mxu0 0.0
        %1137 = vmatpush2.msra.mxu0 0.0
        %1138 = vmatprep.subr.mxu0 0.0
        %1139 = vmatpush2.msra.mxu0 0.0
        %1140 = vmatprep.subr.mxu0 0.0
        %1141 = vmatpush2.msra.mxu0 0.0
        %1142 = vmatprep.subr.mxu0 0.0
        %1143 = vmatpush2.msra.mxu0 0.0
        %1144 = vmatprep.mubr.f32.mxu0 0.0
        %1145 = vmatmul.mubr.f32.gmra.mxu0 %v1078
        %v1146 = vpop.f32.mrf.mxu0
        %v1147 = vadd.f32 0.0, %v1146
        %v1148 = vpop.f32.mrf.mxu0
        %1149 = vdwg.mxu0
        %v1151 = vsel %vm1076, %v1073, 0
        %1153 = vmatprep.subr.mxu0 0.0
        %1154 = vmatpush1.msra.mxu0 0.0
        %1155 = vmatprep.subr.mxu0 0.0
        %1156 = vmatpush1.msra.mxu0 0.0
        %1157 = vmatprep.subr.mxu0 0.0
        %1158 = vmatpush1.msra.mxu0 0.0
        %1159 = vmatprep.subr.mxu0 0.0
        %1160 = vmatpush1.msra.mxu0 0.0
        %1161 = vmatprep.subr.mxu0 0.0
        %1162 = vmatpush1.msra.mxu0 0.0
        %1163 = vmatprep.subr.mxu0 0.0
        %1164 = vmatpush1.msra.mxu0 0.0
        %1165 = vmatprep.subr.mxu0 0.0
        %1166 = vmatpush1.msra.mxu0 0.0
        %1167 = vmatprep.subr.mxu0 0.0
        %1168 = vmatpush1.msra.mxu0 0.0
        %1169 = vmatprep.subr.mxu0 0.0
        %1170 = vmatpush1.msra.mxu0 0.0
        %1171 = vmatprep.subr.mxu0 0.0
        %1172 = vmatpush1.msra.mxu0 0.0
        %1173 = vmatprep.subr.mxu0 0.0
        %1174 = vmatpush1.msra.mxu0 0.0
        %1175 = vmatprep.subr.mxu0 0.0
        %1176 = vmatpush1.msra.mxu0 0.0
        %1177 = vmatprep.subr.mxu0 0.0
        %1178 = vmatpush1.msra.mxu0 0.0
        %1179 = vmatprep.subr.mxu0 0.0
        %1180 = vmatpush1.msra.mxu0 0.0
        %1181 = vmatprep.subr.mxu0 0.0
        %1182 = vmatpush1.msra.mxu0 %v1075
        %1183 = vmatprep.subr.mxu0 0.0
        %1184 = vmatpush1.msra.mxu0 %v1074
        %1185 = vmatprep.subr.mxu0 0.0
        %1186 = vmatpush2.msra.mxu0 0.0
        %1187 = vmatprep.subr.mxu0 0.0
        %1188 = vmatpush2.msra.mxu0 0.0
        %1189 = vmatprep.subr.mxu0 0.0
        %1190 = vmatpush2.msra.mxu0 0.0
        %1191 = vmatprep.subr.mxu0 0.0
        %1192 = vmatpush2.msra.mxu0 0.0
        %1193 = vmatprep.subr.mxu0 0.0
        %1194 = vmatpush2.msra.mxu0 0.0
        %1195 = vmatprep.subr.mxu0 0.0
        %1196 = vmatpush2.msra.mxu0 0.0
        %1197 = vmatprep.subr.mxu0 0.0
        %1198 = vmatpush2.msra.mxu0 0.0
        %1199 = vmatprep.subr.mxu0 0.0
        %1200 = vmatpush2.msra.mxu0 0.0
        %1201 = vmatprep.subr.mxu0 0.0
        %1202 = vmatpush2.msra.mxu0 0.0
        %1203 = vmatprep.subr.mxu0 0.0
        %1204 = vmatpush2.msra.mxu0 0.0
        %1205 = vmatprep.subr.mxu0 0.0
        %1206 = vmatpush2.msra.mxu0 0.0
        %1207 = vmatprep.subr.mxu0 0.0
        %1208 = vmatpush2.msra.mxu0 0.0
        %1209 = vmatprep.subr.mxu0 0.0
        %1210 = vmatpush2.msra.mxu0 0.0
        %1211 = vmatprep.subr.mxu0 0.0
        %1212 = vmatpush2.msra.mxu0 0.0
        %1213 = vmatprep.subr.mxu0 0.0
        %1214 = vmatpush2.msra.mxu0 0.0
        %1215 = vmatprep.subr.mxu0 0.0
        %1216 = vmatpush2.msra.mxu0 0.0
        %1217 = vmatprep.mubr.f32.mxu0 0.0
        %1218 = vmatmul.mubr.f32.gmra.mxu0 %v1151
        %v1219 = vpop.f32.mrf.mxu0
        %v1220 = vadd.f32 0.0, %v1219
        %v1221 = vpop.f32.mrf.mxu0
        %1222 = vdwg.mxu0
        %v1223 = vld [vmem:[#allocation2] sm:$0xff]
        %v1224 = vld [vmem:[#allocation2 + $0x8] sm:$0xff]
        %v1225 = vld [vmem:[#allocation2 + $0x10] sm:$0xff]
        %v1226 = vld [vmem:[#allocation2 + $0x18] sm:$0xff]
        %v1227 = vld [vmem:[#allocation2 + $0x20] sm:$0xff]
        %v1228 = vld [vmem:[#allocation2 + $0x28] sm:$0xff]
        %v1229 = vld [vmem:[#allocation2 + $0x30] sm:$0xff]
        %v1230 = vld [vmem:[#allocation2 + $0x38] sm:$0xff]
        %v1231 = vld [vmem:[#allocation2 + $0x40] sm:$0xff]
        %v1232 = vld [vmem:[#allocation2 + $0x48] sm:$0xff]
        %v1233 = vld [vmem:[#allocation2 + $0x50] sm:$0xff]
        %v1234 = vld [vmem:[#allocation2 + $0x58] sm:$0xff]
        %v1235 = vld [vmem:[#allocation2 + $0x60] sm:$0xff]
        %v1236 = vld [vmem:[#allocation2 + $0x68] sm:$0xff]
        %v1237 = vld [vmem:[#allocation2 + $0x70] sm:$0xff]
        %v1238 = vld [vmem:[#allocation2 + $0x78] sm:$0xff]
        %v1239 = vld [vmem:[#allocation2 + $0x80] sm:$0xff]
        %v1240 = vld [vmem:[#allocation2 + $0x88] sm:$0xff]
        %v1241 = vld [vmem:[#allocation2 + $0x90] sm:$0xff]
        %v1242 = vld [vmem:[#allocation2 + $0x98] sm:$0xff]
        %v1243 = vld [vmem:[#allocation2 + $0xa0] sm:$0xff]
        %v1244 = vld [vmem:[#allocation2 + $0xa8] sm:$0xff]
        %v1245 = vld [vmem:[#allocation2 + $0xb0] sm:$0xff]
        %v1246 = vld [vmem:[#allocation2 + $0xb8] sm:$0xff]
        %v1247 = vld [vmem:[#allocation2 + $0xc0] sm:$0xff]
        %v1248 = vld [vmem:[#allocation2 + $0xc8] sm:$0xff]
        %v1249 = vld [vmem:[#allocation2 + $0xd0] sm:$0xff]
        %v1250 = vld [vmem:[#allocation2 + $0xd8] sm:$0xff]
        %v1251 = vld [vmem:[#allocation2 + $0xe0] sm:$0xff]
        %v1252 = vld [vmem:[#allocation2 + $0xe8] sm:$0xff]
        %v1253 = vld [vmem:[#allocation2 + $0xf0] sm:$0xff]
        %v1254 = vld [vmem:[#allocation2 + $0xf8] sm:$0xff]
        %v1255 = vld [vmem:[#allocation2 + $0x100] sm:$0xff]
        %v1256 = vld [vmem:[#allocation2 + $0x108] sm:$0xff]
        %v1257 = vld [vmem:[#allocation2 + $0x110] sm:$0xff]
        %v1258 = vlaneseq
        %v1259 = vshrl.u32 %v1258, 7
        %v1260 = vsub.s32 0, %v1259
        %v1261 = vrot.slane %v1147, %v1260
        %v1262 = vmul.f32 %v1223, %v1261
        %v1263 = vmul.f32 %v1224, %v1261
        %v1264 = vmul.f32 %v1225, %v1261
        %v1265 = vmul.f32 %v1226, %v1261
        %v1266 = vmul.f32 %v1227, %v1261
        %v1267 = vmul.f32 %v1228, %v1261
        %v1268 = vmul.f32 %v1229, %v1261
        %v1269 = vmul.f32 %v1230, %v1261
        %v1270 = vmul.f32 %v1231, %v1261
        %v1271 = vmul.f32 %v1232, %v1261
        %v1272 = vmul.f32 %v1233, %v1261
        %v1273 = vmul.f32 %v1234, %v1261
        %v1274 = vmul.f32 %v1235, %v1261
        %v1275 = vmul.f32 %v1236, %v1261
        %v1276 = vmul.f32 %v1237, %v1261
        %v1277 = vmul.f32 %v1238, %v1261
        %v1278 = vmul.f32 %v1239, %v1261
        %v1279 = vmul.f32 %v1240, %v1261
        %v1280 = vmul.f32 %v1241, %v1261
        %v1281 = vmul.f32 %v1242, %v1261
        %v1282 = vmul.f32 %v1243, %v1261
        %v1283 = vmul.f32 %v1244, %v1261
        %v1284 = vmul.f32 %v1245, %v1261
        %v1285 = vmul.f32 %v1246, %v1261
        %v1286 = vmul.f32 %v1247, %v1261
        %v1287 = vmul.f32 %v1248, %v1261
        %v1288 = vmul.f32 %v1249, %v1261
        %v1289 = vmul.f32 %v1250, %v1261
        %v1290 = vmul.f32 %v1251, %v1261
        %v1291 = vmul.f32 %v1252, %v1261
        %v1292 = vmul.f32 %v1253, %v1261
        %v1293 = vmul.f32 %v1254, %v1261
        %v1294 = vmul.f32 %v1255, %v1261
        %v1295 = vmul.f32 %v1256, %v1261
        %v1296 = vmul.f32 %v1257, %v1261
        %v1297 = vlaneseq
        %v1298 = vshrl.u32 %v1297, 7
        %v1299 = vsub.s32 0, %v1298
        %v1300 = vrot.slane %v1220, %v1299
        %v1301 = vadd.f32 %v1262, %v1300
        %v1302 = vadd.f32 %v1263, %v1300
        %v1303 = vadd.f32 %v1264, %v1300
        %v1304 = vadd.f32 %v1265, %v1300
        %v1305 = vadd.f32 %v1266, %v1300
        %v1306 = vadd.f32 %v1267, %v1300
        %v1307 = vadd.f32 %v1268, %v1300
        %v1308 = vadd.f32 %v1269, %v1300
        %v1309 = vadd.f32 %v1270, %v1300
        %v1310 = vadd.f32 %v1271, %v1300
        %v1311 = vadd.f32 %v1272, %v1300
        %v1312 = vadd.f32 %v1273, %v1300
        %v1313 = vadd.f32 %v1274, %v1300
        %v1314 = vadd.f32 %v1275, %v1300
        %v1315 = vadd.f32 %v1276, %v1300
        %v1316 = vadd.f32 %v1277, %v1300
        %v1317 = vadd.f32 %v1278, %v1300
        %v1318 = vadd.f32 %v1279, %v1300
        %v1319 = vadd.f32 %v1280, %v1300
        %v1320 = vadd.f32 %v1281, %v1300
        %v1321 = vadd.f32 %v1282, %v1300
        %v1322 = vadd.f32 %v1283, %v1300
        %v1323 = vadd.f32 %v1284, %v1300
        %v1324 = vadd.f32 %v1285, %v1300
        %v1325 = vadd.f32 %v1286, %v1300
        %v1326 = vadd.f32 %v1287, %v1300
        %v1327 = vadd.f32 %v1288, %v1300
        %v1328 = vadd.f32 %v1289, %v1300
        %v1329 = vadd.f32 %v1290, %v1300
        %v1330 = vadd.f32 %v1291, %v1300
        %v1331 = vadd.f32 %v1292, %v1300
        %v1332 = vadd.f32 %v1293, %v1300
        %v1333 = vadd.f32 %v1294, %v1300
        %v1334 = vadd.f32 %v1295, %v1300
        %v1335 = vadd.f32 %v1296, %v1300
        %v1336 = vmax.f32 %v1301, 0.0
        %v1337 = vmax.f32 %v1302, 0.0
        %v1338 = vmax.f32 %v1303, 0.0
        %v1339 = vmax.f32 %v1304, 0.0
        %v1340 = vmax.f32 %v1305, 0.0
        %v1341 = vmax.f32 %v1306, 0.0
        %v1342 = vmax.f32 %v1307, 0.0
        %v1343 = vmax.f32 %v1308, 0.0
        %v1344 = vmax.f32 %v1309, 0.0
        %v1345 = vmax.f32 %v1310, 0.0
        %v1346 = vmax.f32 %v1311, 0.0
        %v1347 = vmax.f32 %v1312, 0.0
        %v1348 = vmax.f32 %v1313, 0.0
        %v1349 = vmax.f32 %v1314, 0.0
        %v1350 = vmax.f32 %v1315, 0.0
        %v1351 = vmax.f32 %v1316, 0.0
        %v1352 = vmax.f32 %v1317, 0.0
        %v1353 = vmax.f32 %v1318, 0.0
        %v1354 = vmax.f32 %v1319, 0.0
        %v1355 = vmax.f32 %v1320, 0.0
        %v1356 = vmax.f32 %v1321, 0.0
        %v1357 = vmax.f32 %v1322, 0.0
        %v1358 = vmax.f32 %v1323, 0.0
        %v1359 = vmax.f32 %v1324, 0.0
        %v1360 = vmax.f32 %v1325, 0.0
        %v1361 = vmax.f32 %v1326, 0.0
        %v1362 = vmax.f32 %v1327, 0.0
        %v1363 = vmax.f32 %v1328, 0.0
        %v1364 = vmax.f32 %v1329, 0.0
        %v1365 = vmax.f32 %v1330, 0.0
        %v1366 = vmax.f32 %v1331, 0.0
        %v1367 = vmax.f32 %v1332, 0.0
        %v1368 = vmax.f32 %v1333, 0.0
        %v1369 = vmax.f32 %v1334, 0.0
        %v1370 = vmax.f32 %v1335, 0.0
        %vm1381 = vcmask 1041408
        %v1382 = vrot.slane %v1344, 6
        %v1383 = vrot.slane %v1345, 6
        %v1384 = vsel %vm1381, %v1382, %v1383
        %v1385 = vrot.slane %v1346, 6
        %v1386 = vsel %vm1381, %v1383, %v1385
        %v1387 = vrot.slane %v1347, 6
        %v1388 = vsel %vm1381, %v1385, %v1387
        %v1389 = vrot.slane %v1348, 6
        %v1390 = vsel %vm1381, %v1387, %v1389
        %v1391 = vrot.slane %v1349, 6
        %v1392 = vsel %vm1381, %v1389, %v1391
        %v1393 = vrot.slane %v1350, 6
        %v1394 = vsel %vm1381, %v1391, %v1393
        %v1395 = vrot.slane %v1351, 6
        %v1396 = vsel %vm1381, %v1393, %v1395
        %v1397 = vrot.slane %v1352, 6
        %v1398 = vsel %vm1381, %v1395, %v1397
        %v1399 = vrot.slane %v1353, 6
        %v1400 = vsel %vm1381, %v1397, %v1399
        %v1410 = vmax.f32 %v1336, %v1384
        %v1411 = vmax.f32 %v1337, %v1386
        %v1412 = vmax.f32 %v1338, %v1388
        %v1413 = vmax.f32 %v1339, %v1390
        %v1414 = vmax.f32 %v1340, %v1392
        %v1415 = vmax.f32 %v1341, %v1394
        %v1416 = vmax.f32 %v1342, %v1396
        %v1417 = vmax.f32 %v1343, %v1398
        %v1418 = vmax.f32 %v1344, %v1400
        %v1428 = vrot.slane %v1362, 6
        %v1429 = vrot.slane %v1363, 6
        %v1430 = vsel %vm1381, %v1428, %v1429
        %v1431 = vrot.slane %v1364, 6
        %v1432 = vsel %vm1381, %v1429, %v1431
        %v1433 = vrot.slane %v1365, 6
        %v1434 = vsel %vm1381, %v1431, %v1433
        %v1435 = vrot.slane %v1366, 6
        %v1436 = vsel %vm1381, %v1433, %v1435
        %v1437 = vrot.slane %v1367, 6
        %v1438 = vsel %vm1381, %v1435, %v1437
        %v1439 = vrot.slane %v1368, 6
        %v1440 = vsel %vm1381, %v1437, %v1439
        %v1441 = vrot.slane %v1369, 6
        %v1442 = vsel %vm1381, %v1439, %v1441
        %v1443 = vrot.slane %v1370, 6
        %v1444 = vsel %vm1381, %v1441, %v1443
        %v1455 = vmax.f32 %v1353, %v1428
        %v1456 = vmax.f32 %v1354, %v1430
        %v1457 = vmax.f32 %v1355, %v1432
        %v1458 = vmax.f32 %v1356, %v1434
        %v1459 = vmax.f32 %v1357, %v1436
        %v1460 = vmax.f32 %v1358, %v1438
        %v1461 = vmax.f32 %v1359, %v1440
        %v1462 = vmax.f32 %v1360, %v1442
        %v1463 = vmax.f32 %v1361, %v1444
        %v1464 = vmax.f32 %v1362, %v1443
        %vm1475 = vcmask 1043456
        %v1476 = vrot.slane %v1455, 4
        %v1477 = vrot.slane %v1456, 4
        %v1478 = vsel %vm1475, %v1476, %v1477
        %v1479 = vrot.slane %v1457, 4
        %v1480 = vsel %vm1475, %v1477, %v1479
        %v1481 = vrot.slane %v1458, 4
        %v1482 = vsel %vm1475, %v1479, %v1481
        %v1483 = vrot.slane %v1459, 4
        %v1484 = vsel %vm1475, %v1481, %v1483
        %v1485 = vrot.slane %v1460, 4
        %v1486 = vsel %vm1475, %v1483, %v1485
        %v1487 = vrot.slane %v1461, 4
        %v1488 = vsel %vm1475, %v1485, %v1487
        %v1489 = vrot.slane %v1462, 4
        %v1490 = vsel %vm1475, %v1487, %v1489
        %v1491 = vrot.slane %v1463, 4
        %v1492 = vsel %vm1475, %v1489, %v1491
        %v1493 = vrot.slane %v1464, 4
        %v1494 = vsel %vm1475, %v1491, %v1493
        %v1504 = vmax.f32 %v1410, %v1478
        %v1505 = vmax.f32 %v1411, %v1480
        %v1506 = vmax.f32 %v1412, %v1482
        %v1507 = vmax.f32 %v1413, %v1484
        %v1508 = vmax.f32 %v1414, %v1486
        %v1509 = vmax.f32 %v1415, %v1488
        %v1510 = vmax.f32 %v1416, %v1490
        %v1511 = vmax.f32 %v1417, %v1492
        %v1512 = vmax.f32 %v1418, %v1494
        %v1513 = vpack.c.bf16 %v1505, %v1504
        %v1514 = vpack.c.bf16 %v1507, %v1506
        %v1515 = vpack.c.bf16 %v1509, %v1508
        %v1516 = vpack.c.bf16 %v1511, %v1510
        %v1517 = vpack.c.bf16 %v1512, %v1512
        %v1523 = vunpack.c.l.b16 %v1513
        %v1524 = vunpack.c.h.b16 %v1513
        %v1525 = vunpack.c.l.b16 %v1514
        %v1526 = vunpack.c.h.b16 %v1514
        %v1527 = vunpack.c.l.b16 %v1515
        %v1528 = vunpack.c.h.b16 %v1515
        %v1529 = vunpack.c.l.b16 %v1516
        %v1530 = vunpack.c.h.b16 %v1516
        %v1531 = vunpack.c.l.b16 %v1517
        %v1532 = vpack.c.b16 %v1523, %v1523
        %v1533 = vpack.c.b16 %v1524, %v1524
        %v1534 = vpack.c.b16 %v1525, %v1525
        %v1535 = vpack.c.b16 %v1526, %v1526
        %v1536 = vpack.c.b16 %v1527, %v1527
        %v1537 = vpack.c.b16 %v1528, %v1528
        %v1538 = vpack.c.b16 %v1529, %v1529
        %v1539 = vpack.c.b16 %v1530, %v1530
        %v1540 = vpack.c.b16 %v1531, %v1531
        %1550 = vst [vmem:[%s6] sm:$0xf] %v1532
        %1551 = vst [vmem:[%s6 + $0x4] sm:$0xf] %v1533
        %1552 = vst [vmem:[%s6 + $0x8] sm:$0xf] %v1534
        %1553 = vst [vmem:[%s6 + $0xc] sm:$0xf] %v1535
        %1554 = vst [vmem:[%s6 + $0x10] sm:$0xf] %v1536
        %1555 = vst [vmem:[%s6 + $0x14] sm:$0xf] %v1537
        %1556 = vst [vmem:[%s6 + $0x18] sm:$0xf] %v1538
        %1557 = vst [vmem:[%s6 + $0x1c] sm:$0xf] %v1539
        %1558 = vst [vmem:[%s6 + $0x20] sm:$0x7] %v1540
      $region52: #{encoder_forward.5} parent=43 // pred_fallthru
        _
      // Predicated region
      $region53: #{encoder_forward.5} parent=43 // pred_check
        %p1559 = pneg %p161
      $region54: #{encoder_forward.5} parent=43 // pred_check_branch
        %1561 = sbr.rel (%p1559) target = $region56
      $region55: #{encoder_forward.5} parent=43 // pred_region
        _
      $region56: #{encoder_forward.5} parent=43 // pred_fallthru
        _
      // Predicated region
      $region57: #{encoder_forward.5} parent=43 // pred_check
        %p1562 = pneg %p161
      $region58: #{encoder_forward.5} parent=43 // pred_check_branch
        %1564 = sbr.rel (%p1562) target = $region60
      $region59: #{encoder_forward.5} parent=43 // pred_region
        _
      $region60: #{encoder_forward.5} parent=43 // pred_fallthru
        _
    $region44: #{encoder_forward.5} parent=5 // pred_fallthru
      _
    %p1565 = scmp.le.s32.totalorder 2, %s12
    // Predicated region
    $region61: #{encoder_forward.5} parent=5 // pred_check
      %p1566 = pneg %p1565
    $region62: #{encoder_forward.5} parent=5 // pred_check_branch
      %1568 = sbr.rel (%p1566) target = $region64
    $region63: #{encoder_forward.5} parent=5 // pred_region
      %s1569 = ssub.s32 %s12, 2
    $region64: #{encoder_forward.5} parent=5 // pred_fallthru
      _
  $region6: #{encoder_forward.5} parent=0 // loop_footer
    %s16 = sadd.s32 1, %s12
  $region7: #{encoder_forward.5} parent=0 // loop_footer_branch
    %11 = sbr.rel target = $region3
  $region8: #{encoder_forward.5} parent=0 // loop_exit
    _

// kernel: encoder_forward.6
$region0: #{encoder_forward.6}
  #allocation0 [shape = 'u32[]', space=smem, size = 0x4, offset = 0x4, fixed_abs, tag = 'smem constant byte address 0x4 - core index']
  #allocation1 [shape = 'u32[144,128]{1,0:T(1,128)}', space=vmem, size = 0x12000, scoped, tag = 'internal scratch']
  #allocation2 [shape = 'f32[35,128]{1,0:T(8,128)}', space=vmem, size = 0x5000, scoped, tag = 'scratch operand']
  #allocation3 [shape = 'f32[1,128]{1,0:T(1,128)}', space=vmem, size = 0x200, scoped, tag = 'scratch operand']
  #allocation4 [shape = 'f32[1,128]{1,0:T(1,128)}', space=vmem, size = 0x200, scoped, tag = 'scratch operand']
  %s0 = inlined_call_operand.vmem [shape: bf16[35,576], index: 0, kind: input, shape index: {}]
  %s1 = inlined_call_operand.vmem [shape: bf16[576,128], index: 1, kind: input, shape index: {}]
  %s2 = inlined_call_operand.vmem [shape: f32[128,32], index: 2, kind: input, shape index: {}]
  %s3 = inlined_call_operand.vmem [shape: f32[32,128], index: 3, kind: input, shape index: {}]
  %s4 = inlined_call_operand.vmem [shape: f32[1,32], index: 4, kind: input, shape index: {}]
  %s5 = inlined_call_operand.vmem [shape: f32[1,32], index: 5, kind: input, shape index: {}]
  %s6 = inlined_call_operand.vmem [shape: bf16[35,128], index: 6, kind: output, shape index: {}]
  %s7 = sld [smem:[#allocation0]]
  $region42: #{encoder_forward.6} parent=0
    _
  %s9 = ssub.s32 1, %s7
  %s10 = scalar_select 0, %s9, %s7
  // Predicated region
  $region2: #{encoder_forward.6} parent=0 // pred_check
    _
  $region3: #{encoder_forward.6} parent=0 // pred_check_branch
    %12 = sbr.rel (0) target = $region5
  $region4: #{encoder_forward.6} parent=0 // pred_region
    _
  $region5: #{encoder_forward.6} parent=0 // pred_fallthru
    _
  // Predicated region
  $region6: #{encoder_forward.6} parent=0 // pred_check
    _
  $region7: #{encoder_forward.6} parent=0 // pred_check_branch
    %14 = sbr.rel (0) target = $region9
  $region8: #{encoder_forward.6} parent=0 // pred_region
    _
  $region9: #{encoder_forward.6} parent=0 // pred_fallthru
    _
  // Predicated region
  $region10: #{encoder_forward.6} parent=0 // pred_check
    _
  $region11: #{encoder_forward.6} parent=0 // pred_check_branch
    %16 = sbr.rel (0) target = $region13
  $region12: #{encoder_forward.6} parent=0 // pred_region
    _
  $region13: #{encoder_forward.6} parent=0 // pred_fallthru
    _
  // Predicated region
  $region14: #{encoder_forward.6} parent=0 // pred_check
    _
  $region15: #{encoder_forward.6} parent=0 // pred_check_branch
    %18 = sbr.rel (0) target = $region17
  $region16: #{encoder_forward.6} parent=0 // pred_region
    _
  $region17: #{encoder_forward.6} parent=0 // pred_fallthru
    _
  // Predicated region
  $region18: #{encoder_forward.6} parent=0 // pred_check
    _
  $region19: #{encoder_forward.6} parent=0 // pred_check_branch
    %20 = sbr.rel (0) target = $region21
  $region20: #{encoder_forward.6} parent=0 // pred_region
    _
  $region21: #{encoder_forward.6} parent=0 // pred_fallthru
    _
  // Predicated region
  $region22: #{encoder_forward.6} parent=0 // pred_check
    _
  $region23: #{encoder_forward.6} parent=0 // pred_check_branch
    %22 = sbr.rel (0) target = $region25
  $region24: #{encoder_forward.6} parent=0 // pred_region
    _
  $region25: #{encoder_forward.6} parent=0 // pred_fallthru
    _
  %p24 = scmp.eq.s32.totalorder 0, 0
  // Predicated region
  $region26: #{encoder_forward.6} parent=0 // pred_check
    %p25 = pneg %p24
  $region27: #{encoder_forward.6} parent=0 // pred_check_branch
    %27 = sbr.rel (%p25) target = $region29
  $region28: #{encoder_forward.6} parent=0 // pred_region
    %28 = vst [vmem:[#allocation3] sm:$0x1] 0.0
    %29 = vst [vmem:[#allocation4] sm:$0x1] 0.0
  $region29: #{encoder_forward.6} parent=0 // pred_fallthru
    _
  %v30 = vld [vmem:[%s0] sm:$0xff]
  %v31 = vld [vmem:[%s0 + $0x8] sm:$0xff]
  %v32 = vld [vmem:[%s0 + $0x10] sm:$0xf]
  %v33 = vld [vmem:[%s0 + $0x14] sm:$0xff]
  %v34 = vld [vmem:[%s0 + $0x1c] sm:$0xff]
  %v35 = vld [vmem:[%s0 + $0x24] sm:$0xf]
  %v36 = vld [vmem:[%s0 + $0x28] sm:$0xff]
  %v37 = vld [vmem:[%s0 + $0x30] sm:$0xff]
  %v38 = vld [vmem:[%s0 + $0x38] sm:$0xf]
  %v39 = vld [vmem:[%s0 + $0x3c] sm:$0xff]
  %v40 = vld [vmem:[%s0 + $0x44] sm:$0xff]
  %v41 = vld [vmem:[%s0 + $0x4c] sm:$0xf]
  %v42 = vld [vmem:[%s0 + $0x50] sm:$0x33]
  %v43 = vld [vmem:[%s0 + $0x58] sm:$0x33]
  %v44 = vld [vmem:[%s0 + $0x60] sm:$0x3]
  %v45 = vld [vmem:[%s1] sm:$0xf]
  %v46 = vld [vmem:[%s1 + $0x4] sm:$0xf]
  %v47 = vld [vmem:[%s1 + $0x8] sm:$0xf]
  %v48 = vld [vmem:[%s1 + $0xc] sm:$0xf]
  %v49 = vld [vmem:[%s1 + $0x10] sm:$0xf]
  %v50 = vld [vmem:[%s1 + $0x14] sm:$0xf]
  %v51 = vld [vmem:[%s1 + $0x18] sm:$0xf]
  %v52 = vld [vmem:[%s1 + $0x1c] sm:$0xf]
  %v53 = vld [vmem:[%s1 + $0x20] sm:$0xf]
  %v54 = vld [vmem:[%s1 + $0x24] sm:$0xf]
  %v55 = vld [vmem:[%s1 + $0x28] sm:$0xf]
  %v56 = vld [vmem:[%s1 + $0x2c] sm:$0xf]
  %v57 = vld [vmem:[%s1 + $0x30] sm:$0xf]
  %v58 = vld [vmem:[%s1 + $0x34] sm:$0xf]
  %v59 = vld [vmem:[%s1 + $0x38] sm:$0xf]
  %v60 = vld [vmem:[%s1 + $0x3c] sm:$0xf]
  %v61 = vld [vmem:[%s1 + $0x40] sm:$0xf]
  %v62 = vld [vmem:[%s1 + $0x44] sm:$0xf]
  %v63 = vld [vmem:[%s1 + $0x48] sm:$0xf]
  %v64 = vld [vmem:[%s1 + $0x4c] sm:$0xf]
  %v65 = vld [vmem:[%s1 + $0x50] sm:$0xf]
  %v66 = vld [vmem:[%s1 + $0x54] sm:$0xf]
  %v67 = vld [vmem:[%s1 + $0x58] sm:$0xf]
  %v68 = vld [vmem:[%s1 + $0x5c] sm:$0xf]
  %v69 = vld [vmem:[%s1 + $0x60] sm:$0xf]
  %v70 = vld [vmem:[%s1 + $0x64] sm:$0xf]
  %v71 = vld [vmem:[%s1 + $0x68] sm:$0xf]
  %v72 = vld [vmem:[%s1 + $0x6c] sm:$0xf]
  %v73 = vld [vmem:[%s1 + $0x70] sm:$0xf]
  %v74 = vld [vmem:[%s1 + $0x74] sm:$0xf]
  %v75 = vld [vmem:[%s1 + $0x78] sm:$0xf]
  %v76 = vld [vmem:[%s1 + $0x7c] sm:$0xf]
  %v77 = vld [vmem:[%s1 + $0x80] sm:$0xf]
  %v78 = vld [vmem:[%s1 + $0x84] sm:$0xf]
  %v79 = vld [vmem:[%s1 + $0x88] sm:$0xf]
  %v80 = vld [vmem:[%s1 + $0x8c] sm:$0xf]
  %v81 = vld [vmem:[%s1 + $0x90] sm:$0xf]
  %v82 = vld [vmem:[%s1 + $0x94] sm:$0xf]
  %v83 = vld [vmem:[%s1 + $0x98] sm:$0xf]
  %v84 = vld [vmem:[%s1 + $0x9c] sm:$0xf]
  %v85 = vld [vmem:[%s1 + $0xa0] sm:$0xf]
  %v86 = vld [vmem:[%s1 + $0xa4] sm:$0xf]
  %v87 = vld [vmem:[%s1 + $0xa8] sm:$0xf]
  %v88 = vld [vmem:[%s1 + $0xac] sm:$0xf]
  %v89 = vld [vmem:[%s1 + $0xb0] sm:$0xf]
  %v90 = vld [vmem:[%s1 + $0xb4] sm:$0xf]
  %v91 = vld [vmem:[%s1 + $0xb8] sm:$0xf]
  %v92 = vld [vmem:[%s1 + $0xbc] sm:$0xf]
  %v93 = vld [vmem:[%s1 + $0xc0] sm:$0xf]
  %v94 = vld [vmem:[%s1 + $0xc4] sm:$0xf]
  %v95 = vld [vmem:[%s1 + $0xc8] sm:$0xf]
  %v96 = vld [vmem:[%s1 + $0xcc] sm:$0xf]
  %v97 = vld [vmem:[%s1 + $0xd0] sm:$0xf]
  %v98 = vld [vmem:[%s1 + $0xd4] sm:$0xf]
  %v99 = vld [vmem:[%s1 + $0xd8] sm:$0xf]
  %v100 = vld [vmem:[%s1 + $0xdc] sm:$0xf]
  %v101 = vld [vmem:[%s1 + $0xe0] sm:$0xf]
  %v102 = vld [vmem:[%s1 + $0xe4] sm:$0xf]
  %v103 = vld [vmem:[%s1 + $0xe8] sm:$0xf]
  %v104 = vld [vmem:[%s1 + $0xec] sm:$0xf]
  %v105 = vld [vmem:[%s1 + $0xf0] sm:$0xf]
  %v106 = vld [vmem:[%s1 + $0xf4] sm:$0xf]
  %v107 = vld [vmem:[%s1 + $0xf8] sm:$0xf]
  %v108 = vld [vmem:[%s1 + $0xfc] sm:$0xf]
  %v109 = vld [vmem:[%s1 + $0x100] sm:$0xf]
  %v110 = vld [vmem:[%s1 + $0x104] sm:$0xf]
  %v111 = vld [vmem:[%s1 + $0x108] sm:$0xf]
  %v112 = vld [vmem:[%s1 + $0x10c] sm:$0xf]
  %v113 = vld [vmem:[%s1 + $0x110] sm:$0xf]
  %v114 = vld [vmem:[%s1 + $0x114] sm:$0xf]
  %v115 = vld [vmem:[%s1 + $0x118] sm:$0xf]
  %v116 = vld [vmem:[%s1 + $0x11c] sm:$0xf]
  %v132 = vunpack.c.l.b16 %v30
  %v133 = vunpack.c.h.b16 %v30
  %v134 = vunpack.c.l.b16 %v31
  %v135 = vunpack.c.h.b16 %v31
  %v136 = vunpack.c.l.b16 %v32
  %v137 = vunpack.c.l.b16 %v33
  %v138 = vunpack.c.h.b16 %v33
  %v139 = vunpack.c.l.b16 %v34
  %v140 = vunpack.c.h.b16 %v34
  %v141 = vunpack.c.l.b16 %v35
  %v142 = vunpack.c.l.b16 %v36
  %v143 = vunpack.c.h.b16 %v36
  %v144 = vunpack.c.l.b16 %v37
  %v145 = vunpack.c.h.b16 %v37
  %v146 = vunpack.c.l.b16 %v38
  %v147 = vunpack.c.l.b16 %v39
  %v148 = vunpack.c.h.b16 %v39
  %v149 = vunpack.c.l.b16 %v40
  %v150 = vunpack.c.h.b16 %v40
  %v151 = vunpack.c.l.b16 %v41
  %v152 = vunpack.c.l.b16 %v42
  %v153 = vunpack.c.h.b16 %v42
  %v154 = vunpack.c.l.b16 %v43
  %v155 = vunpack.c.h.b16 %v43
  %v156 = vunpack.c.l.b16 %v44
  %v157 = vpack.c.b16 %v137, %v132
  %v158 = vpack.c.b16 %v138, %v133
  %v159 = vpack.c.b16 %v139, %v134
  %v160 = vpack.c.b16 %v140, %v135
  %v161 = vpack.c.b16 %v141, %v136
  %v162 = vpack.c.b16 %v147, %v142
  %v163 = vpack.c.b16 %v148, %v143
  %v164 = vpack.c.b16 %v149, %v144
  %v165 = vpack.c.b16 %v150, %v145
  %v166 = vpack.c.b16 %v151, %v146
  %v167 = vpack.c.b16 %v152, %v152
  %v168 = vpack.c.b16 %v153, %v153
  %v169 = vpack.c.b16 %v154, %v154
  %v170 = vpack.c.b16 %v155, %v155
  %v171 = vpack.c.b16 %v156, %v156
  %v256 = vunpack.c.l.b16 %v45
  %v257 = vunpack.c.l.b16 %v46
  %v258 = vunpack.c.l.b16 %v47
  %v259 = vunpack.c.l.b16 %v48
  %v260 = vunpack.c.l.b16 %v49
  %v261 = vunpack.c.l.b16 %v50
  %v262 = vunpack.c.l.b16 %v51
  %v263 = vunpack.c.l.b16 %v52
  %v264 = vunpack.c.l.b16 %v53
  %v265 = vunpack.c.l.b16 %v54
  %v266 = vunpack.c.l.b16 %v55
  %v267 = vunpack.c.l.b16 %v56
  %v268 = vunpack.c.l.b16 %v57
  %v269 = vunpack.c.l.b16 %v58
  %v270 = vunpack.c.l.b16 %v59
  %v271 = vunpack.c.l.b16 %v60
  %v272 = vunpack.c.l.b16 %v61
  %v273 = vunpack.c.l.b16 %v62
  %v274 = vunpack.c.l.b16 %v63
  %v275 = vunpack.c.l.b16 %v64
  %v276 = vunpack.c.l.b16 %v65
  %v277 = vunpack.c.l.b16 %v66
  %v278 = vunpack.c.l.b16 %v67
  %v279 = vunpack.c.l.b16 %v68
  %v280 = vunpack.c.l.b16 %v69
  %v281 = vunpack.c.l.b16 %v70
  %v282 = vunpack.c.l.b16 %v71
  %v283 = vunpack.c.l.b16 %v72
  %v284 = vunpack.c.l.b16 %v73
  %v285 = vunpack.c.l.b16 %v74
  %v286 = vunpack.c.l.b16 %v75
  %v287 = vunpack.c.l.b16 %v76
  %v288 = vunpack.c.l.b16 %v77
  %v289 = vunpack.c.l.b16 %v78
  %v290 = vunpack.c.l.b16 %v79
  %v291 = vunpack.c.l.b16 %v80
  %v292 = vunpack.c.l.b16 %v81
  %v293 = vunpack.c.l.b16 %v82
  %v294 = vunpack.c.l.b16 %v83
  %v295 = vunpack.c.l.b16 %v84
  %v296 = vunpack.c.l.b16 %v85
  %v297 = vunpack.c.l.b16 %v86
  %v298 = vunpack.c.l.b16 %v87
  %v299 = vunpack.c.l.b16 %v88
  %v300 = vunpack.c.l.b16 %v89
  %v301 = vunpack.c.l.b16 %v90
  %v302 = vunpack.c.l.b16 %v91
  %v303 = vunpack.c.l.b16 %v92
  %v304 = vunpack.c.l.b16 %v93
  %v305 = vunpack.c.l.b16 %v94
  %v306 = vunpack.c.l.b16 %v95
  %v307 = vunpack.c.l.b16 %v96
  %v308 = vunpack.c.l.b16 %v97
  %v309 = vunpack.c.l.b16 %v98
  %v310 = vunpack.c.l.b16 %v99
  %v311 = vunpack.c.l.b16 %v100
  %v312 = vunpack.c.l.b16 %v101
  %v313 = vunpack.c.l.b16 %v102
  %v314 = vunpack.c.l.b16 %v103
  %v315 = vunpack.c.l.b16 %v104
  %v316 = vunpack.c.l.b16 %v105
  %v317 = vunpack.c.l.b16 %v106
  %v318 = vunpack.c.l.b16 %v107
  %v319 = vunpack.c.l.b16 %v108
  %v320 = vunpack.c.l.b16 %v109
  %v321 = vunpack.c.l.b16 %v110
  %v322 = vunpack.c.l.b16 %v111
  %v323 = vunpack.c.l.b16 %v112
  %v324 = vunpack.c.l.b16 %v113
  %v325 = vunpack.c.l.b16 %v114
  %v326 = vunpack.c.l.b16 %v115
  %v327 = vunpack.c.l.b16 %v116
  %v328 = vpack.c.b16 %v257, %v256
  %v329 = vpack.c.b16 %v259, %v258
  %v330 = vpack.c.b16 %v261, %v260
  %v331 = vpack.c.b16 %v263, %v262
  %v332 = vpack.c.b16 %v265, %v264
  %v333 = vpack.c.b16 %v267, %v266
  %v334 = vpack.c.b16 %v269, %v268
  %v335 = vpack.c.b16 %v271, %v270
  %v336 = vpack.c.b16 %v273, %v272
  %v337 = vpack.c.b16 %v275, %v274
  %v338 = vpack.c.b16 %v277, %v276
  %v339 = vpack.c.b16 %v279, %v278
  %v340 = vpack.c.b16 %v281, %v280
  %v341 = vpack.c.b16 %v283, %v282
  %v342 = vpack.c.b16 %v285, %v284
  %v343 = vpack.c.b16 %v287, %v286
  %v344 = vpack.c.b16 %v289, %v288
  %v345 = vpack.c.b16 %v291, %v290
  %v346 = vpack.c.b16 %v293, %v292
  %v347 = vpack.c.b16 %v295, %v294
  %v348 = vpack.c.b16 %v297, %v296
  %v349 = vpack.c.b16 %v299, %v298
  %v350 = vpack.c.b16 %v301, %v300
  %v351 = vpack.c.b16 %v303, %v302
  %v352 = vpack.c.b16 %v305, %v304
  %v353 = vpack.c.b16 %v307, %v306
  %v354 = vpack.c.b16 %v309, %v308
  %v355 = vpack.c.b16 %v311, %v310
  %v356 = vpack.c.b16 %v313, %v312
  %v357 = vpack.c.b16 %v315, %v314
  %v358 = vpack.c.b16 %v317, %v316
  %v359 = vpack.c.b16 %v319, %v318
  %v360 = vpack.c.b16 %v321, %v320
  %v361 = vpack.c.b16 %v323, %v322
  %v362 = vpack.c.b16 %v325, %v324
  %v363 = vpack.c.b16 %v327, %v326
  %vm400 = vcmask 523264
  %v402 = vsel %vm400, %v161, 0
  %v405 = vsel %vm400, %v166, 0
  %v408 = vsel %vm400, %v171, 0
  %410 = vmatprep.subr.bf16.mxu0 0
  %411 = vmatpush1.bf16.msra.mxu0 %v335
  %412 = vmatprep.subr.bf16.mxu0 0
  %413 = vmatpush1.bf16.msra.mxu0 %v334
  %414 = vmatprep.subr.bf16.mxu0 0
  %415 = vmatpush1.bf16.msra.mxu0 %v333
  %416 = vmatprep.subr.bf16.mxu0 0
  %417 = vmatpush1.bf16.msra.mxu0 %v332
  %418 = vmatprep.subr.bf16.mxu0 0
  %419 = vmatpush1.bf16.msra.mxu0 %v331
  %420 = vmatprep.subr.bf16.mxu0 0
  %421 = vmatpush1.bf16.msra.mxu0 %v330
  %422 = vmatprep.subr.bf16.mxu0 0
  %423 = vmatpush1.bf16.msra.mxu0 %v329
  %424 = vmatprep.subr.bf16.mxu0 0
  %425 = vmatpush1.bf16.msra.mxu0 %v328
  %426 = vmatprep.subr.bf16.mxu0 0
  %427 = vmatpush2.bf16.msra.mxu0 %v343
  %428 = vmatprep.subr.bf16.mxu0 0
  %429 = vmatpush2.bf16.msra.mxu0 %v342
  %430 = vmatprep.subr.bf16.mxu0 0
  %431 = vmatpush2.bf16.msra.mxu0 %v341
  %432 = vmatprep.subr.bf16.mxu0 0
  %433 = vmatpush2.bf16.msra.mxu0 %v340
  %434 = vmatprep.subr.bf16.mxu0 0
  %435 = vmatpush2.bf16.msra.mxu0 %v339
  %436 = vmatprep.subr.bf16.mxu0 0
  %437 = vmatpush2.bf16.msra.mxu0 %v338
  %438 = vmatprep.subr.bf16.mxu0 0
  %439 = vmatpush2.bf16.msra.mxu0 %v337
  %440 = vmatprep.subr.bf16.mxu0 0
  %441 = vmatpush2.bf16.msra.mxu0 %v336
  %442 = vmatprep.mubr.bf16.mxu0 %v158
  %443 = vmatmul.mubr.bf16.gmra.mxu0 %v157
  %v444 = vpop.f32.mrf.mxu0
  %v445 = vadd.f32 0.0, %v444
  %v446 = vpop.f32.mrf.mxu0
  %v447 = vpop.f32.mrf.mxu0
  %v448 = vadd.f32 0.0, %v447
  %v449 = vpop.f32.mrf.mxu0
  %450 = vmatprep.mubr.bf16.mxu0 %v163
  %451 = vmatmul.mubr.bf16.gmra.mxu0 %v162
  %v452 = vpop.f32.mrf.mxu0
  %v453 = vadd.f32 0.0, %v452
  %v454 = vpop.f32.mrf.mxu0
  %v455 = vpop.f32.mrf.mxu0
  %v456 = vadd.f32 0.0, %v455
  %v457 = vpop.f32.mrf.mxu0
  %458 = vmatprep.mubr.bf16.mxu0 %v168
  %459 = vmatmul.mubr.bf16.gmra.mxu0 %v167
  %v460 = vpop.f32.mrf.mxu0
  %v461 = vadd.f32 0.0, %v460
  %v462 = vpop.f32.mrf.mxu0
  %v463 = vpop.f32.mrf.mxu0
  %v464 = vpop.f32.mrf.mxu0
  %465 = vdwg.mxu0
  %466 = vmatprep.subr.bf16.mxu0 0
  %467 = vmatpush1.bf16.msra.mxu0 %v351
  %468 = vmatprep.subr.bf16.mxu0 0
  %469 = vmatpush1.bf16.msra.mxu0 %v350
  %470 = vmatprep.subr.bf16.mxu0 0
  %471 = vmatpush1.bf16.msra.mxu0 %v349
  %472 = vmatprep.subr.bf16.mxu0 0
  %473 = vmatpush1.bf16.msra.mxu0 %v348
  %474 = vmatprep.subr.bf16.mxu0 0
  %475 = vmatpush1.bf16.msra.mxu0 %v347
  %476 = vmatprep.subr.bf16.mxu0 0
  %477 = vmatpush1.bf16.msra.mxu0 %v346
  %478 = vmatprep.subr.bf16.mxu0 0
  %479 = vmatpush1.bf16.msra.mxu0 %v345
  %480 = vmatprep.subr.bf16.mxu0 0
  %481 = vmatpush1.bf16.msra.mxu0 %v344
  %482 = vmatprep.subr.bf16.mxu0 0
  %483 = vmatpush2.bf16.msra.mxu0 %v359
  %484 = vmatprep.subr.bf16.mxu0 0
  %485 = vmatpush2.bf16.msra.mxu0 %v358
  %486 = vmatprep.subr.bf16.mxu0 0
  %487 = vmatpush2.bf16.msra.mxu0 %v357
  %488 = vmatprep.subr.bf16.mxu0 0
  %489 = vmatpush2.bf16.msra.mxu0 %v356
  %490 = vmatprep.subr.bf16.mxu0 0
  %491 = vmatpush2.bf16.msra.mxu0 %v355
  %492 = vmatprep.subr.bf16.mxu0 0
  %493 = vmatpush2.bf16.msra.mxu0 %v354
  %494 = vmatprep.subr.bf16.mxu0 0
  %495 = vmatpush2.bf16.msra.mxu0 %v353
  %496 = vmatprep.subr.bf16.mxu0 0
  %497 = vmatpush2.bf16.msra.mxu0 %v352
  %498 = vmatprep.mubr.bf16.mxu0 %v160
  %499 = vmatmul.mubr.bf16.gmra.mxu0 %v159
  %v500 = vpop.f32.mrf.mxu0
  %v501 = vadd.f32 %v445, %v500
  %v502 = vpop.f32.mrf.mxu0
  %v503 = vpop.f32.mrf.mxu0
  %v504 = vadd.f32 %v448, %v503
  %v505 = vpop.f32.mrf.mxu0
  %506 = vmatprep.mubr.bf16.mxu0 %v165
  %507 = vmatmul.mubr.bf16.gmra.mxu0 %v164
  %v508 = vpop.f32.mrf.mxu0
  %v509 = vadd.f32 %v453, %v508
  %v510 = vpop.f32.mrf.mxu0
  %v511 = vpop.f32.mrf.mxu0
  %v512 = vadd.f32 %v456, %v511
  %v513 = vpop.f32.mrf.mxu0
  %514 = vmatprep.mubr.bf16.mxu0 %v170
  %515 = vmatmul.mubr.bf16.gmra.mxu0 %v169
  %v516 = vpop.f32.mrf.mxu0
  %v517 = vadd.f32 %v461, %v516
  %v518 = vpop.f32.mrf.mxu0
  %v519 = vpop.f32.mrf.mxu0
  %v520 = vpop.f32.mrf.mxu0
  %521 = vdwg.mxu0
  %522 = vmatprep.subr.bf16.mxu0 0
  %523 = vmatpush1.bf16.msra.mxu0 0
  %524 = vmatprep.subr.bf16.mxu0 0
  %525 = vmatpush1.bf16.msra.mxu0 0
  %526 = vmatprep.subr.bf16.mxu0 0
  %527 = vmatpush1.bf16.msra.mxu0 0
  %528 = vmatprep.subr.bf16.mxu0 0
  %529 = vmatpush1.bf16.msra.mxu0 0
  %530 = vmatprep.subr.bf16.mxu0 0
  %531 = vmatpush1.bf16.msra.mxu0 %v363
  %532 = vmatprep.subr.bf16.mxu0 0
  %533 = vmatpush1.bf16.msra.mxu0 %v362
  %534 = vmatprep.subr.bf16.mxu0 0
  %535 = vmatpush1.bf16.msra.mxu0 %v361
  %536 = vmatprep.subr.bf16.mxu0 0
  %537 = vmatpush1.bf16.msra.mxu0 %v360
  %538 = vmatprep.subr.bf16.mxu0 0
  %539 = vmatpush2.bf16.msra.mxu0 0
  %540 = vmatprep.subr.bf16.mxu0 0
  %541 = vmatpush2.bf16.msra.mxu0 0
  %542 = vmatprep.subr.bf16.mxu0 0
  %543 = vmatpush2.bf16.msra.mxu0 0
  %544 = vmatprep.subr.bf16.mxu0 0
  %545 = vmatpush2.bf16.msra.mxu0 0
  %546 = vmatprep.subr.bf16.mxu0 0
  %547 = vmatpush2.bf16.msra.mxu0 0
  %548 = vmatprep.subr.bf16.mxu0 0
  %549 = vmatpush2.bf16.msra.mxu0 0
  %550 = vmatprep.subr.bf16.mxu0 0
  %551 = vmatpush2.bf16.msra.mxu0 0
  %552 = vmatprep.subr.bf16.mxu0 0
  %553 = vmatpush2.bf16.msra.mxu0 0
  %554 = vmatprep.mubr.bf16.mxu0 0
  %555 = vmatmul.mubr.bf16.gmra.mxu0 %v402
  %v556 = vpop.f32.mrf.mxu0
  %v557 = vadd.f32 %v501, %v556
  %v558 = vpop.f32.mrf.mxu0
  %v559 = vpop.f32.mrf.mxu0
  %v560 = vadd.f32 %v504, %v559
  %v561 = vpop.f32.mrf.mxu0
  %562 = vmatprep.mubr.bf16.mxu0 0
  %563 = vmatmul.mubr.bf16.gmra.mxu0 %v405
  %v564 = vpop.f32.mrf.mxu0
  %v565 = vadd.f32 %v509, %v564
  %v566 = vpop.f32.mrf.mxu0
  %v567 = vpop.f32.mrf.mxu0
  %v568 = vadd.f32 %v512, %v567
  %v569 = vpop.f32.mrf.mxu0
  %570 = vmatprep.mubr.bf16.mxu0 0
  %571 = vmatmul.mubr.bf16.gmra.mxu0 %v408
  %v572 = vpop.f32.mrf.mxu0
  %v573 = vadd.f32 %v517, %v572
  %v574 = vpop.f32.mrf.mxu0
  %v575 = vpop.f32.mrf.mxu0
  %v576 = vpop.f32.mrf.mxu0
  %577 = vdwg.mxu0
  %578 = vst [vmem:[#allocation2] sm:$0xff] %v557
  %579 = vst [vmem:[#allocation2 + $0x8] sm:$0xff] %v560
  %580 = vst [vmem:[#allocation2 + $0x10] sm:$0xff] %v565
  %581 = vst [vmem:[#allocation2 + $0x18] sm:$0xff] %v568
  %582 = vst [vmem:[#allocation2 + $0x20] sm:$0x7] %v573
  %v583 = vld [vmem:[#allocation3] sm:$0x1]
  %v584 = vadd.f32 %v557, %v560
  %v585 = vadd.f32 %v584, %v565
  %v586 = vadd.f32 %v585, %v568
  %vm587 = vcmask 1042432
  %v588 = vsel %vm587, %v573, 0.0
  %v589 = vadd.f32 %v586, %v588
  %v590 = vrot.slane %v589, 4
  %v591 = vadd.f32 %v589, %v590
  %v592 = vrot.slane %v591, 2
  %v593 = vadd.f32 %v591, %v592
  %v594 = vrot.slane %v593, 1
  %v595 = vadd.f32 %v593, %v594
  %v596 = vadd.f32 %v583, %v595
  %597 = vst [vmem:[#allocation3] sm:$0x1] %v596
  %v598 = vld [vmem:[#allocation4] sm:$0x1]
  %v599 = vmul.f32 %v557, %v557
  %v600 = vmul.f32 %v560, %v560
  %v601 = vmul.f32 %v565, %v565
  %v602 = vmul.f32 %v568, %v568
  %v603 = vmul.f32 %v573, %v573
  %v604 = vadd.f32 %v599, %v600
  %v605 = vadd.f32 %v604, %v601
  %v606 = vadd.f32 %v605, %v602
  %v607 = vsel %vm587, %v603, 0.0
  %v608 = vadd.f32 %v606, %v607
  %v609 = vrot.slane %v608, 4
  %v610 = vadd.f32 %v608, %v609
  %v611 = vrot.slane %v610, 2
  %v612 = vadd.f32 %v610, %v611
  %v613 = vrot.slane %v612, 1
  %v614 = vadd.f32 %v612, %v613
  %v615 = vadd.f32 %v598, %v614
  %616 = vst [vmem:[#allocation4] sm:$0x1] %v615
  // Predicated region
  $region30: #{encoder_forward.6} parent=0 // pred_check
    %p617 = pneg %p24
  $region31: #{encoder_forward.6} parent=0 // pred_check_branch
    %619 = sbr.rel (%p617) target = $region33
  $region32: #{encoder_forward.6} parent=0 // pred_region
    %v620 = vld [vmem:[#allocation3] sm:$0x1]
    %v621 = vld [vmem:[%s2] sm:$0xff]
    %v622 = vld [vmem:[%s2 + $0x8] sm:$0xff]
    %v623 = vld [vmem:[%s2 + $0x10] sm:$0xff]
    %v624 = vld [vmem:[%s2 + $0x18] sm:$0xff]
    %v625 = vld [vmem:[%s2 + $0x20] sm:$0xff]
    %v626 = vld [vmem:[%s2 + $0x28] sm:$0xff]
    %v627 = vld [vmem:[%s2 + $0x30] sm:$0xff]
    %v628 = vld [vmem:[%s2 + $0x38] sm:$0xff]
    %v629 = vld [vmem:[%s2 + $0x40] sm:$0xff]
    %v630 = vld [vmem:[%s2 + $0x48] sm:$0xff]
    %v631 = vld [vmem:[%s2 + $0x50] sm:$0xff]
    %v632 = vld [vmem:[%s2 + $0x58] sm:$0xff]
    %v633 = vld [vmem:[%s2 + $0x60] sm:$0xff]
    %v634 = vld [vmem:[%s2 + $0x68] sm:$0xff]
    %v635 = vld [vmem:[%s2 + $0x70] sm:$0xff]
    %v636 = vld [vmem:[%s2 + $0x78] sm:$0xff]
    %637 = vmatprep.subr.mxu0 0.0
    %638 = vmatpush1.msra.mxu0 %v636
    %639 = vmatprep.subr.mxu0 0.0
    %640 = vmatpush1.msra.mxu0 %v635
    %641 = vmatprep.subr.mxu0 0.0
    %642 = vmatpush1.msra.mxu0 %v634
    %643 = vmatprep.subr.mxu0 0.0
    %644 = vmatpush1.msra.mxu0 %v633
    %645 = vmatprep.subr.mxu0 0.0
    %646 = vmatpush1.msra.mxu0 %v632
    %647 = vmatprep.subr.mxu0 0.0
    %648 = vmatpush1.msra.mxu0 %v631
    %649 = vmatprep.subr.mxu0 0.0
    %650 = vmatpush1.msra.mxu0 %v630
    %651 = vmatprep.subr.mxu0 0.0
    %652 = vmatpush1.msra.mxu0 %v629
    %653 = vmatprep.subr.mxu0 0.0
    %654 = vmatpush1.msra.mxu0 %v628
    %655 = vmatprep.subr.mxu0 0.0
    %656 = vmatpush1.msra.mxu0 %v627
    %657 = vmatprep.subr.mxu0 0.0
    %658 = vmatpush1.msra.mxu0 %v626
    %659 = vmatprep.subr.mxu0 0.0
    %660 = vmatpush1.msra.mxu0 %v625
    %661 = vmatprep.subr.mxu0 0.0
    %662 = vmatpush1.msra.mxu0 %v624
    %663 = vmatprep.subr.mxu0 0.0
    %664 = vmatpush1.msra.mxu0 %v623
    %665 = vmatprep.subr.mxu0 0.0
    %666 = vmatpush1.msra.mxu0 %v622
    %667 = vmatprep.subr.mxu0 0.0
    %668 = vmatpush1.msra.mxu0 %v621
    %669 = vmatprep.subr.mxu0 0.0
    %670 = vmatpush2.msra.mxu0 0.0
    %671 = vmatprep.subr.mxu0 0.0
    %672 = vmatpush2.msra.mxu0 0.0
    %673 = vmatprep.subr.mxu0 0.0
    %674 = vmatpush2.msra.mxu0 0.0
    %675 = vmatprep.subr.mxu0 0.0
    %676 = vmatpush2.msra.mxu0 0.0
    %677 = vmatprep.subr.mxu0 0.0
    %678 = vmatpush2.msra.mxu0 0.0
    %679 = vmatprep.subr.mxu0 0.0
    %680 = vmatpush2.msra.mxu0 0.0
    %681 = vmatprep.subr.mxu0 0.0
    %682 = vmatpush2.msra.mxu0 0.0
    %683 = vmatprep.subr.mxu0 0.0
    %684 = vmatpush2.msra.mxu0 0.0
    %685 = vmatprep.subr.mxu0 0.0
    %686 = vmatpush2.msra.mxu0 0.0
    %687 = vmatprep.subr.mxu0 0.0
    %688 = vmatpush2.msra.mxu0 0.0
    %689 = vmatprep.subr.mxu0 0.0
    %690 = vmatpush2.msra.mxu0 0.0
    %691 = vmatprep.subr.mxu0 0.0
    %692 = vmatpush2.msra.mxu0 0.0
    %693 = vmatprep.subr.mxu0 0.0
    %694 = vmatpush2.msra.mxu0 0.0
    %695 = vmatprep.subr.mxu0 0.0
    %696 = vmatpush2.msra.mxu0 0.0
    %697 = vmatprep.subr.mxu0 0.0
    %698 = vmatpush2.msra.mxu0 0.0
    %699 = vmatprep.subr.mxu0 0.0
    %700 = vmatpush2.msra.mxu0 0.0
    %701 = vmatprep.mubr.f32.mxu0 0.0
    %702 = vmatmul.mubr.f32.gmra.mxu0 %v620
    %v703 = vpop.f32.mrf.mxu0
    %v704 = vadd.f32 0.0, %v703
    %v705 = vpop.f32.mrf.mxu0
    %706 = vdwg.mxu0
    %v707 = vld [vmem:[#allocation4] sm:$0x1]
    %708 = vmatprep.subr.mxu0 0.0
    %709 = vmatpush1.msra.mxu0 %v636
    %710 = vmatprep.subr.mxu0 0.0
    %711 = vmatpush1.msra.mxu0 %v635
    %712 = vmatprep.subr.mxu0 0.0
    %713 = vmatpush1.msra.mxu0 %v634
    %714 = vmatprep.subr.mxu0 0.0
    %715 = vmatpush1.msra.mxu0 %v633
    %716 = vmatprep.subr.mxu0 0.0
    %717 = vmatpush1.msra.mxu0 %v632
    %718 = vmatprep.subr.mxu0 0.0
    %719 = vmatpush1.msra.mxu0 %v631
    %720 = vmatprep.subr.mxu0 0.0
    %721 = vmatpush1.msra.mxu0 %v630
    %722 = vmatprep.subr.mxu0 0.0
    %723 = vmatpush1.msra.mxu0 %v629
    %724 = vmatprep.subr.mxu0 0.0
    %725 = vmatpush1.msra.mxu0 %v628
    %726 = vmatprep.subr.mxu0 0.0
    %727 = vmatpush1.msra.mxu0 %v627
    %728 = vmatprep.subr.mxu0 0.0
    %729 = vmatpush1.msra.mxu0 %v626
    %730 = vmatprep.subr.mxu0 0.0
    %731 = vmatpush1.msra.mxu0 %v625
    %732 = vmatprep.subr.mxu0 0.0
    %733 = vmatpush1.msra.mxu0 %v624
    %734 = vmatprep.subr.mxu0 0.0
    %735 = vmatpush1.msra.mxu0 %v623
    %736 = vmatprep.subr.mxu0 0.0
    %737 = vmatpush1.msra.mxu0 %v622
    %738 = vmatprep.subr.mxu0 0.0
    %739 = vmatpush1.msra.mxu0 %v621
    %740 = vmatprep.subr.mxu0 0.0
    %741 = vmatpush2.msra.mxu0 0.0
    %742 = vmatprep.subr.mxu0 0.0
    %743 = vmatpush2.msra.mxu0 0.0
    %744 = vmatprep.subr.mxu0 0.0
    %745 = vmatpush2.msra.mxu0 0.0
    %746 = vmatprep.subr.mxu0 0.0
    %747 = vmatpush2.msra.mxu0 0.0
    %748 = vmatprep.subr.mxu0 0.0
    %749 = vmatpush2.msra.mxu0 0.0
    %750 = vmatprep.subr.mxu0 0.0
    %751 = vmatpush2.msra.mxu0 0.0
    %752 = vmatprep.subr.mxu0 0.0
    %753 = vmatpush2.msra.mxu0 0.0
    %754 = vmatprep.subr.mxu0 0.0
    %755 = vmatpush2.msra.mxu0 0.0
    %756 = vmatprep.subr.mxu0 0.0
    %757 = vmatpush2.msra.mxu0 0.0
    %758 = vmatprep.subr.mxu0 0.0
    %759 = vmatpush2.msra.mxu0 0.0
    %760 = vmatprep.subr.mxu0 0.0
    %761 = vmatpush2.msra.mxu0 0.0
    %762 = vmatprep.subr.mxu0 0.0
    %763 = vmatpush2.msra.mxu0 0.0
    %764 = vmatprep.subr.mxu0 0.0
    %765 = vmatpush2.msra.mxu0 0.0
    %766 = vmatprep.subr.mxu0 0.0
    %767 = vmatpush2.msra.mxu0 0.0
    %768 = vmatprep.subr.mxu0 0.0
    %769 = vmatpush2.msra.mxu0 0.0
    %770 = vmatprep.subr.mxu0 0.0
    %771 = vmatpush2.msra.mxu0 0.0
    %772 = vmatprep.mubr.f32.mxu0 0.0
    %773 = vmatmul.mubr.f32.gmra.mxu0 %v707
    %v774 = vpop.f32.mrf.mxu0
    %v775 = vadd.f32 0.0, %v774
    %v776 = vpop.f32.mrf.mxu0
    %777 = vdwg.mxu0
    %v778 = vmul.f32 %v704, 0.007142857
    %v779 = vmul.f32 %v775, 0.007142857
    %v780 = vmul.f32 %v778, %v778
    %v781 = vsub.f32 %v779, %v780
    %v782 = vld [vmem:[%s4] sm:$0x1]
    %v783 = vadd.f32 %v781, 1e-05
    %v784 = vrsqrt.pop %v783
    %v785 = vmul.f32 %v782, %v784
    %v786 = vld [vmem:[%s5] sm:$0x1]
    %v787 = vmul.f32 %v778, %v785
    %v788 = vsub.f32 %v786, %v787
    %v789 = vld [vmem:[%s3] sm:$0xff]
    %v790 = vld [vmem:[%s3 + $0x8] sm:$0xff]
    %v791 = vld [vmem:[%s3 + $0x10] sm:$0xff]
    %v792 = vld [vmem:[%s3 + $0x18] sm:$0xff]
    %vm793 = vcmask 261120
    %v795 = vsel %vm793, %v785, 0
    %797 = vmatprep.subr.mxu0 0.0
    %798 = vmatpush1.msra.mxu0 0.0
    %799 = vmatprep.subr.mxu0 0.0
    %800 = vmatpush1.msra.mxu0 0.0
    %801 = vmatprep.subr.mxu0 0.0
    %802 = vmatpush1.msra.mxu0 0.0
    %803 = vmatprep.subr.mxu0 0.0
    %804 = vmatpush1.msra.mxu0 0.0
    %805 = vmatprep.subr.mxu0 0.0
    %806 = vmatpush1.msra.mxu0 0.0
    %807 = vmatprep.subr.mxu0 0.0
    %808 = vmatpush1.msra.mxu0 0.0
    %809 = vmatprep.subr.mxu0 0.0
    %810 = vmatpush1.msra.mxu0 0.0
    %811 = vmatprep.subr.mxu0 0.0
    %812 = vmatpush1.msra.mxu0 0.0
    %813 = vmatprep.subr.mxu0 0.0
    %814 = vmatpush1.msra.mxu0 0.0
    %815 = vmatprep.subr.mxu0 0.0
    %816 = vmatpush1.msra.mxu0 0.0
    %817 = vmatprep.subr.mxu0 0.0
    %818 = vmatpush1.msra.mxu0 0.0
    %819 = vmatprep.subr.mxu0 0.0
    %820 = vmatpush1.msra.mxu0 0.0
    %821 = vmatprep.subr.mxu0 0.0
    %822 = vmatpush1.msra.mxu0 %v792
    %823 = vmatprep.subr.mxu0 0.0
    %824 = vmatpush1.msra.mxu0 %v791
    %825 = vmatprep.subr.mxu0 0.0
    %826 = vmatpush1.msra.mxu0 %v790
    %827 = vmatprep.subr.mxu0 0.0
    %828 = vmatpush1.msra.mxu0 %v789
    %829 = vmatprep.subr.mxu0 0.0
    %830 = vmatpush2.msra.mxu0 0.0
    %831 = vmatprep.subr.mxu0 0.0
    %832 = vmatpush2.msra.mxu0 0.0
    %833 = vmatprep.subr.mxu0 0.0
    %834 = vmatpush2.msra.mxu0 0.0
    %835 = vmatprep.subr.mxu0 0.0
    %836 = vmatpush2.msra.mxu0 0.0
    %837 = vmatprep.subr.mxu0 0.0
    %838 = vmatpush2.msra.mxu0 0.0
    %839 = vmatprep.subr.mxu0 0.0
    %840 = vmatpush2.msra.mxu0 0.0
    %841 = vmatprep.subr.mxu0 0.0
    %842 = vmatpush2.msra.mxu0 0.0
    %843 = vmatprep.subr.mxu0 0.0
    %844 = vmatpush2.msra.mxu0 0.0
    %845 = vmatprep.subr.mxu0 0.0
    %846 = vmatpush2.msra.mxu0 0.0
    %847 = vmatprep.subr.mxu0 0.0
    %848 = vmatpush2.msra.mxu0 0.0
    %849 = vmatprep.subr.mxu0 0.0
    %850 = vmatpush2.msra.mxu0 0.0
    %851 = vmatprep.subr.mxu0 0.0
    %852 = vmatpush2.msra.mxu0 0.0
    %853 = vmatprep.subr.mxu0 0.0
    %854 = vmatpush2.msra.mxu0 0.0
    %855 = vmatprep.subr.mxu0 0.0
    %856 = vmatpush2.msra.mxu0 0.0
    %857 = vmatprep.subr.mxu0 0.0
    %858 = vmatpush2.msra.mxu0 0.0
    %859 = vmatprep.subr.mxu0 0.0
    %860 = vmatpush2.msra.mxu0 0.0
    %861 = vmatprep.mubr.f32.mxu0 0.0
    %862 = vmatmul.mubr.f32.gmra.mxu0 %v795
    %v863 = vpop.f32.mrf.mxu0
    %v864 = vadd.f32 0.0, %v863
    %v865 = vpop.f32.mrf.mxu0
    %866 = vdwg.mxu0
    %v868 = vsel %vm793, %v788, 0
    %870 = vmatprep.subr.mxu0 0.0
    %871 = vmatpush1.msra.mxu0 0.0
    %872 = vmatprep.subr.mxu0 0.0
    %873 = vmatpush1.msra.mxu0 0.0
    %874 = vmatprep.subr.mxu0 0.0
    %875 = vmatpush1.msra.mxu0 0.0
    %876 = vmatprep.subr.mxu0 0.0
    %877 = vmatpush1.msra.mxu0 0.0
    %878 = vmatprep.subr.mxu0 0.0
    %879 = vmatpush1.msra.mxu0 0.0
    %880 = vmatprep.subr.mxu0 0.0
    %881 = vmatpush1.msra.mxu0 0.0
    %882 = vmatprep.subr.mxu0 0.0
    %883 = vmatpush1.msra.mxu0 0.0
    %884 = vmatprep.subr.mxu0 0.0
    %885 = vmatpush1.msra.mxu0 0.0
    %886 = vmatprep.subr.mxu0 0.0
    %887 = vmatpush1.msra.mxu0 0.0
    %888 = vmatprep.subr.mxu0 0.0
    %889 = vmatpush1.msra.mxu0 0.0
    %890 = vmatprep.subr.mxu0 0.0
    %891 = vmatpush1.msra.mxu0 0.0
    %892 = vmatprep.subr.mxu0 0.0
    %893 = vmatpush1.msra.mxu0 0.0
    %894 = vmatprep.subr.mxu0 0.0
    %895 = vmatpush1.msra.mxu0 %v792
    %896 = vmatprep.subr.mxu0 0.0
    %897 = vmatpush1.msra.mxu0 %v791
    %898 = vmatprep.subr.mxu0 0.0
    %899 = vmatpush1.msra.mxu0 %v790
    %900 = vmatprep.subr.mxu0 0.0
    %901 = vmatpush1.msra.mxu0 %v789
    %902 = vmatprep.subr.mxu0 0.0
    %903 = vmatpush2.msra.mxu0 0.0
    %904 = vmatprep.subr.mxu0 0.0
    %905 = vmatpush2.msra.mxu0 0.0
    %906 = vmatprep.subr.mxu0 0.0
    %907 = vmatpush2.msra.mxu0 0.0
    %908 = vmatprep.subr.mxu0 0.0
    %909 = vmatpush2.msra.mxu0 0.0
    %910 = vmatprep.subr.mxu0 0.0
    %911 = vmatpush2.msra.mxu0 0.0
    %912 = vmatprep.subr.mxu0 0.0
    %913 = vmatpush2.msra.mxu0 0.0
    %914 = vmatprep.subr.mxu0 0.0
    %915 = vmatpush2.msra.mxu0 0.0
    %916 = vmatprep.subr.mxu0 0.0
    %917 = vmatpush2.msra.mxu0 0.0
    %918 = vmatprep.subr.mxu0 0.0
    %919 = vmatpush2.msra.mxu0 0.0
    %920 = vmatprep.subr.mxu0 0.0
    %921 = vmatpush2.msra.mxu0 0.0
    %922 = vmatprep.subr.mxu0 0.0
    %923 = vmatpush2.msra.mxu0 0.0
    %924 = vmatprep.subr.mxu0 0.0
    %925 = vmatpush2.msra.mxu0 0.0
    %926 = vmatprep.subr.mxu0 0.0
    %927 = vmatpush2.msra.mxu0 0.0
    %928 = vmatprep.subr.mxu0 0.0
    %929 = vmatpush2.msra.mxu0 0.0
    %930 = vmatprep.subr.mxu0 0.0
    %931 = vmatpush2.msra.mxu0 0.0
    %932 = vmatprep.subr.mxu0 0.0
    %933 = vmatpush2.msra.mxu0 0.0
    %934 = vmatprep.mubr.f32.mxu0 0.0
    %935 = vmatmul.mubr.f32.gmra.mxu0 %v868
    %v936 = vpop.f32.mrf.mxu0
    %v937 = vadd.f32 0.0, %v936
    %v938 = vpop.f32.mrf.mxu0
    %939 = vdwg.mxu0
    %v940 = vld [vmem:[#allocation2] sm:$0xff]
    %v941 = vld [vmem:[#allocation2 + $0x8] sm:$0xff]
    %v942 = vld [vmem:[#allocation2 + $0x10] sm:$0xff]
    %v943 = vld [vmem:[#allocation2 + $0x18] sm:$0xff]
    %v944 = vld [vmem:[#allocation2 + $0x20] sm:$0x7]
    %v945 = vlaneseq
    %v946 = vshrl.u32 %v945, 7
    %v947 = vsub.s32 0, %v946
    %v948 = vrot.slane %v864, %v947
    %v949 = vmul.f32 %v940, %v948
    %v950 = vmul.f32 %v941, %v948
    %v951 = vmul.f32 %v942, %v948
    %v952 = vmul.f32 %v943, %v948
    %v953 = vmul.f32 %v944, %v948
    %v954 = vlaneseq
    %v955 = vshrl.u32 %v954, 7
    %v956 = vsub.s32 0, %v955
    %v957 = vrot.slane %v937, %v956
    %v958 = vadd.f32 %v949, %v957
    %v959 = vadd.f32 %v950, %v957
    %v960 = vadd.f32 %v951, %v957
    %v961 = vadd.f32 %v952, %v957
    %v962 = vadd.f32 %v953, %v957
    %v963 = vmax.f32 %v958, 0.0
    %v964 = vmax.f32 %v959, 0.0
    %v965 = vmax.f32 %v960, 0.0
    %v966 = vmax.f32 %v961, 0.0
    %v967 = vmax.f32 %v962, 0.0
    %v968 = vpack.c.bf16 %v964, %v963
    %v969 = vpack.c.bf16 %v966, %v965
    %v970 = vpack.c.bf16 %v967, %v967
    %v974 = vunpack.c.l.b16 %v968
    %v975 = vunpack.c.h.b16 %v968
    %v976 = vunpack.c.l.b16 %v969
    %v977 = vunpack.c.h.b16 %v969
    %v978 = vunpack.c.l.b16 %v970
    %v979 = vpack.c.b16 %v974, %v974
    %v980 = vpack.c.b16 %v975, %v975
    %v981 = vpack.c.b16 %v976, %v976
    %v982 = vpack.c.b16 %v977, %v977
    %v983 = vpack.c.b16 %v978, %v978
    %989 = vst [vmem:[%s6] sm:$0xf] %v979
    %990 = vst [vmem:[%s6 + $0x4] sm:$0xf] %v980
    %991 = vst [vmem:[%s6 + $0x8] sm:$0xf] %v981
    %992 = vst [vmem:[%s6 + $0xc] sm:$0xf] %v982
    %vm993 = vcmask 1041408
    %vm994 = vsmask.f32 1280
    %vm995 = vmand %vm993, %vm994
    %v996 = vld [vmem:[%s6 + $0x10] sm:$0x3]
    %v997 = vsel %vm995, %v983, %v996
    %998 = vst [vmem:[%s6 + $0x10] sm:$0x3] %v997
  $region33: #{encoder_forward.6} parent=0 // pred_fallthru
    _
  // Predicated region
  $region34: #{encoder_forward.6} parent=0 // pred_check
    _
  $region35: #{encoder_forward.6} parent=0 // pred_check_branch
    %1000 = sbr.rel (0) target = $region37
  $region36: #{encoder_forward.6} parent=0 // pred_region
    _
  $region37: #{encoder_forward.6} parent=0 // pred_fallthru
    _
  // Predicated region
  $region38: #{encoder_forward.6} parent=0 // pred_check
    _
  $region39: #{encoder_forward.6} parent=0 // pred_check_branch
    %1002 = sbr.rel (0) target = $region41
  $region40: #{encoder_forward.6} parent=0 // pred_region
    _
  $region41: #{encoder_forward.6} parent=0 // pred_fallthru
    _

// kernel: encoder_forward.7
$region0: #{encoder_forward.7}
  #allocation0 [shape = 'u32[]', space=smem, size = 0x4, offset = 0x4, fixed_abs, tag = 'smem constant byte address 0x4 - core index']
  #allocation1 [shape = 'u32[144,128]{1,0:T(1,128)}', space=vmem, size = 0x12000, scoped, tag = 'internal scratch']
  %s0 = inlined_call_operand.vmem [shape: bf16[2,2240], index: 0, kind: input, shape index: {}]
  %s1 = inlined_call_operand.vmem [shape: bf16[2240,128], index: 1, kind: input, shape index: {}]
  %s2 = inlined_call_operand.vmem [shape: f32[1,128], index: 2, kind: input, shape index: {}]
  %s3 = inlined_call_operand.hbm [shape: f32[2,128], index: 3, kind: output, shape index: {}]
  %s4 = sld [smem:[#allocation0]]
  $region22: #{encoder_forward.7} parent=0
    _
  %s6 = ssub.s32 1, %s4
  %s7 = scalar_select 0, %s6, %s4
  $region1: #{encoder_forward.7} parent=0
    #allocation2 [shape = 'u8[1024]{0}', space=vmem, size = 0x400, scoped, tag = 'output window, operand 0, single buffered']
    #allocation3 [shape = 's32[1]{0}', space=sflag, size = 0x4, scoped, tag = 'scoped memory for encoder_forward.7']
    %8 = vsyncpa [#allocation3], 0
    // Predicated region
    $region2: #{encoder_forward.7} parent=1 // pred_check
      _
    $region3: #{encoder_forward.7} parent=1 // pred_check_branch
      %10 = sbr.rel (0) target = $region5
    $region4: #{encoder_forward.7} parent=1 // pred_region
      _
    $region5: #{encoder_forward.7} parent=1 // pred_fallthru
      _
    // Predicated region
    $region6: #{encoder_forward.7} parent=1 // pred_check
      _
    $region7: #{encoder_forward.7} parent=1 // pred_check_branch
      %12 = sbr.rel (0) target = $region9
    $region8: #{encoder_forward.7} parent=1 // pred_region
      _
    $region9: #{encoder_forward.7} parent=1 // pred_fallthru
      _
    // Predicated region
    $region10: #{encoder_forward.7} parent=1 // pred_check
      _
    $region11: #{encoder_forward.7} parent=1 // pred_check_branch
      %14 = sbr.rel (0) target = $region13
    $region12: #{encoder_forward.7} parent=1 // pred_region
      _
    $region13: #{encoder_forward.7} parent=1 // pred_fallthru
      _
    %v16 = vld [vmem:[%s0] sm:$0xff]
    %v17 = vld [vmem:[%s0 + $0x8] sm:$0xff]
    %v18 = vld [vmem:[%s0 + $0x10] sm:$0x3]
    %v19 = vld [vmem:[%s1] sm:$0xf]
    %v20 = vld [vmem:[%s1 + $0x4] sm:$0xf]
    %v21 = vld [vmem:[%s1 + $0x8] sm:$0xf]
    %v22 = vld [vmem:[%s1 + $0xc] sm:$0xf]
    %v23 = vld [vmem:[%s1 + $0x10] sm:$0xf]
    %v24 = vld [vmem:[%s1 + $0x14] sm:$0xf]
    %v25 = vld [vmem:[%s1 + $0x18] sm:$0xf]
    %v26 = vld [vmem:[%s1 + $0x1c] sm:$0xf]
    %v27 = vld [vmem:[%s1 + $0x20] sm:$0xf]
    %v28 = vld [vmem:[%s1 + $0x24] sm:$0xf]
    %v29 = vld [vmem:[%s1 + $0x28] sm:$0xf]
    %v30 = vld [vmem:[%s1 + $0x2c] sm:$0xf]
    %v31 = vld [vmem:[%s1 + $0x30] sm:$0xf]
    %v32 = vld [vmem:[%s1 + $0x34] sm:$0xf]
    %v33 = vld [vmem:[%s1 + $0x38] sm:$0xf]
    %v34 = vld [vmem:[%s1 + $0x3c] sm:$0xf]
    %v35 = vld [vmem:[%s1 + $0x40] sm:$0xf]
    %v36 = vld [vmem:[%s1 + $0x44] sm:$0xf]
    %v37 = vld [vmem:[%s1 + $0x48] sm:$0xf]
    %v38 = vld [vmem:[%s1 + $0x4c] sm:$0xf]
    %v39 = vld [vmem:[%s1 + $0x50] sm:$0xf]
    %v40 = vld [vmem:[%s1 + $0x54] sm:$0xf]
    %v41 = vld [vmem:[%s1 + $0x58] sm:$0xf]
    %v42 = vld [vmem:[%s1 + $0x5c] sm:$0xf]
    %v43 = vld [vmem:[%s1 + $0x60] sm:$0xf]
    %v44 = vld [vmem:[%s1 + $0x64] sm:$0xf]
    %v45 = vld [vmem:[%s1 + $0x68] sm:$0xf]
    %v46 = vld [vmem:[%s1 + $0x6c] sm:$0xf]
    %v47 = vld [vmem:[%s1 + $0x70] sm:$0xf]
    %v48 = vld [vmem:[%s1 + $0x74] sm:$0xf]
    %v49 = vld [vmem:[%s1 + $0x78] sm:$0xf]
    %v50 = vld [vmem:[%s1 + $0x7c] sm:$0xf]
    %v51 = vld [vmem:[%s1 + $0x80] sm:$0xf]
    %v52 = vld [vmem:[%s1 + $0x84] sm:$0xf]
    %v53 = vld [vmem:[%s1 + $0x88] sm:$0xf]
    %v54 = vld [vmem:[%s1 + $0x8c] sm:$0xf]
    %v55 = vld [vmem:[%s1 + $0x90] sm:$0xf]
    %v56 = vld [vmem:[%s1 + $0x94] sm:$0xf]
    %v57 = vld [vmem:[%s1 + $0x98] sm:$0xf]
    %v58 = vld [vmem:[%s1 + $0x9c] sm:$0xf]
    %v59 = vld [vmem:[%s1 + $0xa0] sm:$0xf]
    %v60 = vld [vmem:[%s1 + $0xa4] sm:$0xf]
    %v61 = vld [vmem:[%s1 + $0xa8] sm:$0xf]
    %v62 = vld [vmem:[%s1 + $0xac] sm:$0xf]
    %v63 = vld [vmem:[%s1 + $0xb0] sm:$0xf]
    %v64 = vld [vmem:[%s1 + $0xb4] sm:$0xf]
    %v65 = vld [vmem:[%s1 + $0xb8] sm:$0xf]
    %v66 = vld [vmem:[%s1 + $0xbc] sm:$0xf]
    %v67 = vld [vmem:[%s1 + $0xc0] sm:$0xf]
    %v68 = vld [vmem:[%s1 + $0xc4] sm:$0xf]
    %v69 = vld [vmem:[%s1 + $0xc8] sm:$0xf]
    %v70 = vld [vmem:[%s1 + $0xcc] sm:$0xf]
    %v71 = vld [vmem:[%s1 + $0xd0] sm:$0xf]
    %v72 = vld [vmem:[%s1 + $0xd4] sm:$0xf]
    %v73 = vld [vmem:[%s1 + $0xd8] sm:$0xf]
    %v74 = vld [vmem:[%s1 + $0xdc] sm:$0xf]
    %v75 = vld [vmem:[%s1 + $0xe0] sm:$0xf]
    %v76 = vld [vmem:[%s1 + $0xe4] sm:$0xf]
    %v77 = vld [vmem:[%s1 + $0xe8] sm:$0xf]
    %v78 = vld [vmem:[%s1 + $0xec] sm:$0xf]
    %v79 = vld [vmem:[%s1 + $0xf0] sm:$0xf]
    %v80 = vld [vmem:[%s1 + $0xf4] sm:$0xf]
    %v81 = vld [vmem:[%s1 + $0xf8] sm:$0xf]
    %v82 = vld [vmem:[%s1 + $0xfc] sm:$0xf]
    %v83 = vld [vmem:[%s1 + $0x100] sm:$0xf]
    %v84 = vld [vmem:[%s1 + $0x104] sm:$0xf]
    %v85 = vld [vmem:[%s1 + $0x108] sm:$0xf]
    %v86 = vld [vmem:[%s1 + $0x10c] sm:$0xf]
    %v87 = vld [vmem:[%s1 + $0x110] sm:$0xf]
    %v88 = vld [vmem:[%s1 + $0x114] sm:$0xf]
    %v89 = vld [vmem:[%s1 + $0x118] sm:$0xf]
    %v90 = vld [vmem:[%s1 + $0x11c] sm:$0xf]
    %v91 = vld [vmem:[%s1 + $0x120] sm:$0xf]
    %v92 = vld [vmem:[%s1 + $0x124] sm:$0xf]
    %v93 = vld [vmem:[%s1 + $0x128] sm:$0xf]
    %v94 = vld [vmem:[%s1 + $0x12c] sm:$0xf]
    %v95 = vld [vmem:[%s1 + $0x130] sm:$0xf]
    %v96 = vld [vmem:[%s1 + $0x134] sm:$0xf]
    %v97 = vld [vmem:[%s1 + $0x138] sm:$0xf]
    %v98 = vld [vmem:[%s1 + $0x13c] sm:$0xf]
    %v99 = vld [vmem:[%s1 + $0x140] sm:$0xf]
    %v100 = vld [vmem:[%s1 + $0x144] sm:$0xf]
    %v101 = vld [vmem:[%s1 + $0x148] sm:$0xf]
    %v102 = vld [vmem:[%s1 + $0x14c] sm:$0xf]
    %v103 = vld [vmem:[%s1 + $0x150] sm:$0xf]
    %v104 = vld [vmem:[%s1 + $0x154] sm:$0xf]
    %v105 = vld [vmem:[%s1 + $0x158] sm:$0xf]
    %v106 = vld [vmem:[%s1 + $0x15c] sm:$0xf]
    %v107 = vld [vmem:[%s1 + $0x160] sm:$0xf]
    %v108 = vld [vmem:[%s1 + $0x164] sm:$0xf]
    %v109 = vld [vmem:[%s1 + $0x168] sm:$0xf]
    %v110 = vld [vmem:[%s1 + $0x16c] sm:$0xf]
    %v111 = vld [vmem:[%s1 + $0x170] sm:$0xf]
    %v112 = vld [vmem:[%s1 + $0x174] sm:$0xf]
    %v113 = vld [vmem:[%s1 + $0x178] sm:$0xf]
    %v114 = vld [vmem:[%s1 + $0x17c] sm:$0xf]
    %v115 = vld [vmem:[%s1 + $0x180] sm:$0xf]
    %v116 = vld [vmem:[%s1 + $0x184] sm:$0xf]
    %v117 = vld [vmem:[%s1 + $0x188] sm:$0xf]
    %v118 = vld [vmem:[%s1 + $0x18c] sm:$0xf]
    %v119 = vld [vmem:[%s1 + $0x190] sm:$0xf]
    %v120 = vld [vmem:[%s1 + $0x194] sm:$0xf]
    %v121 = vld [vmem:[%s1 + $0x198] sm:$0xf]
    %v122 = vld [vmem:[%s1 + $0x19c] sm:$0xf]
    %v123 = vld [vmem:[%s1 + $0x1a0] sm:$0xf]
    %v124 = vld [vmem:[%s1 + $0x1a4] sm:$0xf]
    %v125 = vld [vmem:[%s1 + $0x1a8] sm:$0xf]
    %v126 = vld [vmem:[%s1 + $0x1ac] sm:$0xf]
    %v127 = vld [vmem:[%s1 + $0x1b0] sm:$0xf]
    %v128 = vld [vmem:[%s1 + $0x1b4] sm:$0xf]
    %v129 = vld [vmem:[%s1 + $0x1b8] sm:$0xf]
    %v130 = vld [vmem:[%s1 + $0x1bc] sm:$0xf]
    %v131 = vld [vmem:[%s1 + $0x1c0] sm:$0xf]
    %v132 = vld [vmem:[%s1 + $0x1c4] sm:$0xf]
    %v133 = vld [vmem:[%s1 + $0x1c8] sm:$0xf]
    %v134 = vld [vmem:[%s1 + $0x1cc] sm:$0xf]
    %v135 = vld [vmem:[%s1 + $0x1d0] sm:$0xf]
    %v136 = vld [vmem:[%s1 + $0x1d4] sm:$0xf]
    %v137 = vld [vmem:[%s1 + $0x1d8] sm:$0xf]
    %v138 = vld [vmem:[%s1 + $0x1dc] sm:$0xf]
    %v139 = vld [vmem:[%s1 + $0x1e0] sm:$0xf]
    %v140 = vld [vmem:[%s1 + $0x1e4] sm:$0xf]
    %v141 = vld [vmem:[%s1 + $0x1e8] sm:$0xf]
    %v142 = vld [vmem:[%s1 + $0x1ec] sm:$0xf]
    %v143 = vld [vmem:[%s1 + $0x1f0] sm:$0xf]
    %v144 = vld [vmem:[%s1 + $0x1f4] sm:$0xf]
    %v145 = vld [vmem:[%s1 + $0x1f8] sm:$0xf]
    %v146 = vld [vmem:[%s1 + $0x1fc] sm:$0xf]
    %v147 = vld [vmem:[%s1 + $0x200] sm:$0xf]
    %v148 = vld [vmem:[%s1 + $0x204] sm:$0xf]
    %v149 = vld [vmem:[%s1 + $0x208] sm:$0xf]
    %v150 = vld [vmem:[%s1 + $0x20c] sm:$0xf]
    %v151 = vld [vmem:[%s1 + $0x210] sm:$0xf]
    %v152 = vld [vmem:[%s1 + $0x214] sm:$0xf]
    %v153 = vld [vmem:[%s1 + $0x218] sm:$0xf]
    %v154 = vld [vmem:[%s1 + $0x21c] sm:$0xf]
    %v155 = vld [vmem:[%s1 + $0x220] sm:$0xf]
    %v156 = vld [vmem:[%s1 + $0x224] sm:$0xf]
    %v157 = vld [vmem:[%s1 + $0x228] sm:$0xf]
    %v158 = vld [vmem:[%s1 + $0x22c] sm:$0xf]
    %v159 = vld [vmem:[%s1 + $0x230] sm:$0xf]
    %v160 = vld [vmem:[%s1 + $0x234] sm:$0xf]
    %v161 = vld [vmem:[%s1 + $0x238] sm:$0xf]
    %v162 = vld [vmem:[%s1 + $0x23c] sm:$0xf]
    %v163 = vld [vmem:[%s1 + $0x240] sm:$0xf]
    %v164 = vld [vmem:[%s1 + $0x244] sm:$0xf]
    %v165 = vld [vmem:[%s1 + $0x248] sm:$0xf]
    %v166 = vld [vmem:[%s1 + $0x24c] sm:$0xf]
    %v167 = vld [vmem:[%s1 + $0x250] sm:$0xf]
    %v168 = vld [vmem:[%s1 + $0x254] sm:$0xf]
    %v169 = vld [vmem:[%s1 + $0x258] sm:$0xf]
    %v170 = vld [vmem:[%s1 + $0x25c] sm:$0xf]
    %v171 = vld [vmem:[%s1 + $0x260] sm:$0xf]
    %v172 = vld [vmem:[%s1 + $0x264] sm:$0xf]
    %v173 = vld [vmem:[%s1 + $0x268] sm:$0xf]
    %v174 = vld [vmem:[%s1 + $0x26c] sm:$0xf]
    %v175 = vld [vmem:[%s1 + $0x270] sm:$0xf]
    %v176 = vld [vmem:[%s1 + $0x274] sm:$0xf]
    %v177 = vld [vmem:[%s1 + $0x278] sm:$0xf]
    %v178 = vld [vmem:[%s1 + $0x27c] sm:$0xf]
    %v179 = vld [vmem:[%s1 + $0x280] sm:$0xf]
    %v180 = vld [vmem:[%s1 + $0x284] sm:$0xf]
    %v181 = vld [vmem:[%s1 + $0x288] sm:$0xf]
    %v182 = vld [vmem:[%s1 + $0x28c] sm:$0xf]
    %v183 = vld [vmem:[%s1 + $0x290] sm:$0xf]
    %v184 = vld [vmem:[%s1 + $0x294] sm:$0xf]
    %v185 = vld [vmem:[%s1 + $0x298] sm:$0xf]
    %v186 = vld [vmem:[%s1 + $0x29c] sm:$0xf]
    %v187 = vld [vmem:[%s1 + $0x2a0] sm:$0xf]
    %v188 = vld [vmem:[%s1 + $0x2a4] sm:$0xf]
    %v189 = vld [vmem:[%s1 + $0x2a8] sm:$0xf]
    %v190 = vld [vmem:[%s1 + $0x2ac] sm:$0xf]
    %v191 = vld [vmem:[%s1 + $0x2b0] sm:$0xf]
    %v192 = vld [vmem:[%s1 + $0x2b4] sm:$0xf]
    %v193 = vld [vmem:[%s1 + $0x2b8] sm:$0xf]
    %v194 = vld [vmem:[%s1 + $0x2bc] sm:$0xf]
    %v195 = vld [vmem:[%s1 + $0x2c0] sm:$0xf]
    %v196 = vld [vmem:[%s1 + $0x2c4] sm:$0xf]
    %v197 = vld [vmem:[%s1 + $0x2c8] sm:$0xf]
    %v198 = vld [vmem:[%s1 + $0x2cc] sm:$0xf]
    %v199 = vld [vmem:[%s1 + $0x2d0] sm:$0xf]
    %v200 = vld [vmem:[%s1 + $0x2d4] sm:$0xf]
    %v201 = vld [vmem:[%s1 + $0x2d8] sm:$0xf]
    %v202 = vld [vmem:[%s1 + $0x2dc] sm:$0xf]
    %v203 = vld [vmem:[%s1 + $0x2e0] sm:$0xf]
    %v204 = vld [vmem:[%s1 + $0x2e4] sm:$0xf]
    %v205 = vld [vmem:[%s1 + $0x2e8] sm:$0xf]
    %v206 = vld [vmem:[%s1 + $0x2ec] sm:$0xf]
    %v207 = vld [vmem:[%s1 + $0x2f0] sm:$0xf]
    %v208 = vld [vmem:[%s1 + $0x2f4] sm:$0xf]
    %v209 = vld [vmem:[%s1 + $0x2f8] sm:$0xf]
    %v210 = vld [vmem:[%s1 + $0x2fc] sm:$0xf]
    %v211 = vld [vmem:[%s1 + $0x300] sm:$0xf]
    %v212 = vld [vmem:[%s1 + $0x304] sm:$0xf]
    %v213 = vld [vmem:[%s1 + $0x308] sm:$0xf]
    %v214 = vld [vmem:[%s1 + $0x30c] sm:$0xf]
    %v215 = vld [vmem:[%s1 + $0x310] sm:$0xf]
    %v216 = vld [vmem:[%s1 + $0x314] sm:$0xf]
    %v217 = vld [vmem:[%s1 + $0x318] sm:$0xf]
    %v218 = vld [vmem:[%s1 + $0x31c] sm:$0xf]
    %v219 = vld [vmem:[%s1 + $0x320] sm:$0xf]
    %v220 = vld [vmem:[%s1 + $0x324] sm:$0xf]
    %v221 = vld [vmem:[%s1 + $0x328] sm:$0xf]
    %v222 = vld [vmem:[%s1 + $0x32c] sm:$0xf]
    %v223 = vld [vmem:[%s1 + $0x330] sm:$0xf]
    %v224 = vld [vmem:[%s1 + $0x334] sm:$0xf]
    %v225 = vld [vmem:[%s1 + $0x338] sm:$0xf]
    %v226 = vld [vmem:[%s1 + $0x33c] sm:$0xf]
    %v227 = vld [vmem:[%s1 + $0x340] sm:$0xf]
    %v228 = vld [vmem:[%s1 + $0x344] sm:$0xf]
    %v229 = vld [vmem:[%s1 + $0x348] sm:$0xf]
    %v230 = vld [vmem:[%s1 + $0x34c] sm:$0xf]
    %v231 = vld [vmem:[%s1 + $0x350] sm:$0xf]
    %v232 = vld [vmem:[%s1 + $0x354] sm:$0xf]
    %v233 = vld [vmem:[%s1 + $0x358] sm:$0xf]
    %v234 = vld [vmem:[%s1 + $0x35c] sm:$0xf]
    %v235 = vld [vmem:[%s1 + $0x360] sm:$0xf]
    %v236 = vld [vmem:[%s1 + $0x364] sm:$0xf]
    %v237 = vld [vmem:[%s1 + $0x368] sm:$0xf]
    %v238 = vld [vmem:[%s1 + $0x36c] sm:$0xf]
    %v239 = vld [vmem:[%s1 + $0x370] sm:$0xf]
    %v240 = vld [vmem:[%s1 + $0x374] sm:$0xf]
    %v241 = vld [vmem:[%s1 + $0x378] sm:$0xf]
    %v242 = vld [vmem:[%s1 + $0x37c] sm:$0xf]
    %v243 = vld [vmem:[%s1 + $0x380] sm:$0xf]
    %v244 = vld [vmem:[%s1 + $0x384] sm:$0xf]
    %v245 = vld [vmem:[%s1 + $0x388] sm:$0xf]
    %v246 = vld [vmem:[%s1 + $0x38c] sm:$0xf]
    %v247 = vld [vmem:[%s1 + $0x390] sm:$0xf]
    %v248 = vld [vmem:[%s1 + $0x394] sm:$0xf]
    %v249 = vld [vmem:[%s1 + $0x398] sm:$0xf]
    %v250 = vld [vmem:[%s1 + $0x39c] sm:$0xf]
    %v251 = vld [vmem:[%s1 + $0x3a0] sm:$0xf]
    %v252 = vld [vmem:[%s1 + $0x3a4] sm:$0xf]
    %v253 = vld [vmem:[%s1 + $0x3a8] sm:$0xf]
    %v254 = vld [vmem:[%s1 + $0x3ac] sm:$0xf]
    %v255 = vld [vmem:[%s1 + $0x3b0] sm:$0xf]
    %v256 = vld [vmem:[%s1 + $0x3b4] sm:$0xf]
    %v257 = vld [vmem:[%s1 + $0x3b8] sm:$0xf]
    %v258 = vld [vmem:[%s1 + $0x3bc] sm:$0xf]
    %v259 = vld [vmem:[%s1 + $0x3c0] sm:$0xf]
    %v260 = vld [vmem:[%s1 + $0x3c4] sm:$0xf]
    %v261 = vld [vmem:[%s1 + $0x3c8] sm:$0xf]
    %v262 = vld [vmem:[%s1 + $0x3cc] sm:$0xf]
    %v263 = vld [vmem:[%s1 + $0x3d0] sm:$0xf]
    %v264 = vld [vmem:[%s1 + $0x3d4] sm:$0xf]
    %v265 = vld [vmem:[%s1 + $0x3d8] sm:$0xf]
    %v266 = vld [vmem:[%s1 + $0x3dc] sm:$0xf]
    %v267 = vld [vmem:[%s1 + $0x3e0] sm:$0xf]
    %v268 = vld [vmem:[%s1 + $0x3e4] sm:$0xf]
    %v269 = vld [vmem:[%s1 + $0x3e8] sm:$0xf]
    %v270 = vld [vmem:[%s1 + $0x3ec] sm:$0xf]
    %v271 = vld [vmem:[%s1 + $0x3f0] sm:$0xf]
    %v272 = vld [vmem:[%s1 + $0x3f4] sm:$0xf]
    %v273 = vld [vmem:[%s1 + $0x3f8] sm:$0xf]
    %v274 = vld [vmem:[%s1 + $0x3fc] sm:$0xf]
    %v275 = vld [vmem:[%s1 + $0x400] sm:$0xf]
    %v276 = vld [vmem:[%s1 + $0x404] sm:$0xf]
    %v277 = vld [vmem:[%s1 + $0x408] sm:$0xf]
    %v278 = vld [vmem:[%s1 + $0x40c] sm:$0xf]
    %v279 = vld [vmem:[%s1 + $0x410] sm:$0xf]
    %v280 = vld [vmem:[%s1 + $0x414] sm:$0xf]
    %v281 = vld [vmem:[%s1 + $0x418] sm:$0xf]
    %v282 = vld [vmem:[%s1 + $0x41c] sm:$0xf]
    %v283 = vld [vmem:[%s1 + $0x420] sm:$0xf]
    %v284 = vld [vmem:[%s1 + $0x424] sm:$0xf]
    %v285 = vld [vmem:[%s1 + $0x428] sm:$0xf]
    %v286 = vld [vmem:[%s1 + $0x42c] sm:$0xf]
    %v287 = vld [vmem:[%s1 + $0x430] sm:$0xf]
    %v288 = vld [vmem:[%s1 + $0x434] sm:$0xf]
    %v289 = vld [vmem:[%s1 + $0x438] sm:$0xf]
    %v290 = vld [vmem:[%s1 + $0x43c] sm:$0xf]
    %v291 = vld [vmem:[%s1 + $0x440] sm:$0xf]
    %v292 = vld [vmem:[%s1 + $0x444] sm:$0xf]
    %v293 = vld [vmem:[%s1 + $0x448] sm:$0xf]
    %v294 = vld [vmem:[%s1 + $0x44c] sm:$0xf]
    %v295 = vld [vmem:[%s1 + $0x450] sm:$0xf]
    %v296 = vld [vmem:[%s1 + $0x454] sm:$0xf]
    %v297 = vld [vmem:[%s1 + $0x458] sm:$0xf]
    %v298 = vld [vmem:[%s1 + $0x45c] sm:$0xf]
    %v299 = vld [vmem:[%s2] sm:$0x1]
    %v301 = vlaneseq
    %v302 = vshrl.u32 %v301, 7
    %v303 = vsub.s32 0, %v302
    %v304 = vrot.slane %v299, %v303
    %v309 = vcombine.high %v16, %v16
    %v311 = vunpack.c.l.s4 1966171168
    %v312 = vunpack.c.0.s8 %v311
    %v313 = vlaneseq
    %v314 = vshrl.u32 %v313, 7
    %v315 = vsub.s32 %v312, %v314
    %v316 = vrot.slane %v16, %v315
    %v318 = vunpack.c.l.s4 1966171168
    %v319 = vunpack.c.0.s8 %v318
    %v320 = vlaneseq
    %v321 = vshrl.u32 %v320, 7
    %v322 = vsub.s32 %v319, %v321
    %v323 = vrot.slane %v309, %v322
    %v324 = vcombine.high %v316, %v316
    %v325 = vcombine.high %v323, %v323
    %v327 = vunpack.c.l.s4 1966171168
    %v328 = vunpack.c.0.s8 %v327
    %v329 = vlaneseq
    %v330 = vshrl.u32 %v329, 7
    %v331 = vsub.s32 %v328, %v330
    %v332 = vrot.slane %v316, %v331
    %v334 = vunpack.c.l.s4 1966171168
    %v335 = vunpack.c.0.s8 %v334
    %v336 = vlaneseq
    %v337 = vshrl.u32 %v336, 7
    %v338 = vsub.s32 %v335, %v337
    %v339 = vrot.slane %v323, %v338
    %v341 = vunpack.c.l.s4 1966171168
    %v342 = vunpack.c.0.s8 %v341
    %v343 = vlaneseq
    %v344 = vshrl.u32 %v343, 7
    %v345 = vsub.s32 %v342, %v344
    %v346 = vrot.slane %v324, %v345
    %v348 = vunpack.c.l.s4 1966171168
    %v349 = vunpack.c.0.s8 %v348
    %v350 = vlaneseq
    %v351 = vshrl.u32 %v350, 7
    %v352 = vsub.s32 %v349, %v351
    %v353 = vrot.slane %v325, %v352
    %v354 = vcombine.high %v332, %v332
    %v355 = vcombine.high %v339, %v339
    %v356 = vcombine.high %v346, %v346
    %v357 = vcombine.high %v353, %v353
    %v358 = vcombine.high %v17, %v17
    %v360 = vunpack.c.l.s4 1966171168
    %v361 = vunpack.c.0.s8 %v360
    %v362 = vlaneseq
    %v363 = vshrl.u32 %v362, 7
    %v364 = vsub.s32 %v361, %v363
    %v365 = vrot.slane %v17, %v364
    %v367 = vunpack.c.l.s4 1966171168
    %v368 = vunpack.c.0.s8 %v367
    %v369 = vlaneseq
    %v370 = vshrl.u32 %v369, 7
    %v371 = vsub.s32 %v368, %v370
    %v372 = vrot.slane %v358, %v371
    %v373 = vcombine.high %v365, %v365
    %v374 = vcombine.high %v372, %v372
    %v376 = vunpack.c.l.s4 1966171168
    %v377 = vunpack.c.0.s8 %v376
    %v378 = vlaneseq
    %v379 = vshrl.u32 %v378, 7
    %v380 = vsub.s32 %v377, %v379
    %v381 = vrot.slane %v365, %v380
    %v383 = vunpack.c.l.s4 1966171168
    %v384 = vunpack.c.0.s8 %v383
    %v385 = vlaneseq
    %v386 = vshrl.u32 %v385, 7
    %v387 = vsub.s32 %v384, %v386
    %v388 = vrot.slane %v372, %v387
    %v390 = vunpack.c.l.s4 1966171168
    %v391 = vunpack.c.0.s8 %v390
    %v392 = vlaneseq
    %v393 = vshrl.u32 %v392, 7
    %v394 = vsub.s32 %v391, %v393
    %v395 = vrot.slane %v373, %v394
    %v397 = vunpack.c.l.s4 1966171168
    %v398 = vunpack.c.0.s8 %v397
    %v399 = vlaneseq
    %v400 = vshrl.u32 %v399, 7
    %v401 = vsub.s32 %v398, %v400
    %v402 = vrot.slane %v374, %v401
    %v403 = vcombine.high %v381, %v381
    %v404 = vcombine.high %v388, %v388
    %v405 = vcombine.high %v395, %v395
    %v406 = vcombine.high %v402, %v402
    %v408 = vunpack.c.l.s4 1966171168
    %v409 = vunpack.c.0.s8 %v408
    %v410 = vlaneseq
    %v411 = vshrl.u32 %v410, 7
    %v412 = vsub.s32 %v409, %v411
    %v413 = vrot.slane %v18, %v412
    %v414 = vcombine.high %v413, %v413
    %v416 = vunpack.c.l.s4 1966171168
    %v417 = vunpack.c.0.s8 %v416
    %v418 = vlaneseq
    %v419 = vshrl.u32 %v418, 7
    %v420 = vsub.s32 %v417, %v419
    %v421 = vrot.slane %v413, %v420
    %v423 = vunpack.c.l.s4 1966171168
    %v424 = vunpack.c.0.s8 %v423
    %v425 = vlaneseq
    %v426 = vshrl.u32 %v425, 7
    %v427 = vsub.s32 %v424, %v426
    %v428 = vrot.slane %v414, %v427
    %v726 = vunpack.c.l.b16 %v19
    %v727 = vunpack.c.l.b16 %v20
    %v728 = vunpack.c.l.b16 %v21
    %v729 = vunpack.c.l.b16 %v22
    %v730 = vunpack.c.l.b16 %v23
    %v731 = vunpack.c.l.b16 %v24
    %v732 = vunpack.c.l.b16 %v25
    %v733 = vunpack.c.l.b16 %v26
    %v734 = vunpack.c.l.b16 %v27
    %v735 = vunpack.c.l.b16 %v28
    %v736 = vunpack.c.l.b16 %v29
    %v737 = vunpack.c.l.b16 %v30
    %v738 = vunpack.c.l.b16 %v31
    %v739 = vunpack.c.l.b16 %v32
    %v740 = vunpack.c.l.b16 %v33
    %v741 = vunpack.c.l.b16 %v34
    %v742 = vunpack.c.l.b16 %v35
    %v743 = vunpack.c.l.b16 %v36
    %v744 = vunpack.c.l.b16 %v37
    %v745 = vunpack.c.l.b16 %v38
    %v746 = vunpack.c.l.b16 %v39
    %v747 = vunpack.c.l.b16 %v40
    %v748 = vunpack.c.l.b16 %v41
    %v749 = vunpack.c.l.b16 %v42
    %v750 = vunpack.c.l.b16 %v43
    %v751 = vunpack.c.l.b16 %v44
    %v752 = vunpack.c.l.b16 %v45
    %v753 = vunpack.c.l.b16 %v46
    %v754 = vunpack.c.l.b16 %v47
    %v755 = vunpack.c.l.b16 %v48
    %v756 = vunpack.c.l.b16 %v49
    %v757 = vunpack.c.l.b16 %v50
    %v758 = vunpack.c.l.b16 %v51
    %v759 = vunpack.c.l.b16 %v52
    %v760 = vunpack.c.l.b16 %v53
    %v761 = vunpack.c.l.b16 %v54
    %v762 = vunpack.c.l.b16 %v55
    %v763 = vunpack.c.l.b16 %v56
    %v764 = vunpack.c.l.b16 %v57
    %v765 = vunpack.c.l.b16 %v58
    %v766 = vunpack.c.l.b16 %v59
    %v767 = vunpack.c.l.b16 %v60
    %v768 = vunpack.c.l.b16 %v61
    %v769 = vunpack.c.l.b16 %v62
    %v770 = vunpack.c.l.b16 %v63
    %v771 = vunpack.c.l.b16 %v64
    %v772 = vunpack.c.l.b16 %v65
    %v773 = vunpack.c.l.b16 %v66
    %v774 = vunpack.c.l.b16 %v67
    %v775 = vunpack.c.l.b16 %v68
    %v776 = vunpack.c.l.b16 %v69
    %v777 = vunpack.c.l.b16 %v70
    %v778 = vunpack.c.l.b16 %v71
    %v779 = vunpack.c.l.b16 %v72
    %v780 = vunpack.c.l.b16 %v73
    %v781 = vunpack.c.l.b16 %v74
    %v782 = vunpack.c.l.b16 %v75
    %v783 = vunpack.c.l.b16 %v76
    %v784 = vunpack.c.l.b16 %v77
    %v785 = vunpack.c.l.b16 %v78
    %v786 = vunpack.c.l.b16 %v79
    %v787 = vunpack.c.l.b16 %v80
    %v788 = vunpack.c.l.b16 %v81
    %v789 = vunpack.c.l.b16 %v82
    %v790 = vunpack.c.l.b16 %v83
    %v791 = vunpack.c.l.b16 %v84
    %v792 = vunpack.c.l.b16 %v85
    %v793 = vunpack.c.l.b16 %v86
    %v794 = vunpack.c.l.b16 %v87
    %v795 = vunpack.c.l.b16 %v88
    %v796 = vunpack.c.l.b16 %v89
    %v797 = vunpack.c.l.b16 %v90
    %v798 = vunpack.c.l.b16 %v91
    %v799 = vunpack.c.l.b16 %v92
    %v800 = vunpack.c.l.b16 %v93
    %v801 = vunpack.c.l.b16 %v94
    %v802 = vunpack.c.l.b16 %v95
    %v803 = vunpack.c.l.b16 %v96
    %v804 = vunpack.c.l.b16 %v97
    %v805 = vunpack.c.l.b16 %v98
    %v806 = vunpack.c.l.b16 %v99
    %v807 = vunpack.c.l.b16 %v100
    %v808 = vunpack.c.l.b16 %v101
    %v809 = vunpack.c.l.b16 %v102
    %v810 = vunpack.c.l.b16 %v103
    %v811 = vunpack.c.l.b16 %v104
    %v812 = vunpack.c.l.b16 %v105
    %v813 = vunpack.c.l.b16 %v106
    %v814 = vunpack.c.l.b16 %v107
    %v815 = vunpack.c.l.b16 %v108
    %v816 = vunpack.c.l.b16 %v109
    %v817 = vunpack.c.l.b16 %v110
    %v818 = vunpack.c.l.b16 %v111
    %v819 = vunpack.c.l.b16 %v112
    %v820 = vunpack.c.l.b16 %v113
    %v821 = vunpack.c.l.b16 %v114
    %v822 = vunpack.c.l.b16 %v115
    %v823 = vunpack.c.l.b16 %v116
    %v824 = vunpack.c.l.b16 %v117
    %v825 = vunpack.c.l.b16 %v118
    %v826 = vunpack.c.l.b16 %v119
    %v827 = vunpack.c.l.b16 %v120
    %v828 = vunpack.c.l.b16 %v121
    %v829 = vunpack.c.l.b16 %v122
    %v830 = vunpack.c.l.b16 %v123
    %v831 = vunpack.c.l.b16 %v124
    %v832 = vunpack.c.l.b16 %v125
    %v833 = vunpack.c.l.b16 %v126
    %v834 = vunpack.c.l.b16 %v127
    %v835 = vunpack.c.l.b16 %v128
    %v836 = vunpack.c.l.b16 %v129
    %v837 = vunpack.c.l.b16 %v130
    %v838 = vunpack.c.l.b16 %v131
    %v839 = vunpack.c.l.b16 %v132
    %v840 = vunpack.c.l.b16 %v133
    %v841 = vunpack.c.l.b16 %v134
    %v842 = vunpack.c.l.b16 %v135
    %v843 = vunpack.c.l.b16 %v136
    %v844 = vunpack.c.l.b16 %v137
    %v845 = vunpack.c.l.b16 %v138
    %v846 = vunpack.c.l.b16 %v139
    %v847 = vunpack.c.l.b16 %v140
    %v848 = vunpack.c.l.b16 %v141
    %v849 = vunpack.c.l.b16 %v142
    %v850 = vunpack.c.l.b16 %v143
    %v851 = vunpack.c.l.b16 %v144
    %v852 = vunpack.c.l.b16 %v145
    %v853 = vunpack.c.l.b16 %v146
    %v854 = vunpack.c.l.b16 %v147
    %v855 = vunpack.c.l.b16 %v148
    %v856 = vunpack.c.l.b16 %v149
    %v857 = vunpack.c.l.b16 %v150
    %v858 = vunpack.c.l.b16 %v151
    %v859 = vunpack.c.l.b16 %v152
    %v860 = vunpack.c.l.b16 %v153
    %v861 = vunpack.c.l.b16 %v154
    %v862 = vunpack.c.l.b16 %v155
    %v863 = vunpack.c.l.b16 %v156
    %v864 = vunpack.c.l.b16 %v157
    %v865 = vunpack.c.l.b16 %v158
    %v866 = vunpack.c.l.b16 %v159
    %v867 = vunpack.c.l.b16 %v160
    %v868 = vunpack.c.l.b16 %v161
    %v869 = vunpack.c.l.b16 %v162
    %v870 = vunpack.c.l.b16 %v163
    %v871 = vunpack.c.l.b16 %v164
    %v872 = vunpack.c.l.b16 %v165
    %v873 = vunpack.c.l.b16 %v166
    %v874 = vunpack.c.l.b16 %v167
    %v875 = vunpack.c.l.b16 %v168
    %v876 = vunpack.c.l.b16 %v169
    %v877 = vunpack.c.l.b16 %v170
    %v878 = vunpack.c.l.b16 %v171
    %v879 = vunpack.c.l.b16 %v172
    %v880 = vunpack.c.l.b16 %v173
    %v881 = vunpack.c.l.b16 %v174
    %v882 = vunpack.c.l.b16 %v175
    %v883 = vunpack.c.l.b16 %v176
    %v884 = vunpack.c.l.b16 %v177
    %v885 = vunpack.c.l.b16 %v178
    %v886 = vunpack.c.l.b16 %v179
    %v887 = vunpack.c.l.b16 %v180
    %v888 = vunpack.c.l.b16 %v181
    %v889 = vunpack.c.l.b16 %v182
    %v890 = vunpack.c.l.b16 %v183
    %v891 = vunpack.c.l.b16 %v184
    %v892 = vunpack.c.l.b16 %v185
    %v893 = vunpack.c.l.b16 %v186
    %v894 = vunpack.c.l.b16 %v187
    %v895 = vunpack.c.l.b16 %v188
    %v896 = vunpack.c.l.b16 %v189
    %v897 = vunpack.c.l.b16 %v190
    %v898 = vunpack.c.l.b16 %v191
    %v899 = vunpack.c.l.b16 %v192
    %v900 = vunpack.c.l.b16 %v193
    %v901 = vunpack.c.l.b16 %v194
    %v902 = vunpack.c.l.b16 %v195
    %v903 = vunpack.c.l.b16 %v196
    %v904 = vunpack.c.l.b16 %v197
    %v905 = vunpack.c.l.b16 %v198
    %v906 = vunpack.c.l.b16 %v199
    %v907 = vunpack.c.l.b16 %v200
    %v908 = vunpack.c.l.b16 %v201
    %v909 = vunpack.c.l.b16 %v202
    %v910 = vunpack.c.l.b16 %v203
    %v911 = vunpack.c.l.b16 %v204
    %v912 = vunpack.c.l.b16 %v205
    %v913 = vunpack.c.l.b16 %v206
    %v914 = vunpack.c.l.b16 %v207
    %v915 = vunpack.c.l.b16 %v208
    %v916 = vunpack.c.l.b16 %v209
    %v917 = vunpack.c.l.b16 %v210
    %v918 = vunpack.c.l.b16 %v211
    %v919 = vunpack.c.l.b16 %v212
    %v920 = vunpack.c.l.b16 %v213
    %v921 = vunpack.c.l.b16 %v214
    %v922 = vunpack.c.l.b16 %v215
    %v923 = vunpack.c.l.b16 %v216
    %v924 = vunpack.c.l.b16 %v217
    %v925 = vunpack.c.l.b16 %v218
    %v926 = vunpack.c.l.b16 %v219
    %v927 = vunpack.c.l.b16 %v220
    %v928 = vunpack.c.l.b16 %v221
    %v929 = vunpack.c.l.b16 %v222
    %v930 = vunpack.c.l.b16 %v223
    %v931 = vunpack.c.l.b16 %v224
    %v932 = vunpack.c.l.b16 %v225
    %v933 = vunpack.c.l.b16 %v226
    %v934 = vunpack.c.l.b16 %v227
    %v935 = vunpack.c.l.b16 %v228
    %v936 = vunpack.c.l.b16 %v229
    %v937 = vunpack.c.l.b16 %v230
    %v938 = vunpack.c.l.b16 %v231
    %v939 = vunpack.c.l.b16 %v232
    %v940 = vunpack.c.l.b16 %v233
    %v941 = vunpack.c.l.b16 %v234
    %v942 = vunpack.c.l.b16 %v235
    %v943 = vunpack.c.l.b16 %v236
    %v944 = vunpack.c.l.b16 %v237
    %v945 = vunpack.c.l.b16 %v238
    %v946 = vunpack.c.l.b16 %v239
    %v947 = vunpack.c.l.b16 %v240
    %v948 = vunpack.c.l.b16 %v241
    %v949 = vunpack.c.l.b16 %v242
    %v950 = vunpack.c.l.b16 %v243
    %v951 = vunpack.c.l.b16 %v244
    %v952 = vunpack.c.l.b16 %v245
    %v953 = vunpack.c.l.b16 %v246
    %v954 = vunpack.c.l.b16 %v247
    %v955 = vunpack.c.l.b16 %v248
    %v956 = vunpack.c.l.b16 %v249
    %v957 = vunpack.c.l.b16 %v250
    %v958 = vunpack.c.l.b16 %v251
    %v959 = vunpack.c.l.b16 %v252
    %v960 = vunpack.c.l.b16 %v253
    %v961 = vunpack.c.l.b16 %v254
    %v962 = vunpack.c.l.b16 %v255
    %v963 = vunpack.c.l.b16 %v256
    %v964 = vunpack.c.l.b16 %v257
    %v965 = vunpack.c.l.b16 %v258
    %v966 = vunpack.c.l.b16 %v259
    %v967 = vunpack.c.l.b16 %v260
    %v968 = vunpack.c.l.b16 %v261
    %v969 = vunpack.c.l.b16 %v262
    %v970 = vunpack.c.l.b16 %v263
    %v971 = vunpack.c.l.b16 %v264
    %v972 = vunpack.c.l.b16 %v265
    %v973 = vunpack.c.l.b16 %v266
    %v974 = vunpack.c.l.b16 %v267
    %v975 = vunpack.c.l.b16 %v268
    %v976 = vunpack.c.l.b16 %v269
    %v977 = vunpack.c.l.b16 %v270
    %v978 = vunpack.c.l.b16 %v271
    %v979 = vunpack.c.l.b16 %v272
    %v980 = vunpack.c.l.b16 %v273
    %v981 = vunpack.c.l.b16 %v274
    %v982 = vunpack.c.l.b16 %v275
    %v983 = vunpack.c.l.b16 %v276
    %v984 = vunpack.c.l.b16 %v277
    %v985 = vunpack.c.l.b16 %v278
    %v986 = vunpack.c.l.b16 %v279
    %v987 = vunpack.c.l.b16 %v280
    %v988 = vunpack.c.l.b16 %v281
    %v989 = vunpack.c.l.b16 %v282
    %v990 = vunpack.c.l.b16 %v283
    %v991 = vunpack.c.l.b16 %v284
    %v992 = vunpack.c.l.b16 %v285
    %v993 = vunpack.c.l.b16 %v286
    %v994 = vunpack.c.l.b16 %v287
    %v995 = vunpack.c.l.b16 %v288
    %v996 = vunpack.c.l.b16 %v289
    %v997 = vunpack.c.l.b16 %v290
    %v998 = vunpack.c.l.b16 %v291
    %v999 = vunpack.c.l.b16 %v292
    %v1000 = vunpack.c.l.b16 %v293
    %v1001 = vunpack.c.l.b16 %v294
    %v1002 = vunpack.c.l.b16 %v295
    %v1003 = vunpack.c.l.b16 %v296
    %v1004 = vunpack.c.l.b16 %v297
    %v1005 = vunpack.c.l.b16 %v298
    %v1006 = vpack.c.b16 %v727, %v726
    %v1007 = vpack.c.b16 %v729, %v728
    %v1008 = vpack.c.b16 %v731, %v730
    %v1009 = vpack.c.b16 %v733, %v732
    %v1010 = vpack.c.b16 %v735, %v734
    %v1011 = vpack.c.b16 %v737, %v736
    %v1012 = vpack.c.b16 %v739, %v738
    %v1013 = vpack.c.b16 %v741, %v740
    %v1014 = vpack.c.b16 %v743, %v742
    %v1015 = vpack.c.b16 %v745, %v744
    %v1016 = vpack.c.b16 %v747, %v746
    %v1017 = vpack.c.b16 %v749, %v748
    %v1018 = vpack.c.b16 %v751, %v750
    %v1019 = vpack.c.b16 %v753, %v752
    %v1020 = vpack.c.b16 %v755, %v754
    %v1021 = vpack.c.b16 %v757, %v756
    %v1022 = vpack.c.b16 %v759, %v758
    %v1023 = vpack.c.b16 %v761, %v760
    %v1024 = vpack.c.b16 %v763, %v762
    %v1025 = vpack.c.b16 %v765, %v764
    %v1026 = vpack.c.b16 %v767, %v766
    %v1027 = vpack.c.b16 %v769, %v768
    %v1028 = vpack.c.b16 %v771, %v770
    %v1029 = vpack.c.b16 %v773, %v772
    %v1030 = vpack.c.b16 %v775, %v774
    %v1031 = vpack.c.b16 %v777, %v776
    %v1032 = vpack.c.b16 %v779, %v778
    %v1033 = vpack.c.b16 %v781, %v780
    %v1034 = vpack.c.b16 %v783, %v782
    %v1035 = vpack.c.b16 %v785, %v784
    %v1036 = vpack.c.b16 %v787, %v786
    %v1037 = vpack.c.b16 %v789, %v788
    %v1038 = vpack.c.b16 %v791, %v790
    %v1039 = vpack.c.b16 %v793, %v792
    %v1040 = vpack.c.b16 %v795, %v794
    %v1041 = vpack.c.b16 %v797, %v796
    %v1042 = vpack.c.b16 %v799, %v798
    %v1043 = vpack.c.b16 %v801, %v800
    %v1044 = vpack.c.b16 %v803, %v802
    %v1045 = vpack.c.b16 %v805, %v804
    %v1046 = vpack.c.b16 %v807, %v806
    %v1047 = vpack.c.b16 %v809, %v808
    %v1048 = vpack.c.b16 %v811, %v810
    %v1049 = vpack.c.b16 %v813, %v812
    %v1050 = vpack.c.b16 %v815, %v814
    %v1051 = vpack.c.b16 %v817, %v816
    %v1052 = vpack.c.b16 %v819, %v818
    %v1053 = vpack.c.b16 %v821, %v820
    %v1054 = vpack.c.b16 %v823, %v822
    %v1055 = vpack.c.b16 %v825, %v824
    %v1056 = vpack.c.b16 %v827, %v826
    %v1057 = vpack.c.b16 %v829, %v828
    %v1058 = vpack.c.b16 %v831, %v830
    %v1059 = vpack.c.b16 %v833, %v832
    %v1060 = vpack.c.b16 %v835, %v834
    %v1061 = vpack.c.b16 %v837, %v836
    %v1062 = vpack.c.b16 %v839, %v838
    %v1063 = vpack.c.b16 %v841, %v840
    %v1064 = vpack.c.b16 %v843, %v842
    %v1065 = vpack.c.b16 %v845, %v844
    %v1066 = vpack.c.b16 %v847, %v846
    %v1067 = vpack.c.b16 %v849, %v848
    %v1068 = vpack.c.b16 %v851, %v850
    %v1069 = vpack.c.b16 %v853, %v852
    %v1070 = vpack.c.b16 %v855, %v854
    %v1071 = vpack.c.b16 %v857, %v856
    %v1072 = vpack.c.b16 %v859, %v858
    %v1073 = vpack.c.b16 %v861, %v860
    %v1074 = vpack.c.b16 %v863, %v862
    %v1075 = vpack.c.b16 %v865, %v864
    %v1076 = vpack.c.b16 %v867, %v866
    %v1077 = vpack.c.b16 %v869, %v868
    %v1078 = vpack.c.b16 %v871, %v870
    %v1079 = vpack.c.b16 %v873, %v872
    %v1080 = vpack.c.b16 %v875, %v874
    %v1081 = vpack.c.b16 %v877, %v876
    %v1082 = vpack.c.b16 %v879, %v878
    %v1083 = vpack.c.b16 %v881, %v880
    %v1084 = vpack.c.b16 %v883, %v882
    %v1085 = vpack.c.b16 %v885, %v884
    %v1086 = vpack.c.b16 %v887, %v886
    %v1087 = vpack.c.b16 %v889, %v888
    %v1088 = vpack.c.b16 %v891, %v890
    %v1089 = vpack.c.b16 %v893, %v892
    %v1090 = vpack.c.b16 %v895, %v894
    %v1091 = vpack.c.b16 %v897, %v896
    %v1092 = vpack.c.b16 %v899, %v898
    %v1093 = vpack.c.b16 %v901, %v900
    %v1094 = vpack.c.b16 %v903, %v902
    %v1095 = vpack.c.b16 %v905, %v904
    %v1096 = vpack.c.b16 %v907, %v906
    %v1097 = vpack.c.b16 %v909, %v908
    %v1098 = vpack.c.b16 %v911, %v910
    %v1099 = vpack.c.b16 %v913, %v912
    %v1100 = vpack.c.b16 %v915, %v914
    %v1101 = vpack.c.b16 %v917, %v916
    %v1102 = vpack.c.b16 %v919, %v918
    %v1103 = vpack.c.b16 %v921, %v920
    %v1104 = vpack.c.b16 %v923, %v922
    %v1105 = vpack.c.b16 %v925, %v924
    %v1106 = vpack.c.b16 %v927, %v926
    %v1107 = vpack.c.b16 %v929, %v928
    %v1108 = vpack.c.b16 %v931, %v930
    %v1109 = vpack.c.b16 %v933, %v932
    %v1110 = vpack.c.b16 %v935, %v934
    %v1111 = vpack.c.b16 %v937, %v936
    %v1112 = vpack.c.b16 %v939, %v938
    %v1113 = vpack.c.b16 %v941, %v940
    %v1114 = vpack.c.b16 %v943, %v942
    %v1115 = vpack.c.b16 %v945, %v944
    %v1116 = vpack.c.b16 %v947, %v946
    %v1117 = vpack.c.b16 %v949, %v948
    %v1118 = vpack.c.b16 %v951, %v950
    %v1119 = vpack.c.b16 %v953, %v952
    %v1120 = vpack.c.b16 %v955, %v954
    %v1121 = vpack.c.b16 %v957, %v956
    %v1122 = vpack.c.b16 %v959, %v958
    %v1123 = vpack.c.b16 %v961, %v960
    %v1124 = vpack.c.b16 %v963, %v962
    %v1125 = vpack.c.b16 %v965, %v964
    %v1126 = vpack.c.b16 %v967, %v966
    %v1127 = vpack.c.b16 %v969, %v968
    %v1128 = vpack.c.b16 %v971, %v970
    %v1129 = vpack.c.b16 %v973, %v972
    %v1130 = vpack.c.b16 %v975, %v974
    %v1131 = vpack.c.b16 %v977, %v976
    %v1132 = vpack.c.b16 %v979, %v978
    %v1133 = vpack.c.b16 %v981, %v980
    %v1134 = vpack.c.b16 %v983, %v982
    %v1135 = vpack.c.b16 %v985, %v984
    %v1136 = vpack.c.b16 %v987, %v986
    %v1137 = vpack.c.b16 %v989, %v988
    %v1138 = vpack.c.b16 %v991, %v990
    %v1139 = vpack.c.b16 %v993, %v992
    %v1140 = vpack.c.b16 %v995, %v994
    %v1141 = vpack.c.b16 %v997, %v996
    %v1142 = vpack.c.b16 %v999, %v998
    %v1143 = vpack.c.b16 %v1001, %v1000
    %v1144 = vpack.c.b16 %v1003, %v1002
    %v1145 = vpack.c.b16 %v1005, %v1004
    %vm1286 = vcmask 523264
    %v1288 = vsel %vm1286, %v428, 0
    %1290 = vmatprep.subr.bf16.mxu0 0
    %1291 = vmatpush1.bf16.msra.mxu0 %v1013
    %1292 = vmatprep.subr.bf16.mxu0 0
    %1293 = vmatpush1.bf16.msra.mxu0 %v1012
    %1294 = vmatprep.subr.bf16.mxu0 0
    %1295 = vmatpush1.bf16.msra.mxu0 %v1011
    %1296 = vmatprep.subr.bf16.mxu0 0
    %1297 = vmatpush1.bf16.msra.mxu0 %v1010
    %1298 = vmatprep.subr.bf16.mxu0 0
    %1299 = vmatpush1.bf16.msra.mxu0 %v1009
    %1300 = vmatprep.subr.bf16.mxu0 0
    %1301 = vmatpush1.bf16.msra.mxu0 %v1008
    %1302 = vmatprep.subr.bf16.mxu0 0
    %1303 = vmatpush1.bf16.msra.mxu0 %v1007
    %1304 = vmatprep.subr.bf16.mxu0 0
    %1305 = vmatpush1.bf16.msra.mxu0 %v1006
    %1306 = vmatprep.subr.bf16.mxu0 0
    %1307 = vmatpush2.bf16.msra.mxu0 %v1021
    %1308 = vmatprep.subr.bf16.mxu0 0
    %1309 = vmatpush2.bf16.msra.mxu0 %v1020
    %1310 = vmatprep.subr.bf16.mxu0 0
    %1311 = vmatpush2.bf16.msra.mxu0 %v1019
    %1312 = vmatprep.subr.bf16.mxu0 0
    %1313 = vmatpush2.bf16.msra.mxu0 %v1018
    %1314 = vmatprep.subr.bf16.mxu0 0
    %1315 = vmatpush2.bf16.msra.mxu0 %v1017
    %1316 = vmatprep.subr.bf16.mxu0 0
    %1317 = vmatpush2.bf16.msra.mxu0 %v1016
    %1318 = vmatprep.subr.bf16.mxu0 0
    %1319 = vmatpush2.bf16.msra.mxu0 %v1015
    %1320 = vmatprep.subr.bf16.mxu0 0
    %1321 = vmatpush2.bf16.msra.mxu0 %v1014
    %1322 = vmatprep.mubr.bf16.mxu0 %v346
    %1323 = vmatmul.mubr.bf16.gmra.mxu0 %v332
    %v1324 = vpop.f32.mrf.mxu0
    %v1325 = vadd.f32 %v304, %v1324
    %v1326 = vpop.f32.mrf.mxu0
    %v1327 = vpop.f32.mrf.mxu0
    %v1328 = vpop.f32.mrf.mxu0
    %1329 = vdwg.mxu0
    %1330 = vmatprep.subr.bf16.mxu0 0
    %1331 = vmatpush1.bf16.msra.mxu0 %v1029
    %1332 = vmatprep.subr.bf16.mxu0 0
    %1333 = vmatpush1.bf16.msra.mxu0 %v1028
    %1334 = vmatprep.subr.bf16.mxu0 0
    %1335 = vmatpush1.bf16.msra.mxu0 %v1027
    %1336 = vmatprep.subr.bf16.mxu0 0
    %1337 = vmatpush1.bf16.msra.mxu0 %v1026
    %1338 = vmatprep.subr.bf16.mxu0 0
    %1339 = vmatpush1.bf16.msra.mxu0 %v1025
    %1340 = vmatprep.subr.bf16.mxu0 0
    %1341 = vmatpush1.bf16.msra.mxu0 %v1024
    %1342 = vmatprep.subr.bf16.mxu0 0
    %1343 = vmatpush1.bf16.msra.mxu0 %v1023
    %1344 = vmatprep.subr.bf16.mxu0 0
    %1345 = vmatpush1.bf16.msra.mxu0 %v1022
    %1346 = vmatprep.subr.bf16.mxu0 0
    %1347 = vmatpush2.bf16.msra.mxu0 %v1037
    %1348 = vmatprep.subr.bf16.mxu0 0
    %1349 = vmatpush2.bf16.msra.mxu0 %v1036
    %1350 = vmatprep.subr.bf16.mxu0 0
    %1351 = vmatpush2.bf16.msra.mxu0 %v1035
    %1352 = vmatprep.subr.bf16.mxu0 0
    %1353 = vmatpush2.bf16.msra.mxu0 %v1034
    %1354 = vmatprep.subr.bf16.mxu0 0
    %1355 = vmatpush2.bf16.msra.mxu0 %v1033
    %1356 = vmatprep.subr.bf16.mxu0 0
    %1357 = vmatpush2.bf16.msra.mxu0 %v1032
    %1358 = vmatprep.subr.bf16.mxu0 0
    %1359 = vmatpush2.bf16.msra.mxu0 %v1031
    %1360 = vmatprep.subr.bf16.mxu0 0
    %1361 = vmatpush2.bf16.msra.mxu0 %v1030
    %1362 = vmatprep.mubr.bf16.mxu0 %v356
    %1363 = vmatmul.mubr.bf16.gmra.mxu0 %v354
    %v1364 = vpop.f32.mrf.mxu0
    %v1365 = vadd.f32 %v1325, %v1364
    %v1366 = vpop.f32.mrf.mxu0
    %v1367 = vpop.f32.mrf.mxu0
    %v1368 = vpop.f32.mrf.mxu0
    %1369 = vdwg.mxu0
    %1370 = vmatprep.subr.bf16.mxu0 0
    %1371 = vmatpush1.bf16.msra.mxu0 %v1045
    %1372 = vmatprep.subr.bf16.mxu0 0
    %1373 = vmatpush1.bf16.msra.mxu0 %v1044
    %1374 = vmatprep.subr.bf16.mxu0 0
    %1375 = vmatpush1.bf16.msra.mxu0 %v1043
    %1376 = vmatprep.subr.bf16.mxu0 0
    %1377 = vmatpush1.bf16.msra.mxu0 %v1042
    %1378 = vmatprep.subr.bf16.mxu0 0
    %1379 = vmatpush1.bf16.msra.mxu0 %v1041
    %1380 = vmatprep.subr.bf16.mxu0 0
    %1381 = vmatpush1.bf16.msra.mxu0 %v1040
    %1382 = vmatprep.subr.bf16.mxu0 0
    %1383 = vmatpush1.bf16.msra.mxu0 %v1039
    %1384 = vmatprep.subr.bf16.mxu0 0
    %1385 = vmatpush1.bf16.msra.mxu0 %v1038
    %1386 = vmatprep.subr.bf16.mxu0 0
    %1387 = vmatpush2.bf16.msra.mxu0 %v1053
    %1388 = vmatprep.subr.bf16.mxu0 0
    %1389 = vmatpush2.bf16.msra.mxu0 %v1052
    %1390 = vmatprep.subr.bf16.mxu0 0
    %1391 = vmatpush2.bf16.msra.mxu0 %v1051
    %1392 = vmatprep.subr.bf16.mxu0 0
    %1393 = vmatpush2.bf16.msra.mxu0 %v1050
    %1394 = vmatprep.subr.bf16.mxu0 0
    %1395 = vmatpush2.bf16.msra.mxu0 %v1049
    %1396 = vmatprep.subr.bf16.mxu0 0
    %1397 = vmatpush2.bf16.msra.mxu0 %v1048
    %1398 = vmatprep.subr.bf16.mxu0 0
    %1399 = vmatpush2.bf16.msra.mxu0 %v1047
    %1400 = vmatprep.subr.bf16.mxu0 0
    %1401 = vmatpush2.bf16.msra.mxu0 %v1046
    %1402 = vmatprep.mubr.bf16.mxu0 %v353
    %1403 = vmatmul.mubr.bf16.gmra.mxu0 %v339
    %v1404 = vpop.f32.mrf.mxu0
    %v1405 = vadd.f32 %v1365, %v1404
    %v1406 = vpop.f32.mrf.mxu0
    %v1407 = vpop.f32.mrf.mxu0
    %v1408 = vpop.f32.mrf.mxu0
    %1409 = vdwg.mxu0
    %1410 = vmatprep.subr.bf16.mxu0 0
    %1411 = vmatpush1.bf16.msra.mxu0 %v1061
    %1412 = vmatprep.subr.bf16.mxu0 0
    %1413 = vmatpush1.bf16.msra.mxu0 %v1060
    %1414 = vmatprep.subr.bf16.mxu0 0
    %1415 = vmatpush1.bf16.msra.mxu0 %v1059
    %1416 = vmatprep.subr.bf16.mxu0 0
    %1417 = vmatpush1.bf16.msra.mxu0 %v1058
    %1418 = vmatprep.subr.bf16.mxu0 0
    %1419 = vmatpush1.bf16.msra.mxu0 %v1057
    %1420 = vmatprep.subr.bf16.mxu0 0
    %1421 = vmatpush1.bf16.msra.mxu0 %v1056
    %1422 = vmatprep.subr.bf16.mxu0 0
    %1423 = vmatpush1.bf16.msra.mxu0 %v1055
    %1424 = vmatprep.subr.bf16.mxu0 0
    %1425 = vmatpush1.bf16.msra.mxu0 %v1054
    %1426 = vmatprep.subr.bf16.mxu0 0
    %1427 = vmatpush2.bf16.msra.mxu0 %v1069
    %1428 = vmatprep.subr.bf16.mxu0 0
    %1429 = vmatpush2.bf16.msra.mxu0 %v1068
    %1430 = vmatprep.subr.bf16.mxu0 0
    %1431 = vmatpush2.bf16.msra.mxu0 %v1067
    %1432 = vmatprep.subr.bf16.mxu0 0
    %1433 = vmatpush2.bf16.msra.mxu0 %v1066
    %1434 = vmatprep.subr.bf16.mxu0 0
    %1435 = vmatpush2.bf16.msra.mxu0 %v1065
    %1436 = vmatprep.subr.bf16.mxu0 0
    %1437 = vmatpush2.bf16.msra.mxu0 %v1064
    %1438 = vmatprep.subr.bf16.mxu0 0
    %1439 = vmatpush2.bf16.msra.mxu0 %v1063
    %1440 = vmatprep.subr.bf16.mxu0 0
    %1441 = vmatpush2.bf16.msra.mxu0 %v1062
    %1442 = vmatprep.mubr.bf16.mxu0 %v357
    %1443 = vmatmul.mubr.bf16.gmra.mxu0 %v355
    %v1444 = vpop.f32.mrf.mxu0
    %v1445 = vadd.f32 %v1405, %v1444
    %v1446 = vpop.f32.mrf.mxu0
    %v1447 = vpop.f32.mrf.mxu0
    %v1448 = vpop.f32.mrf.mxu0
    %1449 = vdwg.mxu0
    %1450 = vmatprep.subr.bf16.mxu0 0
    %1451 = vmatpush1.bf16.msra.mxu0 %v1077
    %1452 = vmatprep.subr.bf16.mxu0 0
    %1453 = vmatpush1.bf16.msra.mxu0 %v1076
    %1454 = vmatprep.subr.bf16.mxu0 0
    %1455 = vmatpush1.bf16.msra.mxu0 %v1075
    %1456 = vmatprep.subr.bf16.mxu0 0
    %1457 = vmatpush1.bf16.msra.mxu0 %v1074
    %1458 = vmatprep.subr.bf16.mxu0 0
    %1459 = vmatpush1.bf16.msra.mxu0 %v1073
    %1460 = vmatprep.subr.bf16.mxu0 0
    %1461 = vmatpush1.bf16.msra.mxu0 %v1072
    %1462 = vmatprep.subr.bf16.mxu0 0
    %1463 = vmatpush1.bf16.msra.mxu0 %v1071
    %1464 = vmatprep.subr.bf16.mxu0 0
    %1465 = vmatpush1.bf16.msra.mxu0 %v1070
    %1466 = vmatprep.subr.bf16.mxu0 0
    %1467 = vmatpush2.bf16.msra.mxu0 %v1085
    %1468 = vmatprep.subr.bf16.mxu0 0
    %1469 = vmatpush2.bf16.msra.mxu0 %v1084
    %1470 = vmatprep.subr.bf16.mxu0 0
    %1471 = vmatpush2.bf16.msra.mxu0 %v1083
    %1472 = vmatprep.subr.bf16.mxu0 0
    %1473 = vmatpush2.bf16.msra.mxu0 %v1082
    %1474 = vmatprep.subr.bf16.mxu0 0
    %1475 = vmatpush2.bf16.msra.mxu0 %v1081
    %1476 = vmatprep.subr.bf16.mxu0 0
    %1477 = vmatpush2.bf16.msra.mxu0 %v1080
    %1478 = vmatprep.subr.bf16.mxu0 0
    %1479 = vmatpush2.bf16.msra.mxu0 %v1079
    %1480 = vmatprep.subr.bf16.mxu0 0
    %1481 = vmatpush2.bf16.msra.mxu0 %v1078
    %1482 = vmatprep.mubr.bf16.mxu0 %v395
    %1483 = vmatmul.mubr.bf16.gmra.mxu0 %v381
    %v1484 = vpop.f32.mrf.mxu0
    %v1485 = vadd.f32 %v1445, %v1484
    %v1486 = vpop.f32.mrf.mxu0
    %v1487 = vpop.f32.mrf.mxu0
    %v1488 = vpop.f32.mrf.mxu0
    %1489 = vdwg.mxu0
    %1490 = vmatprep.subr.bf16.mxu0 0
    %1491 = vmatpush1.bf16.msra.mxu0 %v1093
    %1492 = vmatprep.subr.bf16.mxu0 0
    %1493 = vmatpush1.bf16.msra.mxu0 %v1092
    %1494 = vmatprep.subr.bf16.mxu0 0
    %1495 = vmatpush1.bf16.msra.mxu0 %v1091
    %1496 = vmatprep.subr.bf16.mxu0 0
    %1497 = vmatpush1.bf16.msra.mxu0 %v1090
    %1498 = vmatprep.subr.bf16.mxu0 0
    %1499 = vmatpush1.bf16.msra.mxu0 %v1089
    %1500 = vmatprep.subr.bf16.mxu0 0
    %1501 = vmatpush1.bf16.msra.mxu0 %v1088
    %1502 = vmatprep.subr.bf16.mxu0 0
    %1503 = vmatpush1.bf16.msra.mxu0 %v1087
    %1504 = vmatprep.subr.bf16.mxu0 0
    %1505 = vmatpush1.bf16.msra.mxu0 %v1086
    %1506 = vmatprep.subr.bf16.mxu0 0
    %1507 = vmatpush2.bf16.msra.mxu0 %v1101
    %1508 = vmatprep.subr.bf16.mxu0 0
    %1509 = vmatpush2.bf16.msra.mxu0 %v1100
    %1510 = vmatprep.subr.bf16.mxu0 0
    %1511 = vmatpush2.bf16.msra.mxu0 %v1099
    %1512 = vmatprep.subr.bf16.mxu0 0
    %1513 = vmatpush2.bf16.msra.mxu0 %v1098
    %1514 = vmatprep.subr.bf16.mxu0 0
    %1515 = vmatpush2.bf16.msra.mxu0 %v1097
    %1516 = vmatprep.subr.bf16.mxu0 0
    %1517 = vmatpush2.bf16.msra.mxu0 %v1096
    %1518 = vmatprep.subr.bf16.mxu0 0
    %1519 = vmatpush2.bf16.msra.mxu0 %v1095
    %1520 = vmatprep.subr.bf16.mxu0 0
    %1521 = vmatpush2.bf16.msra.mxu0 %v1094
    %1522 = vmatprep.mubr.bf16.mxu0 %v405
    %1523 = vmatmul.mubr.bf16.gmra.mxu0 %v403
    %v1524 = vpop.f32.mrf.mxu0
    %v1525 = vadd.f32 %v1485, %v1524
    %v1526 = vpop.f32.mrf.mxu0
    %v1527 = vpop.f32.mrf.mxu0
    %v1528 = vpop.f32.mrf.mxu0
    %1529 = vdwg.mxu0
    %1530 = vmatprep.subr.bf16.mxu0 0
    %1531 = vmatpush1.bf16.msra.mxu0 %v1109
    %1532 = vmatprep.subr.bf16.mxu0 0
    %1533 = vmatpush1.bf16.msra.mxu0 %v1108
    %1534 = vmatprep.subr.bf16.mxu0 0
    %1535 = vmatpush1.bf16.msra.mxu0 %v1107
    %1536 = vmatprep.subr.bf16.mxu0 0
    %1537 = vmatpush1.bf16.msra.mxu0 %v1106
    %1538 = vmatprep.subr.bf16.mxu0 0
    %1539 = vmatpush1.bf16.msra.mxu0 %v1105
    %1540 = vmatprep.subr.bf16.mxu0 0
    %1541 = vmatpush1.bf16.msra.mxu0 %v1104
    %1542 = vmatprep.subr.bf16.mxu0 0
    %1543 = vmatpush1.bf16.msra.mxu0 %v1103
    %1544 = vmatprep.subr.bf16.mxu0 0
    %1545 = vmatpush1.bf16.msra.mxu0 %v1102
    %1546 = vmatprep.subr.bf16.mxu0 0
    %1547 = vmatpush2.bf16.msra.mxu0 %v1117
    %1548 = vmatprep.subr.bf16.mxu0 0
    %1549 = vmatpush2.bf16.msra.mxu0 %v1116
    %1550 = vmatprep.subr.bf16.mxu0 0
    %1551 = vmatpush2.bf16.msra.mxu0 %v1115
    %1552 = vmatprep.subr.bf16.mxu0 0
    %1553 = vmatpush2.bf16.msra.mxu0 %v1114
    %1554 = vmatprep.subr.bf16.mxu0 0
    %1555 = vmatpush2.bf16.msra.mxu0 %v1113
    %1556 = vmatprep.subr.bf16.mxu0 0
    %1557 = vmatpush2.bf16.msra.mxu0 %v1112
    %1558 = vmatprep.subr.bf16.mxu0 0
    %1559 = vmatpush2.bf16.msra.mxu0 %v1111
    %1560 = vmatprep.subr.bf16.mxu0 0
    %1561 = vmatpush2.bf16.msra.mxu0 %v1110
    %1562 = vmatprep.mubr.bf16.mxu0 %v402
    %1563 = vmatmul.mubr.bf16.gmra.mxu0 %v388
    %v1564 = vpop.f32.mrf.mxu0
    %v1565 = vadd.f32 %v1525, %v1564
    %v1566 = vpop.f32.mrf.mxu0
    %v1567 = vpop.f32.mrf.mxu0
    %v1568 = vpop.f32.mrf.mxu0
    %1569 = vdwg.mxu0
    %1570 = vmatprep.subr.bf16.mxu0 0
    %1571 = vmatpush1.bf16.msra.mxu0 %v1125
    %1572 = vmatprep.subr.bf16.mxu0 0
    %1573 = vmatpush1.bf16.msra.mxu0 %v1124
    %1574 = vmatprep.subr.bf16.mxu0 0
    %1575 = vmatpush1.bf16.msra.mxu0 %v1123
    %1576 = vmatprep.subr.bf16.mxu0 0
    %1577 = vmatpush1.bf16.msra.mxu0 %v1122
    %1578 = vmatprep.subr.bf16.mxu0 0
    %1579 = vmatpush1.bf16.msra.mxu0 %v1121
    %1580 = vmatprep.subr.bf16.mxu0 0
    %1581 = vmatpush1.bf16.msra.mxu0 %v1120
    %1582 = vmatprep.subr.bf16.mxu0 0
    %1583 = vmatpush1.bf16.msra.mxu0 %v1119
    %1584 = vmatprep.subr.bf16.mxu0 0
    %1585 = vmatpush1.bf16.msra.mxu0 %v1118
    %1586 = vmatprep.subr.bf16.mxu0 0
    %1587 = vmatpush2.bf16.msra.mxu0 %v1133
    %1588 = vmatprep.subr.bf16.mxu0 0
    %1589 = vmatpush2.bf16.msra.mxu0 %v1132
    %1590 = vmatprep.subr.bf16.mxu0 0
    %1591 = vmatpush2.bf16.msra.mxu0 %v1131
    %1592 = vmatprep.subr.bf16.mxu0 0
    %1593 = vmatpush2.bf16.msra.mxu0 %v1130
    %1594 = vmatprep.subr.bf16.mxu0 0
    %1595 = vmatpush2.bf16.msra.mxu0 %v1129
    %1596 = vmatprep.subr.bf16.mxu0 0
    %1597 = vmatpush2.bf16.msra.mxu0 %v1128
    %1598 = vmatprep.subr.bf16.mxu0 0
    %1599 = vmatpush2.bf16.msra.mxu0 %v1127
    %1600 = vmatprep.subr.bf16.mxu0 0
    %1601 = vmatpush2.bf16.msra.mxu0 %v1126
    %1602 = vmatprep.mubr.bf16.mxu0 %v406
    %1603 = vmatmul.mubr.bf16.gmra.mxu0 %v404
    %v1604 = vpop.f32.mrf.mxu0
    %v1605 = vadd.f32 %v1565, %v1604
    %v1606 = vpop.f32.mrf.mxu0
    %v1607 = vpop.f32.mrf.mxu0
    %v1608 = vpop.f32.mrf.mxu0
    %1609 = vdwg.mxu0
    %1610 = vmatprep.subr.bf16.mxu0 0
    %1611 = vmatpush1.bf16.msra.mxu0 %v1141
    %1612 = vmatprep.subr.bf16.mxu0 0
    %1613 = vmatpush1.bf16.msra.mxu0 %v1140
    %1614 = vmatprep.subr.bf16.mxu0 0
    %1615 = vmatpush1.bf16.msra.mxu0 %v1139
    %1616 = vmatprep.subr.bf16.mxu0 0
    %1617 = vmatpush1.bf16.msra.mxu0 %v1138
    %1618 = vmatprep.subr.bf16.mxu0 0
    %1619 = vmatpush1.bf16.msra.mxu0 %v1137
    %1620 = vmatprep.subr.bf16.mxu0 0
    %1621 = vmatpush1.bf16.msra.mxu0 %v1136
    %1622 = vmatprep.subr.bf16.mxu0 0
    %1623 = vmatpush1.bf16.msra.mxu0 %v1135
    %1624 = vmatprep.subr.bf16.mxu0 0
    %1625 = vmatpush1.bf16.msra.mxu0 %v1134
    %1626 = vmatprep.subr.bf16.mxu0 0
    %1627 = vmatpush2.bf16.msra.mxu0 0
    %1628 = vmatprep.subr.bf16.mxu0 0
    %1629 = vmatpush2.bf16.msra.mxu0 0
    %1630 = vmatprep.subr.bf16.mxu0 0
    %1631 = vmatpush2.bf16.msra.mxu0 0
    %1632 = vmatprep.subr.bf16.mxu0 0
    %1633 = vmatpush2.bf16.msra.mxu0 0
    %1634 = vmatprep.subr.bf16.mxu0 0
    %1635 = vmatpush2.bf16.msra.mxu0 %v1145
    %1636 = vmatprep.subr.bf16.mxu0 0
    %1637 = vmatpush2.bf16.msra.mxu0 %v1144
    %1638 = vmatprep.subr.bf16.mxu0 0
    %1639 = vmatpush2.bf16.msra.mxu0 %v1143
    %1640 = vmatprep.subr.bf16.mxu0 0
    %1641 = vmatpush2.bf16.msra.mxu0 %v1142
    %1642 = vmatprep.mubr.bf16.mxu0 %v1288
    %1643 = vmatmul.mubr.bf16.gmra.mxu0 %v421
    %v1644 = vpop.f32.mrf.mxu0
    %v1645 = vadd.f32 %v1605, %v1644
    %v1646 = vpop.f32.mrf.mxu0
    %v1647 = vpop.f32.mrf.mxu0
    %v1648 = vpop.f32.mrf.mxu0
    %1649 = vdwg.mxu0
    %1650 = vst [vmem:[#allocation2] sm:$0x3] %v1645
    // Predicated region
    $region14: #{encoder_forward.7} parent=1 // pred_check
      _
    $region15: #{encoder_forward.7} parent=1 // pred_check_branch
      %1652 = sbr.rel (0) target = $region17
    $region16: #{encoder_forward.7} parent=1 // pred_region
      %s1654 = ssub.s32 32, 32
      %1655 = vsyncadd [#allocation3], %s1654
      %s1657 = sshll.u32 [#allocation2], 4
      %s1658 = int_to_ptr.vmem [resolvable:$true] %s1657
      %1660 = dma.vmem_to_hbm [thread:$0]  %s1658, 32, %s3, [#allocation3]
    $region17: #{encoder_forward.7} parent=1 // pred_fallthru
      _
    // Predicated region
    $region18: #{encoder_forward.7} parent=1 // pred_check
      _
    $region19: #{encoder_forward.7} parent=1 // pred_check_branch
      %1662 = sbr.rel (0) target = $region21
    $region20: #{encoder_forward.7} parent=1 // pred_region
      %1663 = dma.done [#allocation3], 32
    $region21: #{encoder_forward.7} parent=1 // pred_fallthru
      _
    %1664 = vsyncpa [#allocation3], 1

</llo_original>
